<compile_context>
chip_gen: v7x
topology: tpu7x:2x2x1
jax: 0.10.0
libtpu: 0.0.40
codegen_flags: <defaults>
</compile_context>

<pallas_src>
import functools

import jax
import jax.numpy as jnp
from jax.experimental import pallas as pl
from jax.experimental.pallas import tpu as pltpu

IN_DIM = 288 * 3          # 864
H1 = 288
H2 = 96
EPS = 1e-5

# Lane-padded (multiple-of-128) widths used inside the kernel.
PAD_H1 = 384              # 288 -> 384
PAD_H2 = 128              # 96  -> 128
PAD_IN = 896              # 864 -> 896 (decoder output only; input x stays 864)

PADDED_LAYER_DIMS = [(IN_DIM, PAD_H1), (PAD_H1, PAD_H2),
                     (PAD_H2, PAD_H1), (PAD_H1, PAD_IN)]
LAYER_DIMS = [(IN_DIM, H1), (H1, H2), (H2, H1), (H1, IN_DIM)]

VMEM_LIMIT_BYTES = 48 * 1024 * 1024   # below the 64 MiB physical VMEM of v7x


def _round_up(x, m):
    return ((x + m - 1) // m) * m


def _linear_layernorm(h, w_ref, vec_ref, true_dim):
    """y = h @ W + b, then LayerNorm(y) * gamma + beta.

    h/W are bf16 (MXU), accumulation + LN statistics are f32, result returned
    in bf16.  Padded lanes (index >= true_dim) are exactly 0 on input and
    output (W columns, b, gamma, beta are zero there) and are masked out of
    the variance, so the statistics match an unpadded LayerNorm exactly.
    """
    w = w_ref[...]                      # bf16 [din(_pad), dout_pad]
    b = vec_ref[0:1, :]                 # f32  [1, dout_pad]
    gamma = vec_ref[1:2, :]
    beta = vec_ref[2:3, :]

    y = jnp.dot(h, w, preferred_element_type=jnp.float32) + b
    dout_pad = y.shape[-1]
    inv_d = 1.0 / true_dim

    mu = jnp.sum(y, axis=-1, keepdims=True) * inv_d      # padded lanes are 0
    diff = y - mu
    if dout_pad != true_dim:
        lane = jax.lax.broadcasted_iota(jnp.int32, (1, dout_pad), 1)
        diff = jnp.where(lane < true_dim, diff, 0.0)
    # Two-pass biased variance (PyTorch LayerNorm); no cancellation issues.
    var = jnp.sum(diff * diff, axis=-1, keepdims=True) * inv_d
    inv = jax.lax.rsqrt(var + EPS)
    out = (y - mu) * inv * gamma + beta                  # padded lanes -> 0
    return out.astype(jnp.bfloat16)


def autocoder_kernel(
    x_ref,
    w1_ref, v1_ref, w2_ref, v2_ref, w3_ref, v3_ref, w4_ref, v4_ref,
    ctx_ref, out_ref,
):
    h = x_ref[...].astype(jnp.bfloat16)   # accepts f32 or bf16 input tiles

    # Encoder: Linear(864->288)+LN, Linear(288->96)+LN   (padded to 384 / 128)
    e1 = _linear_layernorm(h, w1_ref, v1_ref, H1)
    e2 = _linear_layernorm(e1, w2_ref, v2_ref, H2)
    ctx_ref[...] = e2.astype(ctx_ref.dtype)

    # Decoder: Linear(96->288)+LN, Linear(288->864)+LN   (padded to 384 / 896)
    d1 = _linear_layernorm(e2, w3_ref, v3_ref, H1)
    d2 = _linear_layernorm(d1, w4_ref, v4_ref, IN_DIM)
    out_ref[...] = d2.astype(out_ref.dtype)


def pack_params(params):
    """Pre-pack PyTorch-style params into kernel layout (call once).

    Each layer (W [in,out] f32, b, gamma, beta) becomes:
      * W zero-padded to the lane-aligned (din_pad, dout_pad), cast to bf16
      * a (3, dout_pad) f32 array [bias; gamma; beta], zero-padded.
    Zero padding keeps the padded lanes exactly 0 through every layer.
    """
    packed = []
    for (w, b, g, be), (din_p, dout_p) in zip(params, PADDED_LAYER_DIMS):
        din, dout = w.shape
        wp = jnp.zeros((din_p, dout_p), jnp.bfloat16)
        wp = wp.at[:din, :dout].set(w.astype(jnp.bfloat16))
        vec = jnp.zeros((3, dout_p), jnp.float32)
        vec = vec.at[0, :dout].set(b)
        vec = vec.at[1, :dout].set(g)
        vec = vec.at[2, :dout].set(be)
        packed += [wp, vec]
    return tuple(packed)


@functools.partial(jax.jit, static_argnames=("tb", "use_buffered"))
def _forward_impl(x, packed, *, tb, use_buffered):
    B, F = x.shape
    assert F == IN_DIM, f"expected {IN_DIM} input features, got {F}"

    # Batch tile: as large as the budget allows (amortizes the ~0.35us/step
    # grid overhead), but keep >= 2 balanced tiles when B allows it so both
    # v7x TensorCores get work through the "parallel" batch axis.
    Bp8 = _round_up(B, 8)
    TB = min(tb, Bp8)
    if B >= 16 and Bp8 // TB < 2:
        TB = _round_up((Bp8 + 1) // 2, 8)
    Bp = _round_up(B, TB)
    if Bp != B:
        x = jnp.pad(x, ((0, Bp - B), (0, 0)))
    num_tiles = Bp // TB

    # Weights / LN vectors are grid-invariant: constant index_map -> DMA'd
    # once and VMEM-resident. pl.Buffered(1) drops their second pipeline
    # buffer (VMEM headroom, mostly for v5e's small scoped default).
    def const_spec(shape):
        if use_buffered:
            return pl.BlockSpec(shape, lambda i: (0, 0),
                                pipeline_mode=pl.Buffered(1))
        return pl.BlockSpec(shape, lambda i: (0, 0))

    in_specs = [pl.BlockSpec((TB, IN_DIM), lambda i: (i, 0))]
    in_specs += [const_spec(p.shape) for p in packed]

    flops = 2 * Bp * sum(di * do for di, do in PADDED_LAYER_DIMS)
    bytes_accessed = (
        sum(di * do * 2 + 3 * do * 4 for di, do in PADDED_LAYER_DIMS)  # params
        + Bp * IN_DIM * x.dtype.itemsize                               # x in
        + Bp * (PAD_IN + PAD_H2) * 2                                   # bf16 outs
    )
    cost = pl.CostEstimate(flops=flops, transcendentals=4 * Bp,
                           bytes_accessed=bytes_accessed)

    ctx_p, rec_p = pl.pallas_call(
        autocoder_kernel,
        out_shape=(
            jax.ShapeDtypeStruct((Bp, PAD_H2), jnp.bfloat16),
            jax.ShapeDtypeStruct((Bp, PAD_IN), jnp.bfloat16),
        ),
        grid=(num_tiles,),
        in_specs=in_specs,
        out_specs=(
            pl.BlockSpec((TB, PAD_H2), lambda i: (i, 0)),
            pl.BlockSpec((TB, PAD_IN), lambda i: (i, 0)),
        ),
        compiler_params=pltpu.CompilerParams(
            dimension_semantics=("parallel",),
            vmem_limit_bytes=VMEM_LIMIT_BYTES,
        ),
        cost_estimate=cost,
    )(x, *packed)

    # Slice away batch + lane padding.
    # TODO(synk): consumers that can accept the lane-padded bf16 outputs
    # directly should take ctx_p/rec_p as-is and skip this extra copy.
    return ctx_p[:B, :H2], rec_p[:B, :IN_DIM]


def autocoder_forward(x, packed_params, *, tb=512):
    """x: [B, 864] float32 or bfloat16 (pass bf16 straight from the producer
    when possible — the kernel casts internally, no wrapper cast is added).

    Returns (context [B, 96], reconstruction [B, 864]) in bfloat16.
    tb: batch tile; ~512 is a good default on v5e, ~1024 on v6e/v7x.
    """
    packed_params = tuple(packed_params)
    try:
        return _forward_impl(x, packed_params, tb=tb, use_buffered=True)
    except Exception:
        # Fallback for jax builds without BlockSpec pipeline_mode=pl.Buffered.
        return _forward_impl(x, packed_params, tb=tb, use_buffered=False)


def init_params(key):
    """PyTorch-style init: Linear W,b ~ U(-1/sqrt(fan_in), +1/sqrt(fan_in)),
    LayerNorm gamma=1, beta=0.  Weights stored as [in, out], float32."""
    params = []
    for (din, dout) in LAYER_DIMS:
        key, kw, kb = jax.random.split(key, 3)
        bound = 1.0 / jnp.sqrt(float(din))
        w = jax.random.uniform(kw, (din, dout), jnp.float32, -bound, bound)
        b = jax.random.uniform(kb, (dout,), jnp.float32, -bound, bound)
        g = jnp.ones((dout,), jnp.float32)
        be = jnp.zeros((dout,), jnp.float32)
        params.append((w, b, g, be))
    return params


def reference_forward(x, params):
    """Pure-JAX reference using the same numeric recipe as the kernel
    (bf16 weights/activations for the matmuls, f32 accumulation, f32 LN,
    bf16 layer outputs).  Note: a pure-f32 PyTorch model differs at ~1e-2."""
    h = x.astype(jnp.bfloat16)
    outs = []
    for (w, b, g, be) in params:
        y = jnp.dot(h, w.astype(jnp.bfloat16),
                    preferred_element_type=jnp.float32) + b
        mu = jnp.mean(y, axis=-1, keepdims=True)
        var = jnp.mean((y - mu) ** 2, axis=-1, keepdims=True)
        h = ((y - mu) * jax.lax.rsqrt(var + EPS) * g + be).astype(jnp.bfloat16)
        outs.append(h)
    return outs[1], outs[3]


if __name__ == "__main__":
    key = jax.random.PRNGKey(0)
    key, kx = jax.random.split(key)
    B = 8
    x = jax.random.normal(kx, (B, IN_DIM), jnp.float32)

    params = init_params(key)
    packed = pack_params(params)

    ctx, rec = autocoder_forward(x, packed)
    jax.block_until_ready((ctx, rec))

    ctx_ref, rec_ref = reference_forward(x, params)
    assert ctx.shape == (B, H2) and rec.shape == (B, IN_DIM)
    ctx32 = ctx.astype(jnp.float32)
    rec32 = rec.astype(jnp.float32)
    ctx_ref32 = ctx_ref.astype(jnp.float32)
    rec_ref32 = rec_ref.astype(jnp.float32)
    assert jnp.allclose(ctx32, ctx_ref32, atol=3e-2, rtol=3e-2), (
        float(jnp.max(jnp.abs(ctx32 - ctx_ref32))))
    assert jnp.allclose(rec32, rec_ref32, atol=3e-2, rtol=3e-2), (
        float(jnp.max(jnp.abs(rec32 - rec_ref32))))

    print("KERNEL_OK")
</pallas_src>

<mosaic_0001>
module attributes {stable_mosaic.version = 11 : i64} {
  func.func @autocoder_kernel(%arg0: i32, %arg1: memref<8x864xf32, #tpu.memory_space<vmem>>, %arg2: memref<864x384xbf16, #tpu.memory_space<vmem>>, %arg3: memref<3x384xf32, #tpu.memory_space<vmem>>, %arg4: memref<384x128xbf16, #tpu.memory_space<vmem>>, %arg5: memref<3x128xf32, #tpu.memory_space<vmem>>, %arg6: memref<128x384xbf16, #tpu.memory_space<vmem>>, %arg7: memref<3x384xf32, #tpu.memory_space<vmem>>, %arg8: memref<384x896xbf16, #tpu.memory_space<vmem>>, %arg9: memref<3x896xf32, #tpu.memory_space<vmem>>, %arg10: memref<8x128xbf16, #tpu.memory_space<vmem>>, %arg11: memref<8x896xbf16, #tpu.memory_space<vmem>>) attributes {dimension_semantics = [#tpu.dimension_semantics<parallel>], iteration_bounds = array<i64: 1>, scalar_prefetch = 0 : i64, scratch_operands = 0 : i64, tpu.core_type = #tpu.core_type<tc>, window_params = [{transform_indices = @transform_0, window_bounds = array<i64: 8, 864>}, {pipeline_mode = #tpu.pipeline_mode<synchronous>, transform_indices = @transform_1, window_bounds = array<i64: 864, 384>}, {pipeline_mode = #tpu.pipeline_mode<synchronous>, transform_indices = @transform_2, window_bounds = array<i64: 3, 384>}, {pipeline_mode = #tpu.pipeline_mode<synchronous>, transform_indices = @transform_3, window_bounds = array<i64: 384, 128>}, {pipeline_mode = #tpu.pipeline_mode<synchronous>, transform_indices = @transform_4, window_bounds = array<i64: 3, 128>}, {pipeline_mode = #tpu.pipeline_mode<synchronous>, transform_indices = @transform_5, window_bounds = array<i64: 128, 384>}, {pipeline_mode = #tpu.pipeline_mode<synchronous>, transform_indices = @transform_6, window_bounds = array<i64: 3, 384>}, {pipeline_mode = #tpu.pipeline_mode<synchronous>, transform_indices = @transform_7, window_bounds = array<i64: 384, 896>}, {pipeline_mode = #tpu.pipeline_mode<synchronous>, transform_indices = @transform_8, window_bounds = array<i64: 3, 896>}, {transform_indices = @transform_9, window_bounds = array<i64: 8, 128>}, {transform_indices = @transform_10, window_bounds = array<i64: 8, 896>}]} {
    %c0 = arith.constant 0 : index
    %c0_0 = arith.constant 0 : index
    %0 = vector.load %arg1[%c0, %c0_0] : memref<8x864xf32, #tpu.memory_space<vmem>>, vector<8x864xf32>
    %1 = arith.truncf %0 : vector<8x864xf32> to vector<8x864xbf16>
    %c0_1 = arith.constant 0 : index
    %c0_2 = arith.constant 0 : index
    %2 = vector.load %arg2[%c0_1, %c0_2] : memref<864x384xbf16, #tpu.memory_space<vmem>>, vector<864x384xbf16>
    %c0_3 = arith.constant 0 : index
    %c0_4 = arith.constant 0 : index
    %3 = vector.load %arg3[%c0_3, %c0_4] : memref<3x384xf32, #tpu.memory_space<vmem>>, vector<1x384xf32>
    %c1 = arith.constant 1 : index
    %c0_5 = arith.constant 0 : index
    %4 = vector.load %arg3[%c1, %c0_5] : memref<3x384xf32, #tpu.memory_space<vmem>>, vector<1x384xf32>
    %c2 = arith.constant 2 : index
    %c0_6 = arith.constant 0 : index
    %5 = vector.load %arg3[%c2, %c0_6] : memref<3x384xf32, #tpu.memory_space<vmem>>, vector<1x384xf32>
    %cst = arith.constant dense<0.000000e+00> : vector<8x384xf32>
    %6 = tpu.matmul %1, %2, %cst {dimension_numbers = #tpu.dot_dimension_numbers<[1], [0], [0], [1], [0, 0, 1, 1], [], []>} : vector<8x864xbf16>, vector<864x384xbf16>, vector<8x384xf32> -> vector<8x384xf32>
    %7 = vector.broadcast %3 : vector<1x384xf32> to vector<8x384xf32>
    %8 = arith.addf %6, %7 : vector<8x384xf32>
    %cst_7 = arith.constant dense<0.000000e+00> : vector<8xf32>
    %9 = vector.multi_reduction <add>, %8, %cst_7 [1] : vector<8x384xf32> to vector<8xf32>
    %10 = vector.shape_cast %9 : vector<8xf32> to vector<8x1xf32>
    %cst_8 = arith.constant 0.00347222225 : f32
    %11 = vector.broadcast %cst_8 : f32 to vector<8x1xf32>
    %12 = arith.mulf %10, %11 : vector<8x1xf32>
    %13 = vector.broadcast %12 : vector<8x1xf32> to vector<8x384xf32>
    %14 = arith.subf %8, %13 : vector<8x384xf32>
    %15 = tpu.iota {dimensions = array<i32: 1>} : vector<1x384xi32>
    %c288_i32 = arith.constant 288 : i32
    %16 = vector.broadcast %c288_i32 : i32 to vector<1x384xi32>
    %17 = arith.cmpi slt, %15, %16 : vector<1x384xi32>
    %cst_9 = arith.constant 0.000000e+00 : f32
    %18 = vector.shape_cast %17 : vector<1x384xi1> to vector<1x384xi1>
    %19 = vector.broadcast %18 : vector<1x384xi1> to vector<8x384xi1>
    %20 = vector.broadcast %cst_9 : f32 to vector<8x384xf32>
    %21 = arith.select %19, %14, %20 : vector<8x384xi1>, vector<8x384xf32>
    %22 = arith.mulf %21, %21 : vector<8x384xf32>
    %cst_10 = arith.constant dense<0.000000e+00> : vector<8xf32>
    %23 = vector.multi_reduction <add>, %22, %cst_10 [1] : vector<8x384xf32> to vector<8xf32>
    %24 = vector.shape_cast %23 : vector<8xf32> to vector<8x1xf32>
    %cst_11 = arith.constant 0.00347222225 : f32
    %25 = vector.broadcast %cst_11 : f32 to vector<8x1xf32>
    %26 = arith.mulf %24, %25 : vector<8x1xf32>
    %cst_12 = arith.constant 9.99999974E-6 : f32
    %27 = vector.broadcast %cst_12 : f32 to vector<8x1xf32>
    %28 = arith.addf %26, %27 : vector<8x1xf32>
    %29 = math.rsqrt %28 : vector<8x1xf32>
    %30 = vector.broadcast %12 : vector<8x1xf32> to vector<8x384xf32>
    %31 = arith.subf %8, %30 : vector<8x384xf32>
    %32 = vector.broadcast %29 : vector<8x1xf32> to vector<8x384xf32>
    %33 = arith.mulf %31, %32 : vector<8x384xf32>
    %34 = vector.broadcast %4 : vector<1x384xf32> to vector<8x384xf32>
    %35 = arith.mulf %33, %34 : vector<8x384xf32>
    %36 = vector.broadcast %5 : vector<1x384xf32> to vector<8x384xf32>
    %37 = arith.addf %35, %36 : vector<8x384xf32>
    %38 = arith.truncf %37 : vector<8x384xf32> to vector<8x384xbf16>
    %c0_13 = arith.constant 0 : index
    %c0_14 = arith.constant 0 : index
    %39 = vector.load %arg4[%c0_13, %c0_14] : memref<384x128xbf16, #tpu.memory_space<vmem>>, vector<384x128xbf16>
    %c0_15 = arith.constant 0 : index
    %c0_16 = arith.constant 0 : index
    %40 = vector.load %arg5[%c0_15, %c0_16] : memref<3x128xf32, #tpu.memory_space<vmem>>, vector<1x128xf32>
    %c1_17 = arith.constant 1 : index
    %c0_18 = arith.constant 0 : index
    %41 = vector.load %arg5[%c1_17, %c0_18] : memref<3x128xf32, #tpu.memory_space<vmem>>, vector<1x128xf32>
    %c2_19 = arith.constant 2 : index
    %c0_20 = arith.constant 0 : index
    %42 = vector.load %arg5[%c2_19, %c0_20] : memref<3x128xf32, #tpu.memory_space<vmem>>, vector<1x128xf32>
    %cst_21 = arith.constant dense<0.000000e+00> : vector<8x128xf32>
    %43 = tpu.matmul %38, %39, %cst_21 {dimension_numbers = #tpu.dot_dimension_numbers<[1], [0], [0], [1], [0, 0, 1, 1], [], []>} : vector<8x384xbf16>, vector<384x128xbf16>, vector<8x128xf32> -> vector<8x128xf32>
    %44 = vector.broadcast %40 : vector<1x128xf32> to vector<8x128xf32>
    %45 = arith.addf %43, %44 : vector<8x128xf32>
    %cst_22 = arith.constant dense<0.000000e+00> : vector<8xf32>
    %46 = vector.multi_reduction <add>, %45, %cst_22 [1] : vector<8x128xf32> to vector<8xf32>
    %47 = vector.shape_cast %46 : vector<8xf32> to vector<8x1xf32>
    %cst_23 = arith.constant 0.010416667 : f32
    %48 = vector.broadcast %cst_23 : f32 to vector<8x1xf32>
    %49 = arith.mulf %47, %48 : vector<8x1xf32>
    %50 = vector.broadcast %49 : vector<8x1xf32> to vector<8x128xf32>
    %51 = arith.subf %45, %50 : vector<8x128xf32>
    %52 = tpu.iota {dimensions = array<i32: 1>} : vector<1x128xi32>
    %c96_i32 = arith.constant 96 : i32
    %53 = vector.broadcast %c96_i32 : i32 to vector<1x128xi32>
    %54 = arith.cmpi slt, %52, %53 : vector<1x128xi32>
    %cst_24 = arith.constant 0.000000e+00 : f32
    %55 = vector.shape_cast %54 : vector<1x128xi1> to vector<1x128xi1>
    %56 = vector.broadcast %55 : vector<1x128xi1> to vector<8x128xi1>
    %57 = vector.broadcast %cst_24 : f32 to vector<8x128xf32>
    %58 = arith.select %56, %51, %57 : vector<8x128xi1>, vector<8x128xf32>
    %59 = arith.mulf %58, %58 : vector<8x128xf32>
    %cst_25 = arith.constant dense<0.000000e+00> : vector<8xf32>
    %60 = vector.multi_reduction <add>, %59, %cst_25 [1] : vector<8x128xf32> to vector<8xf32>
    %61 = vector.shape_cast %60 : vector<8xf32> to vector<8x1xf32>
    %cst_26 = arith.constant 0.010416667 : f32
    %62 = vector.broadcast %cst_26 : f32 to vector<8x1xf32>
    %63 = arith.mulf %61, %62 : vector<8x1xf32>
    %cst_27 = arith.constant 9.99999974E-6 : f32
    %64 = vector.broadcast %cst_27 : f32 to vector<8x1xf32>
    %65 = arith.addf %63, %64 : vector<8x1xf32>
    %66 = math.rsqrt %65 : vector<8x1xf32>
    %67 = vector.broadcast %49 : vector<8x1xf32> to vector<8x128xf32>
    %68 = arith.subf %45, %67 : vector<8x128xf32>
    %69 = vector.broadcast %66 : vector<8x1xf32> to vector<8x128xf32>
    %70 = arith.mulf %68, %69 : vector<8x128xf32>
    %71 = vector.broadcast %41 : vector<1x128xf32> to vector<8x128xf32>
    %72 = arith.mulf %70, %71 : vector<8x128xf32>
    %73 = vector.broadcast %42 : vector<1x128xf32> to vector<8x128xf32>
    %74 = arith.addf %72, %73 : vector<8x128xf32>
    %75 = arith.truncf %74 : vector<8x128xf32> to vector<8x128xbf16>
    %c0_28 = arith.constant 0 : index
    %c0_29 = arith.constant 0 : index
    %76 = vector.load %arg10[%c0_28, %c0_29] : memref<8x128xbf16, #tpu.memory_space<vmem>>, vector<8x128xbf16>
    tpu.vector_store %arg10[%c0_28, %c0_29], %75 {strides = array<i32>} : memref<8x128xbf16, #tpu.memory_space<vmem>>, vector<8x128xbf16>,
    %c0_30 = arith.constant 0 : index
    %c0_31 = arith.constant 0 : index
    %77 = vector.load %arg6[%c0_30, %c0_31] : memref<128x384xbf16, #tpu.memory_space<vmem>>, vector<128x384xbf16>
    %c0_32 = arith.constant 0 : index
    %c0_33 = arith.constant 0 : index
    %78 = vector.load %arg7[%c0_32, %c0_33] : memref<3x384xf32, #tpu.memory_space<vmem>>, vector<1x384xf32>
    %c1_34 = arith.constant 1 : index
    %c0_35 = arith.constant 0 : index
    %79 = vector.load %arg7[%c1_34, %c0_35] : memref<3x384xf32, #tpu.memory_space<vmem>>, vector<1x384xf32>
    %c2_36 = arith.constant 2 : index
    %c0_37 = arith.constant 0 : index
    %80 = vector.load %arg7[%c2_36, %c0_37] : memref<3x384xf32, #tpu.memory_space<vmem>>, vector<1x384xf32>
    %cst_38 = arith.constant dense<0.000000e+00> : vector<8x384xf32>
    %81 = tpu.matmul %75, %77, %cst_38 {dimension_numbers = #tpu.dot_dimension_numbers<[1], [0], [0], [1], [0, 0, 1, 1], [], []>} : vector<8x128xbf16>, vector<128x384xbf16>, vector<8x384xf32> -> vector<8x384xf32>
    %82 = vector.broadcast %78 : vector<1x384xf32> to vector<8x384xf32>
    %83 = arith.addf %81, %82 : vector<8x384xf32>
    %cst_39 = arith.constant dense<0.000000e+00> : vector<8xf32>
    %84 = vector.multi_reduction <add>, %83, %cst_39 [1] : vector<8x384xf32> to vector<8xf32>
    %85 = vector.shape_cast %84 : vector<8xf32> to vector<8x1xf32>
    %cst_40 = arith.constant 0.00347222225 : f32
    %86 = vector.broadcast %cst_40 : f32 to vector<8x1xf32>
    %87 = arith.mulf %85, %86 : vector<8x1xf32>
    %88 = vector.broadcast %87 : vector<8x1xf32> to vector<8x384xf32>
    %89 = arith.subf %83, %88 : vector<8x384xf32>
    %90 = tpu.iota {dimensions = array<i32: 1>} : vector<1x384xi32>
    %c288_i32_41 = arith.constant 288 : i32
    %91 = vector.broadcast %c288_i32_41 : i32 to vector<1x384xi32>
    %92 = arith.cmpi slt, %90, %91 : vector<1x384xi32>
    %cst_42 = arith.constant 0.000000e+00 : f32
    %93 = vector.shape_cast %92 : vector<1x384xi1> to vector<1x384xi1>
    %94 = vector.broadcast %93 : vector<1x384xi1> to vector<8x384xi1>
    %95 = vector.broadcast %cst_42 : f32 to vector<8x384xf32>
    %96 = arith.select %94, %89, %95 : vector<8x384xi1>, vector<8x384xf32>
    %97 = arith.mulf %96, %96 : vector<8x384xf32>
    %cst_43 = arith.constant dense<0.000000e+00> : vector<8xf32>
    %98 = vector.multi_reduction <add>, %97, %cst_43 [1] : vector<8x384xf32> to vector<8xf32>
    %99 = vector.shape_cast %98 : vector<8xf32> to vector<8x1xf32>
    %cst_44 = arith.constant 0.00347222225 : f32
    %100 = vector.broadcast %cst_44 : f32 to vector<8x1xf32>
    %101 = arith.mulf %99, %100 : vector<8x1xf32>
    %cst_45 = arith.constant 9.99999974E-6 : f32
    %102 = vector.broadcast %cst_45 : f32 to vector<8x1xf32>
    %103 = arith.addf %101, %102 : vector<8x1xf32>
    %104 = math.rsqrt %103 : vector<8x1xf32>
    %105 = vector.broadcast %87 : vector<8x1xf32> to vector<8x384xf32>
    %106 = arith.subf %83, %105 : vector<8x384xf32>
    %107 = vector.broadcast %104 : vector<8x1xf32> to vector<8x384xf32>
    %108 = arith.mulf %106, %107 : vector<8x384xf32>
    %109 = vector.broadcast %79 : vector<1x384xf32> to vector<8x384xf32>
    %110 = arith.mulf %108, %109 : vector<8x384xf32>
    %111 = vector.broadcast %80 : vector<1x384xf32> to vector<8x384xf32>
    %112 = arith.addf %110, %111 : vector<8x384xf32>
    %113 = arith.truncf %112 : vector<8x384xf32> to vector<8x384xbf16>
    %c0_46 = arith.constant 0 : index
    %c0_47 = arith.constant 0 : index
    %114 = vector.load %arg8[%c0_46, %c0_47] : memref<384x896xbf16, #tpu.memory_space<vmem>>, vector<384x896xbf16>
    %c0_48 = arith.constant 0 : index
    %c0_49 = arith.constant 0 : index
    %115 = vector.load %arg9[%c0_48, %c0_49] : memref<3x896xf32, #tpu.memory_space<vmem>>, vector<1x896xf32>
    %c1_50 = arith.constant 1 : index
    %c0_51 = arith.constant 0 : index
    %116 = vector.load %arg9[%c1_50, %c0_51] : memref<3x896xf32, #tpu.memory_space<vmem>>, vector<1x896xf32>
    %c2_52 = arith.constant 2 : index
    %c0_53 = arith.constant 0 : index
    %117 = vector.load %arg9[%c2_52, %c0_53] : memref<3x896xf32, #tpu.memory_space<vmem>>, vector<1x896xf32>
    %cst_54 = arith.constant dense<0.000000e+00> : vector<8x896xf32>
    %118 = tpu.matmul %113, %114, %cst_54 {dimension_numbers = #tpu.dot_dimension_numbers<[1], [0], [0], [1], [0, 0, 1, 1], [], []>} : vector<8x384xbf16>, vector<384x896xbf16>, vector<8x896xf32> -> vector<8x896xf32>
    %119 = vector.broadcast %115 : vector<1x896xf32> to vector<8x896xf32>
    %120 = arith.addf %118, %119 : vector<8x896xf32>
    %cst_55 = arith.constant dense<0.000000e+00> : vector<8xf32>
    %121 = vector.multi_reduction <add>, %120, %cst_55 [1] : vector<8x896xf32> to vector<8xf32>
    %122 = vector.shape_cast %121 : vector<8xf32> to vector<8x1xf32>
    %cst_56 = arith.constant 0.00115740742 : f32
    %123 = vector.broadcast %cst_56 : f32 to vector<8x1xf32>
    %124 = arith.mulf %122, %123 : vector<8x1xf32>
    %125 = vector.broadcast %124 : vector<8x1xf32> to vector<8x896xf32>
    %126 = arith.subf %120, %125 : vector<8x896xf32>
    %127 = tpu.iota {dimensions = array<i32: 1>} : vector<1x896xi32>
    %c864_i32 = arith.constant 864 : i32
    %128 = vector.broadcast %c864_i32 : i32 to vector<1x896xi32>
    %129 = arith.cmpi slt, %127, %128 : vector<1x896xi32>
    %cst_57 = arith.constant 0.000000e+00 : f32
    %130 = vector.shape_cast %129 : vector<1x896xi1> to vector<1x896xi1>
    %131 = vector.broadcast %130 : vector<1x896xi1> to vector<8x896xi1>
    %132 = vector.broadcast %cst_57 : f32 to vector<8x896xf32>
    %133 = arith.select %131, %126, %132 : vector<8x896xi1>, vector<8x896xf32>
    %134 = arith.mulf %133, %133 : vector<8x896xf32>
    %cst_58 = arith.constant dense<0.000000e+00> : vector<8xf32>
    %135 = vector.multi_reduction <add>, %134, %cst_58 [1] : vector<8x896xf32> to vector<8xf32>
    %136 = vector.shape_cast %135 : vector<8xf32> to vector<8x1xf32>
    %cst_59 = arith.constant 0.00115740742 : f32
    %137 = vector.broadcast %cst_59 : f32 to vector<8x1xf32>
    %138 = arith.mulf %136, %137 : vector<8x1xf32>
    %cst_60 = arith.constant 9.99999974E-6 : f32
    %139 = vector.broadcast %cst_60 : f32 to vector<8x1xf32>
    %140 = arith.addf %138, %139 : vector<8x1xf32>
    %141 = math.rsqrt %140 : vector<8x1xf32>
    %142 = vector.broadcast %124 : vector<8x1xf32> to vector<8x896xf32>
    %143 = arith.subf %120, %142 : vector<8x896xf32>
    %144 = vector.broadcast %141 : vector<8x1xf32> to vector<8x896xf32>
    %145 = arith.mulf %143, %144 : vector<8x896xf32>
    %146 = vector.broadcast %116 : vector<1x896xf32> to vector<8x896xf32>
    %147 = arith.mulf %145, %146 : vector<8x896xf32>
    %148 = vector.broadcast %117 : vector<1x896xf32> to vector<8x896xf32>
    %149 = arith.addf %147, %148 : vector<8x896xf32>
    %150 = arith.truncf %149 : vector<8x896xf32> to vector<8x896xbf16>
    %c0_61 = arith.constant 0 : index
    %c0_62 = arith.constant 0 : index
    %151 = vector.load %arg11[%c0_61, %c0_62] : memref<8x896xbf16, #tpu.memory_space<vmem>>, vector<8x896xbf16>
    tpu.vector_store %arg11[%c0_61, %c0_62], %150 {strides = array<i32>} : memref<8x896xbf16, #tpu.memory_space<vmem>>, vector<8x896xbf16>,
    return
  }
  func.func @transform_0(%arg0: i32) -> (i32, i32) {
    %c0_i32 = arith.constant 0 : i32
    %c0_i32_0 = arith.constant 0 : i32
    return %arg0, %c0_i32 : i32, i32
  }
  func.func @transform_1(%arg0: i32) -> (i32, i32) {
    %c0_i32 = arith.constant 0 : i32
    %c0_i32_0 = arith.constant 0 : i32
    %c0_i32_1 = arith.constant 0 : i32
    return %c0_i32, %c0_i32_0 : i32, i32
  }
  func.func @transform_2(%arg0: i32) -> (i32, i32) {
    %c0_i32 = arith.constant 0 : i32
    %c0_i32_0 = arith.constant 0 : i32
    %c0_i32_1 = arith.constant 0 : i32
    return %c0_i32, %c0_i32_0 : i32, i32
  }
  func.func @transform_3(%arg0: i32) -> (i32, i32) {
    %c0_i32 = arith.constant 0 : i32
    %c0_i32_0 = arith.constant 0 : i32
    %c0_i32_1 = arith.constant 0 : i32
    return %c0_i32, %c0_i32_0 : i32, i32
  }
  func.func @transform_4(%arg0: i32) -> (i32, i32) {
    %c0_i32 = arith.constant 0 : i32
    %c0_i32_0 = arith.constant 0 : i32
    %c0_i32_1 = arith.constant 0 : i32
    return %c0_i32, %c0_i32_0 : i32, i32
  }
  func.func @transform_5(%arg0: i32) -> (i32, i32) {
    %c0_i32 = arith.constant 0 : i32
    %c0_i32_0 = arith.constant 0 : i32
    %c0_i32_1 = arith.constant 0 : i32
    return %c0_i32, %c0_i32_0 : i32, i32
  }
  func.func @transform_6(%arg0: i32) -> (i32, i32) {
    %c0_i32 = arith.constant 0 : i32
    %c0_i32_0 = arith.constant 0 : i32
    %c0_i32_1 = arith.constant 0 : i32
    return %c0_i32, %c0_i32_0 : i32, i32
  }
  func.func @transform_7(%arg0: i32) -> (i32, i32) {
    %c0_i32 = arith.constant 0 : i32
    %c0_i32_0 = arith.constant 0 : i32
    %c0_i32_1 = arith.constant 0 : i32
    return %c0_i32, %c0_i32_0 : i32, i32
  }
  func.func @transform_8(%arg0: i32) -> (i32, i32) {
    %c0_i32 = arith.constant 0 : i32
    %c0_i32_0 = arith.constant 0 : i32
    %c0_i32_1 = arith.constant 0 : i32
    return %c0_i32, %c0_i32_0 : i32, i32
  }
  func.func @transform_9(%arg0: i32) -> (i32, i32) {
    %c0_i32 = arith.constant 0 : i32
    %c0_i32_0 = arith.constant 0 : i32
    return %arg0, %c0_i32 : i32, i32
  }
  func.func @transform_10(%arg0: i32) -> (i32, i32) {
    %c0_i32 = arith.constant 0 : i32
    %c0_i32_0 = arith.constant 0 : i32
    return %arg0, %c0_i32 : i32, i32
  }
}

module attributes {stable_mosaic.version = 11 : i64} {
  func.func @autocoder_kernel(%arg0: i32, %arg1: memref<8x864xf32, #tpu.memory_space<vmem>>, %arg2: memref<864x384xbf16, #tpu.memory_space<vmem>>, %arg3: memref<3x384xf32, #tpu.memory_space<vmem>>, %arg4: memref<384x128xbf16, #tpu.memory_space<vmem>>, %arg5: memref<3x128xf32, #tpu.memory_space<vmem>>, %arg6: memref<128x384xbf16, #tpu.memory_space<vmem>>, %arg7: memref<3x384xf32, #tpu.memory_space<vmem>>, %arg8: memref<384x896xbf16, #tpu.memory_space<vmem>>, %arg9: memref<3x896xf32, #tpu.memory_space<vmem>>, %arg10: memref<8x128xbf16, #tpu.memory_space<vmem>>, %arg11: memref<8x896xbf16, #tpu.memory_space<vmem>>) attributes {dimension_semantics = [#tpu.dimension_semantics<parallel>], iteration_bounds = array<i64: 1>, scalar_prefetch = 0 : i64, scratch_operands = 0 : i64, tpu.core_type = #tpu.core_type<tc>, window_params = [{transform_indices = @transform_0, window_bounds = array<i64: 8, 864>}, {pipeline_mode = #tpu.pipeline_mode<synchronous>, transform_indices = @transform_1, window_bounds = array<i64: 864, 384>}, {pipeline_mode = #tpu.pipeline_mode<synchronous>, transform_indices = @transform_2, window_bounds = array<i64: 3, 384>}, {pipeline_mode = #tpu.pipeline_mode<synchronous>, transform_indices = @transform_3, window_bounds = array<i64: 384, 128>}, {pipeline_mode = #tpu.pipeline_mode<synchronous>, transform_indices = @transform_4, window_bounds = array<i64: 3, 128>}, {pipeline_mode = #tpu.pipeline_mode<synchronous>, transform_indices = @transform_5, window_bounds = array<i64: 128, 384>}, {pipeline_mode = #tpu.pipeline_mode<synchronous>, transform_indices = @transform_6, window_bounds = array<i64: 3, 384>}, {pipeline_mode = #tpu.pipeline_mode<synchronous>, transform_indices = @transform_7, window_bounds = array<i64: 384, 896>}, {pipeline_mode = #tpu.pipeline_mode<synchronous>, transform_indices = @transform_8, window_bounds = array<i64: 3, 896>}, {transform_indices = @transform_9, window_bounds = array<i64: 8, 128>}, {transform_indices = @transform_10, window_bounds = array<i64: 8, 896>}]} {
    %c0 = arith.constant 0 : index
    %c0_0 = arith.constant 0 : index
    %0 = vector.load %arg1[%c0, %c0_0] : memref<8x864xf32, #tpu.memory_space<vmem>>, vector<8x864xf32>
    %1 = arith.truncf %0 : vector<8x864xf32> to vector<8x864xbf16>
    %c0_1 = arith.constant 0 : index
    %c0_2 = arith.constant 0 : index
    %2 = vector.load %arg2[%c0_1, %c0_2] : memref<864x384xbf16, #tpu.memory_space<vmem>>, vector<864x384xbf16>
    %c0_3 = arith.constant 0 : index
    %c0_4 = arith.constant 0 : index
    %3 = vector.load %arg3[%c0_3, %c0_4] : memref<3x384xf32, #tpu.memory_space<vmem>>, vector<1x384xf32>
    %c1 = arith.constant 1 : index
    %c0_5 = arith.constant 0 : index
    %4 = vector.load %arg3[%c1, %c0_5] : memref<3x384xf32, #tpu.memory_space<vmem>>, vector<1x384xf32>
    %c2 = arith.constant 2 : index
    %c0_6 = arith.constant 0 : index
    %5 = vector.load %arg3[%c2, %c0_6] : memref<3x384xf32, #tpu.memory_space<vmem>>, vector<1x384xf32>
    %cst = arith.constant dense<0.000000e+00> : vector<8x384xf32>
    %6 = tpu.matmul %1, %2, %cst {dimension_numbers = #tpu.dot_dimension_numbers<[1], [0], [0], [1], [0, 0, 1, 1], [], []>} : vector<8x864xbf16>, vector<864x384xbf16>, vector<8x384xf32> -> vector<8x384xf32>
    %7 = vector.broadcast %3 : vector<1x384xf32> to vector<8x384xf32>
    %8 = arith.addf %6, %7 : vector<8x384xf32>
    %cst_7 = arith.constant dense<0.000000e+00> : vector<8xf32>
    %9 = vector.multi_reduction <add>, %8, %cst_7 [1] : vector<8x384xf32> to vector<8xf32>
    %10 = vector.shape_cast %9 : vector<8xf32> to vector<8x1xf32>
    %cst_8 = arith.constant 0.00347222225 : f32
    %11 = vector.broadcast %cst_8 : f32 to vector<8x1xf32>
    %12 = arith.mulf %10, %11 : vector<8x1xf32>
    %13 = vector.broadcast %12 : vector<8x1xf32> to vector<8x384xf32>
    %14 = arith.subf %8, %13 : vector<8x384xf32>
    %15 = tpu.iota {dimensions = array<i32: 1>} : vector<1x384xi32>
    %c288_i32 = arith.constant 288 : i32
    %16 = vector.broadcast %c288_i32 : i32 to vector<1x384xi32>
    %17 = arith.cmpi slt, %15, %16 : vector<1x384xi32>
    %cst_9 = arith.constant 0.000000e+00 : f32
    %18 = vector.shape_cast %17 : vector<1x384xi1> to vector<1x384xi1>
    %19 = vector.broadcast %18 : vector<1x384xi1> to vector<8x384xi1>
    %20 = vector.broadcast %cst_9 : f32 to vector<8x384xf32>
    %21 = arith.select %19, %14, %20 : vector<8x384xi1>, vector<8x384xf32>
    %22 = arith.mulf %21, %21 : vector<8x384xf32>
    %cst_10 = arith.constant dense<0.000000e+00> : vector<8xf32>
    %23 = vector.multi_reduction <add>, %22, %cst_10 [1] : vector<8x384xf32> to vector<8xf32>
    %24 = vector.shape_cast %23 : vector<8xf32> to vector<8x1xf32>
    %cst_11 = arith.constant 0.00347222225 : f32
    %25 = vector.broadcast %cst_11 : f32 to vector<8x1xf32>
    %26 = arith.mulf %24, %25 : vector<8x1xf32>
    %cst_12 = arith.constant 9.99999974E-6 : f32
    %27 = vector.broadcast %cst_12 : f32 to vector<8x1xf32>
    %28 = arith.addf %26, %27 : vector<8x1xf32>
    %29 = math.rsqrt %28 : vector<8x1xf32>
    %30 = vector.broadcast %12 : vector<8x1xf32> to vector<8x384xf32>
    %31 = arith.subf %8, %30 : vector<8x384xf32>
    %32 = vector.broadcast %29 : vector<8x1xf32> to vector<8x384xf32>
    %33 = arith.mulf %31, %32 : vector<8x384xf32>
    %34 = vector.broadcast %4 : vector<1x384xf32> to vector<8x384xf32>
    %35 = arith.mulf %33, %34 : vector<8x384xf32>
    %36 = vector.broadcast %5 : vector<1x384xf32> to vector<8x384xf32>
    %37 = arith.addf %35, %36 : vector<8x384xf32>
    %38 = arith.truncf %37 : vector<8x384xf32> to vector<8x384xbf16>
    %c0_13 = arith.constant 0 : index
    %c0_14 = arith.constant 0 : index
    %39 = vector.load %arg4[%c0_13, %c0_14] : memref<384x128xbf16, #tpu.memory_space<vmem>>, vector<384x128xbf16>
    %c0_15 = arith.constant 0 : index
    %c0_16 = arith.constant 0 : index
    %40 = vector.load %arg5[%c0_15, %c0_16] : memref<3x128xf32, #tpu.memory_space<vmem>>, vector<1x128xf32>
    %c1_17 = arith.constant 1 : index
    %c0_18 = arith.constant 0 : index
    %41 = vector.load %arg5[%c1_17, %c0_18] : memref<3x128xf32, #tpu.memory_space<vmem>>, vector<1x128xf32>
    %c2_19 = arith.constant 2 : index
    %c0_20 = arith.constant 0 : index
    %42 = vector.load %arg5[%c2_19, %c0_20] : memref<3x128xf32, #tpu.memory_space<vmem>>, vector<1x128xf32>
    %cst_21 = arith.constant dense<0.000000e+00> : vector<8x128xf32>
    %43 = tpu.matmul %38, %39, %cst_21 {dimension_numbers = #tpu.dot_dimension_numbers<[1], [0], [0], [1], [0, 0, 1, 1], [], []>} : vector<8x384xbf16>, vector<384x128xbf16>, vector<8x128xf32> -> vector<8x128xf32>
    %44 = vector.broadcast %40 : vector<1x128xf32> to vector<8x128xf32>
    %45 = arith.addf %43, %44 : vector<8x128xf32>
    %cst_22 = arith.constant dense<0.000000e+00> : vector<8xf32>
    %46 = vector.multi_reduction <add>, %45, %cst_22 [1] : vector<8x128xf32> to vector<8xf32>
    %47 = vector.shape_cast %46 : vector<8xf32> to vector<8x1xf32>
    %cst_23 = arith.constant 0.010416667 : f32
    %48 = vector.broadcast %cst_23 : f32 to vector<8x1xf32>
    %49 = arith.mulf %47, %48 : vector<8x1xf32>
    %50 = vector.broadcast %49 : vector<8x1xf32> to vector<8x128xf32>
    %51 = arith.subf %45, %50 : vector<8x128xf32>
    %52 = tpu.iota {dimensions = array<i32: 1>} : vector<1x128xi32>
    %c96_i32 = arith.constant 96 : i32
    %53 = vector.broadcast %c96_i32 : i32 to vector<1x128xi32>
    %54 = arith.cmpi slt, %52, %53 : vector<1x128xi32>
    %cst_24 = arith.constant 0.000000e+00 : f32
    %55 = vector.shape_cast %54 : vector<1x128xi1> to vector<1x128xi1>
    %56 = vector.broadcast %55 : vector<1x128xi1> to vector<8x128xi1>
    %57 = vector.broadcast %cst_24 : f32 to vector<8x128xf32>
    %58 = arith.select %56, %51, %57 : vector<8x128xi1>, vector<8x128xf32>
    %59 = arith.mulf %58, %58 : vector<8x128xf32>
    %cst_25 = arith.constant dense<0.000000e+00> : vector<8xf32>
    %60 = vector.multi_reduction <add>, %59, %cst_25 [1] : vector<8x128xf32> to vector<8xf32>
    %61 = vector.shape_cast %60 : vector<8xf32> to vector<8x1xf32>
    %cst_26 = arith.constant 0.010416667 : f32
    %62 = vector.broadcast %cst_26 : f32 to vector<8x1xf32>
    %63 = arith.mulf %61, %62 : vector<8x1xf32>
    %cst_27 = arith.constant 9.99999974E-6 : f32
    %64 = vector.broadcast %cst_27 : f32 to vector<8x1xf32>
    %65 = arith.addf %63, %64 : vector<8x1xf32>
    %66 = math.rsqrt %65 : vector<8x1xf32>
    %67 = vector.broadcast %49 : vector<8x1xf32> to vector<8x128xf32>
    %68 = arith.subf %45, %67 : vector<8x128xf32>
    %69 = vector.broadcast %66 : vector<8x1xf32> to vector<8x128xf32>
    %70 = arith.mulf %68, %69 : vector<8x128xf32>
    %71 = vector.broadcast %41 : vector<1x128xf32> to vector<8x128xf32>
    %72 = arith.mulf %70, %71 : vector<8x128xf32>
    %73 = vector.broadcast %42 : vector<1x128xf32> to vector<8x128xf32>
    %74 = arith.addf %72, %73 : vector<8x128xf32>
    %75 = arith.truncf %74 : vector<8x128xf32> to vector<8x128xbf16>
    %c0_28 = arith.constant 0 : index
    %c0_29 = arith.constant 0 : index
    %76 = vector.load %arg10[%c0_28, %c0_29] : memref<8x128xbf16, #tpu.memory_space<vmem>>, vector<8x128xbf16>
    tpu.vector_store %arg10[%c0_28, %c0_29], %75 {strides = array<i32>} : memref<8x128xbf16, #tpu.memory_space<vmem>>, vector<8x128xbf16>,
    %c0_30 = arith.constant 0 : index
    %c0_31 = arith.constant 0 : index
    %77 = vector.load %arg6[%c0_30, %c0_31] : memref<128x384xbf16, #tpu.memory_space<vmem>>, vector<128x384xbf16>
    %c0_32 = arith.constant 0 : index
    %c0_33 = arith.constant 0 : index
    %78 = vector.load %arg7[%c0_32, %c0_33] : memref<3x384xf32, #tpu.memory_space<vmem>>, vector<1x384xf32>
    %c1_34 = arith.constant 1 : index
    %c0_35 = arith.constant 0 : index
    %79 = vector.load %arg7[%c1_34, %c0_35] : memref<3x384xf32, #tpu.memory_space<vmem>>, vector<1x384xf32>
    %c2_36 = arith.constant 2 : index
    %c0_37 = arith.constant 0 : index
    %80 = vector.load %arg7[%c2_36, %c0_37] : memref<3x384xf32, #tpu.memory_space<vmem>>, vector<1x384xf32>
    %cst_38 = arith.constant dense<0.000000e+00> : vector<8x384xf32>
    %81 = tpu.matmul %75, %77, %cst_38 {dimension_numbers = #tpu.dot_dimension_numbers<[1], [0], [0], [1], [0, 0, 1, 1], [], []>} : vector<8x128xbf16>, vector<128x384xbf16>, vector<8x384xf32> -> vector<8x384xf32>
    %82 = vector.broadcast %78 : vector<1x384xf32> to vector<8x384xf32>
    %83 = arith.addf %81, %82 : vector<8x384xf32>
    %cst_39 = arith.constant dense<0.000000e+00> : vector<8xf32>
    %84 = vector.multi_reduction <add>, %83, %cst_39 [1] : vector<8x384xf32> to vector<8xf32>
    %85 = vector.shape_cast %84 : vector<8xf32> to vector<8x1xf32>
    %cst_40 = arith.constant 0.00347222225 : f32
    %86 = vector.broadcast %cst_40 : f32 to vector<8x1xf32>
    %87 = arith.mulf %85, %86 : vector<8x1xf32>
    %88 = vector.broadcast %87 : vector<8x1xf32> to vector<8x384xf32>
    %89 = arith.subf %83, %88 : vector<8x384xf32>
    %90 = tpu.iota {dimensions = array<i32: 1>} : vector<1x384xi32>
    %c288_i32_41 = arith.constant 288 : i32
    %91 = vector.broadcast %c288_i32_41 : i32 to vector<1x384xi32>
    %92 = arith.cmpi slt, %90, %91 : vector<1x384xi32>
    %cst_42 = arith.constant 0.000000e+00 : f32
    %93 = vector.shape_cast %92 : vector<1x384xi1> to vector<1x384xi1>
    %94 = vector.broadcast %93 : vector<1x384xi1> to vector<8x384xi1>
    %95 = vector.broadcast %cst_42 : f32 to vector<8x384xf32>
    %96 = arith.select %94, %89, %95 : vector<8x384xi1>, vector<8x384xf32>
    %97 = arith.mulf %96, %96 : vector<8x384xf32>
    %cst_43 = arith.constant dense<0.000000e+00> : vector<8xf32>
    %98 = vector.multi_reduction <add>, %97, %cst_43 [1] : vector<8x384xf32> to vector<8xf32>
    %99 = vector.shape_cast %98 : vector<8xf32> to vector<8x1xf32>
    %cst_44 = arith.constant 0.00347222225 : f32
    %100 = vector.broadcast %cst_44 : f32 to vector<8x1xf32>
    %101 = arith.mulf %99, %100 : vector<8x1xf32>
    %cst_45 = arith.constant 9.99999974E-6 : f32
    %102 = vector.broadcast %cst_45 : f32 to vector<8x1xf32>
    %103 = arith.addf %101, %102 : vector<8x1xf32>
    %104 = math.rsqrt %103 : vector<8x1xf32>
    %105 = vector.broadcast %87 : vector<8x1xf32> to vector<8x384xf32>
    %106 = arith.subf %83, %105 : vector<8x384xf32>
    %107 = vector.broadcast %104 : vector<8x1xf32> to vector<8x384xf32>
    %108 = arith.mulf %106, %107 : vector<8x384xf32>
    %109 = vector.broadcast %79 : vector<1x384xf32> to vector<8x384xf32>
    %110 = arith.mulf %108, %109 : vector<8x384xf32>
    %111 = vector.broadcast %80 : vector<1x384xf32> to vector<8x384xf32>
    %112 = arith.addf %110, %111 : vector<8x384xf32>
    %113 = arith.truncf %112 : vector<8x384xf32> to vector<8x384xbf16>
    %c0_46 = arith.constant 0 : index
    %c0_47 = arith.constant 0 : index
    %114 = vector.load %arg8[%c0_46, %c0_47] : memref<384x896xbf16, #tpu.memory_space<vmem>>, vector<384x896xbf16>
    %c0_48 = arith.constant 0 : index
    %c0_49 = arith.constant 0 : index
    %115 = vector.load %arg9[%c0_48, %c0_49] : memref<3x896xf32, #tpu.memory_space<vmem>>, vector<1x896xf32>
    %c1_50 = arith.constant 1 : index
    %c0_51 = arith.constant 0 : index
    %116 = vector.load %arg9[%c1_50, %c0_51] : memref<3x896xf32, #tpu.memory_space<vmem>>, vector<1x896xf32>
    %c2_52 = arith.constant 2 : index
    %c0_53 = arith.constant 0 : index
    %117 = vector.load %arg9[%c2_52, %c0_53] : memref<3x896xf32, #tpu.memory_space<vmem>>, vector<1x896xf32>
    %cst_54 = arith.constant dense<0.000000e+00> : vector<8x896xf32>
    %118 = tpu.matmul %113, %114, %cst_54 {dimension_numbers = #tpu.dot_dimension_numbers<[1], [0], [0], [1], [0, 0, 1, 1], [], []>} : vector<8x384xbf16>, vector<384x896xbf16>, vector<8x896xf32> -> vector<8x896xf32>
    %119 = vector.broadcast %115 : vector<1x896xf32> to vector<8x896xf32>
    %120 = arith.addf %118, %119 : vector<8x896xf32>
    %cst_55 = arith.constant dense<0.000000e+00> : vector<8xf32>
    %121 = vector.multi_reduction <add>, %120, %cst_55 [1] : vector<8x896xf32> to vector<8xf32>
    %122 = vector.shape_cast %121 : vector<8xf32> to vector<8x1xf32>
    %cst_56 = arith.constant 0.00115740742 : f32
    %123 = vector.broadcast %cst_56 : f32 to vector<8x1xf32>
    %124 = arith.mulf %122, %123 : vector<8x1xf32>
    %125 = vector.broadcast %124 : vector<8x1xf32> to vector<8x896xf32>
    %126 = arith.subf %120, %125 : vector<8x896xf32>
    %127 = tpu.iota {dimensions = array<i32: 1>} : vector<1x896xi32>
    %c864_i32 = arith.constant 864 : i32
    %128 = vector.broadcast %c864_i32 : i32 to vector<1x896xi32>
    %129 = arith.cmpi slt, %127, %128 : vector<1x896xi32>
    %cst_57 = arith.constant 0.000000e+00 : f32
    %130 = vector.shape_cast %129 : vector<1x896xi1> to vector<1x896xi1>
    %131 = vector.broadcast %130 : vector<1x896xi1> to vector<8x896xi1>
    %132 = vector.broadcast %cst_57 : f32 to vector<8x896xf32>
    %133 = arith.select %131, %126, %132 : vector<8x896xi1>, vector<8x896xf32>
    %134 = arith.mulf %133, %133 : vector<8x896xf32>
    %cst_58 = arith.constant dense<0.000000e+00> : vector<8xf32>
    %135 = vector.multi_reduction <add>, %134, %cst_58 [1] : vector<8x896xf32> to vector<8xf32>
    %136 = vector.shape_cast %135 : vector<8xf32> to vector<8x1xf32>
    %cst_59 = arith.constant 0.00115740742 : f32
    %137 = vector.broadcast %cst_59 : f32 to vector<8x1xf32>
    %138 = arith.mulf %136, %137 : vector<8x1xf32>
    %cst_60 = arith.constant 9.99999974E-6 : f32
    %139 = vector.broadcast %cst_60 : f32 to vector<8x1xf32>
    %140 = arith.addf %138, %139 : vector<8x1xf32>
    %141 = math.rsqrt %140 : vector<8x1xf32>
    %142 = vector.broadcast %124 : vector<8x1xf32> to vector<8x896xf32>
    %143 = arith.subf %120, %142 : vector<8x896xf32>
    %144 = vector.broadcast %141 : vector<8x1xf32> to vector<8x896xf32>
    %145 = arith.mulf %143, %144 : vector<8x896xf32>
    %146 = vector.broadcast %116 : vector<1x896xf32> to vector<8x896xf32>
    %147 = arith.mulf %145, %146 : vector<8x896xf32>
    %148 = vector.broadcast %117 : vector<1x896xf32> to vector<8x896xf32>
    %149 = arith.addf %147, %148 : vector<8x896xf32>
    %150 = arith.truncf %149 : vector<8x896xf32> to vector<8x896xbf16>
    %c0_61 = arith.constant 0 : index
    %c0_62 = arith.constant 0 : index
    %151 = vector.load %arg11[%c0_61, %c0_62] : memref<8x896xbf16, #tpu.memory_space<vmem>>, vector<8x896xbf16>
    tpu.vector_store %arg11[%c0_61, %c0_62], %150 {strides = array<i32>} : memref<8x896xbf16, #tpu.memory_space<vmem>>, vector<8x896xbf16>,
    return
  }
  func.func @transform_0(%arg0: i32) -> (i32, i32) {
    %c0_i32 = arith.constant 0 : i32
    %c0_i32_0 = arith.constant 0 : i32
    return %arg0, %c0_i32 : i32, i32
  }
  func.func @transform_1(%arg0: i32) -> (i32, i32) {
    %c0_i32 = arith.constant 0 : i32
    %c0_i32_0 = arith.constant 0 : i32
    %c0_i32_1 = arith.constant 0 : i32
    return %c0_i32, %c0_i32_0 : i32, i32
  }
  func.func @transform_2(%arg0: i32) -> (i32, i32) {
    %c0_i32 = arith.constant 0 : i32
    %c0_i32_0 = arith.constant 0 : i32
    %c0_i32_1 = arith.constant 0 : i32
    return %c0_i32, %c0_i32_0 : i32, i32
  }
  func.func @transform_3(%arg0: i32) -> (i32, i32) {
    %c0_i32 = arith.constant 0 : i32
    %c0_i32_0 = arith.constant 0 : i32
    %c0_i32_1 = arith.constant 0 : i32
    return %c0_i32, %c0_i32_0 : i32, i32
  }
  func.func @transform_4(%arg0: i32) -> (i32, i32) {
    %c0_i32 = arith.constant 0 : i32
    %c0_i32_0 = arith.constant 0 : i32
    %c0_i32_1 = arith.constant 0 : i32
    return %c0_i32, %c0_i32_0 : i32, i32
  }
  func.func @transform_5(%arg0: i32) -> (i32, i32) {
    %c0_i32 = arith.constant 0 : i32
    %c0_i32_0 = arith.constant 0 : i32
    %c0_i32_1 = arith.constant 0 : i32
    return %c0_i32, %c0_i32_0 : i32, i32
  }
  func.func @transform_6(%arg0: i32) -> (i32, i32) {
    %c0_i32 = arith.constant 0 : i32
    %c0_i32_0 = arith.constant 0 : i32
    %c0_i32_1 = arith.constant 0 : i32
    return %c0_i32, %c0_i32_0 : i32, i32
  }
  func.func @transform_7(%arg0: i32) -> (i32, i32) {
    %c0_i32 = arith.constant 0 : i32
    %c0_i32_0 = arith.constant 0 : i32
    %c0_i32_1 = arith.constant 0 : i32
    return %c0_i32, %c0_i32_0 : i32, i32
  }
  func.func @transform_8(%arg0: i32) -> (i32, i32) {
    %c0_i32 = arith.constant 0 : i32
    %c0_i32_0 = arith.constant 0 : i32
    %c0_i32_1 = arith.constant 0 : i32
    return %c0_i32, %c0_i32_0 : i32, i32
  }
  func.func @transform_9(%arg0: i32) -> (i32, i32) {
    %c0_i32 = arith.constant 0 : i32
    %c0_i32_0 = arith.constant 0 : i32
    return %arg0, %c0_i32 : i32, i32
  }
  func.func @transform_10(%arg0: i32) -> (i32, i32) {
    %c0_i32 = arith.constant 0 : i32
    %c0_i32_0 = arith.constant 0 : i32
    return %arg0, %c0_i32 : i32, i32
  }
}

</mosaic_0001>

<llo_original>
// kernel: _forward_impl.1
$region0: #{_forward_impl.1}
  #allocation0 [shape = 'u32[]', space=smem, size = 0x4, offset = 0x4, fixed_abs, tag = 'smem constant byte address 0x4 - core index']
  #allocation1 [shape = 'u32[144,128]{1,0:T(1,128)}', space=vmem, size = 0x12000, scoped, tag = 'internal scratch']
  %s0 = inlined_call_operand.hbm [shape: f32[8,864], index: 0, kind: input, shape index: {}]
  %s1 = inlined_call_operand.hbm [shape: bf16[864,384], index: 1, kind: input, shape index: {}]
  %s2 = inlined_call_operand.hbm [shape: f32[3,384], index: 2, kind: input, shape index: {}]
  %s3 = inlined_call_operand.hbm [shape: bf16[384,128], index: 3, kind: input, shape index: {}]
  %s4 = inlined_call_operand.hbm [shape: f32[3,128], index: 4, kind: input, shape index: {}]
  %s5 = inlined_call_operand.hbm [shape: bf16[128,384], index: 5, kind: input, shape index: {}]
  %s6 = inlined_call_operand.hbm [shape: f32[3,384], index: 6, kind: input, shape index: {}]
  %s7 = inlined_call_operand.hbm [shape: bf16[384,896], index: 7, kind: input, shape index: {}]
  %s8 = inlined_call_operand.vmem [shape: f32[3,896], index: 8, kind: input, shape index: {}]
  %s9 = inlined_call_operand.hbm [shape: bf16[8,128], index: 9, kind: output, shape index: {0}]
  %s10 = inlined_call_operand.hbm [shape: bf16[8,896], index: 10, kind: output, shape index: {1}]
  %11 = xla_tuple %s9, %s10
  %s12 = sld [smem:[#allocation0]]
  $region86: #{_forward_impl.1} parent=0
    _
  %s14 = ssub.s32 1, %s12
  %s15 = scalar_select 0, %s14, %s12
  $region1: #{_forward_impl.1} parent=0
    #allocation2 [shape = 'u8[28672]{0}', space=vmem, size = 0x7000, scoped, tag = 'input window, operand 0, single buffered']
    #allocation3 [shape = 's32[1]{0}', space=sflag, size = 0x4, scoped, tag = 'scoped memory for _forward_impl.1']
    #allocation4 [shape = 's32[1]{0}', space=sflag, size = 0x4, scoped, tag = 'scoped memory for _forward_impl.1']
    #allocation5 [shape = 'u8[663552]{0}', space=vmem, size = 0xa2000, scoped, tag = 'input window, operand 1, single buffered']
    #allocation6 [shape = 's32[1]{0}', space=sflag, size = 0x4, scoped, tag = 'scoped memory for _forward_impl.1']
    #allocation7 [shape = 'u8[6144]{0}', space=vmem, size = 0x1800, scoped, tag = 'input window, operand 2, single buffered']
    #allocation8 [shape = 'u8[98304]{0}', space=vmem, size = 0x18000, scoped, tag = 'input window, operand 3, single buffered']
    #allocation9 [shape = 's32[1]{0}', space=sflag, size = 0x4, scoped, tag = 'scoped memory for _forward_impl.1']
    #allocation10 [shape = 'u8[2048]{0}', space=vmem, size = 0x800, scoped, tag = 'input window, operand 4, single buffered']
    #allocation11 [shape = 'u8[98304]{0}', space=vmem, size = 0x18000, scoped, tag = 'input window, operand 5, single buffered']
    #allocation12 [shape = 's32[1]{0}', space=sflag, size = 0x4, scoped, tag = 'scoped memory for _forward_impl.1']
    #allocation13 [shape = 'u8[6144]{0}', space=vmem, size = 0x1800, scoped, tag = 'input window, operand 6, single buffered']
    #allocation14 [shape = 'u8[688128]{0}', space=vmem, size = 0xa8000, scoped, tag = 'input window, operand 7, single buffered']
    #allocation15 [shape = 's32[1]{0}', space=sflag, size = 0x4, scoped, tag = 'scoped memory for _forward_impl.1']
    #allocation16 [shape = 'u8[2048]{0}', space=vmem, size = 0x800, scoped, tag = 'output window, operand 0, single buffered']
    #allocation17 [shape = 'u8[14336]{0}', space=vmem, size = 0x3800, scoped, tag = 'output window, operand 1, single buffered']
    #allocation18 [shape = 's32[1]{0}', space=sflag, size = 0x4, scoped, tag = 'scoped memory for _forward_impl.1']
    %16 = vsyncpa [#allocation3], 0
    %17 = vsyncpa [#allocation6], 0
    %18 = vsyncpa [#allocation9], 0
    %19 = vsyncpa [#allocation12], 0
    %20 = vsyncpa [#allocation15], 0
    %21 = vsyncpa [#allocation4], 0
    %22 = vsyncpa [#allocation18], 0
    // Predicated region
    $region2: #{_forward_impl.1} parent=1 // pred_check
      _
    $region3: #{_forward_impl.1} parent=1 // pred_check_branch
      %24 = sbr.rel (0) target = $region5
    $region4: #{_forward_impl.1} parent=1 // pred_region
      %s26 = ssub.s32 896, 896
      %27 = vsyncadd [#allocation3], %s26
      %s29 = sshll.u32 [#allocation2], 4
      %s30 = int_to_ptr.vmem [resolvable:$true] %s29
      %32 = dma.hbm_to_vmem [thread:$0]  %s0, 896, %s30, [#allocation3]
    $region5: #{_forward_impl.1} parent=1 // pred_fallthru
      _
    // Predicated region
    $region6: #{_forward_impl.1} parent=1 // pred_check
      _
    $region7: #{_forward_impl.1} parent=1 // pred_check_branch
      %34 = sbr.rel (0) target = $region9
    $region8: #{_forward_impl.1} parent=1 // pred_region
      %s36 = ssub.s32 20736, 20736
      %37 = vsyncadd [#allocation6], %s36
      %s38 = sshll.u32 [#allocation5], 4
      %s39 = int_to_ptr.vmem [resolvable:$true] %s38
      %44 = dma.hbm_to_vmem [thread:$0]  %s1, 20736, %s39, [#allocation6], 192, 192, 12
    $region9: #{_forward_impl.1} parent=1 // pred_fallthru
      _
    // Predicated region
    $region10: #{_forward_impl.1} parent=1 // pred_check
      _
    $region11: #{_forward_impl.1} parent=1 // pred_check_branch
      %46 = sbr.rel (0) target = $region13
    $region12: #{_forward_impl.1} parent=1 // pred_region
      %s48 = ssub.s32 192, 192
      %49 = vsyncadd [#allocation6], %s48
      %s51 = sshll.u32 [#allocation7], 4
      %s52 = int_to_ptr.vmem [resolvable:$true] %s51
      %54 = dma.hbm_to_vmem [thread:$0]  %s2, 192, %s52, [#allocation6]
    $region13: #{_forward_impl.1} parent=1 // pred_fallthru
      _
    // Predicated region
    $region14: #{_forward_impl.1} parent=1 // pred_check
      _
    $region15: #{_forward_impl.1} parent=1 // pred_check_branch
      %56 = sbr.rel (0) target = $region17
    $region16: #{_forward_impl.1} parent=1 // pred_region
      %s58 = ssub.s32 3072, 3072
      %59 = vsyncadd [#allocation9], %s58
      %s60 = sshll.u32 [#allocation8], 4
      %s61 = int_to_ptr.vmem [resolvable:$true] %s60
      %66 = dma.hbm_to_vmem [thread:$0]  %s3, 3072, %s61, [#allocation9], 64, 64, 4
    $region17: #{_forward_impl.1} parent=1 // pred_fallthru
      _
    // Predicated region
    $region18: #{_forward_impl.1} parent=1 // pred_check
      _
    $region19: #{_forward_impl.1} parent=1 // pred_check_branch
      %68 = sbr.rel (0) target = $region21
    $region20: #{_forward_impl.1} parent=1 // pred_region
      %s70 = ssub.s32 64, 64
      %71 = vsyncadd [#allocation9], %s70
      %s73 = sshll.u32 [#allocation10], 4
      %s74 = int_to_ptr.vmem [resolvable:$true] %s73
      %76 = dma.hbm_to_vmem [thread:$0]  %s4, 64, %s74, [#allocation9]
    $region21: #{_forward_impl.1} parent=1 // pred_fallthru
      _
    // Predicated region
    $region22: #{_forward_impl.1} parent=1 // pred_check
      _
    $region23: #{_forward_impl.1} parent=1 // pred_check_branch
      %78 = sbr.rel (0) target = $region25
    $region24: #{_forward_impl.1} parent=1 // pred_region
      %s80 = ssub.s32 3072, 3072
      %81 = vsyncadd [#allocation12], %s80
      %s82 = sshll.u32 [#allocation11], 4
      %s83 = int_to_ptr.vmem [resolvable:$true] %s82
      %88 = dma.hbm_to_vmem [thread:$0]  %s5, 3072, %s83, [#allocation12], 192, 192, 12
    $region25: #{_forward_impl.1} parent=1 // pred_fallthru
      _
    // Predicated region
    $region26: #{_forward_impl.1} parent=1 // pred_check
      _
    $region27: #{_forward_impl.1} parent=1 // pred_check_branch
      %90 = sbr.rel (0) target = $region29
    $region28: #{_forward_impl.1} parent=1 // pred_region
      %s92 = ssub.s32 192, 192
      %93 = vsyncadd [#allocation12], %s92
      %s95 = sshll.u32 [#allocation13], 4
      %s96 = int_to_ptr.vmem [resolvable:$true] %s95
      %98 = dma.hbm_to_vmem [thread:$0]  %s6, 192, %s96, [#allocation12]
    $region29: #{_forward_impl.1} parent=1 // pred_fallthru
      _
    // Predicated region
    $region30: #{_forward_impl.1} parent=1 // pred_check
      _
    $region31: #{_forward_impl.1} parent=1 // pred_check_branch
      %100 = sbr.rel (0) target = $region33
    $region32: #{_forward_impl.1} parent=1 // pred_region
      %s102 = ssub.s32 21504, 21504
      %103 = vsyncadd [#allocation15], %s102
      %s104 = sshll.u32 [#allocation14], 4
      %s105 = int_to_ptr.vmem [resolvable:$true] %s104
      %110 = dma.hbm_to_vmem [thread:$0]  %s7, 21504, %s105, [#allocation15], 448, 448, 28
    $region33: #{_forward_impl.1} parent=1 // pred_fallthru
      _
    // Predicated region
    $region34: #{_forward_impl.1} parent=1 // pred_check
      _
    $region35: #{_forward_impl.1} parent=1 // pred_check_branch
      %112 = sbr.rel (0) target = $region37
    $region36: #{_forward_impl.1} parent=1 // pred_region
      _
    $region37: #{_forward_impl.1} parent=1 // pred_fallthru
      _
    // Predicated region
    $region38: #{_forward_impl.1} parent=1 // pred_check
      _
    $region39: #{_forward_impl.1} parent=1 // pred_check_branch
      %114 = sbr.rel (0) target = $region41
    $region40: #{_forward_impl.1} parent=1 // pred_region
      %115 = dma.done [#allocation3], 896
    $region41: #{_forward_impl.1} parent=1 // pred_fallthru
      _
    // Predicated region
    $region42: #{_forward_impl.1} parent=1 // pred_check
      _
    $region43: #{_forward_impl.1} parent=1 // pred_check_branch
      %117 = sbr.rel (0) target = $region45
    $region44: #{_forward_impl.1} parent=1 // pred_region
      %118 = dma.done [#allocation6], 20736
    $region45: #{_forward_impl.1} parent=1 // pred_fallthru
      _
    // Predicated region
    $region46: #{_forward_impl.1} parent=1 // pred_check
      _
    $region47: #{_forward_impl.1} parent=1 // pred_check_branch
      %120 = sbr.rel (0) target = $region49
    $region48: #{_forward_impl.1} parent=1 // pred_region
      %121 = dma.done [#allocation6], 192
    $region49: #{_forward_impl.1} parent=1 // pred_fallthru
      _
    // Predicated region
    $region50: #{_forward_impl.1} parent=1 // pred_check
      _
    $region51: #{_forward_impl.1} parent=1 // pred_check_branch
      %123 = sbr.rel (0) target = $region53
    $region52: #{_forward_impl.1} parent=1 // pred_region
      %124 = dma.done [#allocation9], 3072
    $region53: #{_forward_impl.1} parent=1 // pred_fallthru
      _
    // Predicated region
    $region54: #{_forward_impl.1} parent=1 // pred_check
      _
    $region55: #{_forward_impl.1} parent=1 // pred_check_branch
      %126 = sbr.rel (0) target = $region57
    $region56: #{_forward_impl.1} parent=1 // pred_region
      %127 = dma.done [#allocation9], 64
    $region57: #{_forward_impl.1} parent=1 // pred_fallthru
      _
    // Predicated region
    $region58: #{_forward_impl.1} parent=1 // pred_check
      _
    $region59: #{_forward_impl.1} parent=1 // pred_check_branch
      %129 = sbr.rel (0) target = $region61
    $region60: #{_forward_impl.1} parent=1 // pred_region
      %130 = dma.done [#allocation12], 3072
    $region61: #{_forward_impl.1} parent=1 // pred_fallthru
      _
    // Predicated region
    $region62: #{_forward_impl.1} parent=1 // pred_check
      _
    $region63: #{_forward_impl.1} parent=1 // pred_check_branch
      %132 = sbr.rel (0) target = $region65
    $region64: #{_forward_impl.1} parent=1 // pred_region
      %133 = dma.done [#allocation12], 192
    $region65: #{_forward_impl.1} parent=1 // pred_fallthru
      _
    // Predicated region
    $region66: #{_forward_impl.1} parent=1 // pred_check
      _
    $region67: #{_forward_impl.1} parent=1 // pred_check_branch
      %135 = sbr.rel (0) target = $region69
    $region68: #{_forward_impl.1} parent=1 // pred_region
      %136 = dma.done [#allocation15], 21504
    $region69: #{_forward_impl.1} parent=1 // pred_fallthru
      _
    %v138 = vld [vmem:[#allocation2] sm:$0xff]
    %v139 = vld [vmem:[#allocation2 + $0x8] sm:$0xff]
    %v140 = vld [vmem:[#allocation2 + $0x10] sm:$0xff]
    %v141 = vld [vmem:[#allocation2 + $0x18] sm:$0xff]
    %v142 = vld [vmem:[#allocation2 + $0x20] sm:$0xff]
    %v143 = vld [vmem:[#allocation2 + $0x28] sm:$0xff]
    %v144 = vld [vmem:[#allocation2 + $0x30] sm:$0xff]
    %v145 = vpack.c.bf16 %v138, %v138
    %v146 = vpack.c.bf16 %v139, %v139
    %v147 = vpack.c.bf16 %v140, %v140
    %v148 = vpack.c.bf16 %v141, %v141
    %v149 = vpack.c.bf16 %v142, %v142
    %v150 = vpack.c.bf16 %v143, %v143
    %v151 = vpack.c.bf16 %v144, %v144
    %v152 = vld [vmem:[#allocation5] sm:$0xff]
    %v153 = vld [vmem:[#allocation5 + $0x8] sm:$0xf]
    %v154 = vld [vmem:[#allocation5 + $0xc] sm:$0xff]
    %v155 = vld [vmem:[#allocation5 + $0x14] sm:$0xf]
    %v156 = vld [vmem:[#allocation5 + $0x18] sm:$0xff]
    %v157 = vld [vmem:[#allocation5 + $0x20] sm:$0xf]
    %v158 = vld [vmem:[#allocation5 + $0x24] sm:$0xff]
    %v159 = vld [vmem:[#allocation5 + $0x2c] sm:$0xf]
    %v160 = vld [vmem:[#allocation5 + $0x30] sm:$0xff]
    %v161 = vld [vmem:[#allocation5 + $0x38] sm:$0xf]
    %v162 = vld [vmem:[#allocation5 + $0x3c] sm:$0xff]
    %v163 = vld [vmem:[#allocation5 + $0x44] sm:$0xf]
    %v164 = vld [vmem:[#allocation5 + $0x48] sm:$0xff]
    %v165 = vld [vmem:[#allocation5 + $0x50] sm:$0xf]
    %v166 = vld [vmem:[#allocation5 + $0x54] sm:$0xff]
    %v167 = vld [vmem:[#allocation5 + $0x5c] sm:$0xf]
    %v168 = vld [vmem:[#allocation5 + $0x60] sm:$0xff]
    %v169 = vld [vmem:[#allocation5 + $0x68] sm:$0xf]
    %v170 = vld [vmem:[#allocation5 + $0x6c] sm:$0xff]
    %v171 = vld [vmem:[#allocation5 + $0x74] sm:$0xf]
    %v172 = vld [vmem:[#allocation5 + $0x78] sm:$0xff]
    %v173 = vld [vmem:[#allocation5 + $0x80] sm:$0xf]
    %v174 = vld [vmem:[#allocation5 + $0x84] sm:$0xff]
    %v175 = vld [vmem:[#allocation5 + $0x8c] sm:$0xf]
    %v176 = vld [vmem:[#allocation5 + $0x90] sm:$0xff]
    %v177 = vld [vmem:[#allocation5 + $0x98] sm:$0xf]
    %v178 = vld [vmem:[#allocation5 + $0x9c] sm:$0xff]
    %v179 = vld [vmem:[#allocation5 + $0xa4] sm:$0xf]
    %v180 = vld [vmem:[#allocation5 + $0xa8] sm:$0xff]
    %v181 = vld [vmem:[#allocation5 + $0xb0] sm:$0xf]
    %v182 = vld [vmem:[#allocation5 + $0xb4] sm:$0xff]
    %v183 = vld [vmem:[#allocation5 + $0xbc] sm:$0xf]
    %v184 = vld [vmem:[#allocation5 + $0xc0] sm:$0xff]
    %v185 = vld [vmem:[#allocation5 + $0xc8] sm:$0xf]
    %v186 = vld [vmem:[#allocation5 + $0xcc] sm:$0xff]
    %v187 = vld [vmem:[#allocation5 + $0xd4] sm:$0xf]
    %v188 = vld [vmem:[#allocation5 + $0xd8] sm:$0xff]
    %v189 = vld [vmem:[#allocation5 + $0xe0] sm:$0xf]
    %v190 = vld [vmem:[#allocation5 + $0xe4] sm:$0xff]
    %v191 = vld [vmem:[#allocation5 + $0xec] sm:$0xf]
    %v192 = vld [vmem:[#allocation5 + $0xf0] sm:$0xff]
    %v193 = vld [vmem:[#allocation5 + $0xf8] sm:$0xf]
    %v194 = vld [vmem:[#allocation5 + $0xfc] sm:$0xff]
    %v195 = vld [vmem:[#allocation5 + $0x104] sm:$0xf]
    %v196 = vld [vmem:[#allocation5 + $0x108] sm:$0xff]
    %v197 = vld [vmem:[#allocation5 + $0x110] sm:$0xf]
    %v198 = vld [vmem:[#allocation5 + $0x114] sm:$0xff]
    %v199 = vld [vmem:[#allocation5 + $0x11c] sm:$0xf]
    %v200 = vld [vmem:[#allocation5 + $0x120] sm:$0xff]
    %v201 = vld [vmem:[#allocation5 + $0x128] sm:$0xf]
    %v202 = vld [vmem:[#allocation5 + $0x12c] sm:$0xff]
    %v203 = vld [vmem:[#allocation5 + $0x134] sm:$0xf]
    %v204 = vld [vmem:[#allocation5 + $0x138] sm:$0xff]
    %v205 = vld [vmem:[#allocation5 + $0x140] sm:$0xf]
    %v206 = vld [vmem:[#allocation5 + $0x144] sm:$0xff]
    %v207 = vld [vmem:[#allocation5 + $0x14c] sm:$0xf]
    %v208 = vld [vmem:[#allocation5 + $0x150] sm:$0xff]
    %v209 = vld [vmem:[#allocation5 + $0x158] sm:$0xf]
    %v210 = vld [vmem:[#allocation5 + $0x15c] sm:$0xff]
    %v211 = vld [vmem:[#allocation5 + $0x164] sm:$0xf]
    %v212 = vld [vmem:[#allocation5 + $0x168] sm:$0xff]
    %v213 = vld [vmem:[#allocation5 + $0x170] sm:$0xf]
    %v214 = vld [vmem:[#allocation5 + $0x174] sm:$0xff]
    %v215 = vld [vmem:[#allocation5 + $0x17c] sm:$0xf]
    %v216 = vld [vmem:[#allocation5 + $0x180] sm:$0xff]
    %v217 = vld [vmem:[#allocation5 + $0x188] sm:$0xf]
    %v218 = vld [vmem:[#allocation5 + $0x18c] sm:$0xff]
    %v219 = vld [vmem:[#allocation5 + $0x194] sm:$0xf]
    %v220 = vld [vmem:[#allocation5 + $0x198] sm:$0xff]
    %v221 = vld [vmem:[#allocation5 + $0x1a0] sm:$0xf]
    %v222 = vld [vmem:[#allocation5 + $0x1a4] sm:$0xff]
    %v223 = vld [vmem:[#allocation5 + $0x1ac] sm:$0xf]
    %v224 = vld [vmem:[#allocation5 + $0x1b0] sm:$0xff]
    %v225 = vld [vmem:[#allocation5 + $0x1b8] sm:$0xf]
    %v226 = vld [vmem:[#allocation5 + $0x1bc] sm:$0xff]
    %v227 = vld [vmem:[#allocation5 + $0x1c4] sm:$0xf]
    %v228 = vld [vmem:[#allocation5 + $0x1c8] sm:$0xff]
    %v229 = vld [vmem:[#allocation5 + $0x1d0] sm:$0xf]
    %v230 = vld [vmem:[#allocation5 + $0x1d4] sm:$0xff]
    %v231 = vld [vmem:[#allocation5 + $0x1dc] sm:$0xf]
    %v232 = vld [vmem:[#allocation5 + $0x1e0] sm:$0xff]
    %v233 = vld [vmem:[#allocation5 + $0x1e8] sm:$0xf]
    %v234 = vld [vmem:[#allocation5 + $0x1ec] sm:$0xff]
    %v235 = vld [vmem:[#allocation5 + $0x1f4] sm:$0xf]
    %v236 = vld [vmem:[#allocation5 + $0x1f8] sm:$0xff]
    %v237 = vld [vmem:[#allocation5 + $0x200] sm:$0xf]
    %v238 = vld [vmem:[#allocation5 + $0x204] sm:$0xff]
    %v239 = vld [vmem:[#allocation5 + $0x20c] sm:$0xf]
    %v240 = vld [vmem:[#allocation5 + $0x210] sm:$0xff]
    %v241 = vld [vmem:[#allocation5 + $0x218] sm:$0xf]
    %v242 = vld [vmem:[#allocation5 + $0x21c] sm:$0xff]
    %v243 = vld [vmem:[#allocation5 + $0x224] sm:$0xf]
    %v244 = vld [vmem:[#allocation5 + $0x228] sm:$0xff]
    %v245 = vld [vmem:[#allocation5 + $0x230] sm:$0xf]
    %v246 = vld [vmem:[#allocation5 + $0x234] sm:$0xff]
    %v247 = vld [vmem:[#allocation5 + $0x23c] sm:$0xf]
    %v248 = vld [vmem:[#allocation5 + $0x240] sm:$0xff]
    %v249 = vld [vmem:[#allocation5 + $0x248] sm:$0xf]
    %v250 = vld [vmem:[#allocation5 + $0x24c] sm:$0xff]
    %v251 = vld [vmem:[#allocation5 + $0x254] sm:$0xf]
    %v252 = vld [vmem:[#allocation5 + $0x258] sm:$0xff]
    %v253 = vld [vmem:[#allocation5 + $0x260] sm:$0xf]
    %v254 = vld [vmem:[#allocation5 + $0x264] sm:$0xff]
    %v255 = vld [vmem:[#allocation5 + $0x26c] sm:$0xf]
    %v256 = vld [vmem:[#allocation5 + $0x270] sm:$0xff]
    %v257 = vld [vmem:[#allocation5 + $0x278] sm:$0xf]
    %v258 = vld [vmem:[#allocation5 + $0x27c] sm:$0xff]
    %v259 = vld [vmem:[#allocation5 + $0x284] sm:$0xf]
    %v260 = vld [vmem:[#allocation5 + $0x288] sm:$0xff]
    %v261 = vld [vmem:[#allocation5 + $0x290] sm:$0xf]
    %v262 = vld [vmem:[#allocation5 + $0x294] sm:$0xff]
    %v263 = vld [vmem:[#allocation5 + $0x29c] sm:$0xf]
    %v264 = vld [vmem:[#allocation5 + $0x2a0] sm:$0xff]
    %v265 = vld [vmem:[#allocation5 + $0x2a8] sm:$0xf]
    %v266 = vld [vmem:[#allocation5 + $0x2ac] sm:$0xff]
    %v267 = vld [vmem:[#allocation5 + $0x2b4] sm:$0xf]
    %v268 = vld [vmem:[#allocation5 + $0x2b8] sm:$0xff]
    %v269 = vld [vmem:[#allocation5 + $0x2c0] sm:$0xf]
    %v270 = vld [vmem:[#allocation5 + $0x2c4] sm:$0xff]
    %v271 = vld [vmem:[#allocation5 + $0x2cc] sm:$0xf]
    %v272 = vld [vmem:[#allocation5 + $0x2d0] sm:$0xff]
    %v273 = vld [vmem:[#allocation5 + $0x2d8] sm:$0xf]
    %v274 = vld [vmem:[#allocation5 + $0x2dc] sm:$0xff]
    %v275 = vld [vmem:[#allocation5 + $0x2e4] sm:$0xf]
    %v276 = vld [vmem:[#allocation5 + $0x2e8] sm:$0xff]
    %v277 = vld [vmem:[#allocation5 + $0x2f0] sm:$0xf]
    %v278 = vld [vmem:[#allocation5 + $0x2f4] sm:$0xff]
    %v279 = vld [vmem:[#allocation5 + $0x2fc] sm:$0xf]
    %v280 = vld [vmem:[#allocation5 + $0x300] sm:$0xff]
    %v281 = vld [vmem:[#allocation5 + $0x308] sm:$0xf]
    %v282 = vld [vmem:[#allocation5 + $0x30c] sm:$0xff]
    %v283 = vld [vmem:[#allocation5 + $0x314] sm:$0xf]
    %v284 = vld [vmem:[#allocation5 + $0x318] sm:$0xff]
    %v285 = vld [vmem:[#allocation5 + $0x320] sm:$0xf]
    %v286 = vld [vmem:[#allocation5 + $0x324] sm:$0xff]
    %v287 = vld [vmem:[#allocation5 + $0x32c] sm:$0xf]
    %v288 = vld [vmem:[#allocation5 + $0x330] sm:$0xff]
    %v289 = vld [vmem:[#allocation5 + $0x338] sm:$0xf]
    %v290 = vld [vmem:[#allocation5 + $0x33c] sm:$0xff]
    %v291 = vld [vmem:[#allocation5 + $0x344] sm:$0xf]
    %v292 = vld [vmem:[#allocation5 + $0x348] sm:$0xff]
    %v293 = vld [vmem:[#allocation5 + $0x350] sm:$0xf]
    %v294 = vld [vmem:[#allocation5 + $0x354] sm:$0xff]
    %v295 = vld [vmem:[#allocation5 + $0x35c] sm:$0xf]
    %v296 = vld [vmem:[#allocation5 + $0x360] sm:$0xff]
    %v297 = vld [vmem:[#allocation5 + $0x368] sm:$0xf]
    %v298 = vld [vmem:[#allocation5 + $0x36c] sm:$0xff]
    %v299 = vld [vmem:[#allocation5 + $0x374] sm:$0xf]
    %v300 = vld [vmem:[#allocation5 + $0x378] sm:$0xff]
    %v301 = vld [vmem:[#allocation5 + $0x380] sm:$0xf]
    %v302 = vld [vmem:[#allocation5 + $0x384] sm:$0xff]
    %v303 = vld [vmem:[#allocation5 + $0x38c] sm:$0xf]
    %v304 = vld [vmem:[#allocation5 + $0x390] sm:$0xff]
    %v305 = vld [vmem:[#allocation5 + $0x398] sm:$0xf]
    %v306 = vld [vmem:[#allocation5 + $0x39c] sm:$0xff]
    %v307 = vld [vmem:[#allocation5 + $0x3a4] sm:$0xf]
    %v308 = vld [vmem:[#allocation5 + $0x3a8] sm:$0xff]
    %v309 = vld [vmem:[#allocation5 + $0x3b0] sm:$0xf]
    %v310 = vld [vmem:[#allocation5 + $0x3b4] sm:$0xff]
    %v311 = vld [vmem:[#allocation5 + $0x3bc] sm:$0xf]
    %v312 = vld [vmem:[#allocation5 + $0x3c0] sm:$0xff]
    %v313 = vld [vmem:[#allocation5 + $0x3c8] sm:$0xf]
    %v314 = vld [vmem:[#allocation5 + $0x3cc] sm:$0xff]
    %v315 = vld [vmem:[#allocation5 + $0x3d4] sm:$0xf]
    %v316 = vld [vmem:[#allocation5 + $0x3d8] sm:$0xff]
    %v317 = vld [vmem:[#allocation5 + $0x3e0] sm:$0xf]
    %v318 = vld [vmem:[#allocation5 + $0x3e4] sm:$0xff]
    %v319 = vld [vmem:[#allocation5 + $0x3ec] sm:$0xf]
    %v320 = vld [vmem:[#allocation5 + $0x3f0] sm:$0xff]
    %v321 = vld [vmem:[#allocation5 + $0x3f8] sm:$0xf]
    %v322 = vld [vmem:[#allocation5 + $0x3fc] sm:$0xff]
    %v323 = vld [vmem:[#allocation5 + $0x404] sm:$0xf]
    %v324 = vld [vmem:[#allocation5 + $0x408] sm:$0xff]
    %v325 = vld [vmem:[#allocation5 + $0x410] sm:$0xf]
    %v326 = vld [vmem:[#allocation5 + $0x414] sm:$0xff]
    %v327 = vld [vmem:[#allocation5 + $0x41c] sm:$0xf]
    %v328 = vld [vmem:[#allocation5 + $0x420] sm:$0xff]
    %v329 = vld [vmem:[#allocation5 + $0x428] sm:$0xf]
    %v330 = vld [vmem:[#allocation5 + $0x42c] sm:$0xff]
    %v331 = vld [vmem:[#allocation5 + $0x434] sm:$0xf]
    %v332 = vld [vmem:[#allocation5 + $0x438] sm:$0xff]
    %v333 = vld [vmem:[#allocation5 + $0x440] sm:$0xf]
    %v334 = vld [vmem:[#allocation5 + $0x444] sm:$0xff]
    %v335 = vld [vmem:[#allocation5 + $0x44c] sm:$0xf]
    %v336 = vld [vmem:[#allocation5 + $0x450] sm:$0xff]
    %v337 = vld [vmem:[#allocation5 + $0x458] sm:$0xf]
    %v338 = vld [vmem:[#allocation5 + $0x45c] sm:$0xff]
    %v339 = vld [vmem:[#allocation5 + $0x464] sm:$0xf]
    %v340 = vld [vmem:[#allocation5 + $0x468] sm:$0xff]
    %v341 = vld [vmem:[#allocation5 + $0x470] sm:$0xf]
    %v342 = vld [vmem:[#allocation5 + $0x474] sm:$0xff]
    %v343 = vld [vmem:[#allocation5 + $0x47c] sm:$0xf]
    %v344 = vld [vmem:[#allocation5 + $0x480] sm:$0xff]
    %v345 = vld [vmem:[#allocation5 + $0x488] sm:$0xf]
    %v346 = vld [vmem:[#allocation5 + $0x48c] sm:$0xff]
    %v347 = vld [vmem:[#allocation5 + $0x494] sm:$0xf]
    %v348 = vld [vmem:[#allocation5 + $0x498] sm:$0xff]
    %v349 = vld [vmem:[#allocation5 + $0x4a0] sm:$0xf]
    %v350 = vld [vmem:[#allocation5 + $0x4a4] sm:$0xff]
    %v351 = vld [vmem:[#allocation5 + $0x4ac] sm:$0xf]
    %v352 = vld [vmem:[#allocation5 + $0x4b0] sm:$0xff]
    %v353 = vld [vmem:[#allocation5 + $0x4b8] sm:$0xf]
    %v354 = vld [vmem:[#allocation5 + $0x4bc] sm:$0xff]
    %v355 = vld [vmem:[#allocation5 + $0x4c4] sm:$0xf]
    %v356 = vld [vmem:[#allocation5 + $0x4c8] sm:$0xff]
    %v357 = vld [vmem:[#allocation5 + $0x4d0] sm:$0xf]
    %v358 = vld [vmem:[#allocation5 + $0x4d4] sm:$0xff]
    %v359 = vld [vmem:[#allocation5 + $0x4dc] sm:$0xf]
    %v360 = vld [vmem:[#allocation5 + $0x4e0] sm:$0xff]
    %v361 = vld [vmem:[#allocation5 + $0x4e8] sm:$0xf]
    %v362 = vld [vmem:[#allocation5 + $0x4ec] sm:$0xff]
    %v363 = vld [vmem:[#allocation5 + $0x4f4] sm:$0xf]
    %v364 = vld [vmem:[#allocation5 + $0x4f8] sm:$0xff]
    %v365 = vld [vmem:[#allocation5 + $0x500] sm:$0xf]
    %v366 = vld [vmem:[#allocation5 + $0x504] sm:$0xff]
    %v367 = vld [vmem:[#allocation5 + $0x50c] sm:$0xf]
    %v368 = vld [vmem:[#allocation7] ss:$4 sm:$0x7]
    %s369 = scalar_lea.vmem [#allocation7], 1
    %v370 = vld [vmem:[%s369] ss:$4 sm:$0x7]
    %s371 = scalar_lea.vmem [#allocation7], 2
    %v372 = vld [vmem:[%s371] ss:$4 sm:$0x7]
    %v374 = vlaneseq
    %v375 = vshrl.u32 %v374, 7
    %v376 = vsub.s32 0, %v375
    %v377 = vrot.slane %v368, %v376
    %v378 = vlaneseq
    %v379 = vshrl.u32 %v378, 7
    %v380 = vsub.s32 1, %v379
    %v381 = vrot.slane %v368, %v380
    %v382 = vlaneseq
    %v383 = vshrl.u32 %v382, 7
    %v384 = vsub.s32 2, %v383
    %v385 = vrot.slane %v368, %v384
    %v605 = vunpack.c.l.b16 %v152
    %v606 = vunpack.c.h.b16 %v152
    %v607 = vunpack.c.l.b16 %v153
    %v608 = vunpack.c.l.b16 %v154
    %v609 = vunpack.c.h.b16 %v154
    %v610 = vunpack.c.l.b16 %v155
    %v611 = vunpack.c.l.b16 %v156
    %v612 = vunpack.c.h.b16 %v156
    %v613 = vunpack.c.l.b16 %v157
    %v614 = vunpack.c.l.b16 %v158
    %v615 = vunpack.c.h.b16 %v158
    %v616 = vunpack.c.l.b16 %v159
    %v617 = vunpack.c.l.b16 %v160
    %v618 = vunpack.c.h.b16 %v160
    %v619 = vunpack.c.l.b16 %v161
    %v620 = vunpack.c.l.b16 %v162
    %v621 = vunpack.c.h.b16 %v162
    %v622 = vunpack.c.l.b16 %v163
    %v623 = vunpack.c.l.b16 %v164
    %v624 = vunpack.c.h.b16 %v164
    %v625 = vunpack.c.l.b16 %v165
    %v626 = vunpack.c.l.b16 %v166
    %v627 = vunpack.c.h.b16 %v166
    %v628 = vunpack.c.l.b16 %v167
    %v629 = vunpack.c.l.b16 %v168
    %v630 = vunpack.c.h.b16 %v168
    %v631 = vunpack.c.l.b16 %v169
    %v632 = vunpack.c.l.b16 %v170
    %v633 = vunpack.c.h.b16 %v170
    %v634 = vunpack.c.l.b16 %v171
    %v635 = vunpack.c.l.b16 %v172
    %v636 = vunpack.c.h.b16 %v172
    %v637 = vunpack.c.l.b16 %v173
    %v638 = vunpack.c.l.b16 %v174
    %v639 = vunpack.c.h.b16 %v174
    %v640 = vunpack.c.l.b16 %v175
    %v641 = vunpack.c.l.b16 %v176
    %v642 = vunpack.c.h.b16 %v176
    %v643 = vunpack.c.l.b16 %v177
    %v644 = vunpack.c.l.b16 %v178
    %v645 = vunpack.c.h.b16 %v178
    %v646 = vunpack.c.l.b16 %v179
    %v647 = vunpack.c.l.b16 %v180
    %v648 = vunpack.c.h.b16 %v180
    %v649 = vunpack.c.l.b16 %v181
    %v650 = vunpack.c.l.b16 %v182
    %v651 = vunpack.c.h.b16 %v182
    %v652 = vunpack.c.l.b16 %v183
    %v653 = vunpack.c.l.b16 %v184
    %v654 = vunpack.c.h.b16 %v184
    %v655 = vunpack.c.l.b16 %v185
    %v656 = vunpack.c.l.b16 %v186
    %v657 = vunpack.c.h.b16 %v186
    %v658 = vunpack.c.l.b16 %v187
    %v659 = vunpack.c.l.b16 %v188
    %v660 = vunpack.c.h.b16 %v188
    %v661 = vunpack.c.l.b16 %v189
    %v662 = vunpack.c.l.b16 %v190
    %v663 = vunpack.c.h.b16 %v190
    %v664 = vunpack.c.l.b16 %v191
    %v665 = vunpack.c.l.b16 %v192
    %v666 = vunpack.c.h.b16 %v192
    %v667 = vunpack.c.l.b16 %v193
    %v668 = vunpack.c.l.b16 %v194
    %v669 = vunpack.c.h.b16 %v194
    %v670 = vunpack.c.l.b16 %v195
    %v671 = vunpack.c.l.b16 %v196
    %v672 = vunpack.c.h.b16 %v196
    %v673 = vunpack.c.l.b16 %v197
    %v674 = vunpack.c.l.b16 %v198
    %v675 = vunpack.c.h.b16 %v198
    %v676 = vunpack.c.l.b16 %v199
    %v677 = vunpack.c.l.b16 %v200
    %v678 = vunpack.c.h.b16 %v200
    %v679 = vunpack.c.l.b16 %v201
    %v680 = vunpack.c.l.b16 %v202
    %v681 = vunpack.c.h.b16 %v202
    %v682 = vunpack.c.l.b16 %v203
    %v683 = vunpack.c.l.b16 %v204
    %v684 = vunpack.c.h.b16 %v204
    %v685 = vunpack.c.l.b16 %v205
    %v686 = vunpack.c.l.b16 %v206
    %v687 = vunpack.c.h.b16 %v206
    %v688 = vunpack.c.l.b16 %v207
    %v689 = vunpack.c.l.b16 %v208
    %v690 = vunpack.c.h.b16 %v208
    %v691 = vunpack.c.l.b16 %v209
    %v692 = vunpack.c.l.b16 %v210
    %v693 = vunpack.c.h.b16 %v210
    %v694 = vunpack.c.l.b16 %v211
    %v695 = vunpack.c.l.b16 %v212
    %v696 = vunpack.c.h.b16 %v212
    %v697 = vunpack.c.l.b16 %v213
    %v698 = vunpack.c.l.b16 %v214
    %v699 = vunpack.c.h.b16 %v214
    %v700 = vunpack.c.l.b16 %v215
    %v701 = vunpack.c.l.b16 %v216
    %v702 = vunpack.c.h.b16 %v216
    %v703 = vunpack.c.l.b16 %v217
    %v704 = vunpack.c.l.b16 %v218
    %v705 = vunpack.c.h.b16 %v218
    %v706 = vunpack.c.l.b16 %v219
    %v707 = vunpack.c.l.b16 %v220
    %v708 = vunpack.c.h.b16 %v220
    %v709 = vunpack.c.l.b16 %v221
    %v710 = vunpack.c.l.b16 %v222
    %v711 = vunpack.c.h.b16 %v222
    %v712 = vunpack.c.l.b16 %v223
    %v713 = vunpack.c.l.b16 %v224
    %v714 = vunpack.c.h.b16 %v224
    %v715 = vunpack.c.l.b16 %v225
    %v716 = vunpack.c.l.b16 %v226
    %v717 = vunpack.c.h.b16 %v226
    %v718 = vunpack.c.l.b16 %v227
    %v719 = vunpack.c.l.b16 %v228
    %v720 = vunpack.c.h.b16 %v228
    %v721 = vunpack.c.l.b16 %v229
    %v722 = vunpack.c.l.b16 %v230
    %v723 = vunpack.c.h.b16 %v230
    %v724 = vunpack.c.l.b16 %v231
    %v725 = vunpack.c.l.b16 %v232
    %v726 = vunpack.c.h.b16 %v232
    %v727 = vunpack.c.l.b16 %v233
    %v728 = vunpack.c.l.b16 %v234
    %v729 = vunpack.c.h.b16 %v234
    %v730 = vunpack.c.l.b16 %v235
    %v731 = vunpack.c.l.b16 %v236
    %v732 = vunpack.c.h.b16 %v236
    %v733 = vunpack.c.l.b16 %v237
    %v734 = vunpack.c.l.b16 %v238
    %v735 = vunpack.c.h.b16 %v238
    %v736 = vunpack.c.l.b16 %v239
    %v737 = vunpack.c.l.b16 %v240
    %v738 = vunpack.c.h.b16 %v240
    %v739 = vunpack.c.l.b16 %v241
    %v740 = vunpack.c.l.b16 %v242
    %v741 = vunpack.c.h.b16 %v242
    %v742 = vunpack.c.l.b16 %v243
    %v743 = vunpack.c.l.b16 %v244
    %v744 = vunpack.c.h.b16 %v244
    %v745 = vunpack.c.l.b16 %v245
    %v746 = vunpack.c.l.b16 %v246
    %v747 = vunpack.c.h.b16 %v246
    %v748 = vunpack.c.l.b16 %v247
    %v749 = vunpack.c.l.b16 %v248
    %v750 = vunpack.c.h.b16 %v248
    %v751 = vunpack.c.l.b16 %v249
    %v752 = vunpack.c.l.b16 %v250
    %v753 = vunpack.c.h.b16 %v250
    %v754 = vunpack.c.l.b16 %v251
    %v755 = vunpack.c.l.b16 %v252
    %v756 = vunpack.c.h.b16 %v252
    %v757 = vunpack.c.l.b16 %v253
    %v758 = vunpack.c.l.b16 %v254
    %v759 = vunpack.c.h.b16 %v254
    %v760 = vunpack.c.l.b16 %v255
    %v761 = vunpack.c.l.b16 %v256
    %v762 = vunpack.c.h.b16 %v256
    %v763 = vunpack.c.l.b16 %v257
    %v764 = vunpack.c.l.b16 %v258
    %v765 = vunpack.c.h.b16 %v258
    %v766 = vunpack.c.l.b16 %v259
    %v767 = vunpack.c.l.b16 %v260
    %v768 = vunpack.c.h.b16 %v260
    %v769 = vunpack.c.l.b16 %v261
    %v770 = vunpack.c.l.b16 %v262
    %v771 = vunpack.c.h.b16 %v262
    %v772 = vunpack.c.l.b16 %v263
    %v773 = vunpack.c.l.b16 %v264
    %v774 = vunpack.c.h.b16 %v264
    %v775 = vunpack.c.l.b16 %v265
    %v776 = vunpack.c.l.b16 %v266
    %v777 = vunpack.c.h.b16 %v266
    %v778 = vunpack.c.l.b16 %v267
    %v779 = vunpack.c.l.b16 %v268
    %v780 = vunpack.c.h.b16 %v268
    %v781 = vunpack.c.l.b16 %v269
    %v782 = vunpack.c.l.b16 %v270
    %v783 = vunpack.c.h.b16 %v270
    %v784 = vunpack.c.l.b16 %v271
    %v785 = vunpack.c.l.b16 %v272
    %v786 = vunpack.c.h.b16 %v272
    %v787 = vunpack.c.l.b16 %v273
    %v788 = vunpack.c.l.b16 %v274
    %v789 = vunpack.c.h.b16 %v274
    %v790 = vunpack.c.l.b16 %v275
    %v791 = vunpack.c.l.b16 %v276
    %v792 = vunpack.c.h.b16 %v276
    %v793 = vunpack.c.l.b16 %v277
    %v794 = vunpack.c.l.b16 %v278
    %v795 = vunpack.c.h.b16 %v278
    %v796 = vunpack.c.l.b16 %v279
    %v797 = vunpack.c.l.b16 %v280
    %v798 = vunpack.c.h.b16 %v280
    %v799 = vunpack.c.l.b16 %v281
    %v800 = vunpack.c.l.b16 %v282
    %v801 = vunpack.c.h.b16 %v282
    %v802 = vunpack.c.l.b16 %v283
    %v803 = vunpack.c.l.b16 %v284
    %v804 = vunpack.c.h.b16 %v284
    %v805 = vunpack.c.l.b16 %v285
    %v806 = vunpack.c.l.b16 %v286
    %v807 = vunpack.c.h.b16 %v286
    %v808 = vunpack.c.l.b16 %v287
    %v809 = vunpack.c.l.b16 %v288
    %v810 = vunpack.c.h.b16 %v288
    %v811 = vunpack.c.l.b16 %v289
    %v812 = vunpack.c.l.b16 %v290
    %v813 = vunpack.c.h.b16 %v290
    %v814 = vunpack.c.l.b16 %v291
    %v815 = vunpack.c.l.b16 %v292
    %v816 = vunpack.c.h.b16 %v292
    %v817 = vunpack.c.l.b16 %v293
    %v818 = vunpack.c.l.b16 %v294
    %v819 = vunpack.c.h.b16 %v294
    %v820 = vunpack.c.l.b16 %v295
    %v821 = vunpack.c.l.b16 %v296
    %v822 = vunpack.c.h.b16 %v296
    %v823 = vunpack.c.l.b16 %v297
    %v824 = vunpack.c.l.b16 %v298
    %v825 = vunpack.c.h.b16 %v298
    %v826 = vunpack.c.l.b16 %v299
    %v827 = vunpack.c.l.b16 %v300
    %v828 = vunpack.c.h.b16 %v300
    %v829 = vunpack.c.l.b16 %v301
    %v830 = vunpack.c.l.b16 %v302
    %v831 = vunpack.c.h.b16 %v302
    %v832 = vunpack.c.l.b16 %v303
    %v833 = vunpack.c.l.b16 %v304
    %v834 = vunpack.c.h.b16 %v304
    %v835 = vunpack.c.l.b16 %v305
    %v836 = vunpack.c.l.b16 %v306
    %v837 = vunpack.c.h.b16 %v306
    %v838 = vunpack.c.l.b16 %v307
    %v839 = vunpack.c.l.b16 %v308
    %v840 = vunpack.c.h.b16 %v308
    %v841 = vunpack.c.l.b16 %v309
    %v842 = vunpack.c.l.b16 %v310
    %v843 = vunpack.c.h.b16 %v310
    %v844 = vunpack.c.l.b16 %v311
    %v845 = vunpack.c.l.b16 %v312
    %v846 = vunpack.c.h.b16 %v312
    %v847 = vunpack.c.l.b16 %v313
    %v848 = vunpack.c.l.b16 %v314
    %v849 = vunpack.c.h.b16 %v314
    %v850 = vunpack.c.l.b16 %v315
    %v851 = vunpack.c.l.b16 %v316
    %v852 = vunpack.c.h.b16 %v316
    %v853 = vunpack.c.l.b16 %v317
    %v854 = vunpack.c.l.b16 %v318
    %v855 = vunpack.c.h.b16 %v318
    %v856 = vunpack.c.l.b16 %v319
    %v857 = vunpack.c.l.b16 %v320
    %v858 = vunpack.c.h.b16 %v320
    %v859 = vunpack.c.l.b16 %v321
    %v860 = vunpack.c.l.b16 %v322
    %v861 = vunpack.c.h.b16 %v322
    %v862 = vunpack.c.l.b16 %v323
    %v863 = vunpack.c.l.b16 %v324
    %v864 = vunpack.c.h.b16 %v324
    %v865 = vunpack.c.l.b16 %v325
    %v866 = vunpack.c.l.b16 %v326
    %v867 = vunpack.c.h.b16 %v326
    %v868 = vunpack.c.l.b16 %v327
    %v869 = vunpack.c.l.b16 %v328
    %v870 = vunpack.c.h.b16 %v328
    %v871 = vunpack.c.l.b16 %v329
    %v872 = vunpack.c.l.b16 %v330
    %v873 = vunpack.c.h.b16 %v330
    %v874 = vunpack.c.l.b16 %v331
    %v875 = vunpack.c.l.b16 %v332
    %v876 = vunpack.c.h.b16 %v332
    %v877 = vunpack.c.l.b16 %v333
    %v878 = vunpack.c.l.b16 %v334
    %v879 = vunpack.c.h.b16 %v334
    %v880 = vunpack.c.l.b16 %v335
    %v881 = vunpack.c.l.b16 %v336
    %v882 = vunpack.c.h.b16 %v336
    %v883 = vunpack.c.l.b16 %v337
    %v884 = vunpack.c.l.b16 %v338
    %v885 = vunpack.c.h.b16 %v338
    %v886 = vunpack.c.l.b16 %v339
    %v887 = vunpack.c.l.b16 %v340
    %v888 = vunpack.c.h.b16 %v340
    %v889 = vunpack.c.l.b16 %v341
    %v890 = vunpack.c.l.b16 %v342
    %v891 = vunpack.c.h.b16 %v342
    %v892 = vunpack.c.l.b16 %v343
    %v893 = vunpack.c.l.b16 %v344
    %v894 = vunpack.c.h.b16 %v344
    %v895 = vunpack.c.l.b16 %v345
    %v896 = vunpack.c.l.b16 %v346
    %v897 = vunpack.c.h.b16 %v346
    %v898 = vunpack.c.l.b16 %v347
    %v899 = vunpack.c.l.b16 %v348
    %v900 = vunpack.c.h.b16 %v348
    %v901 = vunpack.c.l.b16 %v349
    %v902 = vunpack.c.l.b16 %v350
    %v903 = vunpack.c.h.b16 %v350
    %v904 = vunpack.c.l.b16 %v351
    %v905 = vunpack.c.l.b16 %v352
    %v906 = vunpack.c.h.b16 %v352
    %v907 = vunpack.c.l.b16 %v353
    %v908 = vunpack.c.l.b16 %v354
    %v909 = vunpack.c.h.b16 %v354
    %v910 = vunpack.c.l.b16 %v355
    %v911 = vunpack.c.l.b16 %v356
    %v912 = vunpack.c.h.b16 %v356
    %v913 = vunpack.c.l.b16 %v357
    %v914 = vunpack.c.l.b16 %v358
    %v915 = vunpack.c.h.b16 %v358
    %v916 = vunpack.c.l.b16 %v359
    %v917 = vunpack.c.l.b16 %v360
    %v918 = vunpack.c.h.b16 %v360
    %v919 = vunpack.c.l.b16 %v361
    %v920 = vunpack.c.l.b16 %v362
    %v921 = vunpack.c.h.b16 %v362
    %v922 = vunpack.c.l.b16 %v363
    %v923 = vunpack.c.l.b16 %v364
    %v924 = vunpack.c.h.b16 %v364
    %v925 = vunpack.c.l.b16 %v365
    %v926 = vunpack.c.l.b16 %v366
    %v927 = vunpack.c.h.b16 %v366
    %v928 = vunpack.c.l.b16 %v367
    %v929 = vpack.c.b16 %v608, %v605
    %v930 = vpack.c.b16 %v609, %v606
    %v931 = vpack.c.b16 %v610, %v607
    %v932 = vpack.c.b16 %v614, %v611
    %v933 = vpack.c.b16 %v615, %v612
    %v934 = vpack.c.b16 %v616, %v613
    %v935 = vpack.c.b16 %v620, %v617
    %v936 = vpack.c.b16 %v621, %v618
    %v937 = vpack.c.b16 %v622, %v619
    %v938 = vpack.c.b16 %v626, %v623
    %v939 = vpack.c.b16 %v627, %v624
    %v940 = vpack.c.b16 %v628, %v625
    %v941 = vpack.c.b16 %v632, %v629
    %v942 = vpack.c.b16 %v633, %v630
    %v943 = vpack.c.b16 %v634, %v631
    %v944 = vpack.c.b16 %v638, %v635
    %v945 = vpack.c.b16 %v639, %v636
    %v946 = vpack.c.b16 %v640, %v637
    %v947 = vpack.c.b16 %v644, %v641
    %v948 = vpack.c.b16 %v645, %v642
    %v949 = vpack.c.b16 %v646, %v643
    %v950 = vpack.c.b16 %v650, %v647
    %v951 = vpack.c.b16 %v651, %v648
    %v952 = vpack.c.b16 %v652, %v649
    %v953 = vpack.c.b16 %v656, %v653
    %v954 = vpack.c.b16 %v657, %v654
    %v955 = vpack.c.b16 %v658, %v655
    %v956 = vpack.c.b16 %v662, %v659
    %v957 = vpack.c.b16 %v663, %v660
    %v958 = vpack.c.b16 %v664, %v661
    %v959 = vpack.c.b16 %v668, %v665
    %v960 = vpack.c.b16 %v669, %v666
    %v961 = vpack.c.b16 %v670, %v667
    %v962 = vpack.c.b16 %v674, %v671
    %v963 = vpack.c.b16 %v675, %v672
    %v964 = vpack.c.b16 %v676, %v673
    %v965 = vpack.c.b16 %v680, %v677
    %v966 = vpack.c.b16 %v681, %v678
    %v967 = vpack.c.b16 %v682, %v679
    %v968 = vpack.c.b16 %v686, %v683
    %v969 = vpack.c.b16 %v687, %v684
    %v970 = vpack.c.b16 %v688, %v685
    %v971 = vpack.c.b16 %v692, %v689
    %v972 = vpack.c.b16 %v693, %v690
    %v973 = vpack.c.b16 %v694, %v691
    %v974 = vpack.c.b16 %v698, %v695
    %v975 = vpack.c.b16 %v699, %v696
    %v976 = vpack.c.b16 %v700, %v697
    %v977 = vpack.c.b16 %v704, %v701
    %v978 = vpack.c.b16 %v705, %v702
    %v979 = vpack.c.b16 %v706, %v703
    %v980 = vpack.c.b16 %v710, %v707
    %v981 = vpack.c.b16 %v711, %v708
    %v982 = vpack.c.b16 %v712, %v709
    %v983 = vpack.c.b16 %v716, %v713
    %v984 = vpack.c.b16 %v717, %v714
    %v985 = vpack.c.b16 %v718, %v715
    %v986 = vpack.c.b16 %v722, %v719
    %v987 = vpack.c.b16 %v723, %v720
    %v988 = vpack.c.b16 %v724, %v721
    %v989 = vpack.c.b16 %v728, %v725
    %v990 = vpack.c.b16 %v729, %v726
    %v991 = vpack.c.b16 %v730, %v727
    %v992 = vpack.c.b16 %v734, %v731
    %v993 = vpack.c.b16 %v735, %v732
    %v994 = vpack.c.b16 %v736, %v733
    %v995 = vpack.c.b16 %v740, %v737
    %v996 = vpack.c.b16 %v741, %v738
    %v997 = vpack.c.b16 %v742, %v739
    %v998 = vpack.c.b16 %v746, %v743
    %v999 = vpack.c.b16 %v747, %v744
    %v1000 = vpack.c.b16 %v748, %v745
    %v1001 = vpack.c.b16 %v752, %v749
    %v1002 = vpack.c.b16 %v753, %v750
    %v1003 = vpack.c.b16 %v754, %v751
    %v1004 = vpack.c.b16 %v758, %v755
    %v1005 = vpack.c.b16 %v759, %v756
    %v1006 = vpack.c.b16 %v760, %v757
    %v1007 = vpack.c.b16 %v764, %v761
    %v1008 = vpack.c.b16 %v765, %v762
    %v1009 = vpack.c.b16 %v766, %v763
    %v1010 = vpack.c.b16 %v770, %v767
    %v1011 = vpack.c.b16 %v771, %v768
    %v1012 = vpack.c.b16 %v772, %v769
    %v1013 = vpack.c.b16 %v776, %v773
    %v1014 = vpack.c.b16 %v777, %v774
    %v1015 = vpack.c.b16 %v778, %v775
    %v1016 = vpack.c.b16 %v782, %v779
    %v1017 = vpack.c.b16 %v783, %v780
    %v1018 = vpack.c.b16 %v784, %v781
    %v1019 = vpack.c.b16 %v788, %v785
    %v1020 = vpack.c.b16 %v789, %v786
    %v1021 = vpack.c.b16 %v790, %v787
    %v1022 = vpack.c.b16 %v794, %v791
    %v1023 = vpack.c.b16 %v795, %v792
    %v1024 = vpack.c.b16 %v796, %v793
    %v1025 = vpack.c.b16 %v800, %v797
    %v1026 = vpack.c.b16 %v801, %v798
    %v1027 = vpack.c.b16 %v802, %v799
    %v1028 = vpack.c.b16 %v806, %v803
    %v1029 = vpack.c.b16 %v807, %v804
    %v1030 = vpack.c.b16 %v808, %v805
    %v1031 = vpack.c.b16 %v812, %v809
    %v1032 = vpack.c.b16 %v813, %v810
    %v1033 = vpack.c.b16 %v814, %v811
    %v1034 = vpack.c.b16 %v818, %v815
    %v1035 = vpack.c.b16 %v819, %v816
    %v1036 = vpack.c.b16 %v820, %v817
    %v1037 = vpack.c.b16 %v824, %v821
    %v1038 = vpack.c.b16 %v825, %v822
    %v1039 = vpack.c.b16 %v826, %v823
    %v1040 = vpack.c.b16 %v830, %v827
    %v1041 = vpack.c.b16 %v831, %v828
    %v1042 = vpack.c.b16 %v832, %v829
    %v1043 = vpack.c.b16 %v836, %v833
    %v1044 = vpack.c.b16 %v837, %v834
    %v1045 = vpack.c.b16 %v838, %v835
    %v1046 = vpack.c.b16 %v842, %v839
    %v1047 = vpack.c.b16 %v843, %v840
    %v1048 = vpack.c.b16 %v844, %v841
    %v1049 = vpack.c.b16 %v848, %v845
    %v1050 = vpack.c.b16 %v849, %v846
    %v1051 = vpack.c.b16 %v850, %v847
    %v1052 = vpack.c.b16 %v854, %v851
    %v1053 = vpack.c.b16 %v855, %v852
    %v1054 = vpack.c.b16 %v856, %v853
    %v1055 = vpack.c.b16 %v860, %v857
    %v1056 = vpack.c.b16 %v861, %v858
    %v1057 = vpack.c.b16 %v862, %v859
    %v1058 = vpack.c.b16 %v866, %v863
    %v1059 = vpack.c.b16 %v867, %v864
    %v1060 = vpack.c.b16 %v868, %v865
    %v1061 = vpack.c.b16 %v872, %v869
    %v1062 = vpack.c.b16 %v873, %v870
    %v1063 = vpack.c.b16 %v874, %v871
    %v1064 = vpack.c.b16 %v878, %v875
    %v1065 = vpack.c.b16 %v879, %v876
    %v1066 = vpack.c.b16 %v880, %v877
    %v1067 = vpack.c.b16 %v884, %v881
    %v1068 = vpack.c.b16 %v885, %v882
    %v1069 = vpack.c.b16 %v886, %v883
    %v1070 = vpack.c.b16 %v890, %v887
    %v1071 = vpack.c.b16 %v891, %v888
    %v1072 = vpack.c.b16 %v892, %v889
    %v1073 = vpack.c.b16 %v896, %v893
    %v1074 = vpack.c.b16 %v897, %v894
    %v1075 = vpack.c.b16 %v898, %v895
    %v1076 = vpack.c.b16 %v902, %v899
    %v1077 = vpack.c.b16 %v903, %v900
    %v1078 = vpack.c.b16 %v904, %v901
    %v1079 = vpack.c.b16 %v908, %v905
    %v1080 = vpack.c.b16 %v909, %v906
    %v1081 = vpack.c.b16 %v910, %v907
    %v1082 = vpack.c.b16 %v914, %v911
    %v1083 = vpack.c.b16 %v915, %v912
    %v1084 = vpack.c.b16 %v916, %v913
    %v1085 = vpack.c.b16 %v920, %v917
    %v1086 = vpack.c.b16 %v921, %v918
    %v1087 = vpack.c.b16 %v922, %v919
    %v1088 = vpack.c.b16 %v926, %v923
    %v1089 = vpack.c.b16 %v927, %v924
    %v1090 = vpack.c.b16 %v928, %v925
    %vm1253 = vcmask 785408
    %v1255 = vsel %vm1253, %v151, 0
    %1257 = vmatprep.subr.bf16.mxu0 %v930
    %1258 = vmatpush1.bf16.msra.mxu0 %v929
    %1259 = vmatprep.subr.bf16.mxu0 %v933
    %1260 = vmatpush1.bf16.msra.mxu0 %v932
    %1261 = vmatprep.subr.bf16.mxu0 %v936
    %1262 = vmatpush1.bf16.msra.mxu0 %v935
    %1263 = vmatprep.subr.bf16.mxu0 %v939
    %1264 = vmatpush1.bf16.msra.mxu0 %v938
    %1265 = vmatprep.subr.bf16.mxu0 %v942
    %1266 = vmatpush1.bf16.msra.mxu0 %v941
    %1267 = vmatprep.subr.bf16.mxu0 %v945
    %1268 = vmatpush1.bf16.msra.mxu0 %v944
    %1269 = vmatprep.subr.bf16.mxu0 %v948
    %1270 = vmatpush1.bf16.msra.mxu0 %v947
    %1271 = vmatprep.subr.bf16.mxu0 %v951
    %1272 = vmatpush1.bf16.msra.mxu0 %v950
    %1273 = vmatprep.subr.bf16.mxu0 %v954
    %1274 = vmatpush1.bf16.msra.mxu0 %v953
    %1275 = vmatprep.subr.bf16.mxu0 %v957
    %1276 = vmatpush1.bf16.msra.mxu0 %v956
    %1277 = vmatprep.subr.bf16.mxu0 %v960
    %1278 = vmatpush1.bf16.msra.mxu0 %v959
    %1279 = vmatprep.subr.bf16.mxu0 %v963
    %1280 = vmatpush1.bf16.msra.mxu0 %v962
    %1281 = vmatprep.subr.bf16.mxu0 %v966
    %1282 = vmatpush1.bf16.msra.mxu0 %v965
    %1283 = vmatprep.subr.bf16.mxu0 %v969
    %1284 = vmatpush1.bf16.msra.mxu0 %v968
    %1285 = vmatprep.subr.bf16.mxu0 %v972
    %1286 = vmatpush1.bf16.msra.mxu0 %v971
    %1287 = vmatprep.subr.bf16.mxu0 %v975
    %1288 = vmatpush1.bf16.msra.mxu0 %v974
    %1289 = vmatprep.mubr.bf16.mxu0 %v146
    %1290 = vmatmul.mubr.bf16.gmra.mrb[0].mxu0 %v145
    %v1291 = vpop.f32.mrb[0].mxu0
    %v1292 = vadd.f32 %v377, %v1291
    %v1293 = vpop.f32.mrb[0].mxu0
    %v1294 = vadd.f32 %v381, %v1293
    %v1295 = vpop.f32.mrb[0].mxu0
    %v1296 = vpop.f32.mrb[0].mxu0
    %1297 = vdwg.mxu0
    %1298 = vmatprep.subr.bf16.mxu0 %v978
    %1299 = vmatpush1.bf16.msra.mxu0 %v977
    %1300 = vmatprep.subr.bf16.mxu0 %v981
    %1301 = vmatpush1.bf16.msra.mxu0 %v980
    %1302 = vmatprep.subr.bf16.mxu0 %v984
    %1303 = vmatpush1.bf16.msra.mxu0 %v983
    %1304 = vmatprep.subr.bf16.mxu0 %v987
    %1305 = vmatpush1.bf16.msra.mxu0 %v986
    %1306 = vmatprep.subr.bf16.mxu0 %v990
    %1307 = vmatpush1.bf16.msra.mxu0 %v989
    %1308 = vmatprep.subr.bf16.mxu0 %v993
    %1309 = vmatpush1.bf16.msra.mxu0 %v992
    %1310 = vmatprep.subr.bf16.mxu0 %v996
    %1311 = vmatpush1.bf16.msra.mxu0 %v995
    %1312 = vmatprep.subr.bf16.mxu0 %v999
    %1313 = vmatpush1.bf16.msra.mxu0 %v998
    %1314 = vmatprep.subr.bf16.mxu0 %v1002
    %1315 = vmatpush1.bf16.msra.mxu0 %v1001
    %1316 = vmatprep.subr.bf16.mxu0 %v1005
    %1317 = vmatpush1.bf16.msra.mxu0 %v1004
    %1318 = vmatprep.subr.bf16.mxu0 %v1008
    %1319 = vmatpush1.bf16.msra.mxu0 %v1007
    %1320 = vmatprep.subr.bf16.mxu0 %v1011
    %1321 = vmatpush1.bf16.msra.mxu0 %v1010
    %1322 = vmatprep.subr.bf16.mxu0 %v1014
    %1323 = vmatpush1.bf16.msra.mxu0 %v1013
    %1324 = vmatprep.subr.bf16.mxu0 %v1017
    %1325 = vmatpush1.bf16.msra.mxu0 %v1016
    %1326 = vmatprep.subr.bf16.mxu0 %v1020
    %1327 = vmatpush1.bf16.msra.mxu0 %v1019
    %1328 = vmatprep.subr.bf16.mxu0 %v1023
    %1329 = vmatpush1.bf16.msra.mxu0 %v1022
    %1330 = vmatprep.mubr.bf16.mxu0 %v148
    %1331 = vmatmul.mubr.bf16.gmra.mrb[0].mxu0 %v147
    %v1332 = vpop.f32.mrb[0].mxu0
    %v1333 = vadd.f32 %v1292, %v1332
    %v1334 = vpop.f32.mrb[0].mxu0
    %v1335 = vadd.f32 %v1294, %v1334
    %v1336 = vpop.f32.mrb[0].mxu0
    %v1337 = vpop.f32.mrb[0].mxu0
    %1338 = vdwg.mxu0
    %1339 = vmatprep.subr.bf16.mxu0 %v1026
    %1340 = vmatpush1.bf16.msra.mxu0 %v1025
    %1341 = vmatprep.subr.bf16.mxu0 %v1029
    %1342 = vmatpush1.bf16.msra.mxu0 %v1028
    %1343 = vmatprep.subr.bf16.mxu0 %v1032
    %1344 = vmatpush1.bf16.msra.mxu0 %v1031
    %1345 = vmatprep.subr.bf16.mxu0 %v1035
    %1346 = vmatpush1.bf16.msra.mxu0 %v1034
    %1347 = vmatprep.subr.bf16.mxu0 %v1038
    %1348 = vmatpush1.bf16.msra.mxu0 %v1037
    %1349 = vmatprep.subr.bf16.mxu0 %v1041
    %1350 = vmatpush1.bf16.msra.mxu0 %v1040
    %1351 = vmatprep.subr.bf16.mxu0 %v1044
    %1352 = vmatpush1.bf16.msra.mxu0 %v1043
    %1353 = vmatprep.subr.bf16.mxu0 %v1047
    %1354 = vmatpush1.bf16.msra.mxu0 %v1046
    %1355 = vmatprep.subr.bf16.mxu0 %v1050
    %1356 = vmatpush1.bf16.msra.mxu0 %v1049
    %1357 = vmatprep.subr.bf16.mxu0 %v1053
    %1358 = vmatpush1.bf16.msra.mxu0 %v1052
    %1359 = vmatprep.subr.bf16.mxu0 %v1056
    %1360 = vmatpush1.bf16.msra.mxu0 %v1055
    %1361 = vmatprep.subr.bf16.mxu0 %v1059
    %1362 = vmatpush1.bf16.msra.mxu0 %v1058
    %1363 = vmatprep.subr.bf16.mxu0 %v1062
    %1364 = vmatpush1.bf16.msra.mxu0 %v1061
    %1365 = vmatprep.subr.bf16.mxu0 %v1065
    %1366 = vmatpush1.bf16.msra.mxu0 %v1064
    %1367 = vmatprep.subr.bf16.mxu0 %v1068
    %1368 = vmatpush1.bf16.msra.mxu0 %v1067
    %1369 = vmatprep.subr.bf16.mxu0 %v1071
    %1370 = vmatpush1.bf16.msra.mxu0 %v1070
    %1371 = vmatprep.mubr.bf16.mxu0 %v150
    %1372 = vmatmul.mubr.bf16.gmra.mrb[0].mxu0 %v149
    %v1373 = vpop.f32.mrb[0].mxu0
    %v1374 = vadd.f32 %v1333, %v1373
    %v1375 = vpop.f32.mrb[0].mxu0
    %v1376 = vadd.f32 %v1335, %v1375
    %v1377 = vpop.f32.mrb[0].mxu0
    %v1378 = vpop.f32.mrb[0].mxu0
    %1379 = vdwg.mxu0
    %1380 = vmatprep.subr.bf16.mxu0 %v1074
    %1381 = vmatpush1.bf16.msra.mxu0 %v1073
    %1382 = vmatprep.subr.bf16.mxu0 %v1077
    %1383 = vmatpush1.bf16.msra.mxu0 %v1076
    %1384 = vmatprep.subr.bf16.mxu0 %v1080
    %1385 = vmatpush1.bf16.msra.mxu0 %v1079
    %1386 = vmatprep.subr.bf16.mxu0 %v1083
    %1387 = vmatpush1.bf16.msra.mxu0 %v1082
    %1388 = vmatprep.subr.bf16.mxu0 %v1086
    %1389 = vmatpush1.bf16.msra.mxu0 %v1085
    %1390 = vmatprep.subr.bf16.mxu0 %v1089
    %1391 = vmatpush1.bf16.msra.mxu0 %v1088
    %1392 = vmatprep.subr.bf16.mxu0 0
    %1393 = vmatpush1.bf16.msra.mxu0 0
    %1394 = vmatprep.subr.bf16.mxu0 0
    %1395 = vmatpush1.bf16.msra.mxu0 0
    %1396 = vmatprep.subr.bf16.mxu0 0
    %1397 = vmatpush1.bf16.msra.mxu0 0
    %1398 = vmatprep.subr.bf16.mxu0 0
    %1399 = vmatpush1.bf16.msra.mxu0 0
    %1400 = vmatprep.subr.bf16.mxu0 0
    %1401 = vmatpush1.bf16.msra.mxu0 0
    %1402 = vmatprep.subr.bf16.mxu0 0
    %1403 = vmatpush1.bf16.msra.mxu0 0
    %1404 = vmatprep.subr.bf16.mxu0 0
    %1405 = vmatpush1.bf16.msra.mxu0 0
    %1406 = vmatprep.subr.bf16.mxu0 0
    %1407 = vmatpush1.bf16.msra.mxu0 0
    %1408 = vmatprep.subr.bf16.mxu0 0
    %1409 = vmatpush1.bf16.msra.mxu0 0
    %1410 = vmatprep.subr.bf16.mxu0 0
    %1411 = vmatpush1.bf16.msra.mxu0 0
    %1412 = vmatprep.mubr.bf16.mxu0 0
    %1413 = vmatmul.mubr.bf16.gmra.mrb[0].mxu0 %v1255
    %v1414 = vpop.f32.mrb[0].mxu0
    %v1415 = vadd.f32 %v1374, %v1414
    %v1416 = vpop.f32.mrb[0].mxu0
    %v1417 = vadd.f32 %v1376, %v1416
    %v1418 = vpop.f32.mrb[0].mxu0
    %v1419 = vpop.f32.mrb[0].mxu0
    %1420 = vdwg.mxu0
    %1421 = vmatprep.subr.bf16.mxu0 0
    %1422 = vmatpush1.bf16.msra.mxu0 %v931
    %1423 = vmatprep.subr.bf16.mxu0 0
    %1424 = vmatpush1.bf16.msra.mxu0 %v934
    %1425 = vmatprep.subr.bf16.mxu0 0
    %1426 = vmatpush1.bf16.msra.mxu0 %v937
    %1427 = vmatprep.subr.bf16.mxu0 0
    %1428 = vmatpush1.bf16.msra.mxu0 %v940
    %1429 = vmatprep.subr.bf16.mxu0 0
    %1430 = vmatpush1.bf16.msra.mxu0 %v943
    %1431 = vmatprep.subr.bf16.mxu0 0
    %1432 = vmatpush1.bf16.msra.mxu0 %v946
    %1433 = vmatprep.subr.bf16.mxu0 0
    %1434 = vmatpush1.bf16.msra.mxu0 %v949
    %1435 = vmatprep.subr.bf16.mxu0 0
    %1436 = vmatpush1.bf16.msra.mxu0 %v952
    %1437 = vmatprep.subr.bf16.mxu0 0
    %1438 = vmatpush1.bf16.msra.mxu0 %v955
    %1439 = vmatprep.subr.bf16.mxu0 0
    %1440 = vmatpush1.bf16.msra.mxu0 %v958
    %1441 = vmatprep.subr.bf16.mxu0 0
    %1442 = vmatpush1.bf16.msra.mxu0 %v961
    %1443 = vmatprep.subr.bf16.mxu0 0
    %1444 = vmatpush1.bf16.msra.mxu0 %v964
    %1445 = vmatprep.subr.bf16.mxu0 0
    %1446 = vmatpush1.bf16.msra.mxu0 %v967
    %1447 = vmatprep.subr.bf16.mxu0 0
    %1448 = vmatpush1.bf16.msra.mxu0 %v970
    %1449 = vmatprep.subr.bf16.mxu0 0
    %1450 = vmatpush1.bf16.msra.mxu0 %v973
    %1451 = vmatprep.subr.bf16.mxu0 0
    %1452 = vmatpush1.bf16.msra.mxu0 %v976
    %1453 = vmatprep.mubr.bf16.mxu0 %v146
    %1454 = vmatmul.mubr.bf16.gmra.mrb[0].mxu0 %v145
    %v1455 = vpop.f32.mrb[0].mxu0
    %v1456 = vadd.f32 %v385, %v1455
    %v1457 = vpop.f32.mrb[0].mxu0
    %v1458 = vpop.f32.mrb[0].mxu0
    %v1459 = vpop.f32.mrb[0].mxu0
    %1460 = vdwg.mxu0
    %1461 = vmatprep.subr.bf16.mxu0 0
    %1462 = vmatpush1.bf16.msra.mxu0 %v979
    %1463 = vmatprep.subr.bf16.mxu0 0
    %1464 = vmatpush1.bf16.msra.mxu0 %v982
    %1465 = vmatprep.subr.bf16.mxu0 0
    %1466 = vmatpush1.bf16.msra.mxu0 %v985
    %1467 = vmatprep.subr.bf16.mxu0 0
    %1468 = vmatpush1.bf16.msra.mxu0 %v988
    %1469 = vmatprep.subr.bf16.mxu0 0
    %1470 = vmatpush1.bf16.msra.mxu0 %v991
    %1471 = vmatprep.subr.bf16.mxu0 0
    %1472 = vmatpush1.bf16.msra.mxu0 %v994
    %1473 = vmatprep.subr.bf16.mxu0 0
    %1474 = vmatpush1.bf16.msra.mxu0 %v997
    %1475 = vmatprep.subr.bf16.mxu0 0
    %1476 = vmatpush1.bf16.msra.mxu0 %v1000
    %1477 = vmatprep.subr.bf16.mxu0 0
    %1478 = vmatpush1.bf16.msra.mxu0 %v1003
    %1479 = vmatprep.subr.bf16.mxu0 0
    %1480 = vmatpush1.bf16.msra.mxu0 %v1006
    %1481 = vmatprep.subr.bf16.mxu0 0
    %1482 = vmatpush1.bf16.msra.mxu0 %v1009
    %1483 = vmatprep.subr.bf16.mxu0 0
    %1484 = vmatpush1.bf16.msra.mxu0 %v1012
    %1485 = vmatprep.subr.bf16.mxu0 0
    %1486 = vmatpush1.bf16.msra.mxu0 %v1015
    %1487 = vmatprep.subr.bf16.mxu0 0
    %1488 = vmatpush1.bf16.msra.mxu0 %v1018
    %1489 = vmatprep.subr.bf16.mxu0 0
    %1490 = vmatpush1.bf16.msra.mxu0 %v1021
    %1491 = vmatprep.subr.bf16.mxu0 0
    %1492 = vmatpush1.bf16.msra.mxu0 %v1024
    %1493 = vmatprep.mubr.bf16.mxu0 %v148
    %1494 = vmatmul.mubr.bf16.gmra.mrb[0].mxu0 %v147
    %v1495 = vpop.f32.mrb[0].mxu0
    %v1496 = vadd.f32 %v1456, %v1495
    %v1497 = vpop.f32.mrb[0].mxu0
    %v1498 = vpop.f32.mrb[0].mxu0
    %v1499 = vpop.f32.mrb[0].mxu0
    %1500 = vdwg.mxu0
    %1501 = vmatprep.subr.bf16.mxu0 0
    %1502 = vmatpush1.bf16.msra.mxu0 %v1027
    %1503 = vmatprep.subr.bf16.mxu0 0
    %1504 = vmatpush1.bf16.msra.mxu0 %v1030
    %1505 = vmatprep.subr.bf16.mxu0 0
    %1506 = vmatpush1.bf16.msra.mxu0 %v1033
    %1507 = vmatprep.subr.bf16.mxu0 0
    %1508 = vmatpush1.bf16.msra.mxu0 %v1036
    %1509 = vmatprep.subr.bf16.mxu0 0
    %1510 = vmatpush1.bf16.msra.mxu0 %v1039
    %1511 = vmatprep.subr.bf16.mxu0 0
    %1512 = vmatpush1.bf16.msra.mxu0 %v1042
    %1513 = vmatprep.subr.bf16.mxu0 0
    %1514 = vmatpush1.bf16.msra.mxu0 %v1045
    %1515 = vmatprep.subr.bf16.mxu0 0
    %1516 = vmatpush1.bf16.msra.mxu0 %v1048
    %1517 = vmatprep.subr.bf16.mxu0 0
    %1518 = vmatpush1.bf16.msra.mxu0 %v1051
    %1519 = vmatprep.subr.bf16.mxu0 0
    %1520 = vmatpush1.bf16.msra.mxu0 %v1054
    %1521 = vmatprep.subr.bf16.mxu0 0
    %1522 = vmatpush1.bf16.msra.mxu0 %v1057
    %1523 = vmatprep.subr.bf16.mxu0 0
    %1524 = vmatpush1.bf16.msra.mxu0 %v1060
    %1525 = vmatprep.subr.bf16.mxu0 0
    %1526 = vmatpush1.bf16.msra.mxu0 %v1063
    %1527 = vmatprep.subr.bf16.mxu0 0
    %1528 = vmatpush1.bf16.msra.mxu0 %v1066
    %1529 = vmatprep.subr.bf16.mxu0 0
    %1530 = vmatpush1.bf16.msra.mxu0 %v1069
    %1531 = vmatprep.subr.bf16.mxu0 0
    %1532 = vmatpush1.bf16.msra.mxu0 %v1072
    %1533 = vmatprep.mubr.bf16.mxu0 %v150
    %1534 = vmatmul.mubr.bf16.gmra.mrb[0].mxu0 %v149
    %v1535 = vpop.f32.mrb[0].mxu0
    %v1536 = vadd.f32 %v1496, %v1535
    %v1537 = vpop.f32.mrb[0].mxu0
    %v1538 = vpop.f32.mrb[0].mxu0
    %v1539 = vpop.f32.mrb[0].mxu0
    %1540 = vdwg.mxu0
    %1541 = vmatprep.subr.bf16.mxu0 0
    %1542 = vmatpush1.bf16.msra.mxu0 %v1075
    %1543 = vmatprep.subr.bf16.mxu0 0
    %1544 = vmatpush1.bf16.msra.mxu0 %v1078
    %1545 = vmatprep.subr.bf16.mxu0 0
    %1546 = vmatpush1.bf16.msra.mxu0 %v1081
    %1547 = vmatprep.subr.bf16.mxu0 0
    %1548 = vmatpush1.bf16.msra.mxu0 %v1084
    %1549 = vmatprep.subr.bf16.mxu0 0
    %1550 = vmatpush1.bf16.msra.mxu0 %v1087
    %1551 = vmatprep.subr.bf16.mxu0 0
    %1552 = vmatpush1.bf16.msra.mxu0 %v1090
    %1553 = vmatprep.subr.bf16.mxu0 0
    %1554 = vmatpush1.bf16.msra.mxu0 0
    %1555 = vmatprep.subr.bf16.mxu0 0
    %1556 = vmatpush1.bf16.msra.mxu0 0
    %1557 = vmatprep.subr.bf16.mxu0 0
    %1558 = vmatpush1.bf16.msra.mxu0 0
    %1559 = vmatprep.subr.bf16.mxu0 0
    %1560 = vmatpush1.bf16.msra.mxu0 0
    %1561 = vmatprep.subr.bf16.mxu0 0
    %1562 = vmatpush1.bf16.msra.mxu0 0
    %1563 = vmatprep.subr.bf16.mxu0 0
    %1564 = vmatpush1.bf16.msra.mxu0 0
    %1565 = vmatprep.subr.bf16.mxu0 0
    %1566 = vmatpush1.bf16.msra.mxu0 0
    %1567 = vmatprep.subr.bf16.mxu0 0
    %1568 = vmatpush1.bf16.msra.mxu0 0
    %1569 = vmatprep.subr.bf16.mxu0 0
    %1570 = vmatpush1.bf16.msra.mxu0 0
    %1571 = vmatprep.subr.bf16.mxu0 0
    %1572 = vmatpush1.bf16.msra.mxu0 0
    %1573 = vmatprep.mubr.bf16.mxu0 0
    %1574 = vmatmul.mubr.bf16.gmra.mrb[0].mxu0 %v1255
    %v1575 = vpop.f32.mrb[0].mxu0
    %v1576 = vadd.f32 %v1536, %v1575
    %v1577 = vpop.f32.mrb[0].mxu0
    %v1578 = vpop.f32.mrb[0].mxu0
    %v1579 = vpop.f32.mrb[0].mxu0
    %1580 = vdwg.mxu0
    %v1581 = vadd.f32 %v1415, %v1417
    %v1582 = vadd.f32 %v1581, %v1576
    %1583 = vadd.xlane.f32.xlu0 %v1582
    %v1584 = vpop.xlane.xlu0 %1583
    %v1585 = vmul.f32 %v1584, 0.0034722222
    %v1586 = vsub.f32 %v1415, %v1585
    %v1587 = vsub.f32 %v1417, %v1585
    %v1588 = vsub.f32 %v1576, %v1585
    %v1589 = vlaneseq
    %v1590 = vand.u32 %v1589, 127
    %v1591 = vadd.s32 %v1590, 128
    %v1592 = vadd.s32 %v1590, 256
    %vm1593 = vcmp.lt.s32.totalorder %v1590, 288
    %vm1594 = vcmp.lt.s32.totalorder %v1591, 288
    %vm1595 = vcmp.lt.s32.totalorder %v1592, 288
    %v1596 = vsel %vm1593, 1, 0
    %v1597 = vsel %vm1594, 1, 0
    %v1598 = vsel %vm1595, 1, 0
    %vm1599 = vcmp.eq.s32.totalorder %v1596, 1
    %vm1600 = vcmp.eq.s32.totalorder %v1597, 1
    %vm1601 = vcmp.eq.s32.totalorder %v1598, 1
    %v1602 = vsel %vm1599, %v1586, 0.0
    %v1603 = vsel %vm1600, %v1587, 0.0
    %v1604 = vsel %vm1601, %v1588, 0.0
    %v1605 = vmul.f32 %v1602, %v1602
    %v1606 = vmul.f32 %v1603, %v1603
    %v1607 = vmul.f32 %v1604, %v1604
    %v1608 = vadd.f32 %v1605, %v1606
    %v1609 = vadd.f32 %v1608, %v1607
    %1610 = vadd.xlane.f32.xlu0 %v1609
    %v1611 = vpop.xlane.xlu0 %1610
    %v1612 = vmul.f32 %v1611, 0.0034722222
    %v1613 = vadd.f32 %v1612, 1e-05
    %v1614 = vrsqrt.pop %v1613
    %v1615 = vmul.f32 %v1586, %v1614
    %v1616 = vmul.f32 %v1587, %v1614
    %v1617 = vmul.f32 %v1588, %v1614
    %v1619 = vlaneseq
    %v1620 = vshrl.u32 %v1619, 7
    %v1621 = vsub.s32 0, %v1620
    %v1622 = vrot.slane %v370, %v1621
    %v1623 = vlaneseq
    %v1624 = vshrl.u32 %v1623, 7
    %v1625 = vsub.s32 1, %v1624
    %v1626 = vrot.slane %v370, %v1625
    %v1627 = vlaneseq
    %v1628 = vshrl.u32 %v1627, 7
    %v1629 = vsub.s32 2, %v1628
    %v1630 = vrot.slane %v370, %v1629
    %v1634 = vmul.f32 %v1615, %v1622
    %v1635 = vmul.f32 %v1616, %v1626
    %v1636 = vmul.f32 %v1617, %v1630
    %v1638 = vlaneseq
    %v1639 = vshrl.u32 %v1638, 7
    %v1640 = vsub.s32 0, %v1639
    %v1641 = vrot.slane %v372, %v1640
    %v1642 = vlaneseq
    %v1643 = vshrl.u32 %v1642, 7
    %v1644 = vsub.s32 1, %v1643
    %v1645 = vrot.slane %v372, %v1644
    %v1646 = vlaneseq
    %v1647 = vshrl.u32 %v1646, 7
    %v1648 = vsub.s32 2, %v1647
    %v1649 = vrot.slane %v372, %v1648
    %v1653 = vadd.f32 %v1634, %v1641
    %v1654 = vadd.f32 %v1635, %v1645
    %v1655 = vadd.f32 %v1636, %v1649
    %v1656 = vpack.c.bf16 %v1653, %v1653
    %v1657 = vpack.c.bf16 %v1654, %v1654
    %v1658 = vpack.c.bf16 %v1655, %v1655
    %v1659 = vld [vmem:[#allocation8] sm:$0xf]
    %v1660 = vld [vmem:[#allocation8 + $0x4] sm:$0xf]
    %v1661 = vld [vmem:[#allocation8 + $0x8] sm:$0xf]
    %v1662 = vld [vmem:[#allocation8 + $0xc] sm:$0xf]
    %v1663 = vld [vmem:[#allocation8 + $0x10] sm:$0xf]
    %v1664 = vld [vmem:[#allocation8 + $0x14] sm:$0xf]
    %v1665 = vld [vmem:[#allocation8 + $0x18] sm:$0xf]
    %v1666 = vld [vmem:[#allocation8 + $0x1c] sm:$0xf]
    %v1667 = vld [vmem:[#allocation8 + $0x20] sm:$0xf]
    %v1668 = vld [vmem:[#allocation8 + $0x24] sm:$0xf]
    %v1669 = vld [vmem:[#allocation8 + $0x28] sm:$0xf]
    %v1670 = vld [vmem:[#allocation8 + $0x2c] sm:$0xf]
    %v1671 = vld [vmem:[#allocation8 + $0x30] sm:$0xf]
    %v1672 = vld [vmem:[#allocation8 + $0x34] sm:$0xf]
    %v1673 = vld [vmem:[#allocation8 + $0x38] sm:$0xf]
    %v1674 = vld [vmem:[#allocation8 + $0x3c] sm:$0xf]
    %v1675 = vld [vmem:[#allocation8 + $0x40] sm:$0xf]
    %v1676 = vld [vmem:[#allocation8 + $0x44] sm:$0xf]
    %v1677 = vld [vmem:[#allocation8 + $0x48] sm:$0xf]
    %v1678 = vld [vmem:[#allocation8 + $0x4c] sm:$0xf]
    %v1679 = vld [vmem:[#allocation8 + $0x50] sm:$0xf]
    %v1680 = vld [vmem:[#allocation8 + $0x54] sm:$0xf]
    %v1681 = vld [vmem:[#allocation8 + $0x58] sm:$0xf]
    %v1682 = vld [vmem:[#allocation8 + $0x5c] sm:$0xf]
    %v1683 = vld [vmem:[#allocation8 + $0x60] sm:$0xf]
    %v1684 = vld [vmem:[#allocation8 + $0x64] sm:$0xf]
    %v1685 = vld [vmem:[#allocation8 + $0x68] sm:$0xf]
    %v1686 = vld [vmem:[#allocation8 + $0x6c] sm:$0xf]
    %v1687 = vld [vmem:[#allocation8 + $0x70] sm:$0xf]
    %v1688 = vld [vmem:[#allocation8 + $0x74] sm:$0xf]
    %v1689 = vld [vmem:[#allocation8 + $0x78] sm:$0xf]
    %v1690 = vld [vmem:[#allocation8 + $0x7c] sm:$0xf]
    %v1691 = vld [vmem:[#allocation8 + $0x80] sm:$0xf]
    %v1692 = vld [vmem:[#allocation8 + $0x84] sm:$0xf]
    %v1693 = vld [vmem:[#allocation8 + $0x88] sm:$0xf]
    %v1694 = vld [vmem:[#allocation8 + $0x8c] sm:$0xf]
    %v1695 = vld [vmem:[#allocation8 + $0x90] sm:$0xf]
    %v1696 = vld [vmem:[#allocation8 + $0x94] sm:$0xf]
    %v1697 = vld [vmem:[#allocation8 + $0x98] sm:$0xf]
    %v1698 = vld [vmem:[#allocation8 + $0x9c] sm:$0xf]
    %v1699 = vld [vmem:[#allocation8 + $0xa0] sm:$0xf]
    %v1700 = vld [vmem:[#allocation8 + $0xa4] sm:$0xf]
    %v1701 = vld [vmem:[#allocation8 + $0xa8] sm:$0xf]
    %v1702 = vld [vmem:[#allocation8 + $0xac] sm:$0xf]
    %v1703 = vld [vmem:[#allocation8 + $0xb0] sm:$0xf]
    %v1704 = vld [vmem:[#allocation8 + $0xb4] sm:$0xf]
    %v1705 = vld [vmem:[#allocation8 + $0xb8] sm:$0xf]
    %v1706 = vld [vmem:[#allocation8 + $0xbc] sm:$0xf]
    %v1707 = vld [vmem:[#allocation10] sm:$0x1]
    %v1708 = vld [vmem:[#allocation10 + $0x1] sm:$0x1]
    %v1709 = vld [vmem:[#allocation10 + $0x2] sm:$0x1]
    %v1710 = vlaneseq
    %v1711 = vshrl.u32 %v1710, 7
    %v1712 = vsub.s32 0, %v1711
    %v1713 = vrot.slane %v1707, %v1712
    %v1762 = vunpack.c.l.b16 %v1659
    %v1763 = vunpack.c.l.b16 %v1660
    %v1764 = vunpack.c.l.b16 %v1661
    %v1765 = vunpack.c.l.b16 %v1662
    %v1766 = vunpack.c.l.b16 %v1663
    %v1767 = vunpack.c.l.b16 %v1664
    %v1768 = vunpack.c.l.b16 %v1665
    %v1769 = vunpack.c.l.b16 %v1666
    %v1770 = vunpack.c.l.b16 %v1667
    %v1771 = vunpack.c.l.b16 %v1668
    %v1772 = vunpack.c.l.b16 %v1669
    %v1773 = vunpack.c.l.b16 %v1670
    %v1774 = vunpack.c.l.b16 %v1671
    %v1775 = vunpack.c.l.b16 %v1672
    %v1776 = vunpack.c.l.b16 %v1673
    %v1777 = vunpack.c.l.b16 %v1674
    %v1778 = vunpack.c.l.b16 %v1675
    %v1779 = vunpack.c.l.b16 %v1676
    %v1780 = vunpack.c.l.b16 %v1677
    %v1781 = vunpack.c.l.b16 %v1678
    %v1782 = vunpack.c.l.b16 %v1679
    %v1783 = vunpack.c.l.b16 %v1680
    %v1784 = vunpack.c.l.b16 %v1681
    %v1785 = vunpack.c.l.b16 %v1682
    %v1786 = vunpack.c.l.b16 %v1683
    %v1787 = vunpack.c.l.b16 %v1684
    %v1788 = vunpack.c.l.b16 %v1685
    %v1789 = vunpack.c.l.b16 %v1686
    %v1790 = vunpack.c.l.b16 %v1687
    %v1791 = vunpack.c.l.b16 %v1688
    %v1792 = vunpack.c.l.b16 %v1689
    %v1793 = vunpack.c.l.b16 %v1690
    %v1794 = vunpack.c.l.b16 %v1691
    %v1795 = vunpack.c.l.b16 %v1692
    %v1796 = vunpack.c.l.b16 %v1693
    %v1797 = vunpack.c.l.b16 %v1694
    %v1798 = vunpack.c.l.b16 %v1695
    %v1799 = vunpack.c.l.b16 %v1696
    %v1800 = vunpack.c.l.b16 %v1697
    %v1801 = vunpack.c.l.b16 %v1698
    %v1802 = vunpack.c.l.b16 %v1699
    %v1803 = vunpack.c.l.b16 %v1700
    %v1804 = vunpack.c.l.b16 %v1701
    %v1805 = vunpack.c.l.b16 %v1702
    %v1806 = vunpack.c.l.b16 %v1703
    %v1807 = vunpack.c.l.b16 %v1704
    %v1808 = vunpack.c.l.b16 %v1705
    %v1809 = vunpack.c.l.b16 %v1706
    %v1810 = vpack.c.b16 %v1763, %v1762
    %v1811 = vpack.c.b16 %v1765, %v1764
    %v1812 = vpack.c.b16 %v1767, %v1766
    %v1813 = vpack.c.b16 %v1769, %v1768
    %v1814 = vpack.c.b16 %v1771, %v1770
    %v1815 = vpack.c.b16 %v1773, %v1772
    %v1816 = vpack.c.b16 %v1775, %v1774
    %v1817 = vpack.c.b16 %v1777, %v1776
    %v1818 = vpack.c.b16 %v1779, %v1778
    %v1819 = vpack.c.b16 %v1781, %v1780
    %v1820 = vpack.c.b16 %v1783, %v1782
    %v1821 = vpack.c.b16 %v1785, %v1784
    %v1822 = vpack.c.b16 %v1787, %v1786
    %v1823 = vpack.c.b16 %v1789, %v1788
    %v1824 = vpack.c.b16 %v1791, %v1790
    %v1825 = vpack.c.b16 %v1793, %v1792
    %v1826 = vpack.c.b16 %v1795, %v1794
    %v1827 = vpack.c.b16 %v1797, %v1796
    %v1828 = vpack.c.b16 %v1799, %v1798
    %v1829 = vpack.c.b16 %v1801, %v1800
    %v1830 = vpack.c.b16 %v1803, %v1802
    %v1831 = vpack.c.b16 %v1805, %v1804
    %v1832 = vpack.c.b16 %v1807, %v1806
    %v1833 = vpack.c.b16 %v1809, %v1808
    %1858 = vmatprep.subr.bf16.mxu0 0
    %1859 = vmatpush1.bf16.msra.mxu0 %v1810
    %1860 = vmatprep.subr.bf16.mxu0 0
    %1861 = vmatpush1.bf16.msra.mxu0 %v1811
    %1862 = vmatprep.subr.bf16.mxu0 0
    %1863 = vmatpush1.bf16.msra.mxu0 %v1812
    %1864 = vmatprep.subr.bf16.mxu0 0
    %1865 = vmatpush1.bf16.msra.mxu0 %v1813
    %1866 = vmatprep.subr.bf16.mxu0 0
    %1867 = vmatpush1.bf16.msra.mxu0 %v1814
    %1868 = vmatprep.subr.bf16.mxu0 0
    %1869 = vmatpush1.bf16.msra.mxu0 %v1815
    %1870 = vmatprep.subr.bf16.mxu0 0
    %1871 = vmatpush1.bf16.msra.mxu0 %v1816
    %1872 = vmatprep.subr.bf16.mxu0 0
    %1873 = vmatpush1.bf16.msra.mxu0 %v1817
    %1874 = vmatprep.subr.bf16.mxu0 0
    %1875 = vmatpush1.bf16.msra.mxu0 %v1818
    %1876 = vmatprep.subr.bf16.mxu0 0
    %1877 = vmatpush1.bf16.msra.mxu0 %v1819
    %1878 = vmatprep.subr.bf16.mxu0 0
    %1879 = vmatpush1.bf16.msra.mxu0 %v1820
    %1880 = vmatprep.subr.bf16.mxu0 0
    %1881 = vmatpush1.bf16.msra.mxu0 %v1821
    %1882 = vmatprep.subr.bf16.mxu0 0
    %1883 = vmatpush1.bf16.msra.mxu0 %v1822
    %1884 = vmatprep.subr.bf16.mxu0 0
    %1885 = vmatpush1.bf16.msra.mxu0 %v1823
    %1886 = vmatprep.subr.bf16.mxu0 0
    %1887 = vmatpush1.bf16.msra.mxu0 %v1824
    %1888 = vmatprep.subr.bf16.mxu0 0
    %1889 = vmatpush1.bf16.msra.mxu0 %v1825
    %1890 = vmatprep.mubr.bf16.mxu0 %v1657
    %1891 = vmatmul.mubr.bf16.gmra.mrb[0].mxu0 %v1656
    %v1892 = vpop.f32.mrb[0].mxu0
    %v1893 = vadd.f32 %v1713, %v1892
    %v1894 = vpop.f32.mrb[0].mxu0
    %v1895 = vpop.f32.mrb[0].mxu0
    %v1896 = vpop.f32.mrb[0].mxu0
    %1897 = vdwg.mxu0
    %1898 = vmatprep.subr.bf16.mxu0 0
    %1899 = vmatpush1.bf16.msra.mxu0 %v1826
    %1900 = vmatprep.subr.bf16.mxu0 0
    %1901 = vmatpush1.bf16.msra.mxu0 %v1827
    %1902 = vmatprep.subr.bf16.mxu0 0
    %1903 = vmatpush1.bf16.msra.mxu0 %v1828
    %1904 = vmatprep.subr.bf16.mxu0 0
    %1905 = vmatpush1.bf16.msra.mxu0 %v1829
    %1906 = vmatprep.subr.bf16.mxu0 0
    %1907 = vmatpush1.bf16.msra.mxu0 %v1830
    %1908 = vmatprep.subr.bf16.mxu0 0
    %1909 = vmatpush1.bf16.msra.mxu0 %v1831
    %1910 = vmatprep.subr.bf16.mxu0 0
    %1911 = vmatpush1.bf16.msra.mxu0 %v1832
    %1912 = vmatprep.subr.bf16.mxu0 0
    %1913 = vmatpush1.bf16.msra.mxu0 %v1833
    %1914 = vmatprep.subr.bf16.mxu0 0
    %1915 = vmatpush1.bf16.msra.mxu0 0
    %1916 = vmatprep.subr.bf16.mxu0 0
    %1917 = vmatpush1.bf16.msra.mxu0 0
    %1918 = vmatprep.subr.bf16.mxu0 0
    %1919 = vmatpush1.bf16.msra.mxu0 0
    %1920 = vmatprep.subr.bf16.mxu0 0
    %1921 = vmatpush1.bf16.msra.mxu0 0
    %1922 = vmatprep.subr.bf16.mxu0 0
    %1923 = vmatpush1.bf16.msra.mxu0 0
    %1924 = vmatprep.subr.bf16.mxu0 0
    %1925 = vmatpush1.bf16.msra.mxu0 0
    %1926 = vmatprep.subr.bf16.mxu0 0
    %1927 = vmatpush1.bf16.msra.mxu0 0
    %1928 = vmatprep.subr.bf16.mxu0 0
    %1929 = vmatpush1.bf16.msra.mxu0 0
    %1930 = vmatprep.mubr.bf16.mxu0 0
    %1931 = vmatmul.mubr.bf16.gmra.mrb[0].mxu0 %v1658
    %v1932 = vpop.f32.mrb[0].mxu0
    %v1933 = vadd.f32 %v1893, %v1932
    %v1934 = vpop.f32.mrb[0].mxu0
    %v1935 = vpop.f32.mrb[0].mxu0
    %v1936 = vpop.f32.mrb[0].mxu0
    %1937 = vdwg.mxu0
    %1938 = vadd.xlane.f32.xlu0 %v1933
    %v1939 = vpop.xlane.xlu0 %1938
    %v1940 = vmul.f32 %v1939, 0.010416667
    %v1941 = vsub.f32 %v1933, %v1940
    %vm1942 = vcmp.lt.s32.totalorder %v1590, 96
    %v1943 = vsel %vm1942, 1, 0
    %vm1944 = vcmp.eq.s32.totalorder %v1943, 1
    %v1945 = vsel %vm1944, %v1941, 0.0
    %v1946 = vmul.f32 %v1945, %v1945
    %1947 = vadd.xlane.f32.xlu0 %v1946
    %v1948 = vpop.xlane.xlu0 %1947
    %v1949 = vmul.f32 %v1948, 0.010416667
    %v1950 = vadd.f32 %v1949, 1e-05
    %v1951 = vrsqrt.pop %v1950
    %v1952 = vmul.f32 %v1941, %v1951
    %v1953 = vlaneseq
    %v1954 = vshrl.u32 %v1953, 7
    %v1955 = vsub.s32 0, %v1954
    %v1956 = vrot.slane %v1708, %v1955
    %v1957 = vmul.f32 %v1952, %v1956
    %v1958 = vlaneseq
    %v1959 = vshrl.u32 %v1958, 7
    %v1960 = vsub.s32 0, %v1959
    %v1961 = vrot.slane %v1709, %v1960
    %v1962 = vadd.f32 %v1957, %v1961
    %v1963 = vpack.c.bf16 %v1962, %v1962
    %1964 = vst [vmem:[#allocation16] sm:$0xf] %v1963
    %v1965 = vld [vmem:[#allocation11] sm:$0xff]
    %v1966 = vld [vmem:[#allocation11 + $0x8] sm:$0xf]
    %v1967 = vld [vmem:[#allocation11 + $0xc] sm:$0xff]
    %v1968 = vld [vmem:[#allocation11 + $0x14] sm:$0xf]
    %v1969 = vld [vmem:[#allocation11 + $0x18] sm:$0xff]
    %v1970 = vld [vmem:[#allocation11 + $0x20] sm:$0xf]
    %v1971 = vld [vmem:[#allocation11 + $0x24] sm:$0xff]
    %v1972 = vld [vmem:[#allocation11 + $0x2c] sm:$0xf]
    %v1973 = vld [vmem:[#allocation11 + $0x30] sm:$0xff]
    %v1974 = vld [vmem:[#allocation11 + $0x38] sm:$0xf]
    %v1975 = vld [vmem:[#allocation11 + $0x3c] sm:$0xff]
    %v1976 = vld [vmem:[#allocation11 + $0x44] sm:$0xf]
    %v1977 = vld [vmem:[#allocation11 + $0x48] sm:$0xff]
    %v1978 = vld [vmem:[#allocation11 + $0x50] sm:$0xf]
    %v1979 = vld [vmem:[#allocation11 + $0x54] sm:$0xff]
    %v1980 = vld [vmem:[#allocation11 + $0x5c] sm:$0xf]
    %v1981 = vld [vmem:[#allocation11 + $0x60] sm:$0xff]
    %v1982 = vld [vmem:[#allocation11 + $0x68] sm:$0xf]
    %v1983 = vld [vmem:[#allocation11 + $0x6c] sm:$0xff]
    %v1984 = vld [vmem:[#allocation11 + $0x74] sm:$0xf]
    %v1985 = vld [vmem:[#allocation11 + $0x78] sm:$0xff]
    %v1986 = vld [vmem:[#allocation11 + $0x80] sm:$0xf]
    %v1987 = vld [vmem:[#allocation11 + $0x84] sm:$0xff]
    %v1988 = vld [vmem:[#allocation11 + $0x8c] sm:$0xf]
    %v1989 = vld [vmem:[#allocation11 + $0x90] sm:$0xff]
    %v1990 = vld [vmem:[#allocation11 + $0x98] sm:$0xf]
    %v1991 = vld [vmem:[#allocation11 + $0x9c] sm:$0xff]
    %v1992 = vld [vmem:[#allocation11 + $0xa4] sm:$0xf]
    %v1993 = vld [vmem:[#allocation11 + $0xa8] sm:$0xff]
    %v1994 = vld [vmem:[#allocation11 + $0xb0] sm:$0xf]
    %v1995 = vld [vmem:[#allocation11 + $0xb4] sm:$0xff]
    %v1996 = vld [vmem:[#allocation11 + $0xbc] sm:$0xf]
    %v1997 = vld [vmem:[#allocation13] ss:$4 sm:$0x7]
    %s1998 = scalar_lea.vmem [#allocation13], 1
    %v1999 = vld [vmem:[%s1998] ss:$4 sm:$0x7]
    %s2000 = scalar_lea.vmem [#allocation13], 2
    %v2001 = vld [vmem:[%s2000] ss:$4 sm:$0x7]
    %v2003 = vlaneseq
    %v2004 = vshrl.u32 %v2003, 7
    %v2005 = vsub.s32 0, %v2004
    %v2006 = vrot.slane %v1997, %v2005
    %v2007 = vlaneseq
    %v2008 = vshrl.u32 %v2007, 7
    %v2009 = vsub.s32 1, %v2008
    %v2010 = vrot.slane %v1997, %v2009
    %v2011 = vlaneseq
    %v2012 = vshrl.u32 %v2011, 7
    %v2013 = vsub.s32 2, %v2012
    %v2014 = vrot.slane %v1997, %v2013
    %v2050 = vunpack.c.l.b16 %v1965
    %v2051 = vunpack.c.h.b16 %v1965
    %v2052 = vunpack.c.l.b16 %v1966
    %v2053 = vunpack.c.l.b16 %v1967
    %v2054 = vunpack.c.h.b16 %v1967
    %v2055 = vunpack.c.l.b16 %v1968
    %v2056 = vunpack.c.l.b16 %v1969
    %v2057 = vunpack.c.h.b16 %v1969
    %v2058 = vunpack.c.l.b16 %v1970
    %v2059 = vunpack.c.l.b16 %v1971
    %v2060 = vunpack.c.h.b16 %v1971
    %v2061 = vunpack.c.l.b16 %v1972
    %v2062 = vunpack.c.l.b16 %v1973
    %v2063 = vunpack.c.h.b16 %v1973
    %v2064 = vunpack.c.l.b16 %v1974
    %v2065 = vunpack.c.l.b16 %v1975
    %v2066 = vunpack.c.h.b16 %v1975
    %v2067 = vunpack.c.l.b16 %v1976
    %v2068 = vunpack.c.l.b16 %v1977
    %v2069 = vunpack.c.h.b16 %v1977
    %v2070 = vunpack.c.l.b16 %v1978
    %v2071 = vunpack.c.l.b16 %v1979
    %v2072 = vunpack.c.h.b16 %v1979
    %v2073 = vunpack.c.l.b16 %v1980
    %v2074 = vunpack.c.l.b16 %v1981
    %v2075 = vunpack.c.h.b16 %v1981
    %v2076 = vunpack.c.l.b16 %v1982
    %v2077 = vunpack.c.l.b16 %v1983
    %v2078 = vunpack.c.h.b16 %v1983
    %v2079 = vunpack.c.l.b16 %v1984
    %v2080 = vunpack.c.l.b16 %v1985
    %v2081 = vunpack.c.h.b16 %v1985
    %v2082 = vunpack.c.l.b16 %v1986
    %v2083 = vunpack.c.l.b16 %v1987
    %v2084 = vunpack.c.h.b16 %v1987
    %v2085 = vunpack.c.l.b16 %v1988
    %v2086 = vunpack.c.l.b16 %v1989
    %v2087 = vunpack.c.h.b16 %v1989
    %v2088 = vunpack.c.l.b16 %v1990
    %v2089 = vunpack.c.l.b16 %v1991
    %v2090 = vunpack.c.h.b16 %v1991
    %v2091 = vunpack.c.l.b16 %v1992
    %v2092 = vunpack.c.l.b16 %v1993
    %v2093 = vunpack.c.h.b16 %v1993
    %v2094 = vunpack.c.l.b16 %v1994
    %v2095 = vunpack.c.l.b16 %v1995
    %v2096 = vunpack.c.h.b16 %v1995
    %v2097 = vunpack.c.l.b16 %v1996
    %v2098 = vpack.c.b16 %v2053, %v2050
    %v2099 = vpack.c.b16 %v2054, %v2051
    %v2100 = vpack.c.b16 %v2055, %v2052
    %v2101 = vpack.c.b16 %v2059, %v2056
    %v2102 = vpack.c.b16 %v2060, %v2057
    %v2103 = vpack.c.b16 %v2061, %v2058
    %v2104 = vpack.c.b16 %v2065, %v2062
    %v2105 = vpack.c.b16 %v2066, %v2063
    %v2106 = vpack.c.b16 %v2067, %v2064
    %v2107 = vpack.c.b16 %v2071, %v2068
    %v2108 = vpack.c.b16 %v2072, %v2069
    %v2109 = vpack.c.b16 %v2073, %v2070
    %v2110 = vpack.c.b16 %v2077, %v2074
    %v2111 = vpack.c.b16 %v2078, %v2075
    %v2112 = vpack.c.b16 %v2079, %v2076
    %v2113 = vpack.c.b16 %v2083, %v2080
    %v2114 = vpack.c.b16 %v2084, %v2081
    %v2115 = vpack.c.b16 %v2085, %v2082
    %v2116 = vpack.c.b16 %v2089, %v2086
    %v2117 = vpack.c.b16 %v2090, %v2087
    %v2118 = vpack.c.b16 %v2091, %v2088
    %v2119 = vpack.c.b16 %v2095, %v2092
    %v2120 = vpack.c.b16 %v2096, %v2093
    %v2121 = vpack.c.b16 %v2097, %v2094
    %2146 = vmatprep.subr.bf16.mxu0 %v2099
    %2147 = vmatpush1.bf16.msra.mxu0 %v2098
    %2148 = vmatprep.subr.bf16.mxu0 %v2102
    %2149 = vmatpush1.bf16.msra.mxu0 %v2101
    %2150 = vmatprep.subr.bf16.mxu0 %v2105
    %2151 = vmatpush1.bf16.msra.mxu0 %v2104
    %2152 = vmatprep.subr.bf16.mxu0 %v2108
    %2153 = vmatpush1.bf16.msra.mxu0 %v2107
    %2154 = vmatprep.subr.bf16.mxu0 %v2111
    %2155 = vmatpush1.bf16.msra.mxu0 %v2110
    %2156 = vmatprep.subr.bf16.mxu0 %v2114
    %2157 = vmatpush1.bf16.msra.mxu0 %v2113
    %2158 = vmatprep.subr.bf16.mxu0 %v2117
    %2159 = vmatpush1.bf16.msra.mxu0 %v2116
    %2160 = vmatprep.subr.bf16.mxu0 %v2120
    %2161 = vmatpush1.bf16.msra.mxu0 %v2119
    %2162 = vmatprep.subr.bf16.mxu0 0
    %2163 = vmatpush1.bf16.msra.mxu0 0
    %2164 = vmatprep.subr.bf16.mxu0 0
    %2165 = vmatpush1.bf16.msra.mxu0 0
    %2166 = vmatprep.subr.bf16.mxu0 0
    %2167 = vmatpush1.bf16.msra.mxu0 0
    %2168 = vmatprep.subr.bf16.mxu0 0
    %2169 = vmatpush1.bf16.msra.mxu0 0
    %2170 = vmatprep.subr.bf16.mxu0 0
    %2171 = vmatpush1.bf16.msra.mxu0 0
    %2172 = vmatprep.subr.bf16.mxu0 0
    %2173 = vmatpush1.bf16.msra.mxu0 0
    %2174 = vmatprep.subr.bf16.mxu0 0
    %2175 = vmatpush1.bf16.msra.mxu0 0
    %2176 = vmatprep.subr.bf16.mxu0 0
    %2177 = vmatpush1.bf16.msra.mxu0 0
    %2178 = vmatprep.mubr.bf16.mxu0 0
    %2179 = vmatmul.mubr.bf16.gmra.mrb[0].mxu0 %v1963
    %v2180 = vpop.f32.mrb[0].mxu0
    %v2181 = vadd.f32 %v2006, %v2180
    %v2182 = vpop.f32.mrb[0].mxu0
    %v2183 = vadd.f32 %v2010, %v2182
    %v2184 = vpop.f32.mrb[0].mxu0
    %v2185 = vpop.f32.mrb[0].mxu0
    %2186 = vdwg.mxu0
    %2187 = vmatprep.subr.bf16.mxu0 0
    %2188 = vmatpush1.bf16.msra.mxu0 %v2100
    %2189 = vmatprep.subr.bf16.mxu0 0
    %2190 = vmatpush1.bf16.msra.mxu0 %v2103
    %2191 = vmatprep.subr.bf16.mxu0 0
    %2192 = vmatpush1.bf16.msra.mxu0 %v2106
    %2193 = vmatprep.subr.bf16.mxu0 0
    %2194 = vmatpush1.bf16.msra.mxu0 %v2109
    %2195 = vmatprep.subr.bf16.mxu0 0
    %2196 = vmatpush1.bf16.msra.mxu0 %v2112
    %2197 = vmatprep.subr.bf16.mxu0 0
    %2198 = vmatpush1.bf16.msra.mxu0 %v2115
    %2199 = vmatprep.subr.bf16.mxu0 0
    %2200 = vmatpush1.bf16.msra.mxu0 %v2118
    %2201 = vmatprep.subr.bf16.mxu0 0
    %2202 = vmatpush1.bf16.msra.mxu0 %v2121
    %2203 = vmatprep.subr.bf16.mxu0 0
    %2204 = vmatpush1.bf16.msra.mxu0 0
    %2205 = vmatprep.subr.bf16.mxu0 0
    %2206 = vmatpush1.bf16.msra.mxu0 0
    %2207 = vmatprep.subr.bf16.mxu0 0
    %2208 = vmatpush1.bf16.msra.mxu0 0
    %2209 = vmatprep.subr.bf16.mxu0 0
    %2210 = vmatpush1.bf16.msra.mxu0 0
    %2211 = vmatprep.subr.bf16.mxu0 0
    %2212 = vmatpush1.bf16.msra.mxu0 0
    %2213 = vmatprep.subr.bf16.mxu0 0
    %2214 = vmatpush1.bf16.msra.mxu0 0
    %2215 = vmatprep.subr.bf16.mxu0 0
    %2216 = vmatpush1.bf16.msra.mxu0 0
    %2217 = vmatprep.subr.bf16.mxu0 0
    %2218 = vmatpush1.bf16.msra.mxu0 0
    %2219 = vmatprep.mubr.bf16.mxu0 0
    %2220 = vmatmul.mubr.bf16.gmra.mrb[0].mxu0 %v1963
    %v2221 = vpop.f32.mrb[0].mxu0
    %v2222 = vadd.f32 %v2014, %v2221
    %v2223 = vpop.f32.mrb[0].mxu0
    %v2224 = vpop.f32.mrb[0].mxu0
    %v2225 = vpop.f32.mrb[0].mxu0
    %2226 = vdwg.mxu0
    %v2227 = vadd.f32 %v2181, %v2183
    %v2228 = vadd.f32 %v2227, %v2222
    %2229 = vadd.xlane.f32.xlu0 %v2228
    %v2230 = vpop.xlane.xlu0 %2229
    %v2231 = vmul.f32 %v2230, 0.0034722222
    %v2232 = vsub.f32 %v2181, %v2231
    %v2233 = vsub.f32 %v2183, %v2231
    %v2234 = vsub.f32 %v2222, %v2231
    %v2235 = vsel %vm1599, %v2232, 0.0
    %v2236 = vsel %vm1600, %v2233, 0.0
    %v2237 = vsel %vm1601, %v2234, 0.0
    %v2238 = vmul.f32 %v2235, %v2235
    %v2239 = vmul.f32 %v2236, %v2236
    %v2240 = vmul.f32 %v2237, %v2237
    %v2241 = vadd.f32 %v2238, %v2239
    %v2242 = vadd.f32 %v2241, %v2240
    %2243 = vadd.xlane.f32.xlu0 %v2242
    %v2244 = vpop.xlane.xlu0 %2243
    %v2245 = vmul.f32 %v2244, 0.0034722222
    %v2246 = vadd.f32 %v2245, 1e-05
    %v2247 = vrsqrt.pop %v2246
    %v2248 = vmul.f32 %v2232, %v2247
    %v2249 = vmul.f32 %v2233, %v2247
    %v2250 = vmul.f32 %v2234, %v2247
    %v2252 = vlaneseq
    %v2253 = vshrl.u32 %v2252, 7
    %v2254 = vsub.s32 0, %v2253
    %v2255 = vrot.slane %v1999, %v2254
    %v2256 = vlaneseq
    %v2257 = vshrl.u32 %v2256, 7
    %v2258 = vsub.s32 1, %v2257
    %v2259 = vrot.slane %v1999, %v2258
    %v2260 = vlaneseq
    %v2261 = vshrl.u32 %v2260, 7
    %v2262 = vsub.s32 2, %v2261
    %v2263 = vrot.slane %v1999, %v2262
    %v2267 = vmul.f32 %v2248, %v2255
    %v2268 = vmul.f32 %v2249, %v2259
    %v2269 = vmul.f32 %v2250, %v2263
    %v2271 = vlaneseq
    %v2272 = vshrl.u32 %v2271, 7
    %v2273 = vsub.s32 0, %v2272
    %v2274 = vrot.slane %v2001, %v2273
    %v2275 = vlaneseq
    %v2276 = vshrl.u32 %v2275, 7
    %v2277 = vsub.s32 1, %v2276
    %v2278 = vrot.slane %v2001, %v2277
    %v2279 = vlaneseq
    %v2280 = vshrl.u32 %v2279, 7
    %v2281 = vsub.s32 2, %v2280
    %v2282 = vrot.slane %v2001, %v2281
    %v2286 = vadd.f32 %v2267, %v2274
    %v2287 = vadd.f32 %v2268, %v2278
    %v2288 = vadd.f32 %v2269, %v2282
    %v2289 = vpack.c.bf16 %v2286, %v2286
    %v2290 = vpack.c.bf16 %v2287, %v2287
    %v2291 = vpack.c.bf16 %v2288, %v2288
    %v2292 = vld [vmem:[#allocation14] sm:$0xff]
    %v2293 = vld [vmem:[#allocation14 + $0x8] sm:$0xff]
    %v2294 = vld [vmem:[#allocation14 + $0x10] sm:$0xff]
    %v2295 = vld [vmem:[#allocation14 + $0x18] sm:$0xf]
    %v2296 = vld [vmem:[#allocation14 + $0x1c] sm:$0xff]
    %v2297 = vld [vmem:[#allocation14 + $0x24] sm:$0xff]
    %v2298 = vld [vmem:[#allocation14 + $0x2c] sm:$0xff]
    %v2299 = vld [vmem:[#allocation14 + $0x34] sm:$0xf]
    %v2300 = vld [vmem:[#allocation14 + $0x38] sm:$0xff]
    %v2301 = vld [vmem:[#allocation14 + $0x40] sm:$0xff]
    %v2302 = vld [vmem:[#allocation14 + $0x48] sm:$0xff]
    %v2303 = vld [vmem:[#allocation14 + $0x50] sm:$0xf]
    %v2304 = vld [vmem:[#allocation14 + $0x54] sm:$0xff]
    %v2305 = vld [vmem:[#allocation14 + $0x5c] sm:$0xff]
    %v2306 = vld [vmem:[#allocation14 + $0x64] sm:$0xff]
    %v2307 = vld [vmem:[#allocation14 + $0x6c] sm:$0xf]
    %v2308 = vld [vmem:[#allocation14 + $0x70] sm:$0xff]
    %v2309 = vld [vmem:[#allocation14 + $0x78] sm:$0xff]
    %v2310 = vld [vmem:[#allocation14 + $0x80] sm:$0xff]
    %v2311 = vld [vmem:[#allocation14 + $0x88] sm:$0xf]
    %v2312 = vld [vmem:[#allocation14 + $0x8c] sm:$0xff]
    %v2313 = vld [vmem:[#allocation14 + $0x94] sm:$0xff]
    %v2314 = vld [vmem:[#allocation14 + $0x9c] sm:$0xff]
    %v2315 = vld [vmem:[#allocation14 + $0xa4] sm:$0xf]
    %v2316 = vld [vmem:[#allocation14 + $0xa8] sm:$0xff]
    %v2317 = vld [vmem:[#allocation14 + $0xb0] sm:$0xff]
    %v2318 = vld [vmem:[#allocation14 + $0xb8] sm:$0xff]
    %v2319 = vld [vmem:[#allocation14 + $0xc0] sm:$0xf]
    %v2320 = vld [vmem:[#allocation14 + $0xc4] sm:$0xff]
    %v2321 = vld [vmem:[#allocation14 + $0xcc] sm:$0xff]
    %v2322 = vld [vmem:[#allocation14 + $0xd4] sm:$0xff]
    %v2323 = vld [vmem:[#allocation14 + $0xdc] sm:$0xf]
    %v2324 = vld [vmem:[#allocation14 + $0xe0] sm:$0xff]
    %v2325 = vld [vmem:[#allocation14 + $0xe8] sm:$0xff]
    %v2326 = vld [vmem:[#allocation14 + $0xf0] sm:$0xff]
    %v2327 = vld [vmem:[#allocation14 + $0xf8] sm:$0xf]
    %v2328 = vld [vmem:[#allocation14 + $0xfc] sm:$0xff]
    %v2329 = vld [vmem:[#allocation14 + $0x104] sm:$0xff]
    %v2330 = vld [vmem:[#allocation14 + $0x10c] sm:$0xff]
    %v2331 = vld [vmem:[#allocation14 + $0x114] sm:$0xf]
    %v2332 = vld [vmem:[#allocation14 + $0x118] sm:$0xff]
    %v2333 = vld [vmem:[#allocation14 + $0x120] sm:$0xff]
    %v2334 = vld [vmem:[#allocation14 + $0x128] sm:$0xff]
    %v2335 = vld [vmem:[#allocation14 + $0x130] sm:$0xf]
    %v2336 = vld [vmem:[#allocation14 + $0x134] sm:$0xff]
    %v2337 = vld [vmem:[#allocation14 + $0x13c] sm:$0xff]
    %v2338 = vld [vmem:[#allocation14 + $0x144] sm:$0xff]
    %v2339 = vld [vmem:[#allocation14 + $0x14c] sm:$0xf]
    %v2340 = vld [vmem:[#allocation14 + $0x150] sm:$0xff]
    %v2341 = vld [vmem:[#allocation14 + $0x158] sm:$0xff]
    %v2342 = vld [vmem:[#allocation14 + $0x160] sm:$0xff]
    %v2343 = vld [vmem:[#allocation14 + $0x168] sm:$0xf]
    %v2344 = vld [vmem:[#allocation14 + $0x16c] sm:$0xff]
    %v2345 = vld [vmem:[#allocation14 + $0x174] sm:$0xff]
    %v2346 = vld [vmem:[#allocation14 + $0x17c] sm:$0xff]
    %v2347 = vld [vmem:[#allocation14 + $0x184] sm:$0xf]
    %v2348 = vld [vmem:[#allocation14 + $0x188] sm:$0xff]
    %v2349 = vld [vmem:[#allocation14 + $0x190] sm:$0xff]
    %v2350 = vld [vmem:[#allocation14 + $0x198] sm:$0xff]
    %v2351 = vld [vmem:[#allocation14 + $0x1a0] sm:$0xf]
    %v2352 = vld [vmem:[#allocation14 + $0x1a4] sm:$0xff]
    %v2353 = vld [vmem:[#allocation14 + $0x1ac] sm:$0xff]
    %v2354 = vld [vmem:[#allocation14 + $0x1b4] sm:$0xff]
    %v2355 = vld [vmem:[#allocation14 + $0x1bc] sm:$0xf]
    %v2356 = vld [vmem:[#allocation14 + $0x1c0] sm:$0xff]
    %v2357 = vld [vmem:[#allocation14 + $0x1c8] sm:$0xff]
    %v2358 = vld [vmem:[#allocation14 + $0x1d0] sm:$0xff]
    %v2359 = vld [vmem:[#allocation14 + $0x1d8] sm:$0xf]
    %v2360 = vld [vmem:[#allocation14 + $0x1dc] sm:$0xff]
    %v2361 = vld [vmem:[#allocation14 + $0x1e4] sm:$0xff]
    %v2362 = vld [vmem:[#allocation14 + $0x1ec] sm:$0xff]
    %v2363 = vld [vmem:[#allocation14 + $0x1f4] sm:$0xf]
    %v2364 = vld [vmem:[#allocation14 + $0x1f8] sm:$0xff]
    %v2365 = vld [vmem:[#allocation14 + $0x200] sm:$0xff]
    %v2366 = vld [vmem:[#allocation14 + $0x208] sm:$0xff]
    %v2367 = vld [vmem:[#allocation14 + $0x210] sm:$0xf]
    %v2368 = vld [vmem:[#allocation14 + $0x214] sm:$0xff]
    %v2369 = vld [vmem:[#allocation14 + $0x21c] sm:$0xff]
    %v2370 = vld [vmem:[#allocation14 + $0x224] sm:$0xff]
    %v2371 = vld [vmem:[#allocation14 + $0x22c] sm:$0xf]
    %v2372 = vld [vmem:[#allocation14 + $0x230] sm:$0xff]
    %v2373 = vld [vmem:[#allocation14 + $0x238] sm:$0xff]
    %v2374 = vld [vmem:[#allocation14 + $0x240] sm:$0xff]
    %v2375 = vld [vmem:[#allocation14 + $0x248] sm:$0xf]
    %v2376 = vld [vmem:[#allocation14 + $0x24c] sm:$0xff]
    %v2377 = vld [vmem:[#allocation14 + $0x254] sm:$0xff]
    %v2378 = vld [vmem:[#allocation14 + $0x25c] sm:$0xff]
    %v2379 = vld [vmem:[#allocation14 + $0x264] sm:$0xf]
    %v2380 = vld [vmem:[#allocation14 + $0x268] sm:$0xff]
    %v2381 = vld [vmem:[#allocation14 + $0x270] sm:$0xff]
    %v2382 = vld [vmem:[#allocation14 + $0x278] sm:$0xff]
    %v2383 = vld [vmem:[#allocation14 + $0x280] sm:$0xf]
    %v2384 = vld [vmem:[#allocation14 + $0x284] sm:$0xff]
    %v2385 = vld [vmem:[#allocation14 + $0x28c] sm:$0xff]
    %v2386 = vld [vmem:[#allocation14 + $0x294] sm:$0xff]
    %v2387 = vld [vmem:[#allocation14 + $0x29c] sm:$0xf]
    %v2388 = vld [vmem:[#allocation14 + $0x2a0] sm:$0xff]
    %v2389 = vld [vmem:[#allocation14 + $0x2a8] sm:$0xff]
    %v2390 = vld [vmem:[#allocation14 + $0x2b0] sm:$0xff]
    %v2391 = vld [vmem:[#allocation14 + $0x2b8] sm:$0xf]
    %v2392 = vld [vmem:[#allocation14 + $0x2bc] sm:$0xff]
    %v2393 = vld [vmem:[#allocation14 + $0x2c4] sm:$0xff]
    %v2394 = vld [vmem:[#allocation14 + $0x2cc] sm:$0xff]
    %v2395 = vld [vmem:[#allocation14 + $0x2d4] sm:$0xf]
    %v2396 = vld [vmem:[#allocation14 + $0x2d8] sm:$0xff]
    %v2397 = vld [vmem:[#allocation14 + $0x2e0] sm:$0xff]
    %v2398 = vld [vmem:[#allocation14 + $0x2e8] sm:$0xff]
    %v2399 = vld [vmem:[#allocation14 + $0x2f0] sm:$0xf]
    %v2400 = vld [vmem:[#allocation14 + $0x2f4] sm:$0xff]
    %v2401 = vld [vmem:[#allocation14 + $0x2fc] sm:$0xff]
    %v2402 = vld [vmem:[#allocation14 + $0x304] sm:$0xff]
    %v2403 = vld [vmem:[#allocation14 + $0x30c] sm:$0xf]
    %v2404 = vld [vmem:[#allocation14 + $0x310] sm:$0xff]
    %v2405 = vld [vmem:[#allocation14 + $0x318] sm:$0xff]
    %v2406 = vld [vmem:[#allocation14 + $0x320] sm:$0xff]
    %v2407 = vld [vmem:[#allocation14 + $0x328] sm:$0xf]
    %v2408 = vld [vmem:[#allocation14 + $0x32c] sm:$0xff]
    %v2409 = vld [vmem:[#allocation14 + $0x334] sm:$0xff]
    %v2410 = vld [vmem:[#allocation14 + $0x33c] sm:$0xff]
    %v2411 = vld [vmem:[#allocation14 + $0x344] sm:$0xf]
    %v2412 = vld [vmem:[#allocation14 + $0x348] sm:$0xff]
    %v2413 = vld [vmem:[#allocation14 + $0x350] sm:$0xff]
    %v2414 = vld [vmem:[#allocation14 + $0x358] sm:$0xff]
    %v2415 = vld [vmem:[#allocation14 + $0x360] sm:$0xf]
    %v2416 = vld [vmem:[#allocation14 + $0x364] sm:$0xff]
    %v2417 = vld [vmem:[#allocation14 + $0x36c] sm:$0xff]
    %v2418 = vld [vmem:[#allocation14 + $0x374] sm:$0xff]
    %v2419 = vld [vmem:[#allocation14 + $0x37c] sm:$0xf]
    %v2420 = vld [vmem:[#allocation14 + $0x380] sm:$0xff]
    %v2421 = vld [vmem:[#allocation14 + $0x388] sm:$0xff]
    %v2422 = vld [vmem:[#allocation14 + $0x390] sm:$0xff]
    %v2423 = vld [vmem:[#allocation14 + $0x398] sm:$0xf]
    %v2424 = vld [vmem:[#allocation14 + $0x39c] sm:$0xff]
    %v2425 = vld [vmem:[#allocation14 + $0x3a4] sm:$0xff]
    %v2426 = vld [vmem:[#allocation14 + $0x3ac] sm:$0xff]
    %v2427 = vld [vmem:[#allocation14 + $0x3b4] sm:$0xf]
    %v2428 = vld [vmem:[#allocation14 + $0x3b8] sm:$0xff]
    %v2429 = vld [vmem:[#allocation14 + $0x3c0] sm:$0xff]
    %v2430 = vld [vmem:[#allocation14 + $0x3c8] sm:$0xff]
    %v2431 = vld [vmem:[#allocation14 + $0x3d0] sm:$0xf]
    %v2432 = vld [vmem:[#allocation14 + $0x3d4] sm:$0xff]
    %v2433 = vld [vmem:[#allocation14 + $0x3dc] sm:$0xff]
    %v2434 = vld [vmem:[#allocation14 + $0x3e4] sm:$0xff]
    %v2435 = vld [vmem:[#allocation14 + $0x3ec] sm:$0xf]
    %v2436 = vld [vmem:[#allocation14 + $0x3f0] sm:$0xff]
    %v2437 = vld [vmem:[#allocation14 + $0x3f8] sm:$0xff]
    %v2438 = vld [vmem:[#allocation14 + $0x400] sm:$0xff]
    %v2439 = vld [vmem:[#allocation14 + $0x408] sm:$0xf]
    %v2440 = vld [vmem:[#allocation14 + $0x40c] sm:$0xff]
    %v2441 = vld [vmem:[#allocation14 + $0x414] sm:$0xff]
    %v2442 = vld [vmem:[#allocation14 + $0x41c] sm:$0xff]
    %v2443 = vld [vmem:[#allocation14 + $0x424] sm:$0xf]
    %v2444 = vld [vmem:[#allocation14 + $0x428] sm:$0xff]
    %v2445 = vld [vmem:[#allocation14 + $0x430] sm:$0xff]
    %v2446 = vld [vmem:[#allocation14 + $0x438] sm:$0xff]
    %v2447 = vld [vmem:[#allocation14 + $0x440] sm:$0xf]
    %v2448 = vld [vmem:[#allocation14 + $0x444] sm:$0xff]
    %v2449 = vld [vmem:[#allocation14 + $0x44c] sm:$0xff]
    %v2450 = vld [vmem:[#allocation14 + $0x454] sm:$0xff]
    %v2451 = vld [vmem:[#allocation14 + $0x45c] sm:$0xf]
    %v2452 = vld [vmem:[#allocation14 + $0x460] sm:$0xff]
    %v2453 = vld [vmem:[#allocation14 + $0x468] sm:$0xff]
    %v2454 = vld [vmem:[#allocation14 + $0x470] sm:$0xff]
    %v2455 = vld [vmem:[#allocation14 + $0x478] sm:$0xf]
    %v2456 = vld [vmem:[#allocation14 + $0x47c] sm:$0xff]
    %v2457 = vld [vmem:[#allocation14 + $0x484] sm:$0xff]
    %v2458 = vld [vmem:[#allocation14 + $0x48c] sm:$0xff]
    %v2459 = vld [vmem:[#allocation14 + $0x494] sm:$0xf]
    %v2460 = vld [vmem:[#allocation14 + $0x498] sm:$0xff]
    %v2461 = vld [vmem:[#allocation14 + $0x4a0] sm:$0xff]
    %v2462 = vld [vmem:[#allocation14 + $0x4a8] sm:$0xff]
    %v2463 = vld [vmem:[#allocation14 + $0x4b0] sm:$0xf]
    %v2464 = vld [vmem:[#allocation14 + $0x4b4] sm:$0xff]
    %v2465 = vld [vmem:[#allocation14 + $0x4bc] sm:$0xff]
    %v2466 = vld [vmem:[#allocation14 + $0x4c4] sm:$0xff]
    %v2467 = vld [vmem:[#allocation14 + $0x4cc] sm:$0xf]
    %v2468 = vld [vmem:[#allocation14 + $0x4d0] sm:$0xff]
    %v2469 = vld [vmem:[#allocation14 + $0x4d8] sm:$0xff]
    %v2470 = vld [vmem:[#allocation14 + $0x4e0] sm:$0xff]
    %v2471 = vld [vmem:[#allocation14 + $0x4e8] sm:$0xf]
    %v2472 = vld [vmem:[#allocation14 + $0x4ec] sm:$0xff]
    %v2473 = vld [vmem:[#allocation14 + $0x4f4] sm:$0xff]
    %v2474 = vld [vmem:[#allocation14 + $0x4fc] sm:$0xff]
    %v2475 = vld [vmem:[#allocation14 + $0x504] sm:$0xf]
    %v2476 = vld [vmem:[#allocation14 + $0x508] sm:$0xff]
    %v2477 = vld [vmem:[#allocation14 + $0x510] sm:$0xff]
    %v2478 = vld [vmem:[#allocation14 + $0x518] sm:$0xff]
    %v2479 = vld [vmem:[#allocation14 + $0x520] sm:$0xf]
    %v2480 = vld [vmem:[#allocation14 + $0x524] sm:$0xff]
    %v2481 = vld [vmem:[#allocation14 + $0x52c] sm:$0xff]
    %v2482 = vld [vmem:[#allocation14 + $0x534] sm:$0xff]
    %v2483 = vld [vmem:[#allocation14 + $0x53c] sm:$0xf]
    %v2484 = vld [vmem:[%s8] ss:$4 sm:$0xff]
    %s2485 = scalar_lea.vmem %s8, 1
    %v2486 = vld [vmem:[%s2485] ss:$4 sm:$0xff]
    %s2487 = scalar_lea.vmem %s8, 2
    %v2488 = vld [vmem:[%s2487] ss:$4 sm:$0xff]
    %v2490 = vlaneseq
    %v2491 = vshrl.u32 %v2490, 7
    %v2492 = vsub.s32 0, %v2491
    %v2493 = vrot.slane %v2484, %v2492
    %v2494 = vlaneseq
    %v2495 = vshrl.u32 %v2494, 7
    %v2496 = vsub.s32 1, %v2495
    %v2497 = vrot.slane %v2484, %v2496
    %v2498 = vlaneseq
    %v2499 = vshrl.u32 %v2498, 7
    %v2500 = vsub.s32 2, %v2499
    %v2501 = vrot.slane %v2484, %v2500
    %v2502 = vlaneseq
    %v2503 = vshrl.u32 %v2502, 7
    %v2504 = vsub.s32 3, %v2503
    %v2505 = vrot.slane %v2484, %v2504
    %v2506 = vlaneseq
    %v2507 = vshrl.u32 %v2506, 7
    %v2508 = vsub.s32 4, %v2507
    %v2509 = vrot.slane %v2484, %v2508
    %v2510 = vlaneseq
    %v2511 = vshrl.u32 %v2510, 7
    %v2512 = vsub.s32 5, %v2511
    %v2513 = vrot.slane %v2484, %v2512
    %v2514 = vlaneseq
    %v2515 = vshrl.u32 %v2514, 7
    %v2516 = vsub.s32 6, %v2515
    %v2517 = vrot.slane %v2484, %v2516
    %v2717 = vunpack.c.l.b16 %v2292
    %v2718 = vunpack.c.h.b16 %v2292
    %v2719 = vunpack.c.l.b16 %v2293
    %v2720 = vunpack.c.h.b16 %v2293
    %v2721 = vunpack.c.l.b16 %v2294
    %v2722 = vunpack.c.h.b16 %v2294
    %v2723 = vunpack.c.l.b16 %v2295
    %v2724 = vunpack.c.l.b16 %v2296
    %v2725 = vunpack.c.h.b16 %v2296
    %v2726 = vunpack.c.l.b16 %v2297
    %v2727 = vunpack.c.h.b16 %v2297
    %v2728 = vunpack.c.l.b16 %v2298
    %v2729 = vunpack.c.h.b16 %v2298
    %v2730 = vunpack.c.l.b16 %v2299
    %v2731 = vunpack.c.l.b16 %v2300
    %v2732 = vunpack.c.h.b16 %v2300
    %v2733 = vunpack.c.l.b16 %v2301
    %v2734 = vunpack.c.h.b16 %v2301
    %v2735 = vunpack.c.l.b16 %v2302
    %v2736 = vunpack.c.h.b16 %v2302
    %v2737 = vunpack.c.l.b16 %v2303
    %v2738 = vunpack.c.l.b16 %v2304
    %v2739 = vunpack.c.h.b16 %v2304
    %v2740 = vunpack.c.l.b16 %v2305
    %v2741 = vunpack.c.h.b16 %v2305
    %v2742 = vunpack.c.l.b16 %v2306
    %v2743 = vunpack.c.h.b16 %v2306
    %v2744 = vunpack.c.l.b16 %v2307
    %v2745 = vunpack.c.l.b16 %v2308
    %v2746 = vunpack.c.h.b16 %v2308
    %v2747 = vunpack.c.l.b16 %v2309
    %v2748 = vunpack.c.h.b16 %v2309
    %v2749 = vunpack.c.l.b16 %v2310
    %v2750 = vunpack.c.h.b16 %v2310
    %v2751 = vunpack.c.l.b16 %v2311
    %v2752 = vunpack.c.l.b16 %v2312
    %v2753 = vunpack.c.h.b16 %v2312
    %v2754 = vunpack.c.l.b16 %v2313
    %v2755 = vunpack.c.h.b16 %v2313
    %v2756 = vunpack.c.l.b16 %v2314
    %v2757 = vunpack.c.h.b16 %v2314
    %v2758 = vunpack.c.l.b16 %v2315
    %v2759 = vunpack.c.l.b16 %v2316
    %v2760 = vunpack.c.h.b16 %v2316
    %v2761 = vunpack.c.l.b16 %v2317
    %v2762 = vunpack.c.h.b16 %v2317
    %v2763 = vunpack.c.l.b16 %v2318
    %v2764 = vunpack.c.h.b16 %v2318
    %v2765 = vunpack.c.l.b16 %v2319
    %v2766 = vunpack.c.l.b16 %v2320
    %v2767 = vunpack.c.h.b16 %v2320
    %v2768 = vunpack.c.l.b16 %v2321
    %v2769 = vunpack.c.h.b16 %v2321
    %v2770 = vunpack.c.l.b16 %v2322
    %v2771 = vunpack.c.h.b16 %v2322
    %v2772 = vunpack.c.l.b16 %v2323
    %v2773 = vunpack.c.l.b16 %v2324
    %v2774 = vunpack.c.h.b16 %v2324
    %v2775 = vunpack.c.l.b16 %v2325
    %v2776 = vunpack.c.h.b16 %v2325
    %v2777 = vunpack.c.l.b16 %v2326
    %v2778 = vunpack.c.h.b16 %v2326
    %v2779 = vunpack.c.l.b16 %v2327
    %v2780 = vunpack.c.l.b16 %v2328
    %v2781 = vunpack.c.h.b16 %v2328
    %v2782 = vunpack.c.l.b16 %v2329
    %v2783 = vunpack.c.h.b16 %v2329
    %v2784 = vunpack.c.l.b16 %v2330
    %v2785 = vunpack.c.h.b16 %v2330
    %v2786 = vunpack.c.l.b16 %v2331
    %v2787 = vunpack.c.l.b16 %v2332
    %v2788 = vunpack.c.h.b16 %v2332
    %v2789 = vunpack.c.l.b16 %v2333
    %v2790 = vunpack.c.h.b16 %v2333
    %v2791 = vunpack.c.l.b16 %v2334
    %v2792 = vunpack.c.h.b16 %v2334
    %v2793 = vunpack.c.l.b16 %v2335
    %v2794 = vunpack.c.l.b16 %v2336
    %v2795 = vunpack.c.h.b16 %v2336
    %v2796 = vunpack.c.l.b16 %v2337
    %v2797 = vunpack.c.h.b16 %v2337
    %v2798 = vunpack.c.l.b16 %v2338
    %v2799 = vunpack.c.h.b16 %v2338
    %v2800 = vunpack.c.l.b16 %v2339
    %v2801 = vunpack.c.l.b16 %v2340
    %v2802 = vunpack.c.h.b16 %v2340
    %v2803 = vunpack.c.l.b16 %v2341
    %v2804 = vunpack.c.h.b16 %v2341
    %v2805 = vunpack.c.l.b16 %v2342
    %v2806 = vunpack.c.h.b16 %v2342
    %v2807 = vunpack.c.l.b16 %v2343
    %v2808 = vunpack.c.l.b16 %v2344
    %v2809 = vunpack.c.h.b16 %v2344
    %v2810 = vunpack.c.l.b16 %v2345
    %v2811 = vunpack.c.h.b16 %v2345
    %v2812 = vunpack.c.l.b16 %v2346
    %v2813 = vunpack.c.h.b16 %v2346
    %v2814 = vunpack.c.l.b16 %v2347
    %v2815 = vunpack.c.l.b16 %v2348
    %v2816 = vunpack.c.h.b16 %v2348
    %v2817 = vunpack.c.l.b16 %v2349
    %v2818 = vunpack.c.h.b16 %v2349
    %v2819 = vunpack.c.l.b16 %v2350
    %v2820 = vunpack.c.h.b16 %v2350
    %v2821 = vunpack.c.l.b16 %v2351
    %v2822 = vunpack.c.l.b16 %v2352
    %v2823 = vunpack.c.h.b16 %v2352
    %v2824 = vunpack.c.l.b16 %v2353
    %v2825 = vunpack.c.h.b16 %v2353
    %v2826 = vunpack.c.l.b16 %v2354
    %v2827 = vunpack.c.h.b16 %v2354
    %v2828 = vunpack.c.l.b16 %v2355
    %v2829 = vunpack.c.l.b16 %v2356
    %v2830 = vunpack.c.h.b16 %v2356
    %v2831 = vunpack.c.l.b16 %v2357
    %v2832 = vunpack.c.h.b16 %v2357
    %v2833 = vunpack.c.l.b16 %v2358
    %v2834 = vunpack.c.h.b16 %v2358
    %v2835 = vunpack.c.l.b16 %v2359
    %v2836 = vunpack.c.l.b16 %v2360
    %v2837 = vunpack.c.h.b16 %v2360
    %v2838 = vunpack.c.l.b16 %v2361
    %v2839 = vunpack.c.h.b16 %v2361
    %v2840 = vunpack.c.l.b16 %v2362
    %v2841 = vunpack.c.h.b16 %v2362
    %v2842 = vunpack.c.l.b16 %v2363
    %v2843 = vunpack.c.l.b16 %v2364
    %v2844 = vunpack.c.h.b16 %v2364
    %v2845 = vunpack.c.l.b16 %v2365
    %v2846 = vunpack.c.h.b16 %v2365
    %v2847 = vunpack.c.l.b16 %v2366
    %v2848 = vunpack.c.h.b16 %v2366
    %v2849 = vunpack.c.l.b16 %v2367
    %v2850 = vunpack.c.l.b16 %v2368
    %v2851 = vunpack.c.h.b16 %v2368
    %v2852 = vunpack.c.l.b16 %v2369
    %v2853 = vunpack.c.h.b16 %v2369
    %v2854 = vunpack.c.l.b16 %v2370
    %v2855 = vunpack.c.h.b16 %v2370
    %v2856 = vunpack.c.l.b16 %v2371
    %v2857 = vunpack.c.l.b16 %v2372
    %v2858 = vunpack.c.h.b16 %v2372
    %v2859 = vunpack.c.l.b16 %v2373
    %v2860 = vunpack.c.h.b16 %v2373
    %v2861 = vunpack.c.l.b16 %v2374
    %v2862 = vunpack.c.h.b16 %v2374
    %v2863 = vunpack.c.l.b16 %v2375
    %v2864 = vunpack.c.l.b16 %v2376
    %v2865 = vunpack.c.h.b16 %v2376
    %v2866 = vunpack.c.l.b16 %v2377
    %v2867 = vunpack.c.h.b16 %v2377
    %v2868 = vunpack.c.l.b16 %v2378
    %v2869 = vunpack.c.h.b16 %v2378
    %v2870 = vunpack.c.l.b16 %v2379
    %v2871 = vunpack.c.l.b16 %v2380
    %v2872 = vunpack.c.h.b16 %v2380
    %v2873 = vunpack.c.l.b16 %v2381
    %v2874 = vunpack.c.h.b16 %v2381
    %v2875 = vunpack.c.l.b16 %v2382
    %v2876 = vunpack.c.h.b16 %v2382
    %v2877 = vunpack.c.l.b16 %v2383
    %v2878 = vunpack.c.l.b16 %v2384
    %v2879 = vunpack.c.h.b16 %v2384
    %v2880 = vunpack.c.l.b16 %v2385
    %v2881 = vunpack.c.h.b16 %v2385
    %v2882 = vunpack.c.l.b16 %v2386
    %v2883 = vunpack.c.h.b16 %v2386
    %v2884 = vunpack.c.l.b16 %v2387
    %v2885 = vunpack.c.l.b16 %v2388
    %v2886 = vunpack.c.h.b16 %v2388
    %v2887 = vunpack.c.l.b16 %v2389
    %v2888 = vunpack.c.h.b16 %v2389
    %v2889 = vunpack.c.l.b16 %v2390
    %v2890 = vunpack.c.h.b16 %v2390
    %v2891 = vunpack.c.l.b16 %v2391
    %v2892 = vunpack.c.l.b16 %v2392
    %v2893 = vunpack.c.h.b16 %v2392
    %v2894 = vunpack.c.l.b16 %v2393
    %v2895 = vunpack.c.h.b16 %v2393
    %v2896 = vunpack.c.l.b16 %v2394
    %v2897 = vunpack.c.h.b16 %v2394
    %v2898 = vunpack.c.l.b16 %v2395
    %v2899 = vunpack.c.l.b16 %v2396
    %v2900 = vunpack.c.h.b16 %v2396
    %v2901 = vunpack.c.l.b16 %v2397
    %v2902 = vunpack.c.h.b16 %v2397
    %v2903 = vunpack.c.l.b16 %v2398
    %v2904 = vunpack.c.h.b16 %v2398
    %v2905 = vunpack.c.l.b16 %v2399
    %v2906 = vunpack.c.l.b16 %v2400
    %v2907 = vunpack.c.h.b16 %v2400
    %v2908 = vunpack.c.l.b16 %v2401
    %v2909 = vunpack.c.h.b16 %v2401
    %v2910 = vunpack.c.l.b16 %v2402
    %v2911 = vunpack.c.h.b16 %v2402
    %v2912 = vunpack.c.l.b16 %v2403
    %v2913 = vunpack.c.l.b16 %v2404
    %v2914 = vunpack.c.h.b16 %v2404
    %v2915 = vunpack.c.l.b16 %v2405
    %v2916 = vunpack.c.h.b16 %v2405
    %v2917 = vunpack.c.l.b16 %v2406
    %v2918 = vunpack.c.h.b16 %v2406
    %v2919 = vunpack.c.l.b16 %v2407
    %v2920 = vunpack.c.l.b16 %v2408
    %v2921 = vunpack.c.h.b16 %v2408
    %v2922 = vunpack.c.l.b16 %v2409
    %v2923 = vunpack.c.h.b16 %v2409
    %v2924 = vunpack.c.l.b16 %v2410
    %v2925 = vunpack.c.h.b16 %v2410
    %v2926 = vunpack.c.l.b16 %v2411
    %v2927 = vunpack.c.l.b16 %v2412
    %v2928 = vunpack.c.h.b16 %v2412
    %v2929 = vunpack.c.l.b16 %v2413
    %v2930 = vunpack.c.h.b16 %v2413
    %v2931 = vunpack.c.l.b16 %v2414
    %v2932 = vunpack.c.h.b16 %v2414
    %v2933 = vunpack.c.l.b16 %v2415
    %v2934 = vunpack.c.l.b16 %v2416
    %v2935 = vunpack.c.h.b16 %v2416
    %v2936 = vunpack.c.l.b16 %v2417
    %v2937 = vunpack.c.h.b16 %v2417
    %v2938 = vunpack.c.l.b16 %v2418
    %v2939 = vunpack.c.h.b16 %v2418
    %v2940 = vunpack.c.l.b16 %v2419
    %v2941 = vunpack.c.l.b16 %v2420
    %v2942 = vunpack.c.h.b16 %v2420
    %v2943 = vunpack.c.l.b16 %v2421
    %v2944 = vunpack.c.h.b16 %v2421
    %v2945 = vunpack.c.l.b16 %v2422
    %v2946 = vunpack.c.h.b16 %v2422
    %v2947 = vunpack.c.l.b16 %v2423
    %v2948 = vunpack.c.l.b16 %v2424
    %v2949 = vunpack.c.h.b16 %v2424
    %v2950 = vunpack.c.l.b16 %v2425
    %v2951 = vunpack.c.h.b16 %v2425
    %v2952 = vunpack.c.l.b16 %v2426
    %v2953 = vunpack.c.h.b16 %v2426
    %v2954 = vunpack.c.l.b16 %v2427
    %v2955 = vunpack.c.l.b16 %v2428
    %v2956 = vunpack.c.h.b16 %v2428
    %v2957 = vunpack.c.l.b16 %v2429
    %v2958 = vunpack.c.h.b16 %v2429
    %v2959 = vunpack.c.l.b16 %v2430
    %v2960 = vunpack.c.h.b16 %v2430
    %v2961 = vunpack.c.l.b16 %v2431
    %v2962 = vunpack.c.l.b16 %v2432
    %v2963 = vunpack.c.h.b16 %v2432
    %v2964 = vunpack.c.l.b16 %v2433
    %v2965 = vunpack.c.h.b16 %v2433
    %v2966 = vunpack.c.l.b16 %v2434
    %v2967 = vunpack.c.h.b16 %v2434
    %v2968 = vunpack.c.l.b16 %v2435
    %v2969 = vunpack.c.l.b16 %v2436
    %v2970 = vunpack.c.h.b16 %v2436
    %v2971 = vunpack.c.l.b16 %v2437
    %v2972 = vunpack.c.h.b16 %v2437
    %v2973 = vunpack.c.l.b16 %v2438
    %v2974 = vunpack.c.h.b16 %v2438
    %v2975 = vunpack.c.l.b16 %v2439
    %v2976 = vunpack.c.l.b16 %v2440
    %v2977 = vunpack.c.h.b16 %v2440
    %v2978 = vunpack.c.l.b16 %v2441
    %v2979 = vunpack.c.h.b16 %v2441
    %v2980 = vunpack.c.l.b16 %v2442
    %v2981 = vunpack.c.h.b16 %v2442
    %v2982 = vunpack.c.l.b16 %v2443
    %v2983 = vunpack.c.l.b16 %v2444
    %v2984 = vunpack.c.h.b16 %v2444
    %v2985 = vunpack.c.l.b16 %v2445
    %v2986 = vunpack.c.h.b16 %v2445
    %v2987 = vunpack.c.l.b16 %v2446
    %v2988 = vunpack.c.h.b16 %v2446
    %v2989 = vunpack.c.l.b16 %v2447
    %v2990 = vunpack.c.l.b16 %v2448
    %v2991 = vunpack.c.h.b16 %v2448
    %v2992 = vunpack.c.l.b16 %v2449
    %v2993 = vunpack.c.h.b16 %v2449
    %v2994 = vunpack.c.l.b16 %v2450
    %v2995 = vunpack.c.h.b16 %v2450
    %v2996 = vunpack.c.l.b16 %v2451
    %v2997 = vunpack.c.l.b16 %v2452
    %v2998 = vunpack.c.h.b16 %v2452
    %v2999 = vunpack.c.l.b16 %v2453
    %v3000 = vunpack.c.h.b16 %v2453
    %v3001 = vunpack.c.l.b16 %v2454
    %v3002 = vunpack.c.h.b16 %v2454
    %v3003 = vunpack.c.l.b16 %v2455
    %v3004 = vunpack.c.l.b16 %v2456
    %v3005 = vunpack.c.h.b16 %v2456
    %v3006 = vunpack.c.l.b16 %v2457
    %v3007 = vunpack.c.h.b16 %v2457
    %v3008 = vunpack.c.l.b16 %v2458
    %v3009 = vunpack.c.h.b16 %v2458
    %v3010 = vunpack.c.l.b16 %v2459
    %v3011 = vunpack.c.l.b16 %v2460
    %v3012 = vunpack.c.h.b16 %v2460
    %v3013 = vunpack.c.l.b16 %v2461
    %v3014 = vunpack.c.h.b16 %v2461
    %v3015 = vunpack.c.l.b16 %v2462
    %v3016 = vunpack.c.h.b16 %v2462
    %v3017 = vunpack.c.l.b16 %v2463
    %v3018 = vunpack.c.l.b16 %v2464
    %v3019 = vunpack.c.h.b16 %v2464
    %v3020 = vunpack.c.l.b16 %v2465
    %v3021 = vunpack.c.h.b16 %v2465
    %v3022 = vunpack.c.l.b16 %v2466
    %v3023 = vunpack.c.h.b16 %v2466
    %v3024 = vunpack.c.l.b16 %v2467
    %v3025 = vunpack.c.l.b16 %v2468
    %v3026 = vunpack.c.h.b16 %v2468
    %v3027 = vunpack.c.l.b16 %v2469
    %v3028 = vunpack.c.h.b16 %v2469
    %v3029 = vunpack.c.l.b16 %v2470
    %v3030 = vunpack.c.h.b16 %v2470
    %v3031 = vunpack.c.l.b16 %v2471
    %v3032 = vunpack.c.l.b16 %v2472
    %v3033 = vunpack.c.h.b16 %v2472
    %v3034 = vunpack.c.l.b16 %v2473
    %v3035 = vunpack.c.h.b16 %v2473
    %v3036 = vunpack.c.l.b16 %v2474
    %v3037 = vunpack.c.h.b16 %v2474
    %v3038 = vunpack.c.l.b16 %v2475
    %v3039 = vunpack.c.l.b16 %v2476
    %v3040 = vunpack.c.h.b16 %v2476
    %v3041 = vunpack.c.l.b16 %v2477
    %v3042 = vunpack.c.h.b16 %v2477
    %v3043 = vunpack.c.l.b16 %v2478
    %v3044 = vunpack.c.h.b16 %v2478
    %v3045 = vunpack.c.l.b16 %v2479
    %v3046 = vunpack.c.l.b16 %v2480
    %v3047 = vunpack.c.h.b16 %v2480
    %v3048 = vunpack.c.l.b16 %v2481
    %v3049 = vunpack.c.h.b16 %v2481
    %v3050 = vunpack.c.l.b16 %v2482
    %v3051 = vunpack.c.h.b16 %v2482
    %v3052 = vunpack.c.l.b16 %v2483
    %v3053 = vpack.c.b16 %v2724, %v2717
    %v3054 = vpack.c.b16 %v2725, %v2718
    %v3055 = vpack.c.b16 %v2726, %v2719
    %v3056 = vpack.c.b16 %v2727, %v2720
    %v3057 = vpack.c.b16 %v2728, %v2721
    %v3058 = vpack.c.b16 %v2729, %v2722
    %v3059 = vpack.c.b16 %v2730, %v2723
    %v3060 = vpack.c.b16 %v2738, %v2731
    %v3061 = vpack.c.b16 %v2739, %v2732
    %v3062 = vpack.c.b16 %v2740, %v2733
    %v3063 = vpack.c.b16 %v2741, %v2734
    %v3064 = vpack.c.b16 %v2742, %v2735
    %v3065 = vpack.c.b16 %v2743, %v2736
    %v3066 = vpack.c.b16 %v2744, %v2737
    %v3067 = vpack.c.b16 %v2752, %v2745
    %v3068 = vpack.c.b16 %v2753, %v2746
    %v3069 = vpack.c.b16 %v2754, %v2747
    %v3070 = vpack.c.b16 %v2755, %v2748
    %v3071 = vpack.c.b16 %v2756, %v2749
    %v3072 = vpack.c.b16 %v2757, %v2750
    %v3073 = vpack.c.b16 %v2758, %v2751
    %v3074 = vpack.c.b16 %v2766, %v2759
    %v3075 = vpack.c.b16 %v2767, %v2760
    %v3076 = vpack.c.b16 %v2768, %v2761
    %v3077 = vpack.c.b16 %v2769, %v2762
    %v3078 = vpack.c.b16 %v2770, %v2763
    %v3079 = vpack.c.b16 %v2771, %v2764
    %v3080 = vpack.c.b16 %v2772, %v2765
    %v3081 = vpack.c.b16 %v2780, %v2773
    %v3082 = vpack.c.b16 %v2781, %v2774
    %v3083 = vpack.c.b16 %v2782, %v2775
    %v3084 = vpack.c.b16 %v2783, %v2776
    %v3085 = vpack.c.b16 %v2784, %v2777
    %v3086 = vpack.c.b16 %v2785, %v2778
    %v3087 = vpack.c.b16 %v2786, %v2779
    %v3088 = vpack.c.b16 %v2794, %v2787
    %v3089 = vpack.c.b16 %v2795, %v2788
    %v3090 = vpack.c.b16 %v2796, %v2789
    %v3091 = vpack.c.b16 %v2797, %v2790
    %v3092 = vpack.c.b16 %v2798, %v2791
    %v3093 = vpack.c.b16 %v2799, %v2792
    %v3094 = vpack.c.b16 %v2800, %v2793
    %v3095 = vpack.c.b16 %v2808, %v2801
    %v3096 = vpack.c.b16 %v2809, %v2802
    %v3097 = vpack.c.b16 %v2810, %v2803
    %v3098 = vpack.c.b16 %v2811, %v2804
    %v3099 = vpack.c.b16 %v2812, %v2805
    %v3100 = vpack.c.b16 %v2813, %v2806
    %v3101 = vpack.c.b16 %v2814, %v2807
    %v3102 = vpack.c.b16 %v2822, %v2815
    %v3103 = vpack.c.b16 %v2823, %v2816
    %v3104 = vpack.c.b16 %v2824, %v2817
    %v3105 = vpack.c.b16 %v2825, %v2818
    %v3106 = vpack.c.b16 %v2826, %v2819
    %v3107 = vpack.c.b16 %v2827, %v2820
    %v3108 = vpack.c.b16 %v2828, %v2821
    %v3109 = vpack.c.b16 %v2836, %v2829
    %v3110 = vpack.c.b16 %v2837, %v2830
    %v3111 = vpack.c.b16 %v2838, %v2831
    %v3112 = vpack.c.b16 %v2839, %v2832
    %v3113 = vpack.c.b16 %v2840, %v2833
    %v3114 = vpack.c.b16 %v2841, %v2834
    %v3115 = vpack.c.b16 %v2842, %v2835
    %v3116 = vpack.c.b16 %v2850, %v2843
    %v3117 = vpack.c.b16 %v2851, %v2844
    %v3118 = vpack.c.b16 %v2852, %v2845
    %v3119 = vpack.c.b16 %v2853, %v2846
    %v3120 = vpack.c.b16 %v2854, %v2847
    %v3121 = vpack.c.b16 %v2855, %v2848
    %v3122 = vpack.c.b16 %v2856, %v2849
    %v3123 = vpack.c.b16 %v2864, %v2857
    %v3124 = vpack.c.b16 %v2865, %v2858
    %v3125 = vpack.c.b16 %v2866, %v2859
    %v3126 = vpack.c.b16 %v2867, %v2860
    %v3127 = vpack.c.b16 %v2868, %v2861
    %v3128 = vpack.c.b16 %v2869, %v2862
    %v3129 = vpack.c.b16 %v2870, %v2863
    %v3130 = vpack.c.b16 %v2878, %v2871
    %v3131 = vpack.c.b16 %v2879, %v2872
    %v3132 = vpack.c.b16 %v2880, %v2873
    %v3133 = vpack.c.b16 %v2881, %v2874
    %v3134 = vpack.c.b16 %v2882, %v2875
    %v3135 = vpack.c.b16 %v2883, %v2876
    %v3136 = vpack.c.b16 %v2884, %v2877
    %v3137 = vpack.c.b16 %v2892, %v2885
    %v3138 = vpack.c.b16 %v2893, %v2886
    %v3139 = vpack.c.b16 %v2894, %v2887
    %v3140 = vpack.c.b16 %v2895, %v2888
    %v3141 = vpack.c.b16 %v2896, %v2889
    %v3142 = vpack.c.b16 %v2897, %v2890
    %v3143 = vpack.c.b16 %v2898, %v2891
    %v3144 = vpack.c.b16 %v2906, %v2899
    %v3145 = vpack.c.b16 %v2907, %v2900
    %v3146 = vpack.c.b16 %v2908, %v2901
    %v3147 = vpack.c.b16 %v2909, %v2902
    %v3148 = vpack.c.b16 %v2910, %v2903
    %v3149 = vpack.c.b16 %v2911, %v2904
    %v3150 = vpack.c.b16 %v2912, %v2905
    %v3151 = vpack.c.b16 %v2920, %v2913
    %v3152 = vpack.c.b16 %v2921, %v2914
    %v3153 = vpack.c.b16 %v2922, %v2915
    %v3154 = vpack.c.b16 %v2923, %v2916
    %v3155 = vpack.c.b16 %v2924, %v2917
    %v3156 = vpack.c.b16 %v2925, %v2918
    %v3157 = vpack.c.b16 %v2926, %v2919
    %v3158 = vpack.c.b16 %v2934, %v2927
    %v3159 = vpack.c.b16 %v2935, %v2928
    %v3160 = vpack.c.b16 %v2936, %v2929
    %v3161 = vpack.c.b16 %v2937, %v2930
    %v3162 = vpack.c.b16 %v2938, %v2931
    %v3163 = vpack.c.b16 %v2939, %v2932
    %v3164 = vpack.c.b16 %v2940, %v2933
    %v3165 = vpack.c.b16 %v2948, %v2941
    %v3166 = vpack.c.b16 %v2949, %v2942
    %v3167 = vpack.c.b16 %v2950, %v2943
    %v3168 = vpack.c.b16 %v2951, %v2944
    %v3169 = vpack.c.b16 %v2952, %v2945
    %v3170 = vpack.c.b16 %v2953, %v2946
    %v3171 = vpack.c.b16 %v2954, %v2947
    %v3172 = vpack.c.b16 %v2962, %v2955
    %v3173 = vpack.c.b16 %v2963, %v2956
    %v3174 = vpack.c.b16 %v2964, %v2957
    %v3175 = vpack.c.b16 %v2965, %v2958
    %v3176 = vpack.c.b16 %v2966, %v2959
    %v3177 = vpack.c.b16 %v2967, %v2960
    %v3178 = vpack.c.b16 %v2968, %v2961
    %v3179 = vpack.c.b16 %v2976, %v2969
    %v3180 = vpack.c.b16 %v2977, %v2970
    %v3181 = vpack.c.b16 %v2978, %v2971
    %v3182 = vpack.c.b16 %v2979, %v2972
    %v3183 = vpack.c.b16 %v2980, %v2973
    %v3184 = vpack.c.b16 %v2981, %v2974
    %v3185 = vpack.c.b16 %v2982, %v2975
    %v3186 = vpack.c.b16 %v2990, %v2983
    %v3187 = vpack.c.b16 %v2991, %v2984
    %v3188 = vpack.c.b16 %v2992, %v2985
    %v3189 = vpack.c.b16 %v2993, %v2986
    %v3190 = vpack.c.b16 %v2994, %v2987
    %v3191 = vpack.c.b16 %v2995, %v2988
    %v3192 = vpack.c.b16 %v2996, %v2989
    %v3193 = vpack.c.b16 %v3004, %v2997
    %v3194 = vpack.c.b16 %v3005, %v2998
    %v3195 = vpack.c.b16 %v3006, %v2999
    %v3196 = vpack.c.b16 %v3007, %v3000
    %v3197 = vpack.c.b16 %v3008, %v3001
    %v3198 = vpack.c.b16 %v3009, %v3002
    %v3199 = vpack.c.b16 %v3010, %v3003
    %v3200 = vpack.c.b16 %v3018, %v3011
    %v3201 = vpack.c.b16 %v3019, %v3012
    %v3202 = vpack.c.b16 %v3020, %v3013
    %v3203 = vpack.c.b16 %v3021, %v3014
    %v3204 = vpack.c.b16 %v3022, %v3015
    %v3205 = vpack.c.b16 %v3023, %v3016
    %v3206 = vpack.c.b16 %v3024, %v3017
    %v3207 = vpack.c.b16 %v3032, %v3025
    %v3208 = vpack.c.b16 %v3033, %v3026
    %v3209 = vpack.c.b16 %v3034, %v3027
    %v3210 = vpack.c.b16 %v3035, %v3028
    %v3211 = vpack.c.b16 %v3036, %v3029
    %v3212 = vpack.c.b16 %v3037, %v3030
    %v3213 = vpack.c.b16 %v3038, %v3031
    %v3214 = vpack.c.b16 %v3046, %v3039
    %v3215 = vpack.c.b16 %v3047, %v3040
    %v3216 = vpack.c.b16 %v3048, %v3041
    %v3217 = vpack.c.b16 %v3049, %v3042
    %v3218 = vpack.c.b16 %v3050, %v3043
    %v3219 = vpack.c.b16 %v3051, %v3044
    %v3220 = vpack.c.b16 %v3052, %v3045
    %3389 = vmatprep.subr.bf16.mxu0 %v3054
    %3390 = vmatpush1.bf16.msra.mxu0 %v3053
    %3391 = vmatprep.subr.bf16.mxu0 %v3061
    %3392 = vmatpush1.bf16.msra.mxu0 %v3060
    %3393 = vmatprep.subr.bf16.mxu0 %v3068
    %3394 = vmatpush1.bf16.msra.mxu0 %v3067
    %3395 = vmatprep.subr.bf16.mxu0 %v3075
    %3396 = vmatpush1.bf16.msra.mxu0 %v3074
    %3397 = vmatprep.subr.bf16.mxu0 %v3082
    %3398 = vmatpush1.bf16.msra.mxu0 %v3081
    %3399 = vmatprep.subr.bf16.mxu0 %v3089
    %3400 = vmatpush1.bf16.msra.mxu0 %v3088
    %3401 = vmatprep.subr.bf16.mxu0 %v3096
    %3402 = vmatpush1.bf16.msra.mxu0 %v3095
    %3403 = vmatprep.subr.bf16.mxu0 %v3103
    %3404 = vmatpush1.bf16.msra.mxu0 %v3102
    %3405 = vmatprep.subr.bf16.mxu0 %v3110
    %3406 = vmatpush1.bf16.msra.mxu0 %v3109
    %3407 = vmatprep.subr.bf16.mxu0 %v3117
    %3408 = vmatpush1.bf16.msra.mxu0 %v3116
    %3409 = vmatprep.subr.bf16.mxu0 %v3124
    %3410 = vmatpush1.bf16.msra.mxu0 %v3123
    %3411 = vmatprep.subr.bf16.mxu0 %v3131
    %3412 = vmatpush1.bf16.msra.mxu0 %v3130
    %3413 = vmatprep.subr.bf16.mxu0 %v3138
    %3414 = vmatpush1.bf16.msra.mxu0 %v3137
    %3415 = vmatprep.subr.bf16.mxu0 %v3145
    %3416 = vmatpush1.bf16.msra.mxu0 %v3144
    %3417 = vmatprep.subr.bf16.mxu0 %v3152
    %3418 = vmatpush1.bf16.msra.mxu0 %v3151
    %3419 = vmatprep.subr.bf16.mxu0 %v3159
    %3420 = vmatpush1.bf16.msra.mxu0 %v3158
    %3421 = vmatprep.mubr.bf16.mxu0 %v2290
    %3422 = vmatmul.mubr.bf16.gmra.mrb[0].mxu0 %v2289
    %v3423 = vpop.f32.mrb[0].mxu0
    %v3424 = vadd.f32 %v2493, %v3423
    %v3425 = vpop.f32.mrb[0].mxu0
    %v3426 = vadd.f32 %v2497, %v3425
    %v3427 = vpop.f32.mrb[0].mxu0
    %v3428 = vpop.f32.mrb[0].mxu0
    %3429 = vdwg.mxu0
    %3430 = vmatprep.subr.bf16.mxu0 %v3166
    %3431 = vmatpush1.bf16.msra.mxu0 %v3165
    %3432 = vmatprep.subr.bf16.mxu0 %v3173
    %3433 = vmatpush1.bf16.msra.mxu0 %v3172
    %3434 = vmatprep.subr.bf16.mxu0 %v3180
    %3435 = vmatpush1.bf16.msra.mxu0 %v3179
    %3436 = vmatprep.subr.bf16.mxu0 %v3187
    %3437 = vmatpush1.bf16.msra.mxu0 %v3186
    %3438 = vmatprep.subr.bf16.mxu0 %v3194
    %3439 = vmatpush1.bf16.msra.mxu0 %v3193
    %3440 = vmatprep.subr.bf16.mxu0 %v3201
    %3441 = vmatpush1.bf16.msra.mxu0 %v3200
    %3442 = vmatprep.subr.bf16.mxu0 %v3208
    %3443 = vmatpush1.bf16.msra.mxu0 %v3207
    %3444 = vmatprep.subr.bf16.mxu0 %v3215
    %3445 = vmatpush1.bf16.msra.mxu0 %v3214
    %3446 = vmatprep.subr.bf16.mxu0 0
    %3447 = vmatpush1.bf16.msra.mxu0 0
    %3448 = vmatprep.subr.bf16.mxu0 0
    %3449 = vmatpush1.bf16.msra.mxu0 0
    %3450 = vmatprep.subr.bf16.mxu0 0
    %3451 = vmatpush1.bf16.msra.mxu0 0
    %3452 = vmatprep.subr.bf16.mxu0 0
    %3453 = vmatpush1.bf16.msra.mxu0 0
    %3454 = vmatprep.subr.bf16.mxu0 0
    %3455 = vmatpush1.bf16.msra.mxu0 0
    %3456 = vmatprep.subr.bf16.mxu0 0
    %3457 = vmatpush1.bf16.msra.mxu0 0
    %3458 = vmatprep.subr.bf16.mxu0 0
    %3459 = vmatpush1.bf16.msra.mxu0 0
    %3460 = vmatprep.subr.bf16.mxu0 0
    %3461 = vmatpush1.bf16.msra.mxu0 0
    %3462 = vmatprep.mubr.bf16.mxu0 0
    %3463 = vmatmul.mubr.bf16.gmra.mrb[0].mxu0 %v2291
    %v3464 = vpop.f32.mrb[0].mxu0
    %v3465 = vadd.f32 %v3424, %v3464
    %v3466 = vpop.f32.mrb[0].mxu0
    %v3467 = vadd.f32 %v3426, %v3466
    %v3468 = vpop.f32.mrb[0].mxu0
    %v3469 = vpop.f32.mrb[0].mxu0
    %3470 = vdwg.mxu0
    %3471 = vmatprep.subr.bf16.mxu0 %v3056
    %3472 = vmatpush1.bf16.msra.mxu0 %v3055
    %3473 = vmatprep.subr.bf16.mxu0 %v3063
    %3474 = vmatpush1.bf16.msra.mxu0 %v3062
    %3475 = vmatprep.subr.bf16.mxu0 %v3070
    %3476 = vmatpush1.bf16.msra.mxu0 %v3069
    %3477 = vmatprep.subr.bf16.mxu0 %v3077
    %3478 = vmatpush1.bf16.msra.mxu0 %v3076
    %3479 = vmatprep.subr.bf16.mxu0 %v3084
    %3480 = vmatpush1.bf16.msra.mxu0 %v3083
    %3481 = vmatprep.subr.bf16.mxu0 %v3091
    %3482 = vmatpush1.bf16.msra.mxu0 %v3090
    %3483 = vmatprep.subr.bf16.mxu0 %v3098
    %3484 = vmatpush1.bf16.msra.mxu0 %v3097
    %3485 = vmatprep.subr.bf16.mxu0 %v3105
    %3486 = vmatpush1.bf16.msra.mxu0 %v3104
    %3487 = vmatprep.subr.bf16.mxu0 %v3112
    %3488 = vmatpush1.bf16.msra.mxu0 %v3111
    %3489 = vmatprep.subr.bf16.mxu0 %v3119
    %3490 = vmatpush1.bf16.msra.mxu0 %v3118
    %3491 = vmatprep.subr.bf16.mxu0 %v3126
    %3492 = vmatpush1.bf16.msra.mxu0 %v3125
    %3493 = vmatprep.subr.bf16.mxu0 %v3133
    %3494 = vmatpush1.bf16.msra.mxu0 %v3132
    %3495 = vmatprep.subr.bf16.mxu0 %v3140
    %3496 = vmatpush1.bf16.msra.mxu0 %v3139
    %3497 = vmatprep.subr.bf16.mxu0 %v3147
    %3498 = vmatpush1.bf16.msra.mxu0 %v3146
    %3499 = vmatprep.subr.bf16.mxu0 %v3154
    %3500 = vmatpush1.bf16.msra.mxu0 %v3153
    %3501 = vmatprep.subr.bf16.mxu0 %v3161
    %3502 = vmatpush1.bf16.msra.mxu0 %v3160
    %3503 = vmatprep.mubr.bf16.mxu0 %v2290
    %3504 = vmatmul.mubr.bf16.gmra.mrb[0].mxu0 %v2289
    %v3505 = vpop.f32.mrb[0].mxu0
    %v3506 = vadd.f32 %v2501, %v3505
    %v3507 = vpop.f32.mrb[0].mxu0
    %v3508 = vadd.f32 %v2505, %v3507
    %v3509 = vpop.f32.mrb[0].mxu0
    %v3510 = vpop.f32.mrb[0].mxu0
    %3511 = vdwg.mxu0
    %3512 = vmatprep.subr.bf16.mxu0 %v3168
    %3513 = vmatpush1.bf16.msra.mxu0 %v3167
    %3514 = vmatprep.subr.bf16.mxu0 %v3175
    %3515 = vmatpush1.bf16.msra.mxu0 %v3174
    %3516 = vmatprep.subr.bf16.mxu0 %v3182
    %3517 = vmatpush1.bf16.msra.mxu0 %v3181
    %3518 = vmatprep.subr.bf16.mxu0 %v3189
    %3519 = vmatpush1.bf16.msra.mxu0 %v3188
    %3520 = vmatprep.subr.bf16.mxu0 %v3196
    %3521 = vmatpush1.bf16.msra.mxu0 %v3195
    %3522 = vmatprep.subr.bf16.mxu0 %v3203
    %3523 = vmatpush1.bf16.msra.mxu0 %v3202
    %3524 = vmatprep.subr.bf16.mxu0 %v3210
    %3525 = vmatpush1.bf16.msra.mxu0 %v3209
    %3526 = vmatprep.subr.bf16.mxu0 %v3217
    %3527 = vmatpush1.bf16.msra.mxu0 %v3216
    %3528 = vmatprep.subr.bf16.mxu0 0
    %3529 = vmatpush1.bf16.msra.mxu0 0
    %3530 = vmatprep.subr.bf16.mxu0 0
    %3531 = vmatpush1.bf16.msra.mxu0 0
    %3532 = vmatprep.subr.bf16.mxu0 0
    %3533 = vmatpush1.bf16.msra.mxu0 0
    %3534 = vmatprep.subr.bf16.mxu0 0
    %3535 = vmatpush1.bf16.msra.mxu0 0
    %3536 = vmatprep.subr.bf16.mxu0 0
    %3537 = vmatpush1.bf16.msra.mxu0 0
    %3538 = vmatprep.subr.bf16.mxu0 0
    %3539 = vmatpush1.bf16.msra.mxu0 0
    %3540 = vmatprep.subr.bf16.mxu0 0
    %3541 = vmatpush1.bf16.msra.mxu0 0
    %3542 = vmatprep.subr.bf16.mxu0 0
    %3543 = vmatpush1.bf16.msra.mxu0 0
    %3544 = vmatprep.mubr.bf16.mxu0 0
    %3545 = vmatmul.mubr.bf16.gmra.mrb[0].mxu0 %v2291
    %v3546 = vpop.f32.mrb[0].mxu0
    %v3547 = vadd.f32 %v3506, %v3546
    %v3548 = vpop.f32.mrb[0].mxu0
    %v3549 = vadd.f32 %v3508, %v3548
    %v3550 = vpop.f32.mrb[0].mxu0
    %v3551 = vpop.f32.mrb[0].mxu0
    %3552 = vdwg.mxu0
    %3553 = vmatprep.subr.bf16.mxu0 %v3058
    %3554 = vmatpush1.bf16.msra.mxu0 %v3057
    %3555 = vmatprep.subr.bf16.mxu0 %v3065
    %3556 = vmatpush1.bf16.msra.mxu0 %v3064
    %3557 = vmatprep.subr.bf16.mxu0 %v3072
    %3558 = vmatpush1.bf16.msra.mxu0 %v3071
    %3559 = vmatprep.subr.bf16.mxu0 %v3079
    %3560 = vmatpush1.bf16.msra.mxu0 %v3078
    %3561 = vmatprep.subr.bf16.mxu0 %v3086
    %3562 = vmatpush1.bf16.msra.mxu0 %v3085
    %3563 = vmatprep.subr.bf16.mxu0 %v3093
    %3564 = vmatpush1.bf16.msra.mxu0 %v3092
    %3565 = vmatprep.subr.bf16.mxu0 %v3100
    %3566 = vmatpush1.bf16.msra.mxu0 %v3099
    %3567 = vmatprep.subr.bf16.mxu0 %v3107
    %3568 = vmatpush1.bf16.msra.mxu0 %v3106
    %3569 = vmatprep.subr.bf16.mxu0 %v3114
    %3570 = vmatpush1.bf16.msra.mxu0 %v3113
    %3571 = vmatprep.subr.bf16.mxu0 %v3121
    %3572 = vmatpush1.bf16.msra.mxu0 %v3120
    %3573 = vmatprep.subr.bf16.mxu0 %v3128
    %3574 = vmatpush1.bf16.msra.mxu0 %v3127
    %3575 = vmatprep.subr.bf16.mxu0 %v3135
    %3576 = vmatpush1.bf16.msra.mxu0 %v3134
    %3577 = vmatprep.subr.bf16.mxu0 %v3142
    %3578 = vmatpush1.bf16.msra.mxu0 %v3141
    %3579 = vmatprep.subr.bf16.mxu0 %v3149
    %3580 = vmatpush1.bf16.msra.mxu0 %v3148
    %3581 = vmatprep.subr.bf16.mxu0 %v3156
    %3582 = vmatpush1.bf16.msra.mxu0 %v3155
    %3583 = vmatprep.subr.bf16.mxu0 %v3163
    %3584 = vmatpush1.bf16.msra.mxu0 %v3162
    %3585 = vmatprep.mubr.bf16.mxu0 %v2290
    %3586 = vmatmul.mubr.bf16.gmra.mrb[0].mxu0 %v2289
    %v3587 = vpop.f32.mrb[0].mxu0
    %v3588 = vadd.f32 %v2509, %v3587
    %v3589 = vpop.f32.mrb[0].mxu0
    %v3590 = vadd.f32 %v2513, %v3589
    %v3591 = vpop.f32.mrb[0].mxu0
    %v3592 = vpop.f32.mrb[0].mxu0
    %3593 = vdwg.mxu0
    %3594 = vmatprep.subr.bf16.mxu0 %v3170
    %3595 = vmatpush1.bf16.msra.mxu0 %v3169
    %3596 = vmatprep.subr.bf16.mxu0 %v3177
    %3597 = vmatpush1.bf16.msra.mxu0 %v3176
    %3598 = vmatprep.subr.bf16.mxu0 %v3184
    %3599 = vmatpush1.bf16.msra.mxu0 %v3183
    %3600 = vmatprep.subr.bf16.mxu0 %v3191
    %3601 = vmatpush1.bf16.msra.mxu0 %v3190
    %3602 = vmatprep.subr.bf16.mxu0 %v3198
    %3603 = vmatpush1.bf16.msra.mxu0 %v3197
    %3604 = vmatprep.subr.bf16.mxu0 %v3205
    %3605 = vmatpush1.bf16.msra.mxu0 %v3204
    %3606 = vmatprep.subr.bf16.mxu0 %v3212
    %3607 = vmatpush1.bf16.msra.mxu0 %v3211
    %3608 = vmatprep.subr.bf16.mxu0 %v3219
    %3609 = vmatpush1.bf16.msra.mxu0 %v3218
    %3610 = vmatprep.subr.bf16.mxu0 0
    %3611 = vmatpush1.bf16.msra.mxu0 0
    %3612 = vmatprep.subr.bf16.mxu0 0
    %3613 = vmatpush1.bf16.msra.mxu0 0
    %3614 = vmatprep.subr.bf16.mxu0 0
    %3615 = vmatpush1.bf16.msra.mxu0 0
    %3616 = vmatprep.subr.bf16.mxu0 0
    %3617 = vmatpush1.bf16.msra.mxu0 0
    %3618 = vmatprep.subr.bf16.mxu0 0
    %3619 = vmatpush1.bf16.msra.mxu0 0
    %3620 = vmatprep.subr.bf16.mxu0 0
    %3621 = vmatpush1.bf16.msra.mxu0 0
    %3622 = vmatprep.subr.bf16.mxu0 0
    %3623 = vmatpush1.bf16.msra.mxu0 0
    %3624 = vmatprep.subr.bf16.mxu0 0
    %3625 = vmatpush1.bf16.msra.mxu0 0
    %3626 = vmatprep.mubr.bf16.mxu0 0
    %3627 = vmatmul.mubr.bf16.gmra.mrb[0].mxu0 %v2291
    %v3628 = vpop.f32.mrb[0].mxu0
    %v3629 = vadd.f32 %v3588, %v3628
    %v3630 = vpop.f32.mrb[0].mxu0
    %v3631 = vadd.f32 %v3590, %v3630
    %v3632 = vpop.f32.mrb[0].mxu0
    %v3633 = vpop.f32.mrb[0].mxu0
    %3634 = vdwg.mxu0
    %3635 = vmatprep.subr.bf16.mxu0 0
    %3636 = vmatpush1.bf16.msra.mxu0 %v3059
    %3637 = vmatprep.subr.bf16.mxu0 0
    %3638 = vmatpush1.bf16.msra.mxu0 %v3066
    %3639 = vmatprep.subr.bf16.mxu0 0
    %3640 = vmatpush1.bf16.msra.mxu0 %v3073
    %3641 = vmatprep.subr.bf16.mxu0 0
    %3642 = vmatpush1.bf16.msra.mxu0 %v3080
    %3643 = vmatprep.subr.bf16.mxu0 0
    %3644 = vmatpush1.bf16.msra.mxu0 %v3087
    %3645 = vmatprep.subr.bf16.mxu0 0
    %3646 = vmatpush1.bf16.msra.mxu0 %v3094
    %3647 = vmatprep.subr.bf16.mxu0 0
    %3648 = vmatpush1.bf16.msra.mxu0 %v3101
    %3649 = vmatprep.subr.bf16.mxu0 0
    %3650 = vmatpush1.bf16.msra.mxu0 %v3108
    %3651 = vmatprep.subr.bf16.mxu0 0
    %3652 = vmatpush1.bf16.msra.mxu0 %v3115
    %3653 = vmatprep.subr.bf16.mxu0 0
    %3654 = vmatpush1.bf16.msra.mxu0 %v3122
    %3655 = vmatprep.subr.bf16.mxu0 0
    %3656 = vmatpush1.bf16.msra.mxu0 %v3129
    %3657 = vmatprep.subr.bf16.mxu0 0
    %3658 = vmatpush1.bf16.msra.mxu0 %v3136
    %3659 = vmatprep.subr.bf16.mxu0 0
    %3660 = vmatpush1.bf16.msra.mxu0 %v3143
    %3661 = vmatprep.subr.bf16.mxu0 0
    %3662 = vmatpush1.bf16.msra.mxu0 %v3150
    %3663 = vmatprep.subr.bf16.mxu0 0
    %3664 = vmatpush1.bf16.msra.mxu0 %v3157
    %3665 = vmatprep.subr.bf16.mxu0 0
    %3666 = vmatpush1.bf16.msra.mxu0 %v3164
    %3667 = vmatprep.mubr.bf16.mxu0 %v2290
    %3668 = vmatmul.mubr.bf16.gmra.mrb[0].mxu0 %v2289
    %v3669 = vpop.f32.mrb[0].mxu0
    %v3670 = vadd.f32 %v2517, %v3669
    %v3671 = vpop.f32.mrb[0].mxu0
    %v3672 = vpop.f32.mrb[0].mxu0
    %v3673 = vpop.f32.mrb[0].mxu0
    %3674 = vdwg.mxu0
    %3675 = vmatprep.subr.bf16.mxu0 0
    %3676 = vmatpush1.bf16.msra.mxu0 %v3171
    %3677 = vmatprep.subr.bf16.mxu0 0
    %3678 = vmatpush1.bf16.msra.mxu0 %v3178
    %3679 = vmatprep.subr.bf16.mxu0 0
    %3680 = vmatpush1.bf16.msra.mxu0 %v3185
    %3681 = vmatprep.subr.bf16.mxu0 0
    %3682 = vmatpush1.bf16.msra.mxu0 %v3192
    %3683 = vmatprep.subr.bf16.mxu0 0
    %3684 = vmatpush1.bf16.msra.mxu0 %v3199
    %3685 = vmatprep.subr.bf16.mxu0 0
    %3686 = vmatpush1.bf16.msra.mxu0 %v3206
    %3687 = vmatprep.subr.bf16.mxu0 0
    %3688 = vmatpush1.bf16.msra.mxu0 %v3213
    %3689 = vmatprep.subr.bf16.mxu0 0
    %3690 = vmatpush1.bf16.msra.mxu0 %v3220
    %3691 = vmatprep.subr.bf16.mxu0 0
    %3692 = vmatpush1.bf16.msra.mxu0 0
    %3693 = vmatprep.subr.bf16.mxu0 0
    %3694 = vmatpush1.bf16.msra.mxu0 0
    %3695 = vmatprep.subr.bf16.mxu0 0
    %3696 = vmatpush1.bf16.msra.mxu0 0
    %3697 = vmatprep.subr.bf16.mxu0 0
    %3698 = vmatpush1.bf16.msra.mxu0 0
    %3699 = vmatprep.subr.bf16.mxu0 0
    %3700 = vmatpush1.bf16.msra.mxu0 0
    %3701 = vmatprep.subr.bf16.mxu0 0
    %3702 = vmatpush1.bf16.msra.mxu0 0
    %3703 = vmatprep.subr.bf16.mxu0 0
    %3704 = vmatpush1.bf16.msra.mxu0 0
    %3705 = vmatprep.subr.bf16.mxu0 0
    %3706 = vmatpush1.bf16.msra.mxu0 0
    %3707 = vmatprep.mubr.bf16.mxu0 0
    %3708 = vmatmul.mubr.bf16.gmra.mrb[0].mxu0 %v2291
    %v3709 = vpop.f32.mrb[0].mxu0
    %v3710 = vadd.f32 %v3670, %v3709
    %v3711 = vpop.f32.mrb[0].mxu0
    %v3712 = vpop.f32.mrb[0].mxu0
    %v3713 = vpop.f32.mrb[0].mxu0
    %3714 = vdwg.mxu0
    %v3715 = vadd.f32 %v3465, %v3467
    %v3716 = vadd.f32 %v3715, %v3547
    %v3717 = vadd.f32 %v3716, %v3549
    %v3718 = vadd.f32 %v3717, %v3629
    %v3719 = vadd.f32 %v3718, %v3631
    %v3720 = vadd.f32 %v3719, %v3710
    %3721 = vadd.xlane.f32.xlu0 %v3720
    %v3722 = vpop.xlane.xlu0 %3721
    %v3723 = vmul.f32 %v3722, 0.0011574074
    %v3724 = vsub.f32 %v3465, %v3723
    %v3725 = vsub.f32 %v3467, %v3723
    %v3726 = vsub.f32 %v3547, %v3723
    %v3727 = vsub.f32 %v3549, %v3723
    %v3728 = vsub.f32 %v3629, %v3723
    %v3729 = vsub.f32 %v3631, %v3723
    %v3730 = vsub.f32 %v3710, %v3723
    %v3731 = vadd.s32 %v1590, 384
    %v3732 = vadd.s32 %v1590, 512
    %v3733 = vadd.s32 %v1590, 640
    %v3734 = vadd.s32 %v1590, 768
    %vm3735 = vcmp.lt.s32.totalorder %v1590, 864
    %vm3736 = vcmp.lt.s32.totalorder %v1591, 864
    %vm3737 = vcmp.lt.s32.totalorder %v1592, 864
    %vm3738 = vcmp.lt.s32.totalorder %v3731, 864
    %vm3739 = vcmp.lt.s32.totalorder %v3732, 864
    %vm3740 = vcmp.lt.s32.totalorder %v3733, 864
    %vm3741 = vcmp.lt.s32.totalorder %v3734, 864
    %v3742 = vsel %vm3735, 1, 0
    %v3743 = vsel %vm3736, 1, 0
    %v3744 = vsel %vm3737, 1, 0
    %v3745 = vsel %vm3738, 1, 0
    %v3746 = vsel %vm3739, 1, 0
    %v3747 = vsel %vm3740, 1, 0
    %v3748 = vsel %vm3741, 1, 0
    %vm3749 = vcmp.eq.s32.totalorder %v3742, 1
    %vm3750 = vcmp.eq.s32.totalorder %v3743, 1
    %vm3751 = vcmp.eq.s32.totalorder %v3744, 1
    %vm3752 = vcmp.eq.s32.totalorder %v3745, 1
    %vm3753 = vcmp.eq.s32.totalorder %v3746, 1
    %vm3754 = vcmp.eq.s32.totalorder %v3747, 1
    %vm3755 = vcmp.eq.s32.totalorder %v3748, 1
    %v3756 = vsel %vm3749, %v3724, 0.0
    %v3757 = vsel %vm3750, %v3725, 0.0
    %v3758 = vsel %vm3751, %v3726, 0.0
    %v3759 = vsel %vm3752, %v3727, 0.0
    %v3760 = vsel %vm3753, %v3728, 0.0
    %v3761 = vsel %vm3754, %v3729, 0.0
    %v3762 = vsel %vm3755, %v3730, 0.0
    %v3763 = vmul.f32 %v3756, %v3756
    %v3764 = vmul.f32 %v3757, %v3757
    %v3765 = vmul.f32 %v3758, %v3758
    %v3766 = vmul.f32 %v3759, %v3759
    %v3767 = vmul.f32 %v3760, %v3760
    %v3768 = vmul.f32 %v3761, %v3761
    %v3769 = vmul.f32 %v3762, %v3762
    %v3770 = vadd.f32 %v3763, %v3764
    %v3771 = vadd.f32 %v3770, %v3765
    %v3772 = vadd.f32 %v3771, %v3766
    %v3773 = vadd.f32 %v3772, %v3767
    %v3774 = vadd.f32 %v3773, %v3768
    %v3775 = vadd.f32 %v3774, %v3769
    %3776 = vadd.xlane.f32.xlu0 %v3775
    %v3777 = vpop.xlane.xlu0 %3776
    %v3778 = vmul.f32 %v3777, 0.0011574074
    %v3779 = vadd.f32 %v3778, 1e-05
    %v3780 = vrsqrt.pop %v3779
    %v3781 = vmul.f32 %v3724, %v3780
    %v3782 = vmul.f32 %v3725, %v3780
    %v3783 = vmul.f32 %v3726, %v3780
    %v3784 = vmul.f32 %v3727, %v3780
    %v3785 = vmul.f32 %v3728, %v3780
    %v3786 = vmul.f32 %v3729, %v3780
    %v3787 = vmul.f32 %v3730, %v3780
    %v3789 = vlaneseq
    %v3790 = vshrl.u32 %v3789, 7
    %v3791 = vsub.s32 0, %v3790
    %v3792 = vrot.slane %v2486, %v3791
    %v3793 = vlaneseq
    %v3794 = vshrl.u32 %v3793, 7
    %v3795 = vsub.s32 1, %v3794
    %v3796 = vrot.slane %v2486, %v3795
    %v3797 = vlaneseq
    %v3798 = vshrl.u32 %v3797, 7
    %v3799 = vsub.s32 2, %v3798
    %v3800 = vrot.slane %v2486, %v3799
    %v3801 = vlaneseq
    %v3802 = vshrl.u32 %v3801, 7
    %v3803 = vsub.s32 3, %v3802
    %v3804 = vrot.slane %v2486, %v3803
    %v3805 = vlaneseq
    %v3806 = vshrl.u32 %v3805, 7
    %v3807 = vsub.s32 4, %v3806
    %v3808 = vrot.slane %v2486, %v3807
    %v3809 = vlaneseq
    %v3810 = vshrl.u32 %v3809, 7
    %v3811 = vsub.s32 5, %v3810
    %v3812 = vrot.slane %v2486, %v3811
    %v3813 = vlaneseq
    %v3814 = vshrl.u32 %v3813, 7
    %v3815 = vsub.s32 6, %v3814
    %v3816 = vrot.slane %v2486, %v3815
    %v3824 = vmul.f32 %v3781, %v3792
    %v3825 = vmul.f32 %v3782, %v3796
    %v3826 = vmul.f32 %v3783, %v3800
    %v3827 = vmul.f32 %v3784, %v3804
    %v3828 = vmul.f32 %v3785, %v3808
    %v3829 = vmul.f32 %v3786, %v3812
    %v3830 = vmul.f32 %v3787, %v3816
    %v3832 = vlaneseq
    %v3833 = vshrl.u32 %v3832, 7
    %v3834 = vsub.s32 0, %v3833
    %v3835 = vrot.slane %v2488, %v3834
    %v3836 = vlaneseq
    %v3837 = vshrl.u32 %v3836, 7
    %v3838 = vsub.s32 1, %v3837
    %v3839 = vrot.slane %v2488, %v3838
    %v3840 = vlaneseq
    %v3841 = vshrl.u32 %v3840, 7
    %v3842 = vsub.s32 2, %v3841
    %v3843 = vrot.slane %v2488, %v3842
    %v3844 = vlaneseq
    %v3845 = vshrl.u32 %v3844, 7
    %v3846 = vsub.s32 3, %v3845
    %v3847 = vrot.slane %v2488, %v3846
    %v3848 = vlaneseq
    %v3849 = vshrl.u32 %v3848, 7
    %v3850 = vsub.s32 4, %v3849
    %v3851 = vrot.slane %v2488, %v3850
    %v3852 = vlaneseq
    %v3853 = vshrl.u32 %v3852, 7
    %v3854 = vsub.s32 5, %v3853
    %v3855 = vrot.slane %v2488, %v3854
    %v3856 = vlaneseq
    %v3857 = vshrl.u32 %v3856, 7
    %v3858 = vsub.s32 6, %v3857
    %v3859 = vrot.slane %v2488, %v3858
    %v3867 = vadd.f32 %v3824, %v3835
    %v3868 = vadd.f32 %v3825, %v3839
    %v3869 = vadd.f32 %v3826, %v3843
    %v3870 = vadd.f32 %v3827, %v3847
    %v3871 = vadd.f32 %v3828, %v3851
    %v3872 = vadd.f32 %v3829, %v3855
    %v3873 = vadd.f32 %v3830, %v3859
    %v3874 = vpack.c.bf16 %v3867, %v3867
    %v3875 = vpack.c.bf16 %v3868, %v3868
    %v3876 = vpack.c.bf16 %v3869, %v3869
    %v3877 = vpack.c.bf16 %v3870, %v3870
    %v3878 = vpack.c.bf16 %v3871, %v3871
    %v3879 = vpack.c.bf16 %v3872, %v3872
    %v3880 = vpack.c.bf16 %v3873, %v3873
    %v3888 = vunpack.c.l.b16 %v3874
    %v3889 = vunpack.c.l.b16 %v3875
    %v3890 = vunpack.c.l.b16 %v3876
    %v3891 = vunpack.c.l.b16 %v3877
    %v3892 = vunpack.c.l.b16 %v3878
    %v3893 = vunpack.c.l.b16 %v3879
    %v3894 = vunpack.c.l.b16 %v3880
    %v3895 = vpack.c.b16 %v3889, %v3888
    %v3896 = vpack.c.b16 %v3891, %v3890
    %v3897 = vpack.c.b16 %v3893, %v3892
    %v3898 = vpack.c.b16 %v3894, %v3894
    %3903 = vst [vmem:[#allocation17] sm:$0xff] %v3895
    %3904 = vst [vmem:[#allocation17 + $0x8] sm:$0xff] %v3896
    %3905 = vst [vmem:[#allocation17 + $0x10] sm:$0xff] %v3897
    %3906 = vst [vmem:[#allocation17 + $0x18] sm:$0xf] %v3898
    // Predicated region
    $region70: #{_forward_impl.1} parent=1 // pred_check
      _
    $region71: #{_forward_impl.1} parent=1 // pred_check_branch
      %3908 = sbr.rel (0) target = $region73
    $region72: #{_forward_impl.1} parent=1 // pred_region
      %s3910 = ssub.s32 64, 64
      %3911 = vsyncadd [#allocation4], %s3910
      %s3913 = sshll.u32 [#allocation16], 4
      %s3914 = int_to_ptr.vmem [resolvable:$true] %s3913
      %3916 = dma.vmem_to_hbm [thread:$0]  %s3914, 64, %s9, [#allocation4]
    $region73: #{_forward_impl.1} parent=1 // pred_fallthru
      _
    // Predicated region
    $region74: #{_forward_impl.1} parent=1 // pred_check
      _
    $region75: #{_forward_impl.1} parent=1 // pred_check_branch
      %3918 = sbr.rel (0) target = $region77
    $region76: #{_forward_impl.1} parent=1 // pred_region
      %s3920 = ssub.s32 448, 448
      %3921 = vsyncadd [#allocation18], %s3920
      %s3923 = sshll.u32 [#allocation17], 4
      %s3924 = int_to_ptr.vmem [resolvable:$true] %s3923
      %3926 = dma.vmem_to_hbm [thread:$0]  %s3924, 448, %s10, [#allocation18]
    $region77: #{_forward_impl.1} parent=1 // pred_fallthru
      _
    // Predicated region
    $region78: #{_forward_impl.1} parent=1 // pred_check
      _
    $region79: #{_forward_impl.1} parent=1 // pred_check_branch
      %3928 = sbr.rel (0) target = $region81
    $region80: #{_forward_impl.1} parent=1 // pred_region
      %3929 = dma.done [#allocation4], 64
    $region81: #{_forward_impl.1} parent=1 // pred_fallthru
      _
    // Predicated region
    $region82: #{_forward_impl.1} parent=1 // pred_check
      _
    $region83: #{_forward_impl.1} parent=1 // pred_check_branch
      %3931 = sbr.rel (0) target = $region85
    $region84: #{_forward_impl.1} parent=1 // pred_region
      %3932 = dma.done [#allocation18], 448
    $region85: #{_forward_impl.1} parent=1 // pred_fallthru
      _
    %3933 = vsyncpa [#allocation3], 1
    %3934 = vsyncpa [#allocation6], 1
    %3935 = vsyncpa [#allocation9], 1
    %3936 = vsyncpa [#allocation12], 1
    %3937 = vsyncpa [#allocation15], 1
    %3938 = vsyncpa [#allocation4], 1
    %3939 = vsyncpa [#allocation18], 1

// kernel: _forward_impl.1
$region0: #{_forward_impl.1}
  #allocation0 [shape = 'u32[]', space=smem, size = 0x4, offset = 0x4, fixed_abs, tag = 'smem constant byte address 0x4 - core index']
  #allocation1 [shape = 'u32[144,128]{1,0:T(1,128)}', space=vmem, size = 0x12000, scoped, tag = 'internal scratch']
  %s0 = inlined_call_operand.hbm [shape: f32[8,864], index: 0, kind: input, shape index: {}]
  %s1 = inlined_call_operand.hbm [shape: bf16[864,384], index: 1, kind: input, shape index: {}]
  %s2 = inlined_call_operand.hbm [shape: f32[3,384], index: 2, kind: input, shape index: {}]
  %s3 = inlined_call_operand.hbm [shape: bf16[384,128], index: 3, kind: input, shape index: {}]
  %s4 = inlined_call_operand.hbm [shape: f32[3,128], index: 4, kind: input, shape index: {}]
  %s5 = inlined_call_operand.hbm [shape: bf16[128,384], index: 5, kind: input, shape index: {}]
  %s6 = inlined_call_operand.hbm [shape: f32[3,384], index: 6, kind: input, shape index: {}]
  %s7 = inlined_call_operand.hbm [shape: bf16[384,896], index: 7, kind: input, shape index: {}]
  %s8 = inlined_call_operand.vmem [shape: f32[3,896], index: 8, kind: input, shape index: {}]
  %s9 = inlined_call_operand.hbm [shape: bf16[8,128], index: 9, kind: output, shape index: {0}]
  %s10 = inlined_call_operand.hbm [shape: bf16[8,896], index: 10, kind: output, shape index: {1}]
  %11 = xla_tuple %s9, %s10
  %s12 = sld [smem:[#allocation0]]
  $region86: #{_forward_impl.1} parent=0
    _
  %s14 = ssub.s32 1, %s12
  %s15 = scalar_select 0, %s14, %s12
  $region1: #{_forward_impl.1} parent=0
    #allocation2 [shape = 'u8[28672]{0}', space=vmem, size = 0x7000, scoped, tag = 'input window, operand 0, single buffered']
    #allocation3 [shape = 's32[1]{0}', space=sflag, size = 0x4, scoped, tag = 'scoped memory for _forward_impl.1']
    #allocation4 [shape = 's32[1]{0}', space=sflag, size = 0x4, scoped, tag = 'scoped memory for _forward_impl.1']
    #allocation5 [shape = 'u8[663552]{0}', space=vmem, size = 0xa2000, scoped, tag = 'input window, operand 1, single buffered']
    #allocation6 [shape = 's32[1]{0}', space=sflag, size = 0x4, scoped, tag = 'scoped memory for _forward_impl.1']
    #allocation7 [shape = 'u8[6144]{0}', space=vmem, size = 0x1800, scoped, tag = 'input window, operand 2, single buffered']
    #allocation8 [shape = 'u8[98304]{0}', space=vmem, size = 0x18000, scoped, tag = 'input window, operand 3, single buffered']
    #allocation9 [shape = 's32[1]{0}', space=sflag, size = 0x4, scoped, tag = 'scoped memory for _forward_impl.1']
    #allocation10 [shape = 'u8[2048]{0}', space=vmem, size = 0x800, scoped, tag = 'input window, operand 4, single buffered']
    #allocation11 [shape = 'u8[98304]{0}', space=vmem, size = 0x18000, scoped, tag = 'input window, operand 5, single buffered']
    #allocation12 [shape = 's32[1]{0}', space=sflag, size = 0x4, scoped, tag = 'scoped memory for _forward_impl.1']
    #allocation13 [shape = 'u8[6144]{0}', space=vmem, size = 0x1800, scoped, tag = 'input window, operand 6, single buffered']
    #allocation14 [shape = 'u8[688128]{0}', space=vmem, size = 0xa8000, scoped, tag = 'input window, operand 7, single buffered']
    #allocation15 [shape = 's32[1]{0}', space=sflag, size = 0x4, scoped, tag = 'scoped memory for _forward_impl.1']
    #allocation16 [shape = 'u8[2048]{0}', space=vmem, size = 0x800, scoped, tag = 'output window, operand 0, single buffered']
    #allocation17 [shape = 'u8[14336]{0}', space=vmem, size = 0x3800, scoped, tag = 'output window, operand 1, single buffered']
    #allocation18 [shape = 's32[1]{0}', space=sflag, size = 0x4, scoped, tag = 'scoped memory for _forward_impl.1']
    %16 = vsyncpa [#allocation3], 0
    %17 = vsyncpa [#allocation6], 0
    %18 = vsyncpa [#allocation9], 0
    %19 = vsyncpa [#allocation12], 0
    %20 = vsyncpa [#allocation15], 0
    %21 = vsyncpa [#allocation4], 0
    %22 = vsyncpa [#allocation18], 0
    // Predicated region
    $region2: #{_forward_impl.1} parent=1 // pred_check
      _
    $region3: #{_forward_impl.1} parent=1 // pred_check_branch
      %24 = sbr.rel (0) target = $region5
    $region4: #{_forward_impl.1} parent=1 // pred_region
      %s26 = ssub.s32 896, 896
      %27 = vsyncadd [#allocation3], %s26
      %s29 = sshll.u32 [#allocation2], 4
      %s30 = int_to_ptr.vmem [resolvable:$true] %s29
      %32 = dma.hbm_to_vmem [thread:$0]  %s0, 896, %s30, [#allocation3]
    $region5: #{_forward_impl.1} parent=1 // pred_fallthru
      _
    // Predicated region
    $region6: #{_forward_impl.1} parent=1 // pred_check
      _
    $region7: #{_forward_impl.1} parent=1 // pred_check_branch
      %34 = sbr.rel (0) target = $region9
    $region8: #{_forward_impl.1} parent=1 // pred_region
      %s36 = ssub.s32 20736, 20736
      %37 = vsyncadd [#allocation6], %s36
      %s38 = sshll.u32 [#allocation5], 4
      %s39 = int_to_ptr.vmem [resolvable:$true] %s38
      %44 = dma.hbm_to_vmem [thread:$0]  %s1, 20736, %s39, [#allocation6], 192, 192, 12
    $region9: #{_forward_impl.1} parent=1 // pred_fallthru
      _
    // Predicated region
    $region10: #{_forward_impl.1} parent=1 // pred_check
      _
    $region11: #{_forward_impl.1} parent=1 // pred_check_branch
      %46 = sbr.rel (0) target = $region13
    $region12: #{_forward_impl.1} parent=1 // pred_region
      %s48 = ssub.s32 192, 192
      %49 = vsyncadd [#allocation6], %s48
      %s51 = sshll.u32 [#allocation7], 4
      %s52 = int_to_ptr.vmem [resolvable:$true] %s51
      %54 = dma.hbm_to_vmem [thread:$0]  %s2, 192, %s52, [#allocation6]
    $region13: #{_forward_impl.1} parent=1 // pred_fallthru
      _
    // Predicated region
    $region14: #{_forward_impl.1} parent=1 // pred_check
      _
    $region15: #{_forward_impl.1} parent=1 // pred_check_branch
      %56 = sbr.rel (0) target = $region17
    $region16: #{_forward_impl.1} parent=1 // pred_region
      %s58 = ssub.s32 3072, 3072
      %59 = vsyncadd [#allocation9], %s58
      %s60 = sshll.u32 [#allocation8], 4
      %s61 = int_to_ptr.vmem [resolvable:$true] %s60
      %66 = dma.hbm_to_vmem [thread:$0]  %s3, 3072, %s61, [#allocation9], 64, 64, 4
    $region17: #{_forward_impl.1} parent=1 // pred_fallthru
      _
    // Predicated region
    $region18: #{_forward_impl.1} parent=1 // pred_check
      _
    $region19: #{_forward_impl.1} parent=1 // pred_check_branch
      %68 = sbr.rel (0) target = $region21
    $region20: #{_forward_impl.1} parent=1 // pred_region
      %s70 = ssub.s32 64, 64
      %71 = vsyncadd [#allocation9], %s70
      %s73 = sshll.u32 [#allocation10], 4
      %s74 = int_to_ptr.vmem [resolvable:$true] %s73
      %76 = dma.hbm_to_vmem [thread:$0]  %s4, 64, %s74, [#allocation9]
    $region21: #{_forward_impl.1} parent=1 // pred_fallthru
      _
    // Predicated region
    $region22: #{_forward_impl.1} parent=1 // pred_check
      _
    $region23: #{_forward_impl.1} parent=1 // pred_check_branch
      %78 = sbr.rel (0) target = $region25
    $region24: #{_forward_impl.1} parent=1 // pred_region
      %s80 = ssub.s32 3072, 3072
      %81 = vsyncadd [#allocation12], %s80
      %s82 = sshll.u32 [#allocation11], 4
      %s83 = int_to_ptr.vmem [resolvable:$true] %s82
      %88 = dma.hbm_to_vmem [thread:$0]  %s5, 3072, %s83, [#allocation12], 192, 192, 12
    $region25: #{_forward_impl.1} parent=1 // pred_fallthru
      _
    // Predicated region
    $region26: #{_forward_impl.1} parent=1 // pred_check
      _
    $region27: #{_forward_impl.1} parent=1 // pred_check_branch
      %90 = sbr.rel (0) target = $region29
    $region28: #{_forward_impl.1} parent=1 // pred_region
      %s92 = ssub.s32 192, 192
      %93 = vsyncadd [#allocation12], %s92
      %s95 = sshll.u32 [#allocation13], 4
      %s96 = int_to_ptr.vmem [resolvable:$true] %s95
      %98 = dma.hbm_to_vmem [thread:$0]  %s6, 192, %s96, [#allocation12]
    $region29: #{_forward_impl.1} parent=1 // pred_fallthru
      _
    // Predicated region
    $region30: #{_forward_impl.1} parent=1 // pred_check
      _
    $region31: #{_forward_impl.1} parent=1 // pred_check_branch
      %100 = sbr.rel (0) target = $region33
    $region32: #{_forward_impl.1} parent=1 // pred_region
      %s102 = ssub.s32 21504, 21504
      %103 = vsyncadd [#allocation15], %s102
      %s104 = sshll.u32 [#allocation14], 4
      %s105 = int_to_ptr.vmem [resolvable:$true] %s104
      %110 = dma.hbm_to_vmem [thread:$0]  %s7, 21504, %s105, [#allocation15], 448, 448, 28
    $region33: #{_forward_impl.1} parent=1 // pred_fallthru
      _
    // Predicated region
    $region34: #{_forward_impl.1} parent=1 // pred_check
      _
    $region35: #{_forward_impl.1} parent=1 // pred_check_branch
      %112 = sbr.rel (0) target = $region37
    $region36: #{_forward_impl.1} parent=1 // pred_region
      _
    $region37: #{_forward_impl.1} parent=1 // pred_fallthru
      _
    // Predicated region
    $region38: #{_forward_impl.1} parent=1 // pred_check
      _
    $region39: #{_forward_impl.1} parent=1 // pred_check_branch
      %114 = sbr.rel (0) target = $region41
    $region40: #{_forward_impl.1} parent=1 // pred_region
      %115 = dma.done [#allocation3], 896
    $region41: #{_forward_impl.1} parent=1 // pred_fallthru
      _
    // Predicated region
    $region42: #{_forward_impl.1} parent=1 // pred_check
      _
    $region43: #{_forward_impl.1} parent=1 // pred_check_branch
      %117 = sbr.rel (0) target = $region45
    $region44: #{_forward_impl.1} parent=1 // pred_region
      %118 = dma.done [#allocation6], 20736
    $region45: #{_forward_impl.1} parent=1 // pred_fallthru
      _
    // Predicated region
    $region46: #{_forward_impl.1} parent=1 // pred_check
      _
    $region47: #{_forward_impl.1} parent=1 // pred_check_branch
      %120 = sbr.rel (0) target = $region49
    $region48: #{_forward_impl.1} parent=1 // pred_region
      %121 = dma.done [#allocation6], 192
    $region49: #{_forward_impl.1} parent=1 // pred_fallthru
      _
    // Predicated region
    $region50: #{_forward_impl.1} parent=1 // pred_check
      _
    $region51: #{_forward_impl.1} parent=1 // pred_check_branch
      %123 = sbr.rel (0) target = $region53
    $region52: #{_forward_impl.1} parent=1 // pred_region
      %124 = dma.done [#allocation9], 3072
    $region53: #{_forward_impl.1} parent=1 // pred_fallthru
      _
    // Predicated region
    $region54: #{_forward_impl.1} parent=1 // pred_check
      _
    $region55: #{_forward_impl.1} parent=1 // pred_check_branch
      %126 = sbr.rel (0) target = $region57
    $region56: #{_forward_impl.1} parent=1 // pred_region
      %127 = dma.done [#allocation9], 64
    $region57: #{_forward_impl.1} parent=1 // pred_fallthru
      _
    // Predicated region
    $region58: #{_forward_impl.1} parent=1 // pred_check
      _
    $region59: #{_forward_impl.1} parent=1 // pred_check_branch
      %129 = sbr.rel (0) target = $region61
    $region60: #{_forward_impl.1} parent=1 // pred_region
      %130 = dma.done [#allocation12], 3072
    $region61: #{_forward_impl.1} parent=1 // pred_fallthru
      _
    // Predicated region
    $region62: #{_forward_impl.1} parent=1 // pred_check
      _
    $region63: #{_forward_impl.1} parent=1 // pred_check_branch
      %132 = sbr.rel (0) target = $region65
    $region64: #{_forward_impl.1} parent=1 // pred_region
      %133 = dma.done [#allocation12], 192
    $region65: #{_forward_impl.1} parent=1 // pred_fallthru
      _
    // Predicated region
    $region66: #{_forward_impl.1} parent=1 // pred_check
      _
    $region67: #{_forward_impl.1} parent=1 // pred_check_branch
      %135 = sbr.rel (0) target = $region69
    $region68: #{_forward_impl.1} parent=1 // pred_region
      %136 = dma.done [#allocation15], 21504
    $region69: #{_forward_impl.1} parent=1 // pred_fallthru
      _
    %v138 = vld [vmem:[#allocation2] sm:$0xff]
    %v139 = vld [vmem:[#allocation2 + $0x8] sm:$0xff]
    %v140 = vld [vmem:[#allocation2 + $0x10] sm:$0xff]
    %v141 = vld [vmem:[#allocation2 + $0x18] sm:$0xff]
    %v142 = vld [vmem:[#allocation2 + $0x20] sm:$0xff]
    %v143 = vld [vmem:[#allocation2 + $0x28] sm:$0xff]
    %v144 = vld [vmem:[#allocation2 + $0x30] sm:$0xff]
    %v145 = vpack.c.bf16 %v138, %v138
    %v146 = vpack.c.bf16 %v139, %v139
    %v147 = vpack.c.bf16 %v140, %v140
    %v148 = vpack.c.bf16 %v141, %v141
    %v149 = vpack.c.bf16 %v142, %v142
    %v150 = vpack.c.bf16 %v143, %v143
    %v151 = vpack.c.bf16 %v144, %v144
    %v152 = vld [vmem:[#allocation5] sm:$0xff]
    %v153 = vld [vmem:[#allocation5 + $0x8] sm:$0xf]
    %v154 = vld [vmem:[#allocation5 + $0xc] sm:$0xff]
    %v155 = vld [vmem:[#allocation5 + $0x14] sm:$0xf]
    %v156 = vld [vmem:[#allocation5 + $0x18] sm:$0xff]
    %v157 = vld [vmem:[#allocation5 + $0x20] sm:$0xf]
    %v158 = vld [vmem:[#allocation5 + $0x24] sm:$0xff]
    %v159 = vld [vmem:[#allocation5 + $0x2c] sm:$0xf]
    %v160 = vld [vmem:[#allocation5 + $0x30] sm:$0xff]
    %v161 = vld [vmem:[#allocation5 + $0x38] sm:$0xf]
    %v162 = vld [vmem:[#allocation5 + $0x3c] sm:$0xff]
    %v163 = vld [vmem:[#allocation5 + $0x44] sm:$0xf]
    %v164 = vld [vmem:[#allocation5 + $0x48] sm:$0xff]
    %v165 = vld [vmem:[#allocation5 + $0x50] sm:$0xf]
    %v166 = vld [vmem:[#allocation5 + $0x54] sm:$0xff]
    %v167 = vld [vmem:[#allocation5 + $0x5c] sm:$0xf]
    %v168 = vld [vmem:[#allocation5 + $0x60] sm:$0xff]
    %v169 = vld [vmem:[#allocation5 + $0x68] sm:$0xf]
    %v170 = vld [vmem:[#allocation5 + $0x6c] sm:$0xff]
    %v171 = vld [vmem:[#allocation5 + $0x74] sm:$0xf]
    %v172 = vld [vmem:[#allocation5 + $0x78] sm:$0xff]
    %v173 = vld [vmem:[#allocation5 + $0x80] sm:$0xf]
    %v174 = vld [vmem:[#allocation5 + $0x84] sm:$0xff]
    %v175 = vld [vmem:[#allocation5 + $0x8c] sm:$0xf]
    %v176 = vld [vmem:[#allocation5 + $0x90] sm:$0xff]
    %v177 = vld [vmem:[#allocation5 + $0x98] sm:$0xf]
    %v178 = vld [vmem:[#allocation5 + $0x9c] sm:$0xff]
    %v179 = vld [vmem:[#allocation5 + $0xa4] sm:$0xf]
    %v180 = vld [vmem:[#allocation5 + $0xa8] sm:$0xff]
    %v181 = vld [vmem:[#allocation5 + $0xb0] sm:$0xf]
    %v182 = vld [vmem:[#allocation5 + $0xb4] sm:$0xff]
    %v183 = vld [vmem:[#allocation5 + $0xbc] sm:$0xf]
    %v184 = vld [vmem:[#allocation5 + $0xc0] sm:$0xff]
    %v185 = vld [vmem:[#allocation5 + $0xc8] sm:$0xf]
    %v186 = vld [vmem:[#allocation5 + $0xcc] sm:$0xff]
    %v187 = vld [vmem:[#allocation5 + $0xd4] sm:$0xf]
    %v188 = vld [vmem:[#allocation5 + $0xd8] sm:$0xff]
    %v189 = vld [vmem:[#allocation5 + $0xe0] sm:$0xf]
    %v190 = vld [vmem:[#allocation5 + $0xe4] sm:$0xff]
    %v191 = vld [vmem:[#allocation5 + $0xec] sm:$0xf]
    %v192 = vld [vmem:[#allocation5 + $0xf0] sm:$0xff]
    %v193 = vld [vmem:[#allocation5 + $0xf8] sm:$0xf]
    %v194 = vld [vmem:[#allocation5 + $0xfc] sm:$0xff]
    %v195 = vld [vmem:[#allocation5 + $0x104] sm:$0xf]
    %v196 = vld [vmem:[#allocation5 + $0x108] sm:$0xff]
    %v197 = vld [vmem:[#allocation5 + $0x110] sm:$0xf]
    %v198 = vld [vmem:[#allocation5 + $0x114] sm:$0xff]
    %v199 = vld [vmem:[#allocation5 + $0x11c] sm:$0xf]
    %v200 = vld [vmem:[#allocation5 + $0x120] sm:$0xff]
    %v201 = vld [vmem:[#allocation5 + $0x128] sm:$0xf]
    %v202 = vld [vmem:[#allocation5 + $0x12c] sm:$0xff]
    %v203 = vld [vmem:[#allocation5 + $0x134] sm:$0xf]
    %v204 = vld [vmem:[#allocation5 + $0x138] sm:$0xff]
    %v205 = vld [vmem:[#allocation5 + $0x140] sm:$0xf]
    %v206 = vld [vmem:[#allocation5 + $0x144] sm:$0xff]
    %v207 = vld [vmem:[#allocation5 + $0x14c] sm:$0xf]
    %v208 = vld [vmem:[#allocation5 + $0x150] sm:$0xff]
    %v209 = vld [vmem:[#allocation5 + $0x158] sm:$0xf]
    %v210 = vld [vmem:[#allocation5 + $0x15c] sm:$0xff]
    %v211 = vld [vmem:[#allocation5 + $0x164] sm:$0xf]
    %v212 = vld [vmem:[#allocation5 + $0x168] sm:$0xff]
    %v213 = vld [vmem:[#allocation5 + $0x170] sm:$0xf]
    %v214 = vld [vmem:[#allocation5 + $0x174] sm:$0xff]
    %v215 = vld [vmem:[#allocation5 + $0x17c] sm:$0xf]
    %v216 = vld [vmem:[#allocation5 + $0x180] sm:$0xff]
    %v217 = vld [vmem:[#allocation5 + $0x188] sm:$0xf]
    %v218 = vld [vmem:[#allocation5 + $0x18c] sm:$0xff]
    %v219 = vld [vmem:[#allocation5 + $0x194] sm:$0xf]
    %v220 = vld [vmem:[#allocation5 + $0x198] sm:$0xff]
    %v221 = vld [vmem:[#allocation5 + $0x1a0] sm:$0xf]
    %v222 = vld [vmem:[#allocation5 + $0x1a4] sm:$0xff]
    %v223 = vld [vmem:[#allocation5 + $0x1ac] sm:$0xf]
    %v224 = vld [vmem:[#allocation5 + $0x1b0] sm:$0xff]
    %v225 = vld [vmem:[#allocation5 + $0x1b8] sm:$0xf]
    %v226 = vld [vmem:[#allocation5 + $0x1bc] sm:$0xff]
    %v227 = vld [vmem:[#allocation5 + $0x1c4] sm:$0xf]
    %v228 = vld [vmem:[#allocation5 + $0x1c8] sm:$0xff]
    %v229 = vld [vmem:[#allocation5 + $0x1d0] sm:$0xf]
    %v230 = vld [vmem:[#allocation5 + $0x1d4] sm:$0xff]
    %v231 = vld [vmem:[#allocation5 + $0x1dc] sm:$0xf]
    %v232 = vld [vmem:[#allocation5 + $0x1e0] sm:$0xff]
    %v233 = vld [vmem:[#allocation5 + $0x1e8] sm:$0xf]
    %v234 = vld [vmem:[#allocation5 + $0x1ec] sm:$0xff]
    %v235 = vld [vmem:[#allocation5 + $0x1f4] sm:$0xf]
    %v236 = vld [vmem:[#allocation5 + $0x1f8] sm:$0xff]
    %v237 = vld [vmem:[#allocation5 + $0x200] sm:$0xf]
    %v238 = vld [vmem:[#allocation5 + $0x204] sm:$0xff]
    %v239 = vld [vmem:[#allocation5 + $0x20c] sm:$0xf]
    %v240 = vld [vmem:[#allocation5 + $0x210] sm:$0xff]
    %v241 = vld [vmem:[#allocation5 + $0x218] sm:$0xf]
    %v242 = vld [vmem:[#allocation5 + $0x21c] sm:$0xff]
    %v243 = vld [vmem:[#allocation5 + $0x224] sm:$0xf]
    %v244 = vld [vmem:[#allocation5 + $0x228] sm:$0xff]
    %v245 = vld [vmem:[#allocation5 + $0x230] sm:$0xf]
    %v246 = vld [vmem:[#allocation5 + $0x234] sm:$0xff]
    %v247 = vld [vmem:[#allocation5 + $0x23c] sm:$0xf]
    %v248 = vld [vmem:[#allocation5 + $0x240] sm:$0xff]
    %v249 = vld [vmem:[#allocation5 + $0x248] sm:$0xf]
    %v250 = vld [vmem:[#allocation5 + $0x24c] sm:$0xff]
    %v251 = vld [vmem:[#allocation5 + $0x254] sm:$0xf]
    %v252 = vld [vmem:[#allocation5 + $0x258] sm:$0xff]
    %v253 = vld [vmem:[#allocation5 + $0x260] sm:$0xf]
    %v254 = vld [vmem:[#allocation5 + $0x264] sm:$0xff]
    %v255 = vld [vmem:[#allocation5 + $0x26c] sm:$0xf]
    %v256 = vld [vmem:[#allocation5 + $0x270] sm:$0xff]
    %v257 = vld [vmem:[#allocation5 + $0x278] sm:$0xf]
    %v258 = vld [vmem:[#allocation5 + $0x27c] sm:$0xff]
    %v259 = vld [vmem:[#allocation5 + $0x284] sm:$0xf]
    %v260 = vld [vmem:[#allocation5 + $0x288] sm:$0xff]
    %v261 = vld [vmem:[#allocation5 + $0x290] sm:$0xf]
    %v262 = vld [vmem:[#allocation5 + $0x294] sm:$0xff]
    %v263 = vld [vmem:[#allocation5 + $0x29c] sm:$0xf]
    %v264 = vld [vmem:[#allocation5 + $0x2a0] sm:$0xff]
    %v265 = vld [vmem:[#allocation5 + $0x2a8] sm:$0xf]
    %v266 = vld [vmem:[#allocation5 + $0x2ac] sm:$0xff]
    %v267 = vld [vmem:[#allocation5 + $0x2b4] sm:$0xf]
    %v268 = vld [vmem:[#allocation5 + $0x2b8] sm:$0xff]
    %v269 = vld [vmem:[#allocation5 + $0x2c0] sm:$0xf]
    %v270 = vld [vmem:[#allocation5 + $0x2c4] sm:$0xff]
    %v271 = vld [vmem:[#allocation5 + $0x2cc] sm:$0xf]
    %v272 = vld [vmem:[#allocation5 + $0x2d0] sm:$0xff]
    %v273 = vld [vmem:[#allocation5 + $0x2d8] sm:$0xf]
    %v274 = vld [vmem:[#allocation5 + $0x2dc] sm:$0xff]
    %v275 = vld [vmem:[#allocation5 + $0x2e4] sm:$0xf]
    %v276 = vld [vmem:[#allocation5 + $0x2e8] sm:$0xff]
    %v277 = vld [vmem:[#allocation5 + $0x2f0] sm:$0xf]
    %v278 = vld [vmem:[#allocation5 + $0x2f4] sm:$0xff]
    %v279 = vld [vmem:[#allocation5 + $0x2fc] sm:$0xf]
    %v280 = vld [vmem:[#allocation5 + $0x300] sm:$0xff]
    %v281 = vld [vmem:[#allocation5 + $0x308] sm:$0xf]
    %v282 = vld [vmem:[#allocation5 + $0x30c] sm:$0xff]
    %v283 = vld [vmem:[#allocation5 + $0x314] sm:$0xf]
    %v284 = vld [vmem:[#allocation5 + $0x318] sm:$0xff]
    %v285 = vld [vmem:[#allocation5 + $0x320] sm:$0xf]
    %v286 = vld [vmem:[#allocation5 + $0x324] sm:$0xff]
    %v287 = vld [vmem:[#allocation5 + $0x32c] sm:$0xf]
    %v288 = vld [vmem:[#allocation5 + $0x330] sm:$0xff]
    %v289 = vld [vmem:[#allocation5 + $0x338] sm:$0xf]
    %v290 = vld [vmem:[#allocation5 + $0x33c] sm:$0xff]
    %v291 = vld [vmem:[#allocation5 + $0x344] sm:$0xf]
    %v292 = vld [vmem:[#allocation5 + $0x348] sm:$0xff]
    %v293 = vld [vmem:[#allocation5 + $0x350] sm:$0xf]
    %v294 = vld [vmem:[#allocation5 + $0x354] sm:$0xff]
    %v295 = vld [vmem:[#allocation5 + $0x35c] sm:$0xf]
    %v296 = vld [vmem:[#allocation5 + $0x360] sm:$0xff]
    %v297 = vld [vmem:[#allocation5 + $0x368] sm:$0xf]
    %v298 = vld [vmem:[#allocation5 + $0x36c] sm:$0xff]
    %v299 = vld [vmem:[#allocation5 + $0x374] sm:$0xf]
    %v300 = vld [vmem:[#allocation5 + $0x378] sm:$0xff]
    %v301 = vld [vmem:[#allocation5 + $0x380] sm:$0xf]
    %v302 = vld [vmem:[#allocation5 + $0x384] sm:$0xff]
    %v303 = vld [vmem:[#allocation5 + $0x38c] sm:$0xf]
    %v304 = vld [vmem:[#allocation5 + $0x390] sm:$0xff]
    %v305 = vld [vmem:[#allocation5 + $0x398] sm:$0xf]
    %v306 = vld [vmem:[#allocation5 + $0x39c] sm:$0xff]
    %v307 = vld [vmem:[#allocation5 + $0x3a4] sm:$0xf]
    %v308 = vld [vmem:[#allocation5 + $0x3a8] sm:$0xff]
    %v309 = vld [vmem:[#allocation5 + $0x3b0] sm:$0xf]
    %v310 = vld [vmem:[#allocation5 + $0x3b4] sm:$0xff]
    %v311 = vld [vmem:[#allocation5 + $0x3bc] sm:$0xf]
    %v312 = vld [vmem:[#allocation5 + $0x3c0] sm:$0xff]
    %v313 = vld [vmem:[#allocation5 + $0x3c8] sm:$0xf]
    %v314 = vld [vmem:[#allocation5 + $0x3cc] sm:$0xff]
    %v315 = vld [vmem:[#allocation5 + $0x3d4] sm:$0xf]
    %v316 = vld [vmem:[#allocation5 + $0x3d8] sm:$0xff]
    %v317 = vld [vmem:[#allocation5 + $0x3e0] sm:$0xf]
    %v318 = vld [vmem:[#allocation5 + $0x3e4] sm:$0xff]
    %v319 = vld [vmem:[#allocation5 + $0x3ec] sm:$0xf]
    %v320 = vld [vmem:[#allocation5 + $0x3f0] sm:$0xff]
    %v321 = vld [vmem:[#allocation5 + $0x3f8] sm:$0xf]
    %v322 = vld [vmem:[#allocation5 + $0x3fc] sm:$0xff]
    %v323 = vld [vmem:[#allocation5 + $0x404] sm:$0xf]
    %v324 = vld [vmem:[#allocation5 + $0x408] sm:$0xff]
    %v325 = vld [vmem:[#allocation5 + $0x410] sm:$0xf]
    %v326 = vld [vmem:[#allocation5 + $0x414] sm:$0xff]
    %v327 = vld [vmem:[#allocation5 + $0x41c] sm:$0xf]
    %v328 = vld [vmem:[#allocation5 + $0x420] sm:$0xff]
    %v329 = vld [vmem:[#allocation5 + $0x428] sm:$0xf]
    %v330 = vld [vmem:[#allocation5 + $0x42c] sm:$0xff]
    %v331 = vld [vmem:[#allocation5 + $0x434] sm:$0xf]
    %v332 = vld [vmem:[#allocation5 + $0x438] sm:$0xff]
    %v333 = vld [vmem:[#allocation5 + $0x440] sm:$0xf]
    %v334 = vld [vmem:[#allocation5 + $0x444] sm:$0xff]
    %v335 = vld [vmem:[#allocation5 + $0x44c] sm:$0xf]
    %v336 = vld [vmem:[#allocation5 + $0x450] sm:$0xff]
    %v337 = vld [vmem:[#allocation5 + $0x458] sm:$0xf]
    %v338 = vld [vmem:[#allocation5 + $0x45c] sm:$0xff]
    %v339 = vld [vmem:[#allocation5 + $0x464] sm:$0xf]
    %v340 = vld [vmem:[#allocation5 + $0x468] sm:$0xff]
    %v341 = vld [vmem:[#allocation5 + $0x470] sm:$0xf]
    %v342 = vld [vmem:[#allocation5 + $0x474] sm:$0xff]
    %v343 = vld [vmem:[#allocation5 + $0x47c] sm:$0xf]
    %v344 = vld [vmem:[#allocation5 + $0x480] sm:$0xff]
    %v345 = vld [vmem:[#allocation5 + $0x488] sm:$0xf]
    %v346 = vld [vmem:[#allocation5 + $0x48c] sm:$0xff]
    %v347 = vld [vmem:[#allocation5 + $0x494] sm:$0xf]
    %v348 = vld [vmem:[#allocation5 + $0x498] sm:$0xff]
    %v349 = vld [vmem:[#allocation5 + $0x4a0] sm:$0xf]
    %v350 = vld [vmem:[#allocation5 + $0x4a4] sm:$0xff]
    %v351 = vld [vmem:[#allocation5 + $0x4ac] sm:$0xf]
    %v352 = vld [vmem:[#allocation5 + $0x4b0] sm:$0xff]
    %v353 = vld [vmem:[#allocation5 + $0x4b8] sm:$0xf]
    %v354 = vld [vmem:[#allocation5 + $0x4bc] sm:$0xff]
    %v355 = vld [vmem:[#allocation5 + $0x4c4] sm:$0xf]
    %v356 = vld [vmem:[#allocation5 + $0x4c8] sm:$0xff]
    %v357 = vld [vmem:[#allocation5 + $0x4d0] sm:$0xf]
    %v358 = vld [vmem:[#allocation5 + $0x4d4] sm:$0xff]
    %v359 = vld [vmem:[#allocation5 + $0x4dc] sm:$0xf]
    %v360 = vld [vmem:[#allocation5 + $0x4e0] sm:$0xff]
    %v361 = vld [vmem:[#allocation5 + $0x4e8] sm:$0xf]
    %v362 = vld [vmem:[#allocation5 + $0x4ec] sm:$0xff]
    %v363 = vld [vmem:[#allocation5 + $0x4f4] sm:$0xf]
    %v364 = vld [vmem:[#allocation5 + $0x4f8] sm:$0xff]
    %v365 = vld [vmem:[#allocation5 + $0x500] sm:$0xf]
    %v366 = vld [vmem:[#allocation5 + $0x504] sm:$0xff]
    %v367 = vld [vmem:[#allocation5 + $0x50c] sm:$0xf]
    %v368 = vld [vmem:[#allocation7] ss:$4 sm:$0x7]
    %s369 = scalar_lea.vmem [#allocation7], 1
    %v370 = vld [vmem:[%s369] ss:$4 sm:$0x7]
    %s371 = scalar_lea.vmem [#allocation7], 2
    %v372 = vld [vmem:[%s371] ss:$4 sm:$0x7]
    %v374 = vlaneseq
    %v375 = vshrl.u32 %v374, 7
    %v376 = vsub.s32 0, %v375
    %v377 = vrot.slane %v368, %v376
    %v378 = vlaneseq
    %v379 = vshrl.u32 %v378, 7
    %v380 = vsub.s32 1, %v379
    %v381 = vrot.slane %v368, %v380
    %v382 = vlaneseq
    %v383 = vshrl.u32 %v382, 7
    %v384 = vsub.s32 2, %v383
    %v385 = vrot.slane %v368, %v384
    %v605 = vunpack.c.l.b16 %v152
    %v606 = vunpack.c.h.b16 %v152
    %v607 = vunpack.c.l.b16 %v153
    %v608 = vunpack.c.l.b16 %v154
    %v609 = vunpack.c.h.b16 %v154
    %v610 = vunpack.c.l.b16 %v155
    %v611 = vunpack.c.l.b16 %v156
    %v612 = vunpack.c.h.b16 %v156
    %v613 = vunpack.c.l.b16 %v157
    %v614 = vunpack.c.l.b16 %v158
    %v615 = vunpack.c.h.b16 %v158
    %v616 = vunpack.c.l.b16 %v159
    %v617 = vunpack.c.l.b16 %v160
    %v618 = vunpack.c.h.b16 %v160
    %v619 = vunpack.c.l.b16 %v161
    %v620 = vunpack.c.l.b16 %v162
    %v621 = vunpack.c.h.b16 %v162
    %v622 = vunpack.c.l.b16 %v163
    %v623 = vunpack.c.l.b16 %v164
    %v624 = vunpack.c.h.b16 %v164
    %v625 = vunpack.c.l.b16 %v165
    %v626 = vunpack.c.l.b16 %v166
    %v627 = vunpack.c.h.b16 %v166
    %v628 = vunpack.c.l.b16 %v167
    %v629 = vunpack.c.l.b16 %v168
    %v630 = vunpack.c.h.b16 %v168
    %v631 = vunpack.c.l.b16 %v169
    %v632 = vunpack.c.l.b16 %v170
    %v633 = vunpack.c.h.b16 %v170
    %v634 = vunpack.c.l.b16 %v171
    %v635 = vunpack.c.l.b16 %v172
    %v636 = vunpack.c.h.b16 %v172
    %v637 = vunpack.c.l.b16 %v173
    %v638 = vunpack.c.l.b16 %v174
    %v639 = vunpack.c.h.b16 %v174
    %v640 = vunpack.c.l.b16 %v175
    %v641 = vunpack.c.l.b16 %v176
    %v642 = vunpack.c.h.b16 %v176
    %v643 = vunpack.c.l.b16 %v177
    %v644 = vunpack.c.l.b16 %v178
    %v645 = vunpack.c.h.b16 %v178
    %v646 = vunpack.c.l.b16 %v179
    %v647 = vunpack.c.l.b16 %v180
    %v648 = vunpack.c.h.b16 %v180
    %v649 = vunpack.c.l.b16 %v181
    %v650 = vunpack.c.l.b16 %v182
    %v651 = vunpack.c.h.b16 %v182
    %v652 = vunpack.c.l.b16 %v183
    %v653 = vunpack.c.l.b16 %v184
    %v654 = vunpack.c.h.b16 %v184
    %v655 = vunpack.c.l.b16 %v185
    %v656 = vunpack.c.l.b16 %v186
    %v657 = vunpack.c.h.b16 %v186
    %v658 = vunpack.c.l.b16 %v187
    %v659 = vunpack.c.l.b16 %v188
    %v660 = vunpack.c.h.b16 %v188
    %v661 = vunpack.c.l.b16 %v189
    %v662 = vunpack.c.l.b16 %v190
    %v663 = vunpack.c.h.b16 %v190
    %v664 = vunpack.c.l.b16 %v191
    %v665 = vunpack.c.l.b16 %v192
    %v666 = vunpack.c.h.b16 %v192
    %v667 = vunpack.c.l.b16 %v193
    %v668 = vunpack.c.l.b16 %v194
    %v669 = vunpack.c.h.b16 %v194
    %v670 = vunpack.c.l.b16 %v195
    %v671 = vunpack.c.l.b16 %v196
    %v672 = vunpack.c.h.b16 %v196
    %v673 = vunpack.c.l.b16 %v197
    %v674 = vunpack.c.l.b16 %v198
    %v675 = vunpack.c.h.b16 %v198
    %v676 = vunpack.c.l.b16 %v199
    %v677 = vunpack.c.l.b16 %v200
    %v678 = vunpack.c.h.b16 %v200
    %v679 = vunpack.c.l.b16 %v201
    %v680 = vunpack.c.l.b16 %v202
    %v681 = vunpack.c.h.b16 %v202
    %v682 = vunpack.c.l.b16 %v203
    %v683 = vunpack.c.l.b16 %v204
    %v684 = vunpack.c.h.b16 %v204
    %v685 = vunpack.c.l.b16 %v205
    %v686 = vunpack.c.l.b16 %v206
    %v687 = vunpack.c.h.b16 %v206
    %v688 = vunpack.c.l.b16 %v207
    %v689 = vunpack.c.l.b16 %v208
    %v690 = vunpack.c.h.b16 %v208
    %v691 = vunpack.c.l.b16 %v209
    %v692 = vunpack.c.l.b16 %v210
    %v693 = vunpack.c.h.b16 %v210
    %v694 = vunpack.c.l.b16 %v211
    %v695 = vunpack.c.l.b16 %v212
    %v696 = vunpack.c.h.b16 %v212
    %v697 = vunpack.c.l.b16 %v213
    %v698 = vunpack.c.l.b16 %v214
    %v699 = vunpack.c.h.b16 %v214
    %v700 = vunpack.c.l.b16 %v215
    %v701 = vunpack.c.l.b16 %v216
    %v702 = vunpack.c.h.b16 %v216
    %v703 = vunpack.c.l.b16 %v217
    %v704 = vunpack.c.l.b16 %v218
    %v705 = vunpack.c.h.b16 %v218
    %v706 = vunpack.c.l.b16 %v219
    %v707 = vunpack.c.l.b16 %v220
    %v708 = vunpack.c.h.b16 %v220
    %v709 = vunpack.c.l.b16 %v221
    %v710 = vunpack.c.l.b16 %v222
    %v711 = vunpack.c.h.b16 %v222
    %v712 = vunpack.c.l.b16 %v223
    %v713 = vunpack.c.l.b16 %v224
    %v714 = vunpack.c.h.b16 %v224
    %v715 = vunpack.c.l.b16 %v225
    %v716 = vunpack.c.l.b16 %v226
    %v717 = vunpack.c.h.b16 %v226
    %v718 = vunpack.c.l.b16 %v227
    %v719 = vunpack.c.l.b16 %v228
    %v720 = vunpack.c.h.b16 %v228
    %v721 = vunpack.c.l.b16 %v229
    %v722 = vunpack.c.l.b16 %v230
    %v723 = vunpack.c.h.b16 %v230
    %v724 = vunpack.c.l.b16 %v231
    %v725 = vunpack.c.l.b16 %v232
    %v726 = vunpack.c.h.b16 %v232
    %v727 = vunpack.c.l.b16 %v233
    %v728 = vunpack.c.l.b16 %v234
    %v729 = vunpack.c.h.b16 %v234
    %v730 = vunpack.c.l.b16 %v235
    %v731 = vunpack.c.l.b16 %v236
    %v732 = vunpack.c.h.b16 %v236
    %v733 = vunpack.c.l.b16 %v237
    %v734 = vunpack.c.l.b16 %v238
    %v735 = vunpack.c.h.b16 %v238
    %v736 = vunpack.c.l.b16 %v239
    %v737 = vunpack.c.l.b16 %v240
    %v738 = vunpack.c.h.b16 %v240
    %v739 = vunpack.c.l.b16 %v241
    %v740 = vunpack.c.l.b16 %v242
    %v741 = vunpack.c.h.b16 %v242
    %v742 = vunpack.c.l.b16 %v243
    %v743 = vunpack.c.l.b16 %v244
    %v744 = vunpack.c.h.b16 %v244
    %v745 = vunpack.c.l.b16 %v245
    %v746 = vunpack.c.l.b16 %v246
    %v747 = vunpack.c.h.b16 %v246
    %v748 = vunpack.c.l.b16 %v247
    %v749 = vunpack.c.l.b16 %v248
    %v750 = vunpack.c.h.b16 %v248
    %v751 = vunpack.c.l.b16 %v249
    %v752 = vunpack.c.l.b16 %v250
    %v753 = vunpack.c.h.b16 %v250
    %v754 = vunpack.c.l.b16 %v251
    %v755 = vunpack.c.l.b16 %v252
    %v756 = vunpack.c.h.b16 %v252
    %v757 = vunpack.c.l.b16 %v253
    %v758 = vunpack.c.l.b16 %v254
    %v759 = vunpack.c.h.b16 %v254
    %v760 = vunpack.c.l.b16 %v255
    %v761 = vunpack.c.l.b16 %v256
    %v762 = vunpack.c.h.b16 %v256
    %v763 = vunpack.c.l.b16 %v257
    %v764 = vunpack.c.l.b16 %v258
    %v765 = vunpack.c.h.b16 %v258
    %v766 = vunpack.c.l.b16 %v259
    %v767 = vunpack.c.l.b16 %v260
    %v768 = vunpack.c.h.b16 %v260
    %v769 = vunpack.c.l.b16 %v261
    %v770 = vunpack.c.l.b16 %v262
    %v771 = vunpack.c.h.b16 %v262
    %v772 = vunpack.c.l.b16 %v263
    %v773 = vunpack.c.l.b16 %v264
    %v774 = vunpack.c.h.b16 %v264
    %v775 = vunpack.c.l.b16 %v265
    %v776 = vunpack.c.l.b16 %v266
    %v777 = vunpack.c.h.b16 %v266
    %v778 = vunpack.c.l.b16 %v267
    %v779 = vunpack.c.l.b16 %v268
    %v780 = vunpack.c.h.b16 %v268
    %v781 = vunpack.c.l.b16 %v269
    %v782 = vunpack.c.l.b16 %v270
    %v783 = vunpack.c.h.b16 %v270
    %v784 = vunpack.c.l.b16 %v271
    %v785 = vunpack.c.l.b16 %v272
    %v786 = vunpack.c.h.b16 %v272
    %v787 = vunpack.c.l.b16 %v273
    %v788 = vunpack.c.l.b16 %v274
    %v789 = vunpack.c.h.b16 %v274
    %v790 = vunpack.c.l.b16 %v275
    %v791 = vunpack.c.l.b16 %v276
    %v792 = vunpack.c.h.b16 %v276
    %v793 = vunpack.c.l.b16 %v277
    %v794 = vunpack.c.l.b16 %v278
    %v795 = vunpack.c.h.b16 %v278
    %v796 = vunpack.c.l.b16 %v279
    %v797 = vunpack.c.l.b16 %v280
    %v798 = vunpack.c.h.b16 %v280
    %v799 = vunpack.c.l.b16 %v281
    %v800 = vunpack.c.l.b16 %v282
    %v801 = vunpack.c.h.b16 %v282
    %v802 = vunpack.c.l.b16 %v283
    %v803 = vunpack.c.l.b16 %v284
    %v804 = vunpack.c.h.b16 %v284
    %v805 = vunpack.c.l.b16 %v285
    %v806 = vunpack.c.l.b16 %v286
    %v807 = vunpack.c.h.b16 %v286
    %v808 = vunpack.c.l.b16 %v287
    %v809 = vunpack.c.l.b16 %v288
    %v810 = vunpack.c.h.b16 %v288
    %v811 = vunpack.c.l.b16 %v289
    %v812 = vunpack.c.l.b16 %v290
    %v813 = vunpack.c.h.b16 %v290
    %v814 = vunpack.c.l.b16 %v291
    %v815 = vunpack.c.l.b16 %v292
    %v816 = vunpack.c.h.b16 %v292
    %v817 = vunpack.c.l.b16 %v293
    %v818 = vunpack.c.l.b16 %v294
    %v819 = vunpack.c.h.b16 %v294
    %v820 = vunpack.c.l.b16 %v295
    %v821 = vunpack.c.l.b16 %v296
    %v822 = vunpack.c.h.b16 %v296
    %v823 = vunpack.c.l.b16 %v297
    %v824 = vunpack.c.l.b16 %v298
    %v825 = vunpack.c.h.b16 %v298
    %v826 = vunpack.c.l.b16 %v299
    %v827 = vunpack.c.l.b16 %v300
    %v828 = vunpack.c.h.b16 %v300
    %v829 = vunpack.c.l.b16 %v301
    %v830 = vunpack.c.l.b16 %v302
    %v831 = vunpack.c.h.b16 %v302
    %v832 = vunpack.c.l.b16 %v303
    %v833 = vunpack.c.l.b16 %v304
    %v834 = vunpack.c.h.b16 %v304
    %v835 = vunpack.c.l.b16 %v305
    %v836 = vunpack.c.l.b16 %v306
    %v837 = vunpack.c.h.b16 %v306
    %v838 = vunpack.c.l.b16 %v307
    %v839 = vunpack.c.l.b16 %v308
    %v840 = vunpack.c.h.b16 %v308
    %v841 = vunpack.c.l.b16 %v309
    %v842 = vunpack.c.l.b16 %v310
    %v843 = vunpack.c.h.b16 %v310
    %v844 = vunpack.c.l.b16 %v311
    %v845 = vunpack.c.l.b16 %v312
    %v846 = vunpack.c.h.b16 %v312
    %v847 = vunpack.c.l.b16 %v313
    %v848 = vunpack.c.l.b16 %v314
    %v849 = vunpack.c.h.b16 %v314
    %v850 = vunpack.c.l.b16 %v315
    %v851 = vunpack.c.l.b16 %v316
    %v852 = vunpack.c.h.b16 %v316
    %v853 = vunpack.c.l.b16 %v317
    %v854 = vunpack.c.l.b16 %v318
    %v855 = vunpack.c.h.b16 %v318
    %v856 = vunpack.c.l.b16 %v319
    %v857 = vunpack.c.l.b16 %v320
    %v858 = vunpack.c.h.b16 %v320
    %v859 = vunpack.c.l.b16 %v321
    %v860 = vunpack.c.l.b16 %v322
    %v861 = vunpack.c.h.b16 %v322
    %v862 = vunpack.c.l.b16 %v323
    %v863 = vunpack.c.l.b16 %v324
    %v864 = vunpack.c.h.b16 %v324
    %v865 = vunpack.c.l.b16 %v325
    %v866 = vunpack.c.l.b16 %v326
    %v867 = vunpack.c.h.b16 %v326
    %v868 = vunpack.c.l.b16 %v327
    %v869 = vunpack.c.l.b16 %v328
    %v870 = vunpack.c.h.b16 %v328
    %v871 = vunpack.c.l.b16 %v329
    %v872 = vunpack.c.l.b16 %v330
    %v873 = vunpack.c.h.b16 %v330
    %v874 = vunpack.c.l.b16 %v331
    %v875 = vunpack.c.l.b16 %v332
    %v876 = vunpack.c.h.b16 %v332
    %v877 = vunpack.c.l.b16 %v333
    %v878 = vunpack.c.l.b16 %v334
    %v879 = vunpack.c.h.b16 %v334
    %v880 = vunpack.c.l.b16 %v335
    %v881 = vunpack.c.l.b16 %v336
    %v882 = vunpack.c.h.b16 %v336
    %v883 = vunpack.c.l.b16 %v337
    %v884 = vunpack.c.l.b16 %v338
    %v885 = vunpack.c.h.b16 %v338
    %v886 = vunpack.c.l.b16 %v339
    %v887 = vunpack.c.l.b16 %v340
    %v888 = vunpack.c.h.b16 %v340
    %v889 = vunpack.c.l.b16 %v341
    %v890 = vunpack.c.l.b16 %v342
    %v891 = vunpack.c.h.b16 %v342
    %v892 = vunpack.c.l.b16 %v343
    %v893 = vunpack.c.l.b16 %v344
    %v894 = vunpack.c.h.b16 %v344
    %v895 = vunpack.c.l.b16 %v345
    %v896 = vunpack.c.l.b16 %v346
    %v897 = vunpack.c.h.b16 %v346
    %v898 = vunpack.c.l.b16 %v347
    %v899 = vunpack.c.l.b16 %v348
    %v900 = vunpack.c.h.b16 %v348
    %v901 = vunpack.c.l.b16 %v349
    %v902 = vunpack.c.l.b16 %v350
    %v903 = vunpack.c.h.b16 %v350
    %v904 = vunpack.c.l.b16 %v351
    %v905 = vunpack.c.l.b16 %v352
    %v906 = vunpack.c.h.b16 %v352
    %v907 = vunpack.c.l.b16 %v353
    %v908 = vunpack.c.l.b16 %v354
    %v909 = vunpack.c.h.b16 %v354
    %v910 = vunpack.c.l.b16 %v355
    %v911 = vunpack.c.l.b16 %v356
    %v912 = vunpack.c.h.b16 %v356
    %v913 = vunpack.c.l.b16 %v357
    %v914 = vunpack.c.l.b16 %v358
    %v915 = vunpack.c.h.b16 %v358
    %v916 = vunpack.c.l.b16 %v359
    %v917 = vunpack.c.l.b16 %v360
    %v918 = vunpack.c.h.b16 %v360
    %v919 = vunpack.c.l.b16 %v361
    %v920 = vunpack.c.l.b16 %v362
    %v921 = vunpack.c.h.b16 %v362
    %v922 = vunpack.c.l.b16 %v363
    %v923 = vunpack.c.l.b16 %v364
    %v924 = vunpack.c.h.b16 %v364
    %v925 = vunpack.c.l.b16 %v365
    %v926 = vunpack.c.l.b16 %v366
    %v927 = vunpack.c.h.b16 %v366
    %v928 = vunpack.c.l.b16 %v367
    %v929 = vpack.c.b16 %v608, %v605
    %v930 = vpack.c.b16 %v609, %v606
    %v931 = vpack.c.b16 %v610, %v607
    %v932 = vpack.c.b16 %v614, %v611
    %v933 = vpack.c.b16 %v615, %v612
    %v934 = vpack.c.b16 %v616, %v613
    %v935 = vpack.c.b16 %v620, %v617
    %v936 = vpack.c.b16 %v621, %v618
    %v937 = vpack.c.b16 %v622, %v619
    %v938 = vpack.c.b16 %v626, %v623
    %v939 = vpack.c.b16 %v627, %v624
    %v940 = vpack.c.b16 %v628, %v625
    %v941 = vpack.c.b16 %v632, %v629
    %v942 = vpack.c.b16 %v633, %v630
    %v943 = vpack.c.b16 %v634, %v631
    %v944 = vpack.c.b16 %v638, %v635
    %v945 = vpack.c.b16 %v639, %v636
    %v946 = vpack.c.b16 %v640, %v637
    %v947 = vpack.c.b16 %v644, %v641
    %v948 = vpack.c.b16 %v645, %v642
    %v949 = vpack.c.b16 %v646, %v643
    %v950 = vpack.c.b16 %v650, %v647
    %v951 = vpack.c.b16 %v651, %v648
    %v952 = vpack.c.b16 %v652, %v649
    %v953 = vpack.c.b16 %v656, %v653
    %v954 = vpack.c.b16 %v657, %v654
    %v955 = vpack.c.b16 %v658, %v655
    %v956 = vpack.c.b16 %v662, %v659
    %v957 = vpack.c.b16 %v663, %v660
    %v958 = vpack.c.b16 %v664, %v661
    %v959 = vpack.c.b16 %v668, %v665
    %v960 = vpack.c.b16 %v669, %v666
    %v961 = vpack.c.b16 %v670, %v667
    %v962 = vpack.c.b16 %v674, %v671
    %v963 = vpack.c.b16 %v675, %v672
    %v964 = vpack.c.b16 %v676, %v673
    %v965 = vpack.c.b16 %v680, %v677
    %v966 = vpack.c.b16 %v681, %v678
    %v967 = vpack.c.b16 %v682, %v679
    %v968 = vpack.c.b16 %v686, %v683
    %v969 = vpack.c.b16 %v687, %v684
    %v970 = vpack.c.b16 %v688, %v685
    %v971 = vpack.c.b16 %v692, %v689
    %v972 = vpack.c.b16 %v693, %v690
    %v973 = vpack.c.b16 %v694, %v691
    %v974 = vpack.c.b16 %v698, %v695
    %v975 = vpack.c.b16 %v699, %v696
    %v976 = vpack.c.b16 %v700, %v697
    %v977 = vpack.c.b16 %v704, %v701
    %v978 = vpack.c.b16 %v705, %v702
    %v979 = vpack.c.b16 %v706, %v703
    %v980 = vpack.c.b16 %v710, %v707
    %v981 = vpack.c.b16 %v711, %v708
    %v982 = vpack.c.b16 %v712, %v709
    %v983 = vpack.c.b16 %v716, %v713
    %v984 = vpack.c.b16 %v717, %v714
    %v985 = vpack.c.b16 %v718, %v715
    %v986 = vpack.c.b16 %v722, %v719
    %v987 = vpack.c.b16 %v723, %v720
    %v988 = vpack.c.b16 %v724, %v721
    %v989 = vpack.c.b16 %v728, %v725
    %v990 = vpack.c.b16 %v729, %v726
    %v991 = vpack.c.b16 %v730, %v727
    %v992 = vpack.c.b16 %v734, %v731
    %v993 = vpack.c.b16 %v735, %v732
    %v994 = vpack.c.b16 %v736, %v733
    %v995 = vpack.c.b16 %v740, %v737
    %v996 = vpack.c.b16 %v741, %v738
    %v997 = vpack.c.b16 %v742, %v739
    %v998 = vpack.c.b16 %v746, %v743
    %v999 = vpack.c.b16 %v747, %v744
    %v1000 = vpack.c.b16 %v748, %v745
    %v1001 = vpack.c.b16 %v752, %v749
    %v1002 = vpack.c.b16 %v753, %v750
    %v1003 = vpack.c.b16 %v754, %v751
    %v1004 = vpack.c.b16 %v758, %v755
    %v1005 = vpack.c.b16 %v759, %v756
    %v1006 = vpack.c.b16 %v760, %v757
    %v1007 = vpack.c.b16 %v764, %v761
    %v1008 = vpack.c.b16 %v765, %v762
    %v1009 = vpack.c.b16 %v766, %v763
    %v1010 = vpack.c.b16 %v770, %v767
    %v1011 = vpack.c.b16 %v771, %v768
    %v1012 = vpack.c.b16 %v772, %v769
    %v1013 = vpack.c.b16 %v776, %v773
    %v1014 = vpack.c.b16 %v777, %v774
    %v1015 = vpack.c.b16 %v778, %v775
    %v1016 = vpack.c.b16 %v782, %v779
    %v1017 = vpack.c.b16 %v783, %v780
    %v1018 = vpack.c.b16 %v784, %v781
    %v1019 = vpack.c.b16 %v788, %v785
    %v1020 = vpack.c.b16 %v789, %v786
    %v1021 = vpack.c.b16 %v790, %v787
    %v1022 = vpack.c.b16 %v794, %v791
    %v1023 = vpack.c.b16 %v795, %v792
    %v1024 = vpack.c.b16 %v796, %v793
    %v1025 = vpack.c.b16 %v800, %v797
    %v1026 = vpack.c.b16 %v801, %v798
    %v1027 = vpack.c.b16 %v802, %v799
    %v1028 = vpack.c.b16 %v806, %v803
    %v1029 = vpack.c.b16 %v807, %v804
    %v1030 = vpack.c.b16 %v808, %v805
    %v1031 = vpack.c.b16 %v812, %v809
    %v1032 = vpack.c.b16 %v813, %v810
    %v1033 = vpack.c.b16 %v814, %v811
    %v1034 = vpack.c.b16 %v818, %v815
    %v1035 = vpack.c.b16 %v819, %v816
    %v1036 = vpack.c.b16 %v820, %v817
    %v1037 = vpack.c.b16 %v824, %v821
    %v1038 = vpack.c.b16 %v825, %v822
    %v1039 = vpack.c.b16 %v826, %v823
    %v1040 = vpack.c.b16 %v830, %v827
    %v1041 = vpack.c.b16 %v831, %v828
    %v1042 = vpack.c.b16 %v832, %v829
    %v1043 = vpack.c.b16 %v836, %v833
    %v1044 = vpack.c.b16 %v837, %v834
    %v1045 = vpack.c.b16 %v838, %v835
    %v1046 = vpack.c.b16 %v842, %v839
    %v1047 = vpack.c.b16 %v843, %v840
    %v1048 = vpack.c.b16 %v844, %v841
    %v1049 = vpack.c.b16 %v848, %v845
    %v1050 = vpack.c.b16 %v849, %v846
    %v1051 = vpack.c.b16 %v850, %v847
    %v1052 = vpack.c.b16 %v854, %v851
    %v1053 = vpack.c.b16 %v855, %v852
    %v1054 = vpack.c.b16 %v856, %v853
    %v1055 = vpack.c.b16 %v860, %v857
    %v1056 = vpack.c.b16 %v861, %v858
    %v1057 = vpack.c.b16 %v862, %v859
    %v1058 = vpack.c.b16 %v866, %v863
    %v1059 = vpack.c.b16 %v867, %v864
    %v1060 = vpack.c.b16 %v868, %v865
    %v1061 = vpack.c.b16 %v872, %v869
    %v1062 = vpack.c.b16 %v873, %v870
    %v1063 = vpack.c.b16 %v874, %v871
    %v1064 = vpack.c.b16 %v878, %v875
    %v1065 = vpack.c.b16 %v879, %v876
    %v1066 = vpack.c.b16 %v880, %v877
    %v1067 = vpack.c.b16 %v884, %v881
    %v1068 = vpack.c.b16 %v885, %v882
    %v1069 = vpack.c.b16 %v886, %v883
    %v1070 = vpack.c.b16 %v890, %v887
    %v1071 = vpack.c.b16 %v891, %v888
    %v1072 = vpack.c.b16 %v892, %v889
    %v1073 = vpack.c.b16 %v896, %v893
    %v1074 = vpack.c.b16 %v897, %v894
    %v1075 = vpack.c.b16 %v898, %v895
    %v1076 = vpack.c.b16 %v902, %v899
    %v1077 = vpack.c.b16 %v903, %v900
    %v1078 = vpack.c.b16 %v904, %v901
    %v1079 = vpack.c.b16 %v908, %v905
    %v1080 = vpack.c.b16 %v909, %v906
    %v1081 = vpack.c.b16 %v910, %v907
    %v1082 = vpack.c.b16 %v914, %v911
    %v1083 = vpack.c.b16 %v915, %v912
    %v1084 = vpack.c.b16 %v916, %v913
    %v1085 = vpack.c.b16 %v920, %v917
    %v1086 = vpack.c.b16 %v921, %v918
    %v1087 = vpack.c.b16 %v922, %v919
    %v1088 = vpack.c.b16 %v926, %v923
    %v1089 = vpack.c.b16 %v927, %v924
    %v1090 = vpack.c.b16 %v928, %v925
    %vm1253 = vcmask 785408
    %v1255 = vsel %vm1253, %v151, 0
    %1257 = vmatprep.subr.bf16.mxu0 %v930
    %1258 = vmatpush1.bf16.msra.mxu0 %v929
    %1259 = vmatprep.subr.bf16.mxu0 %v933
    %1260 = vmatpush1.bf16.msra.mxu0 %v932
    %1261 = vmatprep.subr.bf16.mxu0 %v936
    %1262 = vmatpush1.bf16.msra.mxu0 %v935
    %1263 = vmatprep.subr.bf16.mxu0 %v939
    %1264 = vmatpush1.bf16.msra.mxu0 %v938
    %1265 = vmatprep.subr.bf16.mxu0 %v942
    %1266 = vmatpush1.bf16.msra.mxu0 %v941
    %1267 = vmatprep.subr.bf16.mxu0 %v945
    %1268 = vmatpush1.bf16.msra.mxu0 %v944
    %1269 = vmatprep.subr.bf16.mxu0 %v948
    %1270 = vmatpush1.bf16.msra.mxu0 %v947
    %1271 = vmatprep.subr.bf16.mxu0 %v951
    %1272 = vmatpush1.bf16.msra.mxu0 %v950
    %1273 = vmatprep.subr.bf16.mxu0 %v954
    %1274 = vmatpush1.bf16.msra.mxu0 %v953
    %1275 = vmatprep.subr.bf16.mxu0 %v957
    %1276 = vmatpush1.bf16.msra.mxu0 %v956
    %1277 = vmatprep.subr.bf16.mxu0 %v960
    %1278 = vmatpush1.bf16.msra.mxu0 %v959
    %1279 = vmatprep.subr.bf16.mxu0 %v963
    %1280 = vmatpush1.bf16.msra.mxu0 %v962
    %1281 = vmatprep.subr.bf16.mxu0 %v966
    %1282 = vmatpush1.bf16.msra.mxu0 %v965
    %1283 = vmatprep.subr.bf16.mxu0 %v969
    %1284 = vmatpush1.bf16.msra.mxu0 %v968
    %1285 = vmatprep.subr.bf16.mxu0 %v972
    %1286 = vmatpush1.bf16.msra.mxu0 %v971
    %1287 = vmatprep.subr.bf16.mxu0 %v975
    %1288 = vmatpush1.bf16.msra.mxu0 %v974
    %1289 = vmatprep.mubr.bf16.mxu0 %v146
    %1290 = vmatmul.mubr.bf16.gmra.mrb[0].mxu0 %v145
    %v1291 = vpop.f32.mrb[0].mxu0
    %v1292 = vadd.f32 %v377, %v1291
    %v1293 = vpop.f32.mrb[0].mxu0
    %v1294 = vadd.f32 %v381, %v1293
    %v1295 = vpop.f32.mrb[0].mxu0
    %v1296 = vpop.f32.mrb[0].mxu0
    %1297 = vdwg.mxu0
    %1298 = vmatprep.subr.bf16.mxu0 %v978
    %1299 = vmatpush1.bf16.msra.mxu0 %v977
    %1300 = vmatprep.subr.bf16.mxu0 %v981
    %1301 = vmatpush1.bf16.msra.mxu0 %v980
    %1302 = vmatprep.subr.bf16.mxu0 %v984
    %1303 = vmatpush1.bf16.msra.mxu0 %v983
    %1304 = vmatprep.subr.bf16.mxu0 %v987
    %1305 = vmatpush1.bf16.msra.mxu0 %v986
    %1306 = vmatprep.subr.bf16.mxu0 %v990
    %1307 = vmatpush1.bf16.msra.mxu0 %v989
    %1308 = vmatprep.subr.bf16.mxu0 %v993
    %1309 = vmatpush1.bf16.msra.mxu0 %v992
    %1310 = vmatprep.subr.bf16.mxu0 %v996
    %1311 = vmatpush1.bf16.msra.mxu0 %v995
    %1312 = vmatprep.subr.bf16.mxu0 %v999
    %1313 = vmatpush1.bf16.msra.mxu0 %v998
    %1314 = vmatprep.subr.bf16.mxu0 %v1002
    %1315 = vmatpush1.bf16.msra.mxu0 %v1001
    %1316 = vmatprep.subr.bf16.mxu0 %v1005
    %1317 = vmatpush1.bf16.msra.mxu0 %v1004
    %1318 = vmatprep.subr.bf16.mxu0 %v1008
    %1319 = vmatpush1.bf16.msra.mxu0 %v1007
    %1320 = vmatprep.subr.bf16.mxu0 %v1011
    %1321 = vmatpush1.bf16.msra.mxu0 %v1010
    %1322 = vmatprep.subr.bf16.mxu0 %v1014
    %1323 = vmatpush1.bf16.msra.mxu0 %v1013
    %1324 = vmatprep.subr.bf16.mxu0 %v1017
    %1325 = vmatpush1.bf16.msra.mxu0 %v1016
    %1326 = vmatprep.subr.bf16.mxu0 %v1020
    %1327 = vmatpush1.bf16.msra.mxu0 %v1019
    %1328 = vmatprep.subr.bf16.mxu0 %v1023
    %1329 = vmatpush1.bf16.msra.mxu0 %v1022
    %1330 = vmatprep.mubr.bf16.mxu0 %v148
    %1331 = vmatmul.mubr.bf16.gmra.mrb[0].mxu0 %v147
    %v1332 = vpop.f32.mrb[0].mxu0
    %v1333 = vadd.f32 %v1292, %v1332
    %v1334 = vpop.f32.mrb[0].mxu0
    %v1335 = vadd.f32 %v1294, %v1334
    %v1336 = vpop.f32.mrb[0].mxu0
    %v1337 = vpop.f32.mrb[0].mxu0
    %1338 = vdwg.mxu0
    %1339 = vmatprep.subr.bf16.mxu0 %v1026
    %1340 = vmatpush1.bf16.msra.mxu0 %v1025
    %1341 = vmatprep.subr.bf16.mxu0 %v1029
    %1342 = vmatpush1.bf16.msra.mxu0 %v1028
    %1343 = vmatprep.subr.bf16.mxu0 %v1032
    %1344 = vmatpush1.bf16.msra.mxu0 %v1031
    %1345 = vmatprep.subr.bf16.mxu0 %v1035
    %1346 = vmatpush1.bf16.msra.mxu0 %v1034
    %1347 = vmatprep.subr.bf16.mxu0 %v1038
    %1348 = vmatpush1.bf16.msra.mxu0 %v1037
    %1349 = vmatprep.subr.bf16.mxu0 %v1041
    %1350 = vmatpush1.bf16.msra.mxu0 %v1040
    %1351 = vmatprep.subr.bf16.mxu0 %v1044
    %1352 = vmatpush1.bf16.msra.mxu0 %v1043
    %1353 = vmatprep.subr.bf16.mxu0 %v1047
    %1354 = vmatpush1.bf16.msra.mxu0 %v1046
    %1355 = vmatprep.subr.bf16.mxu0 %v1050
    %1356 = vmatpush1.bf16.msra.mxu0 %v1049
    %1357 = vmatprep.subr.bf16.mxu0 %v1053
    %1358 = vmatpush1.bf16.msra.mxu0 %v1052
    %1359 = vmatprep.subr.bf16.mxu0 %v1056
    %1360 = vmatpush1.bf16.msra.mxu0 %v1055
    %1361 = vmatprep.subr.bf16.mxu0 %v1059
    %1362 = vmatpush1.bf16.msra.mxu0 %v1058
    %1363 = vmatprep.subr.bf16.mxu0 %v1062
    %1364 = vmatpush1.bf16.msra.mxu0 %v1061
    %1365 = vmatprep.subr.bf16.mxu0 %v1065
    %1366 = vmatpush1.bf16.msra.mxu0 %v1064
    %1367 = vmatprep.subr.bf16.mxu0 %v1068
    %1368 = vmatpush1.bf16.msra.mxu0 %v1067
    %1369 = vmatprep.subr.bf16.mxu0 %v1071
    %1370 = vmatpush1.bf16.msra.mxu0 %v1070
    %1371 = vmatprep.mubr.bf16.mxu0 %v150
    %1372 = vmatmul.mubr.bf16.gmra.mrb[0].mxu0 %v149
    %v1373 = vpop.f32.mrb[0].mxu0
    %v1374 = vadd.f32 %v1333, %v1373
    %v1375 = vpop.f32.mrb[0].mxu0
    %v1376 = vadd.f32 %v1335, %v1375
    %v1377 = vpop.f32.mrb[0].mxu0
    %v1378 = vpop.f32.mrb[0].mxu0
    %1379 = vdwg.mxu0
    %1380 = vmatprep.subr.bf16.mxu0 %v1074
    %1381 = vmatpush1.bf16.msra.mxu0 %v1073
    %1382 = vmatprep.subr.bf16.mxu0 %v1077
    %1383 = vmatpush1.bf16.msra.mxu0 %v1076
    %1384 = vmatprep.subr.bf16.mxu0 %v1080
    %1385 = vmatpush1.bf16.msra.mxu0 %v1079
    %1386 = vmatprep.subr.bf16.mxu0 %v1083
    %1387 = vmatpush1.bf16.msra.mxu0 %v1082
    %1388 = vmatprep.subr.bf16.mxu0 %v1086
    %1389 = vmatpush1.bf16.msra.mxu0 %v1085
    %1390 = vmatprep.subr.bf16.mxu0 %v1089
    %1391 = vmatpush1.bf16.msra.mxu0 %v1088
    %1392 = vmatprep.subr.bf16.mxu0 0
    %1393 = vmatpush1.bf16.msra.mxu0 0
    %1394 = vmatprep.subr.bf16.mxu0 0
    %1395 = vmatpush1.bf16.msra.mxu0 0
    %1396 = vmatprep.subr.bf16.mxu0 0
    %1397 = vmatpush1.bf16.msra.mxu0 0
    %1398 = vmatprep.subr.bf16.mxu0 0
    %1399 = vmatpush1.bf16.msra.mxu0 0
    %1400 = vmatprep.subr.bf16.mxu0 0
    %1401 = vmatpush1.bf16.msra.mxu0 0
    %1402 = vmatprep.subr.bf16.mxu0 0
    %1403 = vmatpush1.bf16.msra.mxu0 0
    %1404 = vmatprep.subr.bf16.mxu0 0
    %1405 = vmatpush1.bf16.msra.mxu0 0
    %1406 = vmatprep.subr.bf16.mxu0 0
    %1407 = vmatpush1.bf16.msra.mxu0 0
    %1408 = vmatprep.subr.bf16.mxu0 0
    %1409 = vmatpush1.bf16.msra.mxu0 0
    %1410 = vmatprep.subr.bf16.mxu0 0
    %1411 = vmatpush1.bf16.msra.mxu0 0
    %1412 = vmatprep.mubr.bf16.mxu0 0
    %1413 = vmatmul.mubr.bf16.gmra.mrb[0].mxu0 %v1255
    %v1414 = vpop.f32.mrb[0].mxu0
    %v1415 = vadd.f32 %v1374, %v1414
    %v1416 = vpop.f32.mrb[0].mxu0
    %v1417 = vadd.f32 %v1376, %v1416
    %v1418 = vpop.f32.mrb[0].mxu0
    %v1419 = vpop.f32.mrb[0].mxu0
    %1420 = vdwg.mxu0
    %1421 = vmatprep.subr.bf16.mxu0 0
    %1422 = vmatpush1.bf16.msra.mxu0 %v931
    %1423 = vmatprep.subr.bf16.mxu0 0
    %1424 = vmatpush1.bf16.msra.mxu0 %v934
    %1425 = vmatprep.subr.bf16.mxu0 0
    %1426 = vmatpush1.bf16.msra.mxu0 %v937
    %1427 = vmatprep.subr.bf16.mxu0 0
    %1428 = vmatpush1.bf16.msra.mxu0 %v940
    %1429 = vmatprep.subr.bf16.mxu0 0
    %1430 = vmatpush1.bf16.msra.mxu0 %v943
    %1431 = vmatprep.subr.bf16.mxu0 0
    %1432 = vmatpush1.bf16.msra.mxu0 %v946
    %1433 = vmatprep.subr.bf16.mxu0 0
    %1434 = vmatpush1.bf16.msra.mxu0 %v949
    %1435 = vmatprep.subr.bf16.mxu0 0
    %1436 = vmatpush1.bf16.msra.mxu0 %v952
    %1437 = vmatprep.subr.bf16.mxu0 0
    %1438 = vmatpush1.bf16.msra.mxu0 %v955
    %1439 = vmatprep.subr.bf16.mxu0 0
    %1440 = vmatpush1.bf16.msra.mxu0 %v958
    %1441 = vmatprep.subr.bf16.mxu0 0
    %1442 = vmatpush1.bf16.msra.mxu0 %v961
    %1443 = vmatprep.subr.bf16.mxu0 0
    %1444 = vmatpush1.bf16.msra.mxu0 %v964
    %1445 = vmatprep.subr.bf16.mxu0 0
    %1446 = vmatpush1.bf16.msra.mxu0 %v967
    %1447 = vmatprep.subr.bf16.mxu0 0
    %1448 = vmatpush1.bf16.msra.mxu0 %v970
    %1449 = vmatprep.subr.bf16.mxu0 0
    %1450 = vmatpush1.bf16.msra.mxu0 %v973
    %1451 = vmatprep.subr.bf16.mxu0 0
    %1452 = vmatpush1.bf16.msra.mxu0 %v976
    %1453 = vmatprep.mubr.bf16.mxu0 %v146
    %1454 = vmatmul.mubr.bf16.gmra.mrb[0].mxu0 %v145
    %v1455 = vpop.f32.mrb[0].mxu0
    %v1456 = vadd.f32 %v385, %v1455
    %v1457 = vpop.f32.mrb[0].mxu0
    %v1458 = vpop.f32.mrb[0].mxu0
    %v1459 = vpop.f32.mrb[0].mxu0
    %1460 = vdwg.mxu0
    %1461 = vmatprep.subr.bf16.mxu0 0
    %1462 = vmatpush1.bf16.msra.mxu0 %v979
    %1463 = vmatprep.subr.bf16.mxu0 0
    %1464 = vmatpush1.bf16.msra.mxu0 %v982
    %1465 = vmatprep.subr.bf16.mxu0 0
    %1466 = vmatpush1.bf16.msra.mxu0 %v985
    %1467 = vmatprep.subr.bf16.mxu0 0
    %1468 = vmatpush1.bf16.msra.mxu0 %v988
    %1469 = vmatprep.subr.bf16.mxu0 0
    %1470 = vmatpush1.bf16.msra.mxu0 %v991
    %1471 = vmatprep.subr.bf16.mxu0 0
    %1472 = vmatpush1.bf16.msra.mxu0 %v994
    %1473 = vmatprep.subr.bf16.mxu0 0
    %1474 = vmatpush1.bf16.msra.mxu0 %v997
    %1475 = vmatprep.subr.bf16.mxu0 0
    %1476 = vmatpush1.bf16.msra.mxu0 %v1000
    %1477 = vmatprep.subr.bf16.mxu0 0
    %1478 = vmatpush1.bf16.msra.mxu0 %v1003
    %1479 = vmatprep.subr.bf16.mxu0 0
    %1480 = vmatpush1.bf16.msra.mxu0 %v1006
    %1481 = vmatprep.subr.bf16.mxu0 0
    %1482 = vmatpush1.bf16.msra.mxu0 %v1009
    %1483 = vmatprep.subr.bf16.mxu0 0
    %1484 = vmatpush1.bf16.msra.mxu0 %v1012
    %1485 = vmatprep.subr.bf16.mxu0 0
    %1486 = vmatpush1.bf16.msra.mxu0 %v1015
    %1487 = vmatprep.subr.bf16.mxu0 0
    %1488 = vmatpush1.bf16.msra.mxu0 %v1018
    %1489 = vmatprep.subr.bf16.mxu0 0
    %1490 = vmatpush1.bf16.msra.mxu0 %v1021
    %1491 = vmatprep.subr.bf16.mxu0 0
    %1492 = vmatpush1.bf16.msra.mxu0 %v1024
    %1493 = vmatprep.mubr.bf16.mxu0 %v148
    %1494 = vmatmul.mubr.bf16.gmra.mrb[0].mxu0 %v147
    %v1495 = vpop.f32.mrb[0].mxu0
    %v1496 = vadd.f32 %v1456, %v1495
    %v1497 = vpop.f32.mrb[0].mxu0
    %v1498 = vpop.f32.mrb[0].mxu0
    %v1499 = vpop.f32.mrb[0].mxu0
    %1500 = vdwg.mxu0
    %1501 = vmatprep.subr.bf16.mxu0 0
    %1502 = vmatpush1.bf16.msra.mxu0 %v1027
    %1503 = vmatprep.subr.bf16.mxu0 0
    %1504 = vmatpush1.bf16.msra.mxu0 %v1030
    %1505 = vmatprep.subr.bf16.mxu0 0
    %1506 = vmatpush1.bf16.msra.mxu0 %v1033
    %1507 = vmatprep.subr.bf16.mxu0 0
    %1508 = vmatpush1.bf16.msra.mxu0 %v1036
    %1509 = vmatprep.subr.bf16.mxu0 0
    %1510 = vmatpush1.bf16.msra.mxu0 %v1039
    %1511 = vmatprep.subr.bf16.mxu0 0
    %1512 = vmatpush1.bf16.msra.mxu0 %v1042
    %1513 = vmatprep.subr.bf16.mxu0 0
    %1514 = vmatpush1.bf16.msra.mxu0 %v1045
    %1515 = vmatprep.subr.bf16.mxu0 0
    %1516 = vmatpush1.bf16.msra.mxu0 %v1048
    %1517 = vmatprep.subr.bf16.mxu0 0
    %1518 = vmatpush1.bf16.msra.mxu0 %v1051
    %1519 = vmatprep.subr.bf16.mxu0 0
    %1520 = vmatpush1.bf16.msra.mxu0 %v1054
    %1521 = vmatprep.subr.bf16.mxu0 0
    %1522 = vmatpush1.bf16.msra.mxu0 %v1057
    %1523 = vmatprep.subr.bf16.mxu0 0
    %1524 = vmatpush1.bf16.msra.mxu0 %v1060
    %1525 = vmatprep.subr.bf16.mxu0 0
    %1526 = vmatpush1.bf16.msra.mxu0 %v1063
    %1527 = vmatprep.subr.bf16.mxu0 0
    %1528 = vmatpush1.bf16.msra.mxu0 %v1066
    %1529 = vmatprep.subr.bf16.mxu0 0
    %1530 = vmatpush1.bf16.msra.mxu0 %v1069
    %1531 = vmatprep.subr.bf16.mxu0 0
    %1532 = vmatpush1.bf16.msra.mxu0 %v1072
    %1533 = vmatprep.mubr.bf16.mxu0 %v150
    %1534 = vmatmul.mubr.bf16.gmra.mrb[0].mxu0 %v149
    %v1535 = vpop.f32.mrb[0].mxu0
    %v1536 = vadd.f32 %v1496, %v1535
    %v1537 = vpop.f32.mrb[0].mxu0
    %v1538 = vpop.f32.mrb[0].mxu0
    %v1539 = vpop.f32.mrb[0].mxu0
    %1540 = vdwg.mxu0
    %1541 = vmatprep.subr.bf16.mxu0 0
    %1542 = vmatpush1.bf16.msra.mxu0 %v1075
    %1543 = vmatprep.subr.bf16.mxu0 0
    %1544 = vmatpush1.bf16.msra.mxu0 %v1078
    %1545 = vmatprep.subr.bf16.mxu0 0
    %1546 = vmatpush1.bf16.msra.mxu0 %v1081
    %1547 = vmatprep.subr.bf16.mxu0 0
    %1548 = vmatpush1.bf16.msra.mxu0 %v1084
    %1549 = vmatprep.subr.bf16.mxu0 0
    %1550 = vmatpush1.bf16.msra.mxu0 %v1087
    %1551 = vmatprep.subr.bf16.mxu0 0
    %1552 = vmatpush1.bf16.msra.mxu0 %v1090
    %1553 = vmatprep.subr.bf16.mxu0 0
    %1554 = vmatpush1.bf16.msra.mxu0 0
    %1555 = vmatprep.subr.bf16.mxu0 0
    %1556 = vmatpush1.bf16.msra.mxu0 0
    %1557 = vmatprep.subr.bf16.mxu0 0
    %1558 = vmatpush1.bf16.msra.mxu0 0
    %1559 = vmatprep.subr.bf16.mxu0 0
    %1560 = vmatpush1.bf16.msra.mxu0 0
    %1561 = vmatprep.subr.bf16.mxu0 0
    %1562 = vmatpush1.bf16.msra.mxu0 0
    %1563 = vmatprep.subr.bf16.mxu0 0
    %1564 = vmatpush1.bf16.msra.mxu0 0
    %1565 = vmatprep.subr.bf16.mxu0 0
    %1566 = vmatpush1.bf16.msra.mxu0 0
    %1567 = vmatprep.subr.bf16.mxu0 0
    %1568 = vmatpush1.bf16.msra.mxu0 0
    %1569 = vmatprep.subr.bf16.mxu0 0
    %1570 = vmatpush1.bf16.msra.mxu0 0
    %1571 = vmatprep.subr.bf16.mxu0 0
    %1572 = vmatpush1.bf16.msra.mxu0 0
    %1573 = vmatprep.mubr.bf16.mxu0 0
    %1574 = vmatmul.mubr.bf16.gmra.mrb[0].mxu0 %v1255
    %v1575 = vpop.f32.mrb[0].mxu0
    %v1576 = vadd.f32 %v1536, %v1575
    %v1577 = vpop.f32.mrb[0].mxu0
    %v1578 = vpop.f32.mrb[0].mxu0
    %v1579 = vpop.f32.mrb[0].mxu0
    %1580 = vdwg.mxu0
    %v1581 = vadd.f32 %v1415, %v1417
    %v1582 = vadd.f32 %v1581, %v1576
    %1583 = vadd.xlane.f32.xlu0 %v1582
    %v1584 = vpop.xlane.xlu0 %1583
    %v1585 = vmul.f32 %v1584, 0.0034722222
    %v1586 = vsub.f32 %v1415, %v1585
    %v1587 = vsub.f32 %v1417, %v1585
    %v1588 = vsub.f32 %v1576, %v1585
    %v1589 = vlaneseq
    %v1590 = vand.u32 %v1589, 127
    %v1591 = vadd.s32 %v1590, 128
    %v1592 = vadd.s32 %v1590, 256
    %vm1593 = vcmp.lt.s32.totalorder %v1590, 288
    %vm1594 = vcmp.lt.s32.totalorder %v1591, 288
    %vm1595 = vcmp.lt.s32.totalorder %v1592, 288
    %v1596 = vsel %vm1593, 1, 0
    %v1597 = vsel %vm1594, 1, 0
    %v1598 = vsel %vm1595, 1, 0
    %vm1599 = vcmp.eq.s32.totalorder %v1596, 1
    %vm1600 = vcmp.eq.s32.totalorder %v1597, 1
    %vm1601 = vcmp.eq.s32.totalorder %v1598, 1
    %v1602 = vsel %vm1599, %v1586, 0.0
    %v1603 = vsel %vm1600, %v1587, 0.0
    %v1604 = vsel %vm1601, %v1588, 0.0
    %v1605 = vmul.f32 %v1602, %v1602
    %v1606 = vmul.f32 %v1603, %v1603
    %v1607 = vmul.f32 %v1604, %v1604
    %v1608 = vadd.f32 %v1605, %v1606
    %v1609 = vadd.f32 %v1608, %v1607
    %1610 = vadd.xlane.f32.xlu0 %v1609
    %v1611 = vpop.xlane.xlu0 %1610
    %v1612 = vmul.f32 %v1611, 0.0034722222
    %v1613 = vadd.f32 %v1612, 1e-05
    %v1614 = vrsqrt.pop %v1613
    %v1615 = vmul.f32 %v1586, %v1614
    %v1616 = vmul.f32 %v1587, %v1614
    %v1617 = vmul.f32 %v1588, %v1614
    %v1619 = vlaneseq
    %v1620 = vshrl.u32 %v1619, 7
    %v1621 = vsub.s32 0, %v1620
    %v1622 = vrot.slane %v370, %v1621
    %v1623 = vlaneseq
    %v1624 = vshrl.u32 %v1623, 7
    %v1625 = vsub.s32 1, %v1624
    %v1626 = vrot.slane %v370, %v1625
    %v1627 = vlaneseq
    %v1628 = vshrl.u32 %v1627, 7
    %v1629 = vsub.s32 2, %v1628
    %v1630 = vrot.slane %v370, %v1629
    %v1634 = vmul.f32 %v1615, %v1622
    %v1635 = vmul.f32 %v1616, %v1626
    %v1636 = vmul.f32 %v1617, %v1630
    %v1638 = vlaneseq
    %v1639 = vshrl.u32 %v1638, 7
    %v1640 = vsub.s32 0, %v1639
    %v1641 = vrot.slane %v372, %v1640
    %v1642 = vlaneseq
    %v1643 = vshrl.u32 %v1642, 7
    %v1644 = vsub.s32 1, %v1643
    %v1645 = vrot.slane %v372, %v1644
    %v1646 = vlaneseq
    %v1647 = vshrl.u32 %v1646, 7
    %v1648 = vsub.s32 2, %v1647
    %v1649 = vrot.slane %v372, %v1648
    %v1653 = vadd.f32 %v1634, %v1641
    %v1654 = vadd.f32 %v1635, %v1645
    %v1655 = vadd.f32 %v1636, %v1649
    %v1656 = vpack.c.bf16 %v1653, %v1653
    %v1657 = vpack.c.bf16 %v1654, %v1654
    %v1658 = vpack.c.bf16 %v1655, %v1655
    %v1659 = vld [vmem:[#allocation8] sm:$0xf]
    %v1660 = vld [vmem:[#allocation8 + $0x4] sm:$0xf]
    %v1661 = vld [vmem:[#allocation8 + $0x8] sm:$0xf]
    %v1662 = vld [vmem:[#allocation8 + $0xc] sm:$0xf]
    %v1663 = vld [vmem:[#allocation8 + $0x10] sm:$0xf]
    %v1664 = vld [vmem:[#allocation8 + $0x14] sm:$0xf]
    %v1665 = vld [vmem:[#allocation8 + $0x18] sm:$0xf]
    %v1666 = vld [vmem:[#allocation8 + $0x1c] sm:$0xf]
    %v1667 = vld [vmem:[#allocation8 + $0x20] sm:$0xf]
    %v1668 = vld [vmem:[#allocation8 + $0x24] sm:$0xf]
    %v1669 = vld [vmem:[#allocation8 + $0x28] sm:$0xf]
    %v1670 = vld [vmem:[#allocation8 + $0x2c] sm:$0xf]
    %v1671 = vld [vmem:[#allocation8 + $0x30] sm:$0xf]
    %v1672 = vld [vmem:[#allocation8 + $0x34] sm:$0xf]
    %v1673 = vld [vmem:[#allocation8 + $0x38] sm:$0xf]
    %v1674 = vld [vmem:[#allocation8 + $0x3c] sm:$0xf]
    %v1675 = vld [vmem:[#allocation8 + $0x40] sm:$0xf]
    %v1676 = vld [vmem:[#allocation8 + $0x44] sm:$0xf]
    %v1677 = vld [vmem:[#allocation8 + $0x48] sm:$0xf]
    %v1678 = vld [vmem:[#allocation8 + $0x4c] sm:$0xf]
    %v1679 = vld [vmem:[#allocation8 + $0x50] sm:$0xf]
    %v1680 = vld [vmem:[#allocation8 + $0x54] sm:$0xf]
    %v1681 = vld [vmem:[#allocation8 + $0x58] sm:$0xf]
    %v1682 = vld [vmem:[#allocation8 + $0x5c] sm:$0xf]
    %v1683 = vld [vmem:[#allocation8 + $0x60] sm:$0xf]
    %v1684 = vld [vmem:[#allocation8 + $0x64] sm:$0xf]
    %v1685 = vld [vmem:[#allocation8 + $0x68] sm:$0xf]
    %v1686 = vld [vmem:[#allocation8 + $0x6c] sm:$0xf]
    %v1687 = vld [vmem:[#allocation8 + $0x70] sm:$0xf]
    %v1688 = vld [vmem:[#allocation8 + $0x74] sm:$0xf]
    %v1689 = vld [vmem:[#allocation8 + $0x78] sm:$0xf]
    %v1690 = vld [vmem:[#allocation8 + $0x7c] sm:$0xf]
    %v1691 = vld [vmem:[#allocation8 + $0x80] sm:$0xf]
    %v1692 = vld [vmem:[#allocation8 + $0x84] sm:$0xf]
    %v1693 = vld [vmem:[#allocation8 + $0x88] sm:$0xf]
    %v1694 = vld [vmem:[#allocation8 + $0x8c] sm:$0xf]
    %v1695 = vld [vmem:[#allocation8 + $0x90] sm:$0xf]
    %v1696 = vld [vmem:[#allocation8 + $0x94] sm:$0xf]
    %v1697 = vld [vmem:[#allocation8 + $0x98] sm:$0xf]
    %v1698 = vld [vmem:[#allocation8 + $0x9c] sm:$0xf]
    %v1699 = vld [vmem:[#allocation8 + $0xa0] sm:$0xf]
    %v1700 = vld [vmem:[#allocation8 + $0xa4] sm:$0xf]
    %v1701 = vld [vmem:[#allocation8 + $0xa8] sm:$0xf]
    %v1702 = vld [vmem:[#allocation8 + $0xac] sm:$0xf]
    %v1703 = vld [vmem:[#allocation8 + $0xb0] sm:$0xf]
    %v1704 = vld [vmem:[#allocation8 + $0xb4] sm:$0xf]
    %v1705 = vld [vmem:[#allocation8 + $0xb8] sm:$0xf]
    %v1706 = vld [vmem:[#allocation8 + $0xbc] sm:$0xf]
    %v1707 = vld [vmem:[#allocation10] sm:$0x1]
    %v1708 = vld [vmem:[#allocation10 + $0x1] sm:$0x1]
    %v1709 = vld [vmem:[#allocation10 + $0x2] sm:$0x1]
    %v1710 = vlaneseq
    %v1711 = vshrl.u32 %v1710, 7
    %v1712 = vsub.s32 0, %v1711
    %v1713 = vrot.slane %v1707, %v1712
    %v1762 = vunpack.c.l.b16 %v1659
    %v1763 = vunpack.c.l.b16 %v1660
    %v1764 = vunpack.c.l.b16 %v1661
    %v1765 = vunpack.c.l.b16 %v1662
    %v1766 = vunpack.c.l.b16 %v1663
    %v1767 = vunpack.c.l.b16 %v1664
    %v1768 = vunpack.c.l.b16 %v1665
    %v1769 = vunpack.c.l.b16 %v1666
    %v1770 = vunpack.c.l.b16 %v1667
    %v1771 = vunpack.c.l.b16 %v1668
    %v1772 = vunpack.c.l.b16 %v1669
    %v1773 = vunpack.c.l.b16 %v1670
    %v1774 = vunpack.c.l.b16 %v1671
    %v1775 = vunpack.c.l.b16 %v1672
    %v1776 = vunpack.c.l.b16 %v1673
    %v1777 = vunpack.c.l.b16 %v1674
    %v1778 = vunpack.c.l.b16 %v1675
    %v1779 = vunpack.c.l.b16 %v1676
    %v1780 = vunpack.c.l.b16 %v1677
    %v1781 = vunpack.c.l.b16 %v1678
    %v1782 = vunpack.c.l.b16 %v1679
    %v1783 = vunpack.c.l.b16 %v1680
    %v1784 = vunpack.c.l.b16 %v1681
    %v1785 = vunpack.c.l.b16 %v1682
    %v1786 = vunpack.c.l.b16 %v1683
    %v1787 = vunpack.c.l.b16 %v1684
    %v1788 = vunpack.c.l.b16 %v1685
    %v1789 = vunpack.c.l.b16 %v1686
    %v1790 = vunpack.c.l.b16 %v1687
    %v1791 = vunpack.c.l.b16 %v1688
    %v1792 = vunpack.c.l.b16 %v1689
    %v1793 = vunpack.c.l.b16 %v1690
    %v1794 = vunpack.c.l.b16 %v1691
    %v1795 = vunpack.c.l.b16 %v1692
    %v1796 = vunpack.c.l.b16 %v1693
    %v1797 = vunpack.c.l.b16 %v1694
    %v1798 = vunpack.c.l.b16 %v1695
    %v1799 = vunpack.c.l.b16 %v1696
    %v1800 = vunpack.c.l.b16 %v1697
    %v1801 = vunpack.c.l.b16 %v1698
    %v1802 = vunpack.c.l.b16 %v1699
    %v1803 = vunpack.c.l.b16 %v1700
    %v1804 = vunpack.c.l.b16 %v1701
    %v1805 = vunpack.c.l.b16 %v1702
    %v1806 = vunpack.c.l.b16 %v1703
    %v1807 = vunpack.c.l.b16 %v1704
    %v1808 = vunpack.c.l.b16 %v1705
    %v1809 = vunpack.c.l.b16 %v1706
    %v1810 = vpack.c.b16 %v1763, %v1762
    %v1811 = vpack.c.b16 %v1765, %v1764
    %v1812 = vpack.c.b16 %v1767, %v1766
    %v1813 = vpack.c.b16 %v1769, %v1768
    %v1814 = vpack.c.b16 %v1771, %v1770
    %v1815 = vpack.c.b16 %v1773, %v1772
    %v1816 = vpack.c.b16 %v1775, %v1774
    %v1817 = vpack.c.b16 %v1777, %v1776
    %v1818 = vpack.c.b16 %v1779, %v1778
    %v1819 = vpack.c.b16 %v1781, %v1780
    %v1820 = vpack.c.b16 %v1783, %v1782
    %v1821 = vpack.c.b16 %v1785, %v1784
    %v1822 = vpack.c.b16 %v1787, %v1786
    %v1823 = vpack.c.b16 %v1789, %v1788
    %v1824 = vpack.c.b16 %v1791, %v1790
    %v1825 = vpack.c.b16 %v1793, %v1792
    %v1826 = vpack.c.b16 %v1795, %v1794
    %v1827 = vpack.c.b16 %v1797, %v1796
    %v1828 = vpack.c.b16 %v1799, %v1798
    %v1829 = vpack.c.b16 %v1801, %v1800
    %v1830 = vpack.c.b16 %v1803, %v1802
    %v1831 = vpack.c.b16 %v1805, %v1804
    %v1832 = vpack.c.b16 %v1807, %v1806
    %v1833 = vpack.c.b16 %v1809, %v1808
    %1858 = vmatprep.subr.bf16.mxu0 0
    %1859 = vmatpush1.bf16.msra.mxu0 %v1810
    %1860 = vmatprep.subr.bf16.mxu0 0
    %1861 = vmatpush1.bf16.msra.mxu0 %v1811
    %1862 = vmatprep.subr.bf16.mxu0 0
    %1863 = vmatpush1.bf16.msra.mxu0 %v1812
    %1864 = vmatprep.subr.bf16.mxu0 0
    %1865 = vmatpush1.bf16.msra.mxu0 %v1813
    %1866 = vmatprep.subr.bf16.mxu0 0
    %1867 = vmatpush1.bf16.msra.mxu0 %v1814
    %1868 = vmatprep.subr.bf16.mxu0 0
    %1869 = vmatpush1.bf16.msra.mxu0 %v1815
    %1870 = vmatprep.subr.bf16.mxu0 0
    %1871 = vmatpush1.bf16.msra.mxu0 %v1816
    %1872 = vmatprep.subr.bf16.mxu0 0
    %1873 = vmatpush1.bf16.msra.mxu0 %v1817
    %1874 = vmatprep.subr.bf16.mxu0 0
    %1875 = vmatpush1.bf16.msra.mxu0 %v1818
    %1876 = vmatprep.subr.bf16.mxu0 0
    %1877 = vmatpush1.bf16.msra.mxu0 %v1819
    %1878 = vmatprep.subr.bf16.mxu0 0
    %1879 = vmatpush1.bf16.msra.mxu0 %v1820
    %1880 = vmatprep.subr.bf16.mxu0 0
    %1881 = vmatpush1.bf16.msra.mxu0 %v1821
    %1882 = vmatprep.subr.bf16.mxu0 0
    %1883 = vmatpush1.bf16.msra.mxu0 %v1822
    %1884 = vmatprep.subr.bf16.mxu0 0
    %1885 = vmatpush1.bf16.msra.mxu0 %v1823
    %1886 = vmatprep.subr.bf16.mxu0 0
    %1887 = vmatpush1.bf16.msra.mxu0 %v1824
    %1888 = vmatprep.subr.bf16.mxu0 0
    %1889 = vmatpush1.bf16.msra.mxu0 %v1825
    %1890 = vmatprep.mubr.bf16.mxu0 %v1657
    %1891 = vmatmul.mubr.bf16.gmra.mrb[0].mxu0 %v1656
    %v1892 = vpop.f32.mrb[0].mxu0
    %v1893 = vadd.f32 %v1713, %v1892
    %v1894 = vpop.f32.mrb[0].mxu0
    %v1895 = vpop.f32.mrb[0].mxu0
    %v1896 = vpop.f32.mrb[0].mxu0
    %1897 = vdwg.mxu0
    %1898 = vmatprep.subr.bf16.mxu0 0
    %1899 = vmatpush1.bf16.msra.mxu0 %v1826
    %1900 = vmatprep.subr.bf16.mxu0 0
    %1901 = vmatpush1.bf16.msra.mxu0 %v1827
    %1902 = vmatprep.subr.bf16.mxu0 0
    %1903 = vmatpush1.bf16.msra.mxu0 %v1828
    %1904 = vmatprep.subr.bf16.mxu0 0
    %1905 = vmatpush1.bf16.msra.mxu0 %v1829
    %1906 = vmatprep.subr.bf16.mxu0 0
    %1907 = vmatpush1.bf16.msra.mxu0 %v1830
    %1908 = vmatprep.subr.bf16.mxu0 0
    %1909 = vmatpush1.bf16.msra.mxu0 %v1831
    %1910 = vmatprep.subr.bf16.mxu0 0
    %1911 = vmatpush1.bf16.msra.mxu0 %v1832
    %1912 = vmatprep.subr.bf16.mxu0 0
    %1913 = vmatpush1.bf16.msra.mxu0 %v1833
    %1914 = vmatprep.subr.bf16.mxu0 0
    %1915 = vmatpush1.bf16.msra.mxu0 0
    %1916 = vmatprep.subr.bf16.mxu0 0
    %1917 = vmatpush1.bf16.msra.mxu0 0
    %1918 = vmatprep.subr.bf16.mxu0 0
    %1919 = vmatpush1.bf16.msra.mxu0 0
    %1920 = vmatprep.subr.bf16.mxu0 0
    %1921 = vmatpush1.bf16.msra.mxu0 0
    %1922 = vmatprep.subr.bf16.mxu0 0
    %1923 = vmatpush1.bf16.msra.mxu0 0
    %1924 = vmatprep.subr.bf16.mxu0 0
    %1925 = vmatpush1.bf16.msra.mxu0 0
    %1926 = vmatprep.subr.bf16.mxu0 0
    %1927 = vmatpush1.bf16.msra.mxu0 0
    %1928 = vmatprep.subr.bf16.mxu0 0
    %1929 = vmatpush1.bf16.msra.mxu0 0
    %1930 = vmatprep.mubr.bf16.mxu0 0
    %1931 = vmatmul.mubr.bf16.gmra.mrb[0].mxu0 %v1658
    %v1932 = vpop.f32.mrb[0].mxu0
    %v1933 = vadd.f32 %v1893, %v1932
    %v1934 = vpop.f32.mrb[0].mxu0
    %v1935 = vpop.f32.mrb[0].mxu0
    %v1936 = vpop.f32.mrb[0].mxu0
    %1937 = vdwg.mxu0
    %1938 = vadd.xlane.f32.xlu0 %v1933
    %v1939 = vpop.xlane.xlu0 %1938
    %v1940 = vmul.f32 %v1939, 0.010416667
    %v1941 = vsub.f32 %v1933, %v1940
    %vm1942 = vcmp.lt.s32.totalorder %v1590, 96
    %v1943 = vsel %vm1942, 1, 0
    %vm1944 = vcmp.eq.s32.totalorder %v1943, 1
    %v1945 = vsel %vm1944, %v1941, 0.0
    %v1946 = vmul.f32 %v1945, %v1945
    %1947 = vadd.xlane.f32.xlu0 %v1946
    %v1948 = vpop.xlane.xlu0 %1947
    %v1949 = vmul.f32 %v1948, 0.010416667
    %v1950 = vadd.f32 %v1949, 1e-05
    %v1951 = vrsqrt.pop %v1950
    %v1952 = vmul.f32 %v1941, %v1951
    %v1953 = vlaneseq
    %v1954 = vshrl.u32 %v1953, 7
    %v1955 = vsub.s32 0, %v1954
    %v1956 = vrot.slane %v1708, %v1955
    %v1957 = vmul.f32 %v1952, %v1956
    %v1958 = vlaneseq
    %v1959 = vshrl.u32 %v1958, 7
    %v1960 = vsub.s32 0, %v1959
    %v1961 = vrot.slane %v1709, %v1960
    %v1962 = vadd.f32 %v1957, %v1961
    %v1963 = vpack.c.bf16 %v1962, %v1962
    %1964 = vst [vmem:[#allocation16] sm:$0xf] %v1963
    %v1965 = vld [vmem:[#allocation11] sm:$0xff]
    %v1966 = vld [vmem:[#allocation11 + $0x8] sm:$0xf]
    %v1967 = vld [vmem:[#allocation11 + $0xc] sm:$0xff]
    %v1968 = vld [vmem:[#allocation11 + $0x14] sm:$0xf]
    %v1969 = vld [vmem:[#allocation11 + $0x18] sm:$0xff]
    %v1970 = vld [vmem:[#allocation11 + $0x20] sm:$0xf]
    %v1971 = vld [vmem:[#allocation11 + $0x24] sm:$0xff]
    %v1972 = vld [vmem:[#allocation11 + $0x2c] sm:$0xf]
    %v1973 = vld [vmem:[#allocation11 + $0x30] sm:$0xff]
    %v1974 = vld [vmem:[#allocation11 + $0x38] sm:$0xf]
    %v1975 = vld [vmem:[#allocation11 + $0x3c] sm:$0xff]
    %v1976 = vld [vmem:[#allocation11 + $0x44] sm:$0xf]
    %v1977 = vld [vmem:[#allocation11 + $0x48] sm:$0xff]
    %v1978 = vld [vmem:[#allocation11 + $0x50] sm:$0xf]
    %v1979 = vld [vmem:[#allocation11 + $0x54] sm:$0xff]
    %v1980 = vld [vmem:[#allocation11 + $0x5c] sm:$0xf]
    %v1981 = vld [vmem:[#allocation11 + $0x60] sm:$0xff]
    %v1982 = vld [vmem:[#allocation11 + $0x68] sm:$0xf]
    %v1983 = vld [vmem:[#allocation11 + $0x6c] sm:$0xff]
    %v1984 = vld [vmem:[#allocation11 + $0x74] sm:$0xf]
    %v1985 = vld [vmem:[#allocation11 + $0x78] sm:$0xff]
    %v1986 = vld [vmem:[#allocation11 + $0x80] sm:$0xf]
    %v1987 = vld [vmem:[#allocation11 + $0x84] sm:$0xff]
    %v1988 = vld [vmem:[#allocation11 + $0x8c] sm:$0xf]
    %v1989 = vld [vmem:[#allocation11 + $0x90] sm:$0xff]
    %v1990 = vld [vmem:[#allocation11 + $0x98] sm:$0xf]
    %v1991 = vld [vmem:[#allocation11 + $0x9c] sm:$0xff]
    %v1992 = vld [vmem:[#allocation11 + $0xa4] sm:$0xf]
    %v1993 = vld [vmem:[#allocation11 + $0xa8] sm:$0xff]
    %v1994 = vld [vmem:[#allocation11 + $0xb0] sm:$0xf]
    %v1995 = vld [vmem:[#allocation11 + $0xb4] sm:$0xff]
    %v1996 = vld [vmem:[#allocation11 + $0xbc] sm:$0xf]
    %v1997 = vld [vmem:[#allocation13] ss:$4 sm:$0x7]
    %s1998 = scalar_lea.vmem [#allocation13], 1
    %v1999 = vld [vmem:[%s1998] ss:$4 sm:$0x7]
    %s2000 = scalar_lea.vmem [#allocation13], 2
    %v2001 = vld [vmem:[%s2000] ss:$4 sm:$0x7]
    %v2003 = vlaneseq
    %v2004 = vshrl.u32 %v2003, 7
    %v2005 = vsub.s32 0, %v2004
    %v2006 = vrot.slane %v1997, %v2005
    %v2007 = vlaneseq
    %v2008 = vshrl.u32 %v2007, 7
    %v2009 = vsub.s32 1, %v2008
    %v2010 = vrot.slane %v1997, %v2009
    %v2011 = vlaneseq
    %v2012 = vshrl.u32 %v2011, 7
    %v2013 = vsub.s32 2, %v2012
    %v2014 = vrot.slane %v1997, %v2013
    %v2050 = vunpack.c.l.b16 %v1965
    %v2051 = vunpack.c.h.b16 %v1965
    %v2052 = vunpack.c.l.b16 %v1966
    %v2053 = vunpack.c.l.b16 %v1967
    %v2054 = vunpack.c.h.b16 %v1967
    %v2055 = vunpack.c.l.b16 %v1968
    %v2056 = vunpack.c.l.b16 %v1969
    %v2057 = vunpack.c.h.b16 %v1969
    %v2058 = vunpack.c.l.b16 %v1970
    %v2059 = vunpack.c.l.b16 %v1971
    %v2060 = vunpack.c.h.b16 %v1971
    %v2061 = vunpack.c.l.b16 %v1972
    %v2062 = vunpack.c.l.b16 %v1973
    %v2063 = vunpack.c.h.b16 %v1973
    %v2064 = vunpack.c.l.b16 %v1974
    %v2065 = vunpack.c.l.b16 %v1975
    %v2066 = vunpack.c.h.b16 %v1975
    %v2067 = vunpack.c.l.b16 %v1976
    %v2068 = vunpack.c.l.b16 %v1977
    %v2069 = vunpack.c.h.b16 %v1977
    %v2070 = vunpack.c.l.b16 %v1978
    %v2071 = vunpack.c.l.b16 %v1979
    %v2072 = vunpack.c.h.b16 %v1979
    %v2073 = vunpack.c.l.b16 %v1980
    %v2074 = vunpack.c.l.b16 %v1981
    %v2075 = vunpack.c.h.b16 %v1981
    %v2076 = vunpack.c.l.b16 %v1982
    %v2077 = vunpack.c.l.b16 %v1983
    %v2078 = vunpack.c.h.b16 %v1983
    %v2079 = vunpack.c.l.b16 %v1984
    %v2080 = vunpack.c.l.b16 %v1985
    %v2081 = vunpack.c.h.b16 %v1985
    %v2082 = vunpack.c.l.b16 %v1986
    %v2083 = vunpack.c.l.b16 %v1987
    %v2084 = vunpack.c.h.b16 %v1987
    %v2085 = vunpack.c.l.b16 %v1988
    %v2086 = vunpack.c.l.b16 %v1989
    %v2087 = vunpack.c.h.b16 %v1989
    %v2088 = vunpack.c.l.b16 %v1990
    %v2089 = vunpack.c.l.b16 %v1991
    %v2090 = vunpack.c.h.b16 %v1991
    %v2091 = vunpack.c.l.b16 %v1992
    %v2092 = vunpack.c.l.b16 %v1993
    %v2093 = vunpack.c.h.b16 %v1993
    %v2094 = vunpack.c.l.b16 %v1994
    %v2095 = vunpack.c.l.b16 %v1995
    %v2096 = vunpack.c.h.b16 %v1995
    %v2097 = vunpack.c.l.b16 %v1996
    %v2098 = vpack.c.b16 %v2053, %v2050
    %v2099 = vpack.c.b16 %v2054, %v2051
    %v2100 = vpack.c.b16 %v2055, %v2052
    %v2101 = vpack.c.b16 %v2059, %v2056
    %v2102 = vpack.c.b16 %v2060, %v2057
    %v2103 = vpack.c.b16 %v2061, %v2058
    %v2104 = vpack.c.b16 %v2065, %v2062
    %v2105 = vpack.c.b16 %v2066, %v2063
    %v2106 = vpack.c.b16 %v2067, %v2064
    %v2107 = vpack.c.b16 %v2071, %v2068
    %v2108 = vpack.c.b16 %v2072, %v2069
    %v2109 = vpack.c.b16 %v2073, %v2070
    %v2110 = vpack.c.b16 %v2077, %v2074
    %v2111 = vpack.c.b16 %v2078, %v2075
    %v2112 = vpack.c.b16 %v2079, %v2076
    %v2113 = vpack.c.b16 %v2083, %v2080
    %v2114 = vpack.c.b16 %v2084, %v2081
    %v2115 = vpack.c.b16 %v2085, %v2082
    %v2116 = vpack.c.b16 %v2089, %v2086
    %v2117 = vpack.c.b16 %v2090, %v2087
    %v2118 = vpack.c.b16 %v2091, %v2088
    %v2119 = vpack.c.b16 %v2095, %v2092
    %v2120 = vpack.c.b16 %v2096, %v2093
    %v2121 = vpack.c.b16 %v2097, %v2094
    %2146 = vmatprep.subr.bf16.mxu0 %v2099
    %2147 = vmatpush1.bf16.msra.mxu0 %v2098
    %2148 = vmatprep.subr.bf16.mxu0 %v2102
    %2149 = vmatpush1.bf16.msra.mxu0 %v2101
    %2150 = vmatprep.subr.bf16.mxu0 %v2105
    %2151 = vmatpush1.bf16.msra.mxu0 %v2104
    %2152 = vmatprep.subr.bf16.mxu0 %v2108
    %2153 = vmatpush1.bf16.msra.mxu0 %v2107
    %2154 = vmatprep.subr.bf16.mxu0 %v2111
    %2155 = vmatpush1.bf16.msra.mxu0 %v2110
    %2156 = vmatprep.subr.bf16.mxu0 %v2114
    %2157 = vmatpush1.bf16.msra.mxu0 %v2113
    %2158 = vmatprep.subr.bf16.mxu0 %v2117
    %2159 = vmatpush1.bf16.msra.mxu0 %v2116
    %2160 = vmatprep.subr.bf16.mxu0 %v2120
    %2161 = vmatpush1.bf16.msra.mxu0 %v2119
    %2162 = vmatprep.subr.bf16.mxu0 0
    %2163 = vmatpush1.bf16.msra.mxu0 0
    %2164 = vmatprep.subr.bf16.mxu0 0
    %2165 = vmatpush1.bf16.msra.mxu0 0
    %2166 = vmatprep.subr.bf16.mxu0 0
    %2167 = vmatpush1.bf16.msra.mxu0 0
    %2168 = vmatprep.subr.bf16.mxu0 0
    %2169 = vmatpush1.bf16.msra.mxu0 0
    %2170 = vmatprep.subr.bf16.mxu0 0
    %2171 = vmatpush1.bf16.msra.mxu0 0
    %2172 = vmatprep.subr.bf16.mxu0 0
    %2173 = vmatpush1.bf16.msra.mxu0 0
    %2174 = vmatprep.subr.bf16.mxu0 0
    %2175 = vmatpush1.bf16.msra.mxu0 0
    %2176 = vmatprep.subr.bf16.mxu0 0
    %2177 = vmatpush1.bf16.msra.mxu0 0
    %2178 = vmatprep.mubr.bf16.mxu0 0
    %2179 = vmatmul.mubr.bf16.gmra.mrb[0].mxu0 %v1963
    %v2180 = vpop.f32.mrb[0].mxu0
    %v2181 = vadd.f32 %v2006, %v2180
    %v2182 = vpop.f32.mrb[0].mxu0
    %v2183 = vadd.f32 %v2010, %v2182
    %v2184 = vpop.f32.mrb[0].mxu0
    %v2185 = vpop.f32.mrb[0].mxu0
    %2186 = vdwg.mxu0
    %2187 = vmatprep.subr.bf16.mxu0 0
    %2188 = vmatpush1.bf16.msra.mxu0 %v2100
    %2189 = vmatprep.subr.bf16.mxu0 0
    %2190 = vmatpush1.bf16.msra.mxu0 %v2103
    %2191 = vmatprep.subr.bf16.mxu0 0
    %2192 = vmatpush1.bf16.msra.mxu0 %v2106
    %2193 = vmatprep.subr.bf16.mxu0 0
    %2194 = vmatpush1.bf16.msra.mxu0 %v2109
    %2195 = vmatprep.subr.bf16.mxu0 0
    %2196 = vmatpush1.bf16.msra.mxu0 %v2112
    %2197 = vmatprep.subr.bf16.mxu0 0
    %2198 = vmatpush1.bf16.msra.mxu0 %v2115
    %2199 = vmatprep.subr.bf16.mxu0 0
    %2200 = vmatpush1.bf16.msra.mxu0 %v2118
    %2201 = vmatprep.subr.bf16.mxu0 0
    %2202 = vmatpush1.bf16.msra.mxu0 %v2121
    %2203 = vmatprep.subr.bf16.mxu0 0
    %2204 = vmatpush1.bf16.msra.mxu0 0
    %2205 = vmatprep.subr.bf16.mxu0 0
    %2206 = vmatpush1.bf16.msra.mxu0 0
    %2207 = vmatprep.subr.bf16.mxu0 0
    %2208 = vmatpush1.bf16.msra.mxu0 0
    %2209 = vmatprep.subr.bf16.mxu0 0
    %2210 = vmatpush1.bf16.msra.mxu0 0
    %2211 = vmatprep.subr.bf16.mxu0 0
    %2212 = vmatpush1.bf16.msra.mxu0 0
    %2213 = vmatprep.subr.bf16.mxu0 0
    %2214 = vmatpush1.bf16.msra.mxu0 0
    %2215 = vmatprep.subr.bf16.mxu0 0
    %2216 = vmatpush1.bf16.msra.mxu0 0
    %2217 = vmatprep.subr.bf16.mxu0 0
    %2218 = vmatpush1.bf16.msra.mxu0 0
    %2219 = vmatprep.mubr.bf16.mxu0 0
    %2220 = vmatmul.mubr.bf16.gmra.mrb[0].mxu0 %v1963
    %v2221 = vpop.f32.mrb[0].mxu0
    %v2222 = vadd.f32 %v2014, %v2221
    %v2223 = vpop.f32.mrb[0].mxu0
    %v2224 = vpop.f32.mrb[0].mxu0
    %v2225 = vpop.f32.mrb[0].mxu0
    %2226 = vdwg.mxu0
    %v2227 = vadd.f32 %v2181, %v2183
    %v2228 = vadd.f32 %v2227, %v2222
    %2229 = vadd.xlane.f32.xlu0 %v2228
    %v2230 = vpop.xlane.xlu0 %2229
    %v2231 = vmul.f32 %v2230, 0.0034722222
    %v2232 = vsub.f32 %v2181, %v2231
    %v2233 = vsub.f32 %v2183, %v2231
    %v2234 = vsub.f32 %v2222, %v2231
    %v2235 = vsel %vm1599, %v2232, 0.0
    %v2236 = vsel %vm1600, %v2233, 0.0
    %v2237 = vsel %vm1601, %v2234, 0.0
    %v2238 = vmul.f32 %v2235, %v2235
    %v2239 = vmul.f32 %v2236, %v2236
    %v2240 = vmul.f32 %v2237, %v2237
    %v2241 = vadd.f32 %v2238, %v2239
    %v2242 = vadd.f32 %v2241, %v2240
    %2243 = vadd.xlane.f32.xlu0 %v2242
    %v2244 = vpop.xlane.xlu0 %2243
    %v2245 = vmul.f32 %v2244, 0.0034722222
    %v2246 = vadd.f32 %v2245, 1e-05
    %v2247 = vrsqrt.pop %v2246
    %v2248 = vmul.f32 %v2232, %v2247
    %v2249 = vmul.f32 %v2233, %v2247
    %v2250 = vmul.f32 %v2234, %v2247
    %v2252 = vlaneseq
    %v2253 = vshrl.u32 %v2252, 7
    %v2254 = vsub.s32 0, %v2253
    %v2255 = vrot.slane %v1999, %v2254
    %v2256 = vlaneseq
    %v2257 = vshrl.u32 %v2256, 7
    %v2258 = vsub.s32 1, %v2257
    %v2259 = vrot.slane %v1999, %v2258
    %v2260 = vlaneseq
    %v2261 = vshrl.u32 %v2260, 7
    %v2262 = vsub.s32 2, %v2261
    %v2263 = vrot.slane %v1999, %v2262
    %v2267 = vmul.f32 %v2248, %v2255
    %v2268 = vmul.f32 %v2249, %v2259
    %v2269 = vmul.f32 %v2250, %v2263
    %v2271 = vlaneseq
    %v2272 = vshrl.u32 %v2271, 7
    %v2273 = vsub.s32 0, %v2272
    %v2274 = vrot.slane %v2001, %v2273
    %v2275 = vlaneseq
    %v2276 = vshrl.u32 %v2275, 7
    %v2277 = vsub.s32 1, %v2276
    %v2278 = vrot.slane %v2001, %v2277
    %v2279 = vlaneseq
    %v2280 = vshrl.u32 %v2279, 7
    %v2281 = vsub.s32 2, %v2280
    %v2282 = vrot.slane %v2001, %v2281
    %v2286 = vadd.f32 %v2267, %v2274
    %v2287 = vadd.f32 %v2268, %v2278
    %v2288 = vadd.f32 %v2269, %v2282
    %v2289 = vpack.c.bf16 %v2286, %v2286
    %v2290 = vpack.c.bf16 %v2287, %v2287
    %v2291 = vpack.c.bf16 %v2288, %v2288
    %v2292 = vld [vmem:[#allocation14] sm:$0xff]
    %v2293 = vld [vmem:[#allocation14 + $0x8] sm:$0xff]
    %v2294 = vld [vmem:[#allocation14 + $0x10] sm:$0xff]
    %v2295 = vld [vmem:[#allocation14 + $0x18] sm:$0xf]
    %v2296 = vld [vmem:[#allocation14 + $0x1c] sm:$0xff]
    %v2297 = vld [vmem:[#allocation14 + $0x24] sm:$0xff]
    %v2298 = vld [vmem:[#allocation14 + $0x2c] sm:$0xff]
    %v2299 = vld [vmem:[#allocation14 + $0x34] sm:$0xf]
    %v2300 = vld [vmem:[#allocation14 + $0x38] sm:$0xff]
    %v2301 = vld [vmem:[#allocation14 + $0x40] sm:$0xff]
    %v2302 = vld [vmem:[#allocation14 + $0x48] sm:$0xff]
    %v2303 = vld [vmem:[#allocation14 + $0x50] sm:$0xf]
    %v2304 = vld [vmem:[#allocation14 + $0x54] sm:$0xff]
    %v2305 = vld [vmem:[#allocation14 + $0x5c] sm:$0xff]
    %v2306 = vld [vmem:[#allocation14 + $0x64] sm:$0xff]
    %v2307 = vld [vmem:[#allocation14 + $0x6c] sm:$0xf]
    %v2308 = vld [vmem:[#allocation14 + $0x70] sm:$0xff]
    %v2309 = vld [vmem:[#allocation14 + $0x78] sm:$0xff]
    %v2310 = vld [vmem:[#allocation14 + $0x80] sm:$0xff]
    %v2311 = vld [vmem:[#allocation14 + $0x88] sm:$0xf]
    %v2312 = vld [vmem:[#allocation14 + $0x8c] sm:$0xff]
    %v2313 = vld [vmem:[#allocation14 + $0x94] sm:$0xff]
    %v2314 = vld [vmem:[#allocation14 + $0x9c] sm:$0xff]
    %v2315 = vld [vmem:[#allocation14 + $0xa4] sm:$0xf]
    %v2316 = vld [vmem:[#allocation14 + $0xa8] sm:$0xff]
    %v2317 = vld [vmem:[#allocation14 + $0xb0] sm:$0xff]
    %v2318 = vld [vmem:[#allocation14 + $0xb8] sm:$0xff]
    %v2319 = vld [vmem:[#allocation14 + $0xc0] sm:$0xf]
    %v2320 = vld [vmem:[#allocation14 + $0xc4] sm:$0xff]
    %v2321 = vld [vmem:[#allocation14 + $0xcc] sm:$0xff]
    %v2322 = vld [vmem:[#allocation14 + $0xd4] sm:$0xff]
    %v2323 = vld [vmem:[#allocation14 + $0xdc] sm:$0xf]
    %v2324 = vld [vmem:[#allocation14 + $0xe0] sm:$0xff]
    %v2325 = vld [vmem:[#allocation14 + $0xe8] sm:$0xff]
    %v2326 = vld [vmem:[#allocation14 + $0xf0] sm:$0xff]
    %v2327 = vld [vmem:[#allocation14 + $0xf8] sm:$0xf]
    %v2328 = vld [vmem:[#allocation14 + $0xfc] sm:$0xff]
    %v2329 = vld [vmem:[#allocation14 + $0x104] sm:$0xff]
    %v2330 = vld [vmem:[#allocation14 + $0x10c] sm:$0xff]
    %v2331 = vld [vmem:[#allocation14 + $0x114] sm:$0xf]
    %v2332 = vld [vmem:[#allocation14 + $0x118] sm:$0xff]
    %v2333 = vld [vmem:[#allocation14 + $0x120] sm:$0xff]
    %v2334 = vld [vmem:[#allocation14 + $0x128] sm:$0xff]
    %v2335 = vld [vmem:[#allocation14 + $0x130] sm:$0xf]
    %v2336 = vld [vmem:[#allocation14 + $0x134] sm:$0xff]
    %v2337 = vld [vmem:[#allocation14 + $0x13c] sm:$0xff]
    %v2338 = vld [vmem:[#allocation14 + $0x144] sm:$0xff]
    %v2339 = vld [vmem:[#allocation14 + $0x14c] sm:$0xf]
    %v2340 = vld [vmem:[#allocation14 + $0x150] sm:$0xff]
    %v2341 = vld [vmem:[#allocation14 + $0x158] sm:$0xff]
    %v2342 = vld [vmem:[#allocation14 + $0x160] sm:$0xff]
    %v2343 = vld [vmem:[#allocation14 + $0x168] sm:$0xf]
    %v2344 = vld [vmem:[#allocation14 + $0x16c] sm:$0xff]
    %v2345 = vld [vmem:[#allocation14 + $0x174] sm:$0xff]
    %v2346 = vld [vmem:[#allocation14 + $0x17c] sm:$0xff]
    %v2347 = vld [vmem:[#allocation14 + $0x184] sm:$0xf]
    %v2348 = vld [vmem:[#allocation14 + $0x188] sm:$0xff]
    %v2349 = vld [vmem:[#allocation14 + $0x190] sm:$0xff]
    %v2350 = vld [vmem:[#allocation14 + $0x198] sm:$0xff]
    %v2351 = vld [vmem:[#allocation14 + $0x1a0] sm:$0xf]
    %v2352 = vld [vmem:[#allocation14 + $0x1a4] sm:$0xff]
    %v2353 = vld [vmem:[#allocation14 + $0x1ac] sm:$0xff]
    %v2354 = vld [vmem:[#allocation14 + $0x1b4] sm:$0xff]
    %v2355 = vld [vmem:[#allocation14 + $0x1bc] sm:$0xf]
    %v2356 = vld [vmem:[#allocation14 + $0x1c0] sm:$0xff]
    %v2357 = vld [vmem:[#allocation14 + $0x1c8] sm:$0xff]
    %v2358 = vld [vmem:[#allocation14 + $0x1d0] sm:$0xff]
    %v2359 = vld [vmem:[#allocation14 + $0x1d8] sm:$0xf]
    %v2360 = vld [vmem:[#allocation14 + $0x1dc] sm:$0xff]
    %v2361 = vld [vmem:[#allocation14 + $0x1e4] sm:$0xff]
    %v2362 = vld [vmem:[#allocation14 + $0x1ec] sm:$0xff]
    %v2363 = vld [vmem:[#allocation14 + $0x1f4] sm:$0xf]
    %v2364 = vld [vmem:[#allocation14 + $0x1f8] sm:$0xff]
    %v2365 = vld [vmem:[#allocation14 + $0x200] sm:$0xff]
    %v2366 = vld [vmem:[#allocation14 + $0x208] sm:$0xff]
    %v2367 = vld [vmem:[#allocation14 + $0x210] sm:$0xf]
    %v2368 = vld [vmem:[#allocation14 + $0x214] sm:$0xff]
    %v2369 = vld [vmem:[#allocation14 + $0x21c] sm:$0xff]
    %v2370 = vld [vmem:[#allocation14 + $0x224] sm:$0xff]
    %v2371 = vld [vmem:[#allocation14 + $0x22c] sm:$0xf]
    %v2372 = vld [vmem:[#allocation14 + $0x230] sm:$0xff]
    %v2373 = vld [vmem:[#allocation14 + $0x238] sm:$0xff]
    %v2374 = vld [vmem:[#allocation14 + $0x240] sm:$0xff]
    %v2375 = vld [vmem:[#allocation14 + $0x248] sm:$0xf]
    %v2376 = vld [vmem:[#allocation14 + $0x24c] sm:$0xff]
    %v2377 = vld [vmem:[#allocation14 + $0x254] sm:$0xff]
    %v2378 = vld [vmem:[#allocation14 + $0x25c] sm:$0xff]
    %v2379 = vld [vmem:[#allocation14 + $0x264] sm:$0xf]
    %v2380 = vld [vmem:[#allocation14 + $0x268] sm:$0xff]
    %v2381 = vld [vmem:[#allocation14 + $0x270] sm:$0xff]
    %v2382 = vld [vmem:[#allocation14 + $0x278] sm:$0xff]
    %v2383 = vld [vmem:[#allocation14 + $0x280] sm:$0xf]
    %v2384 = vld [vmem:[#allocation14 + $0x284] sm:$0xff]
    %v2385 = vld [vmem:[#allocation14 + $0x28c] sm:$0xff]
    %v2386 = vld [vmem:[#allocation14 + $0x294] sm:$0xff]
    %v2387 = vld [vmem:[#allocation14 + $0x29c] sm:$0xf]
    %v2388 = vld [vmem:[#allocation14 + $0x2a0] sm:$0xff]
    %v2389 = vld [vmem:[#allocation14 + $0x2a8] sm:$0xff]
    %v2390 = vld [vmem:[#allocation14 + $0x2b0] sm:$0xff]
    %v2391 = vld [vmem:[#allocation14 + $0x2b8] sm:$0xf]
    %v2392 = vld [vmem:[#allocation14 + $0x2bc] sm:$0xff]
    %v2393 = vld [vmem:[#allocation14 + $0x2c4] sm:$0xff]
    %v2394 = vld [vmem:[#allocation14 + $0x2cc] sm:$0xff]
    %v2395 = vld [vmem:[#allocation14 + $0x2d4] sm:$0xf]
    %v2396 = vld [vmem:[#allocation14 + $0x2d8] sm:$0xff]
    %v2397 = vld [vmem:[#allocation14 + $0x2e0] sm:$0xff]
    %v2398 = vld [vmem:[#allocation14 + $0x2e8] sm:$0xff]
    %v2399 = vld [vmem:[#allocation14 + $0x2f0] sm:$0xf]
    %v2400 = vld [vmem:[#allocation14 + $0x2f4] sm:$0xff]
    %v2401 = vld [vmem:[#allocation14 + $0x2fc] sm:$0xff]
    %v2402 = vld [vmem:[#allocation14 + $0x304] sm:$0xff]
    %v2403 = vld [vmem:[#allocation14 + $0x30c] sm:$0xf]
    %v2404 = vld [vmem:[#allocation14 + $0x310] sm:$0xff]
    %v2405 = vld [vmem:[#allocation14 + $0x318] sm:$0xff]
    %v2406 = vld [vmem:[#allocation14 + $0x320] sm:$0xff]
    %v2407 = vld [vmem:[#allocation14 + $0x328] sm:$0xf]
    %v2408 = vld [vmem:[#allocation14 + $0x32c] sm:$0xff]
    %v2409 = vld [vmem:[#allocation14 + $0x334] sm:$0xff]
    %v2410 = vld [vmem:[#allocation14 + $0x33c] sm:$0xff]
    %v2411 = vld [vmem:[#allocation14 + $0x344] sm:$0xf]
    %v2412 = vld [vmem:[#allocation14 + $0x348] sm:$0xff]
    %v2413 = vld [vmem:[#allocation14 + $0x350] sm:$0xff]
    %v2414 = vld [vmem:[#allocation14 + $0x358] sm:$0xff]
    %v2415 = vld [vmem:[#allocation14 + $0x360] sm:$0xf]
    %v2416 = vld [vmem:[#allocation14 + $0x364] sm:$0xff]
    %v2417 = vld [vmem:[#allocation14 + $0x36c] sm:$0xff]
    %v2418 = vld [vmem:[#allocation14 + $0x374] sm:$0xff]
    %v2419 = vld [vmem:[#allocation14 + $0x37c] sm:$0xf]
    %v2420 = vld [vmem:[#allocation14 + $0x380] sm:$0xff]
    %v2421 = vld [vmem:[#allocation14 + $0x388] sm:$0xff]
    %v2422 = vld [vmem:[#allocation14 + $0x390] sm:$0xff]
    %v2423 = vld [vmem:[#allocation14 + $0x398] sm:$0xf]
    %v2424 = vld [vmem:[#allocation14 + $0x39c] sm:$0xff]
    %v2425 = vld [vmem:[#allocation14 + $0x3a4] sm:$0xff]
    %v2426 = vld [vmem:[#allocation14 + $0x3ac] sm:$0xff]
    %v2427 = vld [vmem:[#allocation14 + $0x3b4] sm:$0xf]
    %v2428 = vld [vmem:[#allocation14 + $0x3b8] sm:$0xff]
    %v2429 = vld [vmem:[#allocation14 + $0x3c0] sm:$0xff]
    %v2430 = vld [vmem:[#allocation14 + $0x3c8] sm:$0xff]
    %v2431 = vld [vmem:[#allocation14 + $0x3d0] sm:$0xf]
    %v2432 = vld [vmem:[#allocation14 + $0x3d4] sm:$0xff]
    %v2433 = vld [vmem:[#allocation14 + $0x3dc] sm:$0xff]
    %v2434 = vld [vmem:[#allocation14 + $0x3e4] sm:$0xff]
    %v2435 = vld [vmem:[#allocation14 + $0x3ec] sm:$0xf]
    %v2436 = vld [vmem:[#allocation14 + $0x3f0] sm:$0xff]
    %v2437 = vld [vmem:[#allocation14 + $0x3f8] sm:$0xff]
    %v2438 = vld [vmem:[#allocation14 + $0x400] sm:$0xff]
    %v2439 = vld [vmem:[#allocation14 + $0x408] sm:$0xf]
    %v2440 = vld [vmem:[#allocation14 + $0x40c] sm:$0xff]
    %v2441 = vld [vmem:[#allocation14 + $0x414] sm:$0xff]
    %v2442 = vld [vmem:[#allocation14 + $0x41c] sm:$0xff]
    %v2443 = vld [vmem:[#allocation14 + $0x424] sm:$0xf]
    %v2444 = vld [vmem:[#allocation14 + $0x428] sm:$0xff]
    %v2445 = vld [vmem:[#allocation14 + $0x430] sm:$0xff]
    %v2446 = vld [vmem:[#allocation14 + $0x438] sm:$0xff]
    %v2447 = vld [vmem:[#allocation14 + $0x440] sm:$0xf]
    %v2448 = vld [vmem:[#allocation14 + $0x444] sm:$0xff]
    %v2449 = vld [vmem:[#allocation14 + $0x44c] sm:$0xff]
    %v2450 = vld [vmem:[#allocation14 + $0x454] sm:$0xff]
    %v2451 = vld [vmem:[#allocation14 + $0x45c] sm:$0xf]
    %v2452 = vld [vmem:[#allocation14 + $0x460] sm:$0xff]
    %v2453 = vld [vmem:[#allocation14 + $0x468] sm:$0xff]
    %v2454 = vld [vmem:[#allocation14 + $0x470] sm:$0xff]
    %v2455 = vld [vmem:[#allocation14 + $0x478] sm:$0xf]
    %v2456 = vld [vmem:[#allocation14 + $0x47c] sm:$0xff]
    %v2457 = vld [vmem:[#allocation14 + $0x484] sm:$0xff]
    %v2458 = vld [vmem:[#allocation14 + $0x48c] sm:$0xff]
    %v2459 = vld [vmem:[#allocation14 + $0x494] sm:$0xf]
    %v2460 = vld [vmem:[#allocation14 + $0x498] sm:$0xff]
    %v2461 = vld [vmem:[#allocation14 + $0x4a0] sm:$0xff]
    %v2462 = vld [vmem:[#allocation14 + $0x4a8] sm:$0xff]
    %v2463 = vld [vmem:[#allocation14 + $0x4b0] sm:$0xf]
    %v2464 = vld [vmem:[#allocation14 + $0x4b4] sm:$0xff]
    %v2465 = vld [vmem:[#allocation14 + $0x4bc] sm:$0xff]
    %v2466 = vld [vmem:[#allocation14 + $0x4c4] sm:$0xff]
    %v2467 = vld [vmem:[#allocation14 + $0x4cc] sm:$0xf]
    %v2468 = vld [vmem:[#allocation14 + $0x4d0] sm:$0xff]
    %v2469 = vld [vmem:[#allocation14 + $0x4d8] sm:$0xff]
    %v2470 = vld [vmem:[#allocation14 + $0x4e0] sm:$0xff]
    %v2471 = vld [vmem:[#allocation14 + $0x4e8] sm:$0xf]
    %v2472 = vld [vmem:[#allocation14 + $0x4ec] sm:$0xff]
    %v2473 = vld [vmem:[#allocation14 + $0x4f4] sm:$0xff]
    %v2474 = vld [vmem:[#allocation14 + $0x4fc] sm:$0xff]
    %v2475 = vld [vmem:[#allocation14 + $0x504] sm:$0xf]
    %v2476 = vld [vmem:[#allocation14 + $0x508] sm:$0xff]
    %v2477 = vld [vmem:[#allocation14 + $0x510] sm:$0xff]
    %v2478 = vld [vmem:[#allocation14 + $0x518] sm:$0xff]
    %v2479 = vld [vmem:[#allocation14 + $0x520] sm:$0xf]
    %v2480 = vld [vmem:[#allocation14 + $0x524] sm:$0xff]
    %v2481 = vld [vmem:[#allocation14 + $0x52c] sm:$0xff]
    %v2482 = vld [vmem:[#allocation14 + $0x534] sm:$0xff]
    %v2483 = vld [vmem:[#allocation14 + $0x53c] sm:$0xf]
    %v2484 = vld [vmem:[%s8] ss:$4 sm:$0xff]
    %s2485 = scalar_lea.vmem %s8, 1
    %v2486 = vld [vmem:[%s2485] ss:$4 sm:$0xff]
    %s2487 = scalar_lea.vmem %s8, 2
    %v2488 = vld [vmem:[%s2487] ss:$4 sm:$0xff]
    %v2490 = vlaneseq
    %v2491 = vshrl.u32 %v2490, 7
    %v2492 = vsub.s32 0, %v2491
    %v2493 = vrot.slane %v2484, %v2492
    %v2494 = vlaneseq
    %v2495 = vshrl.u32 %v2494, 7
    %v2496 = vsub.s32 1, %v2495
    %v2497 = vrot.slane %v2484, %v2496
    %v2498 = vlaneseq
    %v2499 = vshrl.u32 %v2498, 7
    %v2500 = vsub.s32 2, %v2499
    %v2501 = vrot.slane %v2484, %v2500
    %v2502 = vlaneseq
    %v2503 = vshrl.u32 %v2502, 7
    %v2504 = vsub.s32 3, %v2503
    %v2505 = vrot.slane %v2484, %v2504
    %v2506 = vlaneseq
    %v2507 = vshrl.u32 %v2506, 7
    %v2508 = vsub.s32 4, %v2507
    %v2509 = vrot.slane %v2484, %v2508
    %v2510 = vlaneseq
    %v2511 = vshrl.u32 %v2510, 7
    %v2512 = vsub.s32 5, %v2511
    %v2513 = vrot.slane %v2484, %v2512
    %v2514 = vlaneseq
    %v2515 = vshrl.u32 %v2514, 7
    %v2516 = vsub.s32 6, %v2515
    %v2517 = vrot.slane %v2484, %v2516
    %v2717 = vunpack.c.l.b16 %v2292
    %v2718 = vunpack.c.h.b16 %v2292
    %v2719 = vunpack.c.l.b16 %v2293
    %v2720 = vunpack.c.h.b16 %v2293
    %v2721 = vunpack.c.l.b16 %v2294
    %v2722 = vunpack.c.h.b16 %v2294
    %v2723 = vunpack.c.l.b16 %v2295
    %v2724 = vunpack.c.l.b16 %v2296
    %v2725 = vunpack.c.h.b16 %v2296
    %v2726 = vunpack.c.l.b16 %v2297
    %v2727 = vunpack.c.h.b16 %v2297
    %v2728 = vunpack.c.l.b16 %v2298
    %v2729 = vunpack.c.h.b16 %v2298
    %v2730 = vunpack.c.l.b16 %v2299
    %v2731 = vunpack.c.l.b16 %v2300
    %v2732 = vunpack.c.h.b16 %v2300
    %v2733 = vunpack.c.l.b16 %v2301
    %v2734 = vunpack.c.h.b16 %v2301
    %v2735 = vunpack.c.l.b16 %v2302
    %v2736 = vunpack.c.h.b16 %v2302
    %v2737 = vunpack.c.l.b16 %v2303
    %v2738 = vunpack.c.l.b16 %v2304
    %v2739 = vunpack.c.h.b16 %v2304
    %v2740 = vunpack.c.l.b16 %v2305
    %v2741 = vunpack.c.h.b16 %v2305
    %v2742 = vunpack.c.l.b16 %v2306
    %v2743 = vunpack.c.h.b16 %v2306
    %v2744 = vunpack.c.l.b16 %v2307
    %v2745 = vunpack.c.l.b16 %v2308
    %v2746 = vunpack.c.h.b16 %v2308
    %v2747 = vunpack.c.l.b16 %v2309
    %v2748 = vunpack.c.h.b16 %v2309
    %v2749 = vunpack.c.l.b16 %v2310
    %v2750 = vunpack.c.h.b16 %v2310
    %v2751 = vunpack.c.l.b16 %v2311
    %v2752 = vunpack.c.l.b16 %v2312
    %v2753 = vunpack.c.h.b16 %v2312
    %v2754 = vunpack.c.l.b16 %v2313
    %v2755 = vunpack.c.h.b16 %v2313
    %v2756 = vunpack.c.l.b16 %v2314
    %v2757 = vunpack.c.h.b16 %v2314
    %v2758 = vunpack.c.l.b16 %v2315
    %v2759 = vunpack.c.l.b16 %v2316
    %v2760 = vunpack.c.h.b16 %v2316
    %v2761 = vunpack.c.l.b16 %v2317
    %v2762 = vunpack.c.h.b16 %v2317
    %v2763 = vunpack.c.l.b16 %v2318
    %v2764 = vunpack.c.h.b16 %v2318
    %v2765 = vunpack.c.l.b16 %v2319
    %v2766 = vunpack.c.l.b16 %v2320
    %v2767 = vunpack.c.h.b16 %v2320
    %v2768 = vunpack.c.l.b16 %v2321
    %v2769 = vunpack.c.h.b16 %v2321
    %v2770 = vunpack.c.l.b16 %v2322
    %v2771 = vunpack.c.h.b16 %v2322
    %v2772 = vunpack.c.l.b16 %v2323
    %v2773 = vunpack.c.l.b16 %v2324
    %v2774 = vunpack.c.h.b16 %v2324
    %v2775 = vunpack.c.l.b16 %v2325
    %v2776 = vunpack.c.h.b16 %v2325
    %v2777 = vunpack.c.l.b16 %v2326
    %v2778 = vunpack.c.h.b16 %v2326
    %v2779 = vunpack.c.l.b16 %v2327
    %v2780 = vunpack.c.l.b16 %v2328
    %v2781 = vunpack.c.h.b16 %v2328
    %v2782 = vunpack.c.l.b16 %v2329
    %v2783 = vunpack.c.h.b16 %v2329
    %v2784 = vunpack.c.l.b16 %v2330
    %v2785 = vunpack.c.h.b16 %v2330
    %v2786 = vunpack.c.l.b16 %v2331
    %v2787 = vunpack.c.l.b16 %v2332
    %v2788 = vunpack.c.h.b16 %v2332
    %v2789 = vunpack.c.l.b16 %v2333
    %v2790 = vunpack.c.h.b16 %v2333
    %v2791 = vunpack.c.l.b16 %v2334
    %v2792 = vunpack.c.h.b16 %v2334
    %v2793 = vunpack.c.l.b16 %v2335
    %v2794 = vunpack.c.l.b16 %v2336
    %v2795 = vunpack.c.h.b16 %v2336
    %v2796 = vunpack.c.l.b16 %v2337
    %v2797 = vunpack.c.h.b16 %v2337
    %v2798 = vunpack.c.l.b16 %v2338
    %v2799 = vunpack.c.h.b16 %v2338
    %v2800 = vunpack.c.l.b16 %v2339
    %v2801 = vunpack.c.l.b16 %v2340
    %v2802 = vunpack.c.h.b16 %v2340
    %v2803 = vunpack.c.l.b16 %v2341
    %v2804 = vunpack.c.h.b16 %v2341
    %v2805 = vunpack.c.l.b16 %v2342
    %v2806 = vunpack.c.h.b16 %v2342
    %v2807 = vunpack.c.l.b16 %v2343
    %v2808 = vunpack.c.l.b16 %v2344
    %v2809 = vunpack.c.h.b16 %v2344
    %v2810 = vunpack.c.l.b16 %v2345
    %v2811 = vunpack.c.h.b16 %v2345
    %v2812 = vunpack.c.l.b16 %v2346
    %v2813 = vunpack.c.h.b16 %v2346
    %v2814 = vunpack.c.l.b16 %v2347
    %v2815 = vunpack.c.l.b16 %v2348
    %v2816 = vunpack.c.h.b16 %v2348
    %v2817 = vunpack.c.l.b16 %v2349
    %v2818 = vunpack.c.h.b16 %v2349
    %v2819 = vunpack.c.l.b16 %v2350
    %v2820 = vunpack.c.h.b16 %v2350
    %v2821 = vunpack.c.l.b16 %v2351
    %v2822 = vunpack.c.l.b16 %v2352
    %v2823 = vunpack.c.h.b16 %v2352
    %v2824 = vunpack.c.l.b16 %v2353
    %v2825 = vunpack.c.h.b16 %v2353
    %v2826 = vunpack.c.l.b16 %v2354
    %v2827 = vunpack.c.h.b16 %v2354
    %v2828 = vunpack.c.l.b16 %v2355
    %v2829 = vunpack.c.l.b16 %v2356
    %v2830 = vunpack.c.h.b16 %v2356
    %v2831 = vunpack.c.l.b16 %v2357
    %v2832 = vunpack.c.h.b16 %v2357
    %v2833 = vunpack.c.l.b16 %v2358
    %v2834 = vunpack.c.h.b16 %v2358
    %v2835 = vunpack.c.l.b16 %v2359
    %v2836 = vunpack.c.l.b16 %v2360
    %v2837 = vunpack.c.h.b16 %v2360
    %v2838 = vunpack.c.l.b16 %v2361
    %v2839 = vunpack.c.h.b16 %v2361
    %v2840 = vunpack.c.l.b16 %v2362
    %v2841 = vunpack.c.h.b16 %v2362
    %v2842 = vunpack.c.l.b16 %v2363
    %v2843 = vunpack.c.l.b16 %v2364
    %v2844 = vunpack.c.h.b16 %v2364
    %v2845 = vunpack.c.l.b16 %v2365
    %v2846 = vunpack.c.h.b16 %v2365
    %v2847 = vunpack.c.l.b16 %v2366
    %v2848 = vunpack.c.h.b16 %v2366
    %v2849 = vunpack.c.l.b16 %v2367
    %v2850 = vunpack.c.l.b16 %v2368
    %v2851 = vunpack.c.h.b16 %v2368
    %v2852 = vunpack.c.l.b16 %v2369
    %v2853 = vunpack.c.h.b16 %v2369
    %v2854 = vunpack.c.l.b16 %v2370
    %v2855 = vunpack.c.h.b16 %v2370
    %v2856 = vunpack.c.l.b16 %v2371
    %v2857 = vunpack.c.l.b16 %v2372
    %v2858 = vunpack.c.h.b16 %v2372
    %v2859 = vunpack.c.l.b16 %v2373
    %v2860 = vunpack.c.h.b16 %v2373
    %v2861 = vunpack.c.l.b16 %v2374
    %v2862 = vunpack.c.h.b16 %v2374
    %v2863 = vunpack.c.l.b16 %v2375
    %v2864 = vunpack.c.l.b16 %v2376
    %v2865 = vunpack.c.h.b16 %v2376
    %v2866 = vunpack.c.l.b16 %v2377
    %v2867 = vunpack.c.h.b16 %v2377
    %v2868 = vunpack.c.l.b16 %v2378
    %v2869 = vunpack.c.h.b16 %v2378
    %v2870 = vunpack.c.l.b16 %v2379
    %v2871 = vunpack.c.l.b16 %v2380
    %v2872 = vunpack.c.h.b16 %v2380
    %v2873 = vunpack.c.l.b16 %v2381
    %v2874 = vunpack.c.h.b16 %v2381
    %v2875 = vunpack.c.l.b16 %v2382
    %v2876 = vunpack.c.h.b16 %v2382
    %v2877 = vunpack.c.l.b16 %v2383
    %v2878 = vunpack.c.l.b16 %v2384
    %v2879 = vunpack.c.h.b16 %v2384
    %v2880 = vunpack.c.l.b16 %v2385
    %v2881 = vunpack.c.h.b16 %v2385
    %v2882 = vunpack.c.l.b16 %v2386
    %v2883 = vunpack.c.h.b16 %v2386
    %v2884 = vunpack.c.l.b16 %v2387
    %v2885 = vunpack.c.l.b16 %v2388
    %v2886 = vunpack.c.h.b16 %v2388
    %v2887 = vunpack.c.l.b16 %v2389
    %v2888 = vunpack.c.h.b16 %v2389
    %v2889 = vunpack.c.l.b16 %v2390
    %v2890 = vunpack.c.h.b16 %v2390
    %v2891 = vunpack.c.l.b16 %v2391
    %v2892 = vunpack.c.l.b16 %v2392
    %v2893 = vunpack.c.h.b16 %v2392
    %v2894 = vunpack.c.l.b16 %v2393
    %v2895 = vunpack.c.h.b16 %v2393
    %v2896 = vunpack.c.l.b16 %v2394
    %v2897 = vunpack.c.h.b16 %v2394
    %v2898 = vunpack.c.l.b16 %v2395
    %v2899 = vunpack.c.l.b16 %v2396
    %v2900 = vunpack.c.h.b16 %v2396
    %v2901 = vunpack.c.l.b16 %v2397
    %v2902 = vunpack.c.h.b16 %v2397
    %v2903 = vunpack.c.l.b16 %v2398
    %v2904 = vunpack.c.h.b16 %v2398
    %v2905 = vunpack.c.l.b16 %v2399
    %v2906 = vunpack.c.l.b16 %v2400
    %v2907 = vunpack.c.h.b16 %v2400
    %v2908 = vunpack.c.l.b16 %v2401
    %v2909 = vunpack.c.h.b16 %v2401
    %v2910 = vunpack.c.l.b16 %v2402
    %v2911 = vunpack.c.h.b16 %v2402
    %v2912 = vunpack.c.l.b16 %v2403
    %v2913 = vunpack.c.l.b16 %v2404
    %v2914 = vunpack.c.h.b16 %v2404
    %v2915 = vunpack.c.l.b16 %v2405
    %v2916 = vunpack.c.h.b16 %v2405
    %v2917 = vunpack.c.l.b16 %v2406
    %v2918 = vunpack.c.h.b16 %v2406
    %v2919 = vunpack.c.l.b16 %v2407
    %v2920 = vunpack.c.l.b16 %v2408
    %v2921 = vunpack.c.h.b16 %v2408
    %v2922 = vunpack.c.l.b16 %v2409
    %v2923 = vunpack.c.h.b16 %v2409
    %v2924 = vunpack.c.l.b16 %v2410
    %v2925 = vunpack.c.h.b16 %v2410
    %v2926 = vunpack.c.l.b16 %v2411
    %v2927 = vunpack.c.l.b16 %v2412
    %v2928 = vunpack.c.h.b16 %v2412
    %v2929 = vunpack.c.l.b16 %v2413
    %v2930 = vunpack.c.h.b16 %v2413
    %v2931 = vunpack.c.l.b16 %v2414
    %v2932 = vunpack.c.h.b16 %v2414
    %v2933 = vunpack.c.l.b16 %v2415
    %v2934 = vunpack.c.l.b16 %v2416
    %v2935 = vunpack.c.h.b16 %v2416
    %v2936 = vunpack.c.l.b16 %v2417
    %v2937 = vunpack.c.h.b16 %v2417
    %v2938 = vunpack.c.l.b16 %v2418
    %v2939 = vunpack.c.h.b16 %v2418
    %v2940 = vunpack.c.l.b16 %v2419
    %v2941 = vunpack.c.l.b16 %v2420
    %v2942 = vunpack.c.h.b16 %v2420
    %v2943 = vunpack.c.l.b16 %v2421
    %v2944 = vunpack.c.h.b16 %v2421
    %v2945 = vunpack.c.l.b16 %v2422
    %v2946 = vunpack.c.h.b16 %v2422
    %v2947 = vunpack.c.l.b16 %v2423
    %v2948 = vunpack.c.l.b16 %v2424
    %v2949 = vunpack.c.h.b16 %v2424
    %v2950 = vunpack.c.l.b16 %v2425
    %v2951 = vunpack.c.h.b16 %v2425
    %v2952 = vunpack.c.l.b16 %v2426
    %v2953 = vunpack.c.h.b16 %v2426
    %v2954 = vunpack.c.l.b16 %v2427
    %v2955 = vunpack.c.l.b16 %v2428
    %v2956 = vunpack.c.h.b16 %v2428
    %v2957 = vunpack.c.l.b16 %v2429
    %v2958 = vunpack.c.h.b16 %v2429
    %v2959 = vunpack.c.l.b16 %v2430
    %v2960 = vunpack.c.h.b16 %v2430
    %v2961 = vunpack.c.l.b16 %v2431
    %v2962 = vunpack.c.l.b16 %v2432
    %v2963 = vunpack.c.h.b16 %v2432
    %v2964 = vunpack.c.l.b16 %v2433
    %v2965 = vunpack.c.h.b16 %v2433
    %v2966 = vunpack.c.l.b16 %v2434
    %v2967 = vunpack.c.h.b16 %v2434
    %v2968 = vunpack.c.l.b16 %v2435
    %v2969 = vunpack.c.l.b16 %v2436
    %v2970 = vunpack.c.h.b16 %v2436
    %v2971 = vunpack.c.l.b16 %v2437
    %v2972 = vunpack.c.h.b16 %v2437
    %v2973 = vunpack.c.l.b16 %v2438
    %v2974 = vunpack.c.h.b16 %v2438
    %v2975 = vunpack.c.l.b16 %v2439
    %v2976 = vunpack.c.l.b16 %v2440
    %v2977 = vunpack.c.h.b16 %v2440
    %v2978 = vunpack.c.l.b16 %v2441
    %v2979 = vunpack.c.h.b16 %v2441
    %v2980 = vunpack.c.l.b16 %v2442
    %v2981 = vunpack.c.h.b16 %v2442
    %v2982 = vunpack.c.l.b16 %v2443
    %v2983 = vunpack.c.l.b16 %v2444
    %v2984 = vunpack.c.h.b16 %v2444
    %v2985 = vunpack.c.l.b16 %v2445
    %v2986 = vunpack.c.h.b16 %v2445
    %v2987 = vunpack.c.l.b16 %v2446
    %v2988 = vunpack.c.h.b16 %v2446
    %v2989 = vunpack.c.l.b16 %v2447
    %v2990 = vunpack.c.l.b16 %v2448
    %v2991 = vunpack.c.h.b16 %v2448
    %v2992 = vunpack.c.l.b16 %v2449
    %v2993 = vunpack.c.h.b16 %v2449
    %v2994 = vunpack.c.l.b16 %v2450
    %v2995 = vunpack.c.h.b16 %v2450
    %v2996 = vunpack.c.l.b16 %v2451
    %v2997 = vunpack.c.l.b16 %v2452
    %v2998 = vunpack.c.h.b16 %v2452
    %v2999 = vunpack.c.l.b16 %v2453
    %v3000 = vunpack.c.h.b16 %v2453
    %v3001 = vunpack.c.l.b16 %v2454
    %v3002 = vunpack.c.h.b16 %v2454
    %v3003 = vunpack.c.l.b16 %v2455
    %v3004 = vunpack.c.l.b16 %v2456
    %v3005 = vunpack.c.h.b16 %v2456
    %v3006 = vunpack.c.l.b16 %v2457
    %v3007 = vunpack.c.h.b16 %v2457
    %v3008 = vunpack.c.l.b16 %v2458
    %v3009 = vunpack.c.h.b16 %v2458
    %v3010 = vunpack.c.l.b16 %v2459
    %v3011 = vunpack.c.l.b16 %v2460
    %v3012 = vunpack.c.h.b16 %v2460
    %v3013 = vunpack.c.l.b16 %v2461
    %v3014 = vunpack.c.h.b16 %v2461
    %v3015 = vunpack.c.l.b16 %v2462
    %v3016 = vunpack.c.h.b16 %v2462
    %v3017 = vunpack.c.l.b16 %v2463
    %v3018 = vunpack.c.l.b16 %v2464
    %v3019 = vunpack.c.h.b16 %v2464
    %v3020 = vunpack.c.l.b16 %v2465
    %v3021 = vunpack.c.h.b16 %v2465
    %v3022 = vunpack.c.l.b16 %v2466
    %v3023 = vunpack.c.h.b16 %v2466
    %v3024 = vunpack.c.l.b16 %v2467
    %v3025 = vunpack.c.l.b16 %v2468
    %v3026 = vunpack.c.h.b16 %v2468
    %v3027 = vunpack.c.l.b16 %v2469
    %v3028 = vunpack.c.h.b16 %v2469
    %v3029 = vunpack.c.l.b16 %v2470
    %v3030 = vunpack.c.h.b16 %v2470
    %v3031 = vunpack.c.l.b16 %v2471
    %v3032 = vunpack.c.l.b16 %v2472
    %v3033 = vunpack.c.h.b16 %v2472
    %v3034 = vunpack.c.l.b16 %v2473
    %v3035 = vunpack.c.h.b16 %v2473
    %v3036 = vunpack.c.l.b16 %v2474
    %v3037 = vunpack.c.h.b16 %v2474
    %v3038 = vunpack.c.l.b16 %v2475
    %v3039 = vunpack.c.l.b16 %v2476
    %v3040 = vunpack.c.h.b16 %v2476
    %v3041 = vunpack.c.l.b16 %v2477
    %v3042 = vunpack.c.h.b16 %v2477
    %v3043 = vunpack.c.l.b16 %v2478
    %v3044 = vunpack.c.h.b16 %v2478
    %v3045 = vunpack.c.l.b16 %v2479
    %v3046 = vunpack.c.l.b16 %v2480
    %v3047 = vunpack.c.h.b16 %v2480
    %v3048 = vunpack.c.l.b16 %v2481
    %v3049 = vunpack.c.h.b16 %v2481
    %v3050 = vunpack.c.l.b16 %v2482
    %v3051 = vunpack.c.h.b16 %v2482
    %v3052 = vunpack.c.l.b16 %v2483
    %v3053 = vpack.c.b16 %v2724, %v2717
    %v3054 = vpack.c.b16 %v2725, %v2718
    %v3055 = vpack.c.b16 %v2726, %v2719
    %v3056 = vpack.c.b16 %v2727, %v2720
    %v3057 = vpack.c.b16 %v2728, %v2721
    %v3058 = vpack.c.b16 %v2729, %v2722
    %v3059 = vpack.c.b16 %v2730, %v2723
    %v3060 = vpack.c.b16 %v2738, %v2731
    %v3061 = vpack.c.b16 %v2739, %v2732
    %v3062 = vpack.c.b16 %v2740, %v2733
    %v3063 = vpack.c.b16 %v2741, %v2734
    %v3064 = vpack.c.b16 %v2742, %v2735
    %v3065 = vpack.c.b16 %v2743, %v2736
    %v3066 = vpack.c.b16 %v2744, %v2737
    %v3067 = vpack.c.b16 %v2752, %v2745
    %v3068 = vpack.c.b16 %v2753, %v2746
    %v3069 = vpack.c.b16 %v2754, %v2747
    %v3070 = vpack.c.b16 %v2755, %v2748
    %v3071 = vpack.c.b16 %v2756, %v2749
    %v3072 = vpack.c.b16 %v2757, %v2750
    %v3073 = vpack.c.b16 %v2758, %v2751
    %v3074 = vpack.c.b16 %v2766, %v2759
    %v3075 = vpack.c.b16 %v2767, %v2760
    %v3076 = vpack.c.b16 %v2768, %v2761
    %v3077 = vpack.c.b16 %v2769, %v2762
    %v3078 = vpack.c.b16 %v2770, %v2763
    %v3079 = vpack.c.b16 %v2771, %v2764
    %v3080 = vpack.c.b16 %v2772, %v2765
    %v3081 = vpack.c.b16 %v2780, %v2773
    %v3082 = vpack.c.b16 %v2781, %v2774
    %v3083 = vpack.c.b16 %v2782, %v2775
    %v3084 = vpack.c.b16 %v2783, %v2776
    %v3085 = vpack.c.b16 %v2784, %v2777
    %v3086 = vpack.c.b16 %v2785, %v2778
    %v3087 = vpack.c.b16 %v2786, %v2779
    %v3088 = vpack.c.b16 %v2794, %v2787
    %v3089 = vpack.c.b16 %v2795, %v2788
    %v3090 = vpack.c.b16 %v2796, %v2789
    %v3091 = vpack.c.b16 %v2797, %v2790
    %v3092 = vpack.c.b16 %v2798, %v2791
    %v3093 = vpack.c.b16 %v2799, %v2792
    %v3094 = vpack.c.b16 %v2800, %v2793
    %v3095 = vpack.c.b16 %v2808, %v2801
    %v3096 = vpack.c.b16 %v2809, %v2802
    %v3097 = vpack.c.b16 %v2810, %v2803
    %v3098 = vpack.c.b16 %v2811, %v2804
    %v3099 = vpack.c.b16 %v2812, %v2805
    %v3100 = vpack.c.b16 %v2813, %v2806
    %v3101 = vpack.c.b16 %v2814, %v2807
    %v3102 = vpack.c.b16 %v2822, %v2815
    %v3103 = vpack.c.b16 %v2823, %v2816
    %v3104 = vpack.c.b16 %v2824, %v2817
    %v3105 = vpack.c.b16 %v2825, %v2818
    %v3106 = vpack.c.b16 %v2826, %v2819
    %v3107 = vpack.c.b16 %v2827, %v2820
    %v3108 = vpack.c.b16 %v2828, %v2821
    %v3109 = vpack.c.b16 %v2836, %v2829
    %v3110 = vpack.c.b16 %v2837, %v2830
    %v3111 = vpack.c.b16 %v2838, %v2831
    %v3112 = vpack.c.b16 %v2839, %v2832
    %v3113 = vpack.c.b16 %v2840, %v2833
    %v3114 = vpack.c.b16 %v2841, %v2834
    %v3115 = vpack.c.b16 %v2842, %v2835
    %v3116 = vpack.c.b16 %v2850, %v2843
    %v3117 = vpack.c.b16 %v2851, %v2844
    %v3118 = vpack.c.b16 %v2852, %v2845
    %v3119 = vpack.c.b16 %v2853, %v2846
    %v3120 = vpack.c.b16 %v2854, %v2847
    %v3121 = vpack.c.b16 %v2855, %v2848
    %v3122 = vpack.c.b16 %v2856, %v2849
    %v3123 = vpack.c.b16 %v2864, %v2857
    %v3124 = vpack.c.b16 %v2865, %v2858
    %v3125 = vpack.c.b16 %v2866, %v2859
    %v3126 = vpack.c.b16 %v2867, %v2860
    %v3127 = vpack.c.b16 %v2868, %v2861
    %v3128 = vpack.c.b16 %v2869, %v2862
    %v3129 = vpack.c.b16 %v2870, %v2863
    %v3130 = vpack.c.b16 %v2878, %v2871
    %v3131 = vpack.c.b16 %v2879, %v2872
    %v3132 = vpack.c.b16 %v2880, %v2873
    %v3133 = vpack.c.b16 %v2881, %v2874
    %v3134 = vpack.c.b16 %v2882, %v2875
    %v3135 = vpack.c.b16 %v2883, %v2876
    %v3136 = vpack.c.b16 %v2884, %v2877
    %v3137 = vpack.c.b16 %v2892, %v2885
    %v3138 = vpack.c.b16 %v2893, %v2886
    %v3139 = vpack.c.b16 %v2894, %v2887
    %v3140 = vpack.c.b16 %v2895, %v2888
    %v3141 = vpack.c.b16 %v2896, %v2889
    %v3142 = vpack.c.b16 %v2897, %v2890
    %v3143 = vpack.c.b16 %v2898, %v2891
    %v3144 = vpack.c.b16 %v2906, %v2899
    %v3145 = vpack.c.b16 %v2907, %v2900
    %v3146 = vpack.c.b16 %v2908, %v2901
    %v3147 = vpack.c.b16 %v2909, %v2902
    %v3148 = vpack.c.b16 %v2910, %v2903
    %v3149 = vpack.c.b16 %v2911, %v2904
    %v3150 = vpack.c.b16 %v2912, %v2905
    %v3151 = vpack.c.b16 %v2920, %v2913
    %v3152 = vpack.c.b16 %v2921, %v2914
    %v3153 = vpack.c.b16 %v2922, %v2915
    %v3154 = vpack.c.b16 %v2923, %v2916
    %v3155 = vpack.c.b16 %v2924, %v2917
    %v3156 = vpack.c.b16 %v2925, %v2918
    %v3157 = vpack.c.b16 %v2926, %v2919
    %v3158 = vpack.c.b16 %v2934, %v2927
    %v3159 = vpack.c.b16 %v2935, %v2928
    %v3160 = vpack.c.b16 %v2936, %v2929
    %v3161 = vpack.c.b16 %v2937, %v2930
    %v3162 = vpack.c.b16 %v2938, %v2931
    %v3163 = vpack.c.b16 %v2939, %v2932
    %v3164 = vpack.c.b16 %v2940, %v2933
    %v3165 = vpack.c.b16 %v2948, %v2941
    %v3166 = vpack.c.b16 %v2949, %v2942
    %v3167 = vpack.c.b16 %v2950, %v2943
    %v3168 = vpack.c.b16 %v2951, %v2944
    %v3169 = vpack.c.b16 %v2952, %v2945
    %v3170 = vpack.c.b16 %v2953, %v2946
    %v3171 = vpack.c.b16 %v2954, %v2947
    %v3172 = vpack.c.b16 %v2962, %v2955
    %v3173 = vpack.c.b16 %v2963, %v2956
    %v3174 = vpack.c.b16 %v2964, %v2957
    %v3175 = vpack.c.b16 %v2965, %v2958
    %v3176 = vpack.c.b16 %v2966, %v2959
    %v3177 = vpack.c.b16 %v2967, %v2960
    %v3178 = vpack.c.b16 %v2968, %v2961
    %v3179 = vpack.c.b16 %v2976, %v2969
    %v3180 = vpack.c.b16 %v2977, %v2970
    %v3181 = vpack.c.b16 %v2978, %v2971
    %v3182 = vpack.c.b16 %v2979, %v2972
    %v3183 = vpack.c.b16 %v2980, %v2973
    %v3184 = vpack.c.b16 %v2981, %v2974
    %v3185 = vpack.c.b16 %v2982, %v2975
    %v3186 = vpack.c.b16 %v2990, %v2983
    %v3187 = vpack.c.b16 %v2991, %v2984
    %v3188 = vpack.c.b16 %v2992, %v2985
    %v3189 = vpack.c.b16 %v2993, %v2986
    %v3190 = vpack.c.b16 %v2994, %v2987
    %v3191 = vpack.c.b16 %v2995, %v2988
    %v3192 = vpack.c.b16 %v2996, %v2989
    %v3193 = vpack.c.b16 %v3004, %v2997
    %v3194 = vpack.c.b16 %v3005, %v2998
    %v3195 = vpack.c.b16 %v3006, %v2999
    %v3196 = vpack.c.b16 %v3007, %v3000
    %v3197 = vpack.c.b16 %v3008, %v3001
    %v3198 = vpack.c.b16 %v3009, %v3002
    %v3199 = vpack.c.b16 %v3010, %v3003
    %v3200 = vpack.c.b16 %v3018, %v3011
    %v3201 = vpack.c.b16 %v3019, %v3012
    %v3202 = vpack.c.b16 %v3020, %v3013
    %v3203 = vpack.c.b16 %v3021, %v3014
    %v3204 = vpack.c.b16 %v3022, %v3015
    %v3205 = vpack.c.b16 %v3023, %v3016
    %v3206 = vpack.c.b16 %v3024, %v3017
    %v3207 = vpack.c.b16 %v3032, %v3025
    %v3208 = vpack.c.b16 %v3033, %v3026
    %v3209 = vpack.c.b16 %v3034, %v3027
    %v3210 = vpack.c.b16 %v3035, %v3028
    %v3211 = vpack.c.b16 %v3036, %v3029
    %v3212 = vpack.c.b16 %v3037, %v3030
    %v3213 = vpack.c.b16 %v3038, %v3031
    %v3214 = vpack.c.b16 %v3046, %v3039
    %v3215 = vpack.c.b16 %v3047, %v3040
    %v3216 = vpack.c.b16 %v3048, %v3041
    %v3217 = vpack.c.b16 %v3049, %v3042
    %v3218 = vpack.c.b16 %v3050, %v3043
    %v3219 = vpack.c.b16 %v3051, %v3044
    %v3220 = vpack.c.b16 %v3052, %v3045
    %3389 = vmatprep.subr.bf16.mxu0 %v3054
    %3390 = vmatpush1.bf16.msra.mxu0 %v3053
    %3391 = vmatprep.subr.bf16.mxu0 %v3061
    %3392 = vmatpush1.bf16.msra.mxu0 %v3060
    %3393 = vmatprep.subr.bf16.mxu0 %v3068
    %3394 = vmatpush1.bf16.msra.mxu0 %v3067
    %3395 = vmatprep.subr.bf16.mxu0 %v3075
    %3396 = vmatpush1.bf16.msra.mxu0 %v3074
    %3397 = vmatprep.subr.bf16.mxu0 %v3082
    %3398 = vmatpush1.bf16.msra.mxu0 %v3081
    %3399 = vmatprep.subr.bf16.mxu0 %v3089
    %3400 = vmatpush1.bf16.msra.mxu0 %v3088
    %3401 = vmatprep.subr.bf16.mxu0 %v3096
    %3402 = vmatpush1.bf16.msra.mxu0 %v3095
    %3403 = vmatprep.subr.bf16.mxu0 %v3103
    %3404 = vmatpush1.bf16.msra.mxu0 %v3102
    %3405 = vmatprep.subr.bf16.mxu0 %v3110
    %3406 = vmatpush1.bf16.msra.mxu0 %v3109
    %3407 = vmatprep.subr.bf16.mxu0 %v3117
    %3408 = vmatpush1.bf16.msra.mxu0 %v3116
    %3409 = vmatprep.subr.bf16.mxu0 %v3124
    %3410 = vmatpush1.bf16.msra.mxu0 %v3123
    %3411 = vmatprep.subr.bf16.mxu0 %v3131
    %3412 = vmatpush1.bf16.msra.mxu0 %v3130
    %3413 = vmatprep.subr.bf16.mxu0 %v3138
    %3414 = vmatpush1.bf16.msra.mxu0 %v3137
    %3415 = vmatprep.subr.bf16.mxu0 %v3145
    %3416 = vmatpush1.bf16.msra.mxu0 %v3144
    %3417 = vmatprep.subr.bf16.mxu0 %v3152
    %3418 = vmatpush1.bf16.msra.mxu0 %v3151
    %3419 = vmatprep.subr.bf16.mxu0 %v3159
    %3420 = vmatpush1.bf16.msra.mxu0 %v3158
    %3421 = vmatprep.mubr.bf16.mxu0 %v2290
    %3422 = vmatmul.mubr.bf16.gmra.mrb[0].mxu0 %v2289
    %v3423 = vpop.f32.mrb[0].mxu0
    %v3424 = vadd.f32 %v2493, %v3423
    %v3425 = vpop.f32.mrb[0].mxu0
    %v3426 = vadd.f32 %v2497, %v3425
    %v3427 = vpop.f32.mrb[0].mxu0
    %v3428 = vpop.f32.mrb[0].mxu0
    %3429 = vdwg.mxu0
    %3430 = vmatprep.subr.bf16.mxu0 %v3166
    %3431 = vmatpush1.bf16.msra.mxu0 %v3165
    %3432 = vmatprep.subr.bf16.mxu0 %v3173
    %3433 = vmatpush1.bf16.msra.mxu0 %v3172
    %3434 = vmatprep.subr.bf16.mxu0 %v3180
    %3435 = vmatpush1.bf16.msra.mxu0 %v3179
    %3436 = vmatprep.subr.bf16.mxu0 %v3187
    %3437 = vmatpush1.bf16.msra.mxu0 %v3186
    %3438 = vmatprep.subr.bf16.mxu0 %v3194
    %3439 = vmatpush1.bf16.msra.mxu0 %v3193
    %3440 = vmatprep.subr.bf16.mxu0 %v3201
    %3441 = vmatpush1.bf16.msra.mxu0 %v3200
    %3442 = vmatprep.subr.bf16.mxu0 %v3208
    %3443 = vmatpush1.bf16.msra.mxu0 %v3207
    %3444 = vmatprep.subr.bf16.mxu0 %v3215
    %3445 = vmatpush1.bf16.msra.mxu0 %v3214
    %3446 = vmatprep.subr.bf16.mxu0 0
    %3447 = vmatpush1.bf16.msra.mxu0 0
    %3448 = vmatprep.subr.bf16.mxu0 0
    %3449 = vmatpush1.bf16.msra.mxu0 0
    %3450 = vmatprep.subr.bf16.mxu0 0
    %3451 = vmatpush1.bf16.msra.mxu0 0
    %3452 = vmatprep.subr.bf16.mxu0 0
    %3453 = vmatpush1.bf16.msra.mxu0 0
    %3454 = vmatprep.subr.bf16.mxu0 0
    %3455 = vmatpush1.bf16.msra.mxu0 0
    %3456 = vmatprep.subr.bf16.mxu0 0
    %3457 = vmatpush1.bf16.msra.mxu0 0
    %3458 = vmatprep.subr.bf16.mxu0 0
    %3459 = vmatpush1.bf16.msra.mxu0 0
    %3460 = vmatprep.subr.bf16.mxu0 0
    %3461 = vmatpush1.bf16.msra.mxu0 0
    %3462 = vmatprep.mubr.bf16.mxu0 0
    %3463 = vmatmul.mubr.bf16.gmra.mrb[0].mxu0 %v2291
    %v3464 = vpop.f32.mrb[0].mxu0
    %v3465 = vadd.f32 %v3424, %v3464
    %v3466 = vpop.f32.mrb[0].mxu0
    %v3467 = vadd.f32 %v3426, %v3466
    %v3468 = vpop.f32.mrb[0].mxu0
    %v3469 = vpop.f32.mrb[0].mxu0
    %3470 = vdwg.mxu0
    %3471 = vmatprep.subr.bf16.mxu0 %v3056
    %3472 = vmatpush1.bf16.msra.mxu0 %v3055
    %3473 = vmatprep.subr.bf16.mxu0 %v3063
    %3474 = vmatpush1.bf16.msra.mxu0 %v3062
    %3475 = vmatprep.subr.bf16.mxu0 %v3070
    %3476 = vmatpush1.bf16.msra.mxu0 %v3069
    %3477 = vmatprep.subr.bf16.mxu0 %v3077
    %3478 = vmatpush1.bf16.msra.mxu0 %v3076
    %3479 = vmatprep.subr.bf16.mxu0 %v3084
    %3480 = vmatpush1.bf16.msra.mxu0 %v3083
    %3481 = vmatprep.subr.bf16.mxu0 %v3091
    %3482 = vmatpush1.bf16.msra.mxu0 %v3090
    %3483 = vmatprep.subr.bf16.mxu0 %v3098
    %3484 = vmatpush1.bf16.msra.mxu0 %v3097
    %3485 = vmatprep.subr.bf16.mxu0 %v3105
    %3486 = vmatpush1.bf16.msra.mxu0 %v3104
    %3487 = vmatprep.subr.bf16.mxu0 %v3112
    %3488 = vmatpush1.bf16.msra.mxu0 %v3111
    %3489 = vmatprep.subr.bf16.mxu0 %v3119
    %3490 = vmatpush1.bf16.msra.mxu0 %v3118
    %3491 = vmatprep.subr.bf16.mxu0 %v3126
    %3492 = vmatpush1.bf16.msra.mxu0 %v3125
    %3493 = vmatprep.subr.bf16.mxu0 %v3133
    %3494 = vmatpush1.bf16.msra.mxu0 %v3132
    %3495 = vmatprep.subr.bf16.mxu0 %v3140
    %3496 = vmatpush1.bf16.msra.mxu0 %v3139
    %3497 = vmatprep.subr.bf16.mxu0 %v3147
    %3498 = vmatpush1.bf16.msra.mxu0 %v3146
    %3499 = vmatprep.subr.bf16.mxu0 %v3154
    %3500 = vmatpush1.bf16.msra.mxu0 %v3153
    %3501 = vmatprep.subr.bf16.mxu0 %v3161
    %3502 = vmatpush1.bf16.msra.mxu0 %v3160
    %3503 = vmatprep.mubr.bf16.mxu0 %v2290
    %3504 = vmatmul.mubr.bf16.gmra.mrb[0].mxu0 %v2289
    %v3505 = vpop.f32.mrb[0].mxu0
    %v3506 = vadd.f32 %v2501, %v3505
    %v3507 = vpop.f32.mrb[0].mxu0
    %v3508 = vadd.f32 %v2505, %v3507
    %v3509 = vpop.f32.mrb[0].mxu0
    %v3510 = vpop.f32.mrb[0].mxu0
    %3511 = vdwg.mxu0
    %3512 = vmatprep.subr.bf16.mxu0 %v3168
    %3513 = vmatpush1.bf16.msra.mxu0 %v3167
    %3514 = vmatprep.subr.bf16.mxu0 %v3175
    %3515 = vmatpush1.bf16.msra.mxu0 %v3174
    %3516 = vmatprep.subr.bf16.mxu0 %v3182
    %3517 = vmatpush1.bf16.msra.mxu0 %v3181
    %3518 = vmatprep.subr.bf16.mxu0 %v3189
    %3519 = vmatpush1.bf16.msra.mxu0 %v3188
    %3520 = vmatprep.subr.bf16.mxu0 %v3196
    %3521 = vmatpush1.bf16.msra.mxu0 %v3195
    %3522 = vmatprep.subr.bf16.mxu0 %v3203
    %3523 = vmatpush1.bf16.msra.mxu0 %v3202
    %3524 = vmatprep.subr.bf16.mxu0 %v3210
    %3525 = vmatpush1.bf16.msra.mxu0 %v3209
    %3526 = vmatprep.subr.bf16.mxu0 %v3217
    %3527 = vmatpush1.bf16.msra.mxu0 %v3216
    %3528 = vmatprep.subr.bf16.mxu0 0
    %3529 = vmatpush1.bf16.msra.mxu0 0
    %3530 = vmatprep.subr.bf16.mxu0 0
    %3531 = vmatpush1.bf16.msra.mxu0 0
    %3532 = vmatprep.subr.bf16.mxu0 0
    %3533 = vmatpush1.bf16.msra.mxu0 0
    %3534 = vmatprep.subr.bf16.mxu0 0
    %3535 = vmatpush1.bf16.msra.mxu0 0
    %3536 = vmatprep.subr.bf16.mxu0 0
    %3537 = vmatpush1.bf16.msra.mxu0 0
    %3538 = vmatprep.subr.bf16.mxu0 0
    %3539 = vmatpush1.bf16.msra.mxu0 0
    %3540 = vmatprep.subr.bf16.mxu0 0
    %3541 = vmatpush1.bf16.msra.mxu0 0
    %3542 = vmatprep.subr.bf16.mxu0 0
    %3543 = vmatpush1.bf16.msra.mxu0 0
    %3544 = vmatprep.mubr.bf16.mxu0 0
    %3545 = vmatmul.mubr.bf16.gmra.mrb[0].mxu0 %v2291
    %v3546 = vpop.f32.mrb[0].mxu0
    %v3547 = vadd.f32 %v3506, %v3546
    %v3548 = vpop.f32.mrb[0].mxu0
    %v3549 = vadd.f32 %v3508, %v3548
    %v3550 = vpop.f32.mrb[0].mxu0
    %v3551 = vpop.f32.mrb[0].mxu0
    %3552 = vdwg.mxu0
    %3553 = vmatprep.subr.bf16.mxu0 %v3058
    %3554 = vmatpush1.bf16.msra.mxu0 %v3057
    %3555 = vmatprep.subr.bf16.mxu0 %v3065
    %3556 = vmatpush1.bf16.msra.mxu0 %v3064
    %3557 = vmatprep.subr.bf16.mxu0 %v3072
    %3558 = vmatpush1.bf16.msra.mxu0 %v3071
    %3559 = vmatprep.subr.bf16.mxu0 %v3079
    %3560 = vmatpush1.bf16.msra.mxu0 %v3078
    %3561 = vmatprep.subr.bf16.mxu0 %v3086
    %3562 = vmatpush1.bf16.msra.mxu0 %v3085
    %3563 = vmatprep.subr.bf16.mxu0 %v3093
    %3564 = vmatpush1.bf16.msra.mxu0 %v3092
    %3565 = vmatprep.subr.bf16.mxu0 %v3100
    %3566 = vmatpush1.bf16.msra.mxu0 %v3099
    %3567 = vmatprep.subr.bf16.mxu0 %v3107
    %3568 = vmatpush1.bf16.msra.mxu0 %v3106
    %3569 = vmatprep.subr.bf16.mxu0 %v3114
    %3570 = vmatpush1.bf16.msra.mxu0 %v3113
    %3571 = vmatprep.subr.bf16.mxu0 %v3121
    %3572 = vmatpush1.bf16.msra.mxu0 %v3120
    %3573 = vmatprep.subr.bf16.mxu0 %v3128
    %3574 = vmatpush1.bf16.msra.mxu0 %v3127
    %3575 = vmatprep.subr.bf16.mxu0 %v3135
    %3576 = vmatpush1.bf16.msra.mxu0 %v3134
    %3577 = vmatprep.subr.bf16.mxu0 %v3142
    %3578 = vmatpush1.bf16.msra.mxu0 %v3141
    %3579 = vmatprep.subr.bf16.mxu0 %v3149
    %3580 = vmatpush1.bf16.msra.mxu0 %v3148
    %3581 = vmatprep.subr.bf16.mxu0 %v3156
    %3582 = vmatpush1.bf16.msra.mxu0 %v3155
    %3583 = vmatprep.subr.bf16.mxu0 %v3163
    %3584 = vmatpush1.bf16.msra.mxu0 %v3162
    %3585 = vmatprep.mubr.bf16.mxu0 %v2290
    %3586 = vmatmul.mubr.bf16.gmra.mrb[0].mxu0 %v2289
    %v3587 = vpop.f32.mrb[0].mxu0
    %v3588 = vadd.f32 %v2509, %v3587
    %v3589 = vpop.f32.mrb[0].mxu0
    %v3590 = vadd.f32 %v2513, %v3589
    %v3591 = vpop.f32.mrb[0].mxu0
    %v3592 = vpop.f32.mrb[0].mxu0
    %3593 = vdwg.mxu0
    %3594 = vmatprep.subr.bf16.mxu0 %v3170
    %3595 = vmatpush1.bf16.msra.mxu0 %v3169
    %3596 = vmatprep.subr.bf16.mxu0 %v3177
    %3597 = vmatpush1.bf16.msra.mxu0 %v3176
    %3598 = vmatprep.subr.bf16.mxu0 %v3184
    %3599 = vmatpush1.bf16.msra.mxu0 %v3183
    %3600 = vmatprep.subr.bf16.mxu0 %v3191
    %3601 = vmatpush1.bf16.msra.mxu0 %v3190
    %3602 = vmatprep.subr.bf16.mxu0 %v3198
    %3603 = vmatpush1.bf16.msra.mxu0 %v3197
    %3604 = vmatprep.subr.bf16.mxu0 %v3205
    %3605 = vmatpush1.bf16.msra.mxu0 %v3204
    %3606 = vmatprep.subr.bf16.mxu0 %v3212
    %3607 = vmatpush1.bf16.msra.mxu0 %v3211
    %3608 = vmatprep.subr.bf16.mxu0 %v3219
    %3609 = vmatpush1.bf16.msra.mxu0 %v3218
    %3610 = vmatprep.subr.bf16.mxu0 0
    %3611 = vmatpush1.bf16.msra.mxu0 0
    %3612 = vmatprep.subr.bf16.mxu0 0
    %3613 = vmatpush1.bf16.msra.mxu0 0
    %3614 = vmatprep.subr.bf16.mxu0 0
    %3615 = vmatpush1.bf16.msra.mxu0 0
    %3616 = vmatprep.subr.bf16.mxu0 0
    %3617 = vmatpush1.bf16.msra.mxu0 0
    %3618 = vmatprep.subr.bf16.mxu0 0
    %3619 = vmatpush1.bf16.msra.mxu0 0
    %3620 = vmatprep.subr.bf16.mxu0 0
    %3621 = vmatpush1.bf16.msra.mxu0 0
    %3622 = vmatprep.subr.bf16.mxu0 0
    %3623 = vmatpush1.bf16.msra.mxu0 0
    %3624 = vmatprep.subr.bf16.mxu0 0
    %3625 = vmatpush1.bf16.msra.mxu0 0
    %3626 = vmatprep.mubr.bf16.mxu0 0
    %3627 = vmatmul.mubr.bf16.gmra.mrb[0].mxu0 %v2291
    %v3628 = vpop.f32.mrb[0].mxu0
    %v3629 = vadd.f32 %v3588, %v3628
    %v3630 = vpop.f32.mrb[0].mxu0
    %v3631 = vadd.f32 %v3590, %v3630
    %v3632 = vpop.f32.mrb[0].mxu0
    %v3633 = vpop.f32.mrb[0].mxu0
    %3634 = vdwg.mxu0
    %3635 = vmatprep.subr.bf16.mxu0 0
    %3636 = vmatpush1.bf16.msra.mxu0 %v3059
    %3637 = vmatprep.subr.bf16.mxu0 0
    %3638 = vmatpush1.bf16.msra.mxu0 %v3066
    %3639 = vmatprep.subr.bf16.mxu0 0
    %3640 = vmatpush1.bf16.msra.mxu0 %v3073
    %3641 = vmatprep.subr.bf16.mxu0 0
    %3642 = vmatpush1.bf16.msra.mxu0 %v3080
    %3643 = vmatprep.subr.bf16.mxu0 0
    %3644 = vmatpush1.bf16.msra.mxu0 %v3087
    %3645 = vmatprep.subr.bf16.mxu0 0
    %3646 = vmatpush1.bf16.msra.mxu0 %v3094
    %3647 = vmatprep.subr.bf16.mxu0 0
    %3648 = vmatpush1.bf16.msra.mxu0 %v3101
    %3649 = vmatprep.subr.bf16.mxu0 0
    %3650 = vmatpush1.bf16.msra.mxu0 %v3108
    %3651 = vmatprep.subr.bf16.mxu0 0
    %3652 = vmatpush1.bf16.msra.mxu0 %v3115
    %3653 = vmatprep.subr.bf16.mxu0 0
    %3654 = vmatpush1.bf16.msra.mxu0 %v3122
    %3655 = vmatprep.subr.bf16.mxu0 0
    %3656 = vmatpush1.bf16.msra.mxu0 %v3129
    %3657 = vmatprep.subr.bf16.mxu0 0
    %3658 = vmatpush1.bf16.msra.mxu0 %v3136
    %3659 = vmatprep.subr.bf16.mxu0 0
    %3660 = vmatpush1.bf16.msra.mxu0 %v3143
    %3661 = vmatprep.subr.bf16.mxu0 0
    %3662 = vmatpush1.bf16.msra.mxu0 %v3150
    %3663 = vmatprep.subr.bf16.mxu0 0
    %3664 = vmatpush1.bf16.msra.mxu0 %v3157
    %3665 = vmatprep.subr.bf16.mxu0 0
    %3666 = vmatpush1.bf16.msra.mxu0 %v3164
    %3667 = vmatprep.mubr.bf16.mxu0 %v2290
    %3668 = vmatmul.mubr.bf16.gmra.mrb[0].mxu0 %v2289
    %v3669 = vpop.f32.mrb[0].mxu0
    %v3670 = vadd.f32 %v2517, %v3669
    %v3671 = vpop.f32.mrb[0].mxu0
    %v3672 = vpop.f32.mrb[0].mxu0
    %v3673 = vpop.f32.mrb[0].mxu0
    %3674 = vdwg.mxu0
    %3675 = vmatprep.subr.bf16.mxu0 0
    %3676 = vmatpush1.bf16.msra.mxu0 %v3171
    %3677 = vmatprep.subr.bf16.mxu0 0
    %3678 = vmatpush1.bf16.msra.mxu0 %v3178
    %3679 = vmatprep.subr.bf16.mxu0 0
    %3680 = vmatpush1.bf16.msra.mxu0 %v3185
    %3681 = vmatprep.subr.bf16.mxu0 0
    %3682 = vmatpush1.bf16.msra.mxu0 %v3192
    %3683 = vmatprep.subr.bf16.mxu0 0
    %3684 = vmatpush1.bf16.msra.mxu0 %v3199
    %3685 = vmatprep.subr.bf16.mxu0 0
    %3686 = vmatpush1.bf16.msra.mxu0 %v3206
    %3687 = vmatprep.subr.bf16.mxu0 0
    %3688 = vmatpush1.bf16.msra.mxu0 %v3213
    %3689 = vmatprep.subr.bf16.mxu0 0
    %3690 = vmatpush1.bf16.msra.mxu0 %v3220
    %3691 = vmatprep.subr.bf16.mxu0 0
    %3692 = vmatpush1.bf16.msra.mxu0 0
    %3693 = vmatprep.subr.bf16.mxu0 0
    %3694 = vmatpush1.bf16.msra.mxu0 0
    %3695 = vmatprep.subr.bf16.mxu0 0
    %3696 = vmatpush1.bf16.msra.mxu0 0
    %3697 = vmatprep.subr.bf16.mxu0 0
    %3698 = vmatpush1.bf16.msra.mxu0 0
    %3699 = vmatprep.subr.bf16.mxu0 0
    %3700 = vmatpush1.bf16.msra.mxu0 0
    %3701 = vmatprep.subr.bf16.mxu0 0
    %3702 = vmatpush1.bf16.msra.mxu0 0
    %3703 = vmatprep.subr.bf16.mxu0 0
    %3704 = vmatpush1.bf16.msra.mxu0 0
    %3705 = vmatprep.subr.bf16.mxu0 0
    %3706 = vmatpush1.bf16.msra.mxu0 0
    %3707 = vmatprep.mubr.bf16.mxu0 0
    %3708 = vmatmul.mubr.bf16.gmra.mrb[0].mxu0 %v2291
    %v3709 = vpop.f32.mrb[0].mxu0
    %v3710 = vadd.f32 %v3670, %v3709
    %v3711 = vpop.f32.mrb[0].mxu0
    %v3712 = vpop.f32.mrb[0].mxu0
    %v3713 = vpop.f32.mrb[0].mxu0
    %3714 = vdwg.mxu0
    %v3715 = vadd.f32 %v3465, %v3467
    %v3716 = vadd.f32 %v3715, %v3547
    %v3717 = vadd.f32 %v3716, %v3549
    %v3718 = vadd.f32 %v3717, %v3629
    %v3719 = vadd.f32 %v3718, %v3631
    %v3720 = vadd.f32 %v3719, %v3710
    %3721 = vadd.xlane.f32.xlu0 %v3720
    %v3722 = vpop.xlane.xlu0 %3721
    %v3723 = vmul.f32 %v3722, 0.0011574074
    %v3724 = vsub.f32 %v3465, %v3723
    %v3725 = vsub.f32 %v3467, %v3723
    %v3726 = vsub.f32 %v3547, %v3723
    %v3727 = vsub.f32 %v3549, %v3723
    %v3728 = vsub.f32 %v3629, %v3723
    %v3729 = vsub.f32 %v3631, %v3723
    %v3730 = vsub.f32 %v3710, %v3723
    %v3731 = vadd.s32 %v1590, 384
    %v3732 = vadd.s32 %v1590, 512
    %v3733 = vadd.s32 %v1590, 640
    %v3734 = vadd.s32 %v1590, 768
    %vm3735 = vcmp.lt.s32.totalorder %v1590, 864
    %vm3736 = vcmp.lt.s32.totalorder %v1591, 864
    %vm3737 = vcmp.lt.s32.totalorder %v1592, 864
    %vm3738 = vcmp.lt.s32.totalorder %v3731, 864
    %vm3739 = vcmp.lt.s32.totalorder %v3732, 864
    %vm3740 = vcmp.lt.s32.totalorder %v3733, 864
    %vm3741 = vcmp.lt.s32.totalorder %v3734, 864
    %v3742 = vsel %vm3735, 1, 0
    %v3743 = vsel %vm3736, 1, 0
    %v3744 = vsel %vm3737, 1, 0
    %v3745 = vsel %vm3738, 1, 0
    %v3746 = vsel %vm3739, 1, 0
    %v3747 = vsel %vm3740, 1, 0
    %v3748 = vsel %vm3741, 1, 0
    %vm3749 = vcmp.eq.s32.totalorder %v3742, 1
    %vm3750 = vcmp.eq.s32.totalorder %v3743, 1
    %vm3751 = vcmp.eq.s32.totalorder %v3744, 1
    %vm3752 = vcmp.eq.s32.totalorder %v3745, 1
    %vm3753 = vcmp.eq.s32.totalorder %v3746, 1
    %vm3754 = vcmp.eq.s32.totalorder %v3747, 1
    %vm3755 = vcmp.eq.s32.totalorder %v3748, 1
    %v3756 = vsel %vm3749, %v3724, 0.0
    %v3757 = vsel %vm3750, %v3725, 0.0
    %v3758 = vsel %vm3751, %v3726, 0.0
    %v3759 = vsel %vm3752, %v3727, 0.0
    %v3760 = vsel %vm3753, %v3728, 0.0
    %v3761 = vsel %vm3754, %v3729, 0.0
    %v3762 = vsel %vm3755, %v3730, 0.0
    %v3763 = vmul.f32 %v3756, %v3756
    %v3764 = vmul.f32 %v3757, %v3757
    %v3765 = vmul.f32 %v3758, %v3758
    %v3766 = vmul.f32 %v3759, %v3759
    %v3767 = vmul.f32 %v3760, %v3760
    %v3768 = vmul.f32 %v3761, %v3761
    %v3769 = vmul.f32 %v3762, %v3762
    %v3770 = vadd.f32 %v3763, %v3764
    %v3771 = vadd.f32 %v3770, %v3765
    %v3772 = vadd.f32 %v3771, %v3766
    %v3773 = vadd.f32 %v3772, %v3767
    %v3774 = vadd.f32 %v3773, %v3768
    %v3775 = vadd.f32 %v3774, %v3769
    %3776 = vadd.xlane.f32.xlu0 %v3775
    %v3777 = vpop.xlane.xlu0 %3776
    %v3778 = vmul.f32 %v3777, 0.0011574074
    %v3779 = vadd.f32 %v3778, 1e-05
    %v3780 = vrsqrt.pop %v3779
    %v3781 = vmul.f32 %v3724, %v3780
    %v3782 = vmul.f32 %v3725, %v3780
    %v3783 = vmul.f32 %v3726, %v3780
    %v3784 = vmul.f32 %v3727, %v3780
    %v3785 = vmul.f32 %v3728, %v3780
    %v3786 = vmul.f32 %v3729, %v3780
    %v3787 = vmul.f32 %v3730, %v3780
    %v3789 = vlaneseq
    %v3790 = vshrl.u32 %v3789, 7
    %v3791 = vsub.s32 0, %v3790
    %v3792 = vrot.slane %v2486, %v3791
    %v3793 = vlaneseq
    %v3794 = vshrl.u32 %v3793, 7
    %v3795 = vsub.s32 1, %v3794
    %v3796 = vrot.slane %v2486, %v3795
    %v3797 = vlaneseq
    %v3798 = vshrl.u32 %v3797, 7
    %v3799 = vsub.s32 2, %v3798
    %v3800 = vrot.slane %v2486, %v3799
    %v3801 = vlaneseq
    %v3802 = vshrl.u32 %v3801, 7
    %v3803 = vsub.s32 3, %v3802
    %v3804 = vrot.slane %v2486, %v3803
    %v3805 = vlaneseq
    %v3806 = vshrl.u32 %v3805, 7
    %v3807 = vsub.s32 4, %v3806
    %v3808 = vrot.slane %v2486, %v3807
    %v3809 = vlaneseq
    %v3810 = vshrl.u32 %v3809, 7
    %v3811 = vsub.s32 5, %v3810
    %v3812 = vrot.slane %v2486, %v3811
    %v3813 = vlaneseq
    %v3814 = vshrl.u32 %v3813, 7
    %v3815 = vsub.s32 6, %v3814
    %v3816 = vrot.slane %v2486, %v3815
    %v3824 = vmul.f32 %v3781, %v3792
    %v3825 = vmul.f32 %v3782, %v3796
    %v3826 = vmul.f32 %v3783, %v3800
    %v3827 = vmul.f32 %v3784, %v3804
    %v3828 = vmul.f32 %v3785, %v3808
    %v3829 = vmul.f32 %v3786, %v3812
    %v3830 = vmul.f32 %v3787, %v3816
    %v3832 = vlaneseq
    %v3833 = vshrl.u32 %v3832, 7
    %v3834 = vsub.s32 0, %v3833
    %v3835 = vrot.slane %v2488, %v3834
    %v3836 = vlaneseq
    %v3837 = vshrl.u32 %v3836, 7
    %v3838 = vsub.s32 1, %v3837
    %v3839 = vrot.slane %v2488, %v3838
    %v3840 = vlaneseq
    %v3841 = vshrl.u32 %v3840, 7
    %v3842 = vsub.s32 2, %v3841
    %v3843 = vrot.slane %v2488, %v3842
    %v3844 = vlaneseq
    %v3845 = vshrl.u32 %v3844, 7
    %v3846 = vsub.s32 3, %v3845
    %v3847 = vrot.slane %v2488, %v3846
    %v3848 = vlaneseq
    %v3849 = vshrl.u32 %v3848, 7
    %v3850 = vsub.s32 4, %v3849
    %v3851 = vrot.slane %v2488, %v3850
    %v3852 = vlaneseq
    %v3853 = vshrl.u32 %v3852, 7
    %v3854 = vsub.s32 5, %v3853
    %v3855 = vrot.slane %v2488, %v3854
    %v3856 = vlaneseq
    %v3857 = vshrl.u32 %v3856, 7
    %v3858 = vsub.s32 6, %v3857
    %v3859 = vrot.slane %v2488, %v3858
    %v3867 = vadd.f32 %v3824, %v3835
    %v3868 = vadd.f32 %v3825, %v3839
    %v3869 = vadd.f32 %v3826, %v3843
    %v3870 = vadd.f32 %v3827, %v3847
    %v3871 = vadd.f32 %v3828, %v3851
    %v3872 = vadd.f32 %v3829, %v3855
    %v3873 = vadd.f32 %v3830, %v3859
    %v3874 = vpack.c.bf16 %v3867, %v3867
    %v3875 = vpack.c.bf16 %v3868, %v3868
    %v3876 = vpack.c.bf16 %v3869, %v3869
    %v3877 = vpack.c.bf16 %v3870, %v3870
    %v3878 = vpack.c.bf16 %v3871, %v3871
    %v3879 = vpack.c.bf16 %v3872, %v3872
    %v3880 = vpack.c.bf16 %v3873, %v3873
    %v3888 = vunpack.c.l.b16 %v3874
    %v3889 = vunpack.c.l.b16 %v3875
    %v3890 = vunpack.c.l.b16 %v3876
    %v3891 = vunpack.c.l.b16 %v3877
    %v3892 = vunpack.c.l.b16 %v3878
    %v3893 = vunpack.c.l.b16 %v3879
    %v3894 = vunpack.c.l.b16 %v3880
    %v3895 = vpack.c.b16 %v3889, %v3888
    %v3896 = vpack.c.b16 %v3891, %v3890
    %v3897 = vpack.c.b16 %v3893, %v3892
    %v3898 = vpack.c.b16 %v3894, %v3894
    %3903 = vst [vmem:[#allocation17] sm:$0xff] %v3895
    %3904 = vst [vmem:[#allocation17 + $0x8] sm:$0xff] %v3896
    %3905 = vst [vmem:[#allocation17 + $0x10] sm:$0xff] %v3897
    %3906 = vst [vmem:[#allocation17 + $0x18] sm:$0xf] %v3898
    // Predicated region
    $region70: #{_forward_impl.1} parent=1 // pred_check
      _
    $region71: #{_forward_impl.1} parent=1 // pred_check_branch
      %3908 = sbr.rel (0) target = $region73
    $region72: #{_forward_impl.1} parent=1 // pred_region
      %s3910 = ssub.s32 64, 64
      %3911 = vsyncadd [#allocation4], %s3910
      %s3913 = sshll.u32 [#allocation16], 4
      %s3914 = int_to_ptr.vmem [resolvable:$true] %s3913
      %3916 = dma.vmem_to_hbm [thread:$0]  %s3914, 64, %s9, [#allocation4]
    $region73: #{_forward_impl.1} parent=1 // pred_fallthru
      _
    // Predicated region
    $region74: #{_forward_impl.1} parent=1 // pred_check
      _
    $region75: #{_forward_impl.1} parent=1 // pred_check_branch
      %3918 = sbr.rel (0) target = $region77
    $region76: #{_forward_impl.1} parent=1 // pred_region
      %s3920 = ssub.s32 448, 448
      %3921 = vsyncadd [#allocation18], %s3920
      %s3923 = sshll.u32 [#allocation17], 4
      %s3924 = int_to_ptr.vmem [resolvable:$true] %s3923
      %3926 = dma.vmem_to_hbm [thread:$0]  %s3924, 448, %s10, [#allocation18]
    $region77: #{_forward_impl.1} parent=1 // pred_fallthru
      _
    // Predicated region
    $region78: #{_forward_impl.1} parent=1 // pred_check
      _
    $region79: #{_forward_impl.1} parent=1 // pred_check_branch
      %3928 = sbr.rel (0) target = $region81
    $region80: #{_forward_impl.1} parent=1 // pred_region
      %3929 = dma.done [#allocation4], 64
    $region81: #{_forward_impl.1} parent=1 // pred_fallthru
      _
    // Predicated region
    $region82: #{_forward_impl.1} parent=1 // pred_check
      _
    $region83: #{_forward_impl.1} parent=1 // pred_check_branch
      %3931 = sbr.rel (0) target = $region85
    $region84: #{_forward_impl.1} parent=1 // pred_region
      %3932 = dma.done [#allocation18], 448
    $region85: #{_forward_impl.1} parent=1 // pred_fallthru
      _
    %3933 = vsyncpa [#allocation3], 1
    %3934 = vsyncpa [#allocation6], 1
    %3935 = vsyncpa [#allocation9], 1
    %3936 = vsyncpa [#allocation12], 1
    %3937 = vsyncpa [#allocation15], 1
    %3938 = vsyncpa [#allocation4], 1
    %3939 = vsyncpa [#allocation18], 1

</llo_original>
